<compile_context>
chip_gen: v7x
topology: tpu7x:2x2x1
jax: 0.10.0
libtpu: 0.0.40
codegen_flags: <defaults>
</compile_context>

<pallas_src>
import functools

import jax
import jax.numpy as jnp
from jax.experimental import pallas as pl
from jax.experimental.pallas import tpu as pltpu


# ----------------------------------------------------------------------------
# Pallas kernel: fused 3x3 conv (stride 1, pad 1) + folded-BN bias + ReLU.
# VPU formulation: out[co,h,w] = b[co] + sum_{ci,dy,dx} w * x[ci,h+dy,w+dx]
# ----------------------------------------------------------------------------
def _conv3x3_bias_act_kernel(w_ref, b_ref, x_ref, o_ref, *, apply_relu):
    # w_ref: SMEM (Cout*Cin*9,) f32, index = ((co*Cin + ci)*3 + dy)*3 + dx
    # b_ref: SMEM (Cout,) f32 (BN already folded)
    # x_ref: VMEM (1, 1, Cin, TH+2, W+2)   halo-padded input row tile
    # o_ref: VMEM (1, Cout, 1, TH, W)      output row tile
    _, _, cin, _, _ = x_ref.shape
    _, cout, _, th, wout = o_ref.shape

    # Gather the 9 shifted taps per input channel once (shared by all cout).
    taps = []
    for ci in range(cin):
        plane = x_ref[0, 0, ci, :, :].astype(jnp.float32)      # (TH+2, W+2)
        for dy in range(3):
            rows = plane[dy:dy + th, :]                         # (TH, W+2)
            for dx in range(3):
                taps.append(rows[:, dx:dx + wout])              # (TH, W)

    for co in range(cout):
        acc = jnp.full((th, wout), b_ref[co], dtype=jnp.float32)
        base = co * cin * 9
        for t in range(cin * 9):
            acc = acc + w_ref[base + t] * taps[t]
        if apply_relu:
            acc = jnp.maximum(acc, 0.0)
        o_ref[0, co, 0, :, :] = acc.astype(o_ref.dtype)


def _pick_tile_h(H, W, cin, cout, in_bytes, out_bytes, budget=8 * 1024 * 1024):
    # Double-buffered input block + output block per row; keep well under the
    # v7x scoped-VMEM budget (and far under v5e/v6e's).
    per_row = 2 * cin * (W + 2) * in_bytes + 2 * cout * W * out_bytes
    th = budget // max(per_row, 1)
    return int(max(1, min(H, th)))


def conv3x3_pallas(x_nchw, weight_oihw, bias, *, relu=False, bn=None,
                   out_dtype=jnp.float32, tile_h=None):
    """3x3 conv, stride 1, pad 1 (PyTorch Conv2d semantics), NCHW in/out.

    weight_oihw: (Cout, Cin, 3, 3); bias: (Cout,)
    bn: optional (gamma, beta, running_mean, running_var, eps) folded into w/b.
    """
    B, Cin, H, W = x_nchw.shape
    Cout = weight_oihw.shape[0]
    assert weight_oihw.shape == (Cout, Cin, 3, 3)

    w = weight_oihw.astype(jnp.float32)
    b = bias.astype(jnp.float32)
    if bn is not None:
        gamma, beta, mean, var, eps = bn
        s = gamma * jax.lax.rsqrt(var + eps)
        w = w * s[:, None, None, None]
        b = (b - mean) * s + beta
    w_flat = w.reshape(-1)                       # (Cout*Cin*9,)

    in_itemsize = jnp.dtype(x_nchw.dtype).itemsize
    out_itemsize = jnp.dtype(out_dtype).itemsize
    if tile_h is None:
        tile_h = _pick_tile_h(H, W, Cin, Cout, in_itemsize, out_itemsize)
    th = int(min(tile_h, H))
    n = -(-H // th)                              # number of row tiles
    Hp = n * th

    # Spatial halo pad + host-side halo-duplicated row tiles (one fused pass).
    xp = jnp.pad(x_nchw, ((0, 0), (0, 0), (1, 1 + Hp - H), (1, 1)))
    x_tiles = jnp.stack([xp[:, :, i * th:i * th + th + 2, :] for i in range(n)],
                        axis=1)                  # (B, n, Cin, TH+2, W+2)

    kernel = functools.partial(_conv3x3_bias_act_kernel, apply_relu=relu)

    flops = 2 * B * Hp * W * 9 * Cin * Cout      # real FLOPs, no padding
    bytes_accessed = (x_tiles.size * in_itemsize + w_flat.size * 4 + b.size * 4
                      + B * Cout * Hp * W * out_itemsize)

    out = pl.pallas_call(
        kernel,
        out_shape=jax.ShapeDtypeStruct((B, Cout, n, th, W), out_dtype),
        grid=(B, n),
        in_specs=[
            pl.BlockSpec(memory_space=pltpu.MemorySpace.SMEM),   # weights
            pl.BlockSpec(memory_space=pltpu.MemorySpace.SMEM),   # bias
            pl.BlockSpec((1, 1, Cin, th + 2, W + 2),
                         lambda bi, ti: (bi, ti, 0, 0, 0)),
        ],
        out_specs=pl.BlockSpec((1, Cout, 1, th, W),
                               lambda bi, ti: (bi, 0, ti, 0, 0)),
        compiler_params=pltpu.CompilerParams(
            dimension_semantics=("parallel", "parallel"),
            vmem_limit_bytes=32 * 1024 * 1024),
        cost_estimate=pl.CostEstimate(flops=flops, transcendentals=0,
                                      bytes_accessed=bytes_accessed),
    )(w_flat, b, x_tiles)

    out = out.reshape(B, Cout, Hp, W)            # (n, th) are adjacent -> cheap
    if Hp != H:
        out = out[:, :, :H, :]
    return out


def _center_tap_3x3(w1x1):
    """Embed a (Cout, Cin, 1, 1) conv as a 3x3 conv with only the centre tap."""
    cout, cin = w1x1.shape[0], w1x1.shape[1]
    w3 = jnp.zeros((cout, cin, 3, 3), w1x1.dtype)
    return w3.at[:, :, 1, 1].set(w1x1[:, :, 0, 0])


# ----------------------------------------------------------------------------
# Element-wise colour-space glue (NCHW) — mirrors the PyTorch helpers exactly.
# ----------------------------------------------------------------------------
def rgb_to_lab(rgb255):
    rgb = rgb255 / 255.0
    r, g, b = rgb[:, 0], rgb[:, 1], rgb[:, 2]

    def lin(c):
        return jnp.where(c <= 0.04045, c / 12.92, ((c + 0.055) / 1.055) ** 2.4)

    r, g, b = lin(r), lin(g), lin(b)
    x = r * 0.4124564 + g * 0.3575761 + b * 0.1804375
    y = r * 0.2126729 + g * 0.7151522 + b * 0.072175
    z = r * 0.0193339 + g * 0.119192 + b * 0.9503041
    x = x / 0.95047
    z = z / 1.08883
    cbrt = lambda v: v ** (1.0 / 3.0)
    l = jnp.where(y > 0.008856, 116.0 * cbrt(y) - 16.0, 903.3 * y)
    a = 500.0 * jnp.where(x > 0.008856, cbrt(x) - cbrt(y), 0.0)
    bb = 200.0 * jnp.where(z > 0.008856, cbrt(y) - cbrt(z), 0.0)
    return jnp.stack([l, a, bb], axis=1)


def rgb_to_hsv(rgb255):
    rgb = rgb255 / 255.0
    r, g, b = rgb[:, 0], rgb[:, 1], rgb[:, 2]
    cmax = jnp.max(rgb, axis=1)
    cmin = jnp.min(rgb, axis=1)
    delta = cmax - cmin
    nz = delta != 0
    safe_d = jnp.where(nz, delta, 1.0)
    h = jnp.zeros_like(cmax)
    h = jnp.where((cmax == r) & nz, (g - b) / safe_d, h)
    h = jnp.where((cmax == g) & nz, (b - r) / safe_d + 2.0, h)
    h = jnp.where((cmax == b) & nz, (r - g) / safe_d + 4.0, h)
    h = jnp.mod(h / 6.0, 1.0)
    v = cmax
    safe_c = jnp.where(cmax != 0, cmax, 1.0)
    s = jnp.where(cmax != 0, delta / safe_c, 0.0)
    return jnp.stack([h, s, v], axis=1)


def hsv_to_rgb(hsv):
    h, s, v = hsv[:, 0], hsv[:, 1], hsv[:, 2]
    hi = jnp.mod((h * 6.0).astype(jnp.int32), 6)
    f = h * 6.0 - hi.astype(jnp.float32)
    p = v * (1.0 - s)
    q = v * (1.0 - f * s)
    t = v * (1.0 - (1.0 - f) * s)
    z = jnp.zeros_like(h)

    def sel(c0, c1, c2, c3, c4, c5):
        out = z
        out = jnp.where(hi == 0, c0, out)
        out = jnp.where(hi == 1, c1, out)
        out = jnp.where(hi == 2, c2, out)
        out = jnp.where(hi == 3, c3, out)
        out = jnp.where(hi == 4, c4, out)
        out = jnp.where(hi == 5, c5, out)
        return out

    r = sel(v, q, p, p, t, v)
    g = sel(t, v, v, q, p, p)
    b = sel(p, p, t, v, v, q)
    return jnp.stack([r, g, b], axis=1)


# ----------------------------------------------------------------------------
# Parameters & forward
# ----------------------------------------------------------------------------
def init_cmt_params(key, out_channels, in_channels):
    oc = out_channels
    keys = iter(jax.random.split(key, 64))

    def conv_p(cin, cout, k=3):
        w = jax.random.normal(next(keys), (cout, cin, k, k), jnp.float32) * 0.1
        b = jax.random.normal(next(keys), (cout,), jnp.float32) * 0.01
        return w, b

    def bn_p(c):
        gamma = 1.0 + 0.1 * jax.random.normal(next(keys), (c,), jnp.float32)
        beta = 0.05 * jax.random.normal(next(keys), (c,), jnp.float32)
        mean = 0.05 * jax.random.normal(next(keys), (c,), jnp.float32)
        var = jnp.abs(1.0 + 0.1 * jax.random.normal(next(keys), (c,), jnp.float32))
        return (gamma, beta, mean, var, 1e-5)

    p = {}
    p['cc1_conv1'], p['cc1_bn1'] = conv_p(6, oc), bn_p(oc)
    p['cc1_conv2'], p['cc1_bn2'] = conv_p(oc, oc // 3), bn_p(oc // 3)
    p['cc2_conv1'], p['cc2_bn1'] = conv_p(6, oc), bn_p(oc)
    p['cc2_conv2'], p['cc2_bn2'] = conv_p(oc, oc // 2), bn_p(oc // 2)
    p['cl_conv1'], p['cl_bn1'] = conv_p(2, oc), bn_p(oc)
    p['cl_conv2'], p['cl_bn2'] = conv_p(oc, oc // 3), bn_p(oc // 3)
    p['conv_s'] = conv_p(1, oc // 2)
    p['conv_sc'] = conv_p(oc, oc * 2 // 3)
    p['conv_rgb'] = conv_p(3, oc)
    if in_channels != 3:
        p['conv_in'] = conv_p(in_channels, 3, k=1)
    c_sc = oc * 2 // 3
    c_cs = c_sc if c_sc % 2 == 0 else c_sc - 1
    p['conv_hsv2'] = conv_p(c_cs + oc // 3, 3)
    return p


def cmt_forward(img_nchw, params, *, inter_dtype=jnp.bfloat16):
    """img_nchw: (B, C, H, W) float32. Returns (B, out_channels, H, W) f32."""
    x = img_nchw.astype(jnp.float32)
    B, C, H, W = x.shape

    def conv(inp, name, relu=False, bn_name=None, out_dtype=None):
        w, b = params[name]
        bn = params[bn_name] if bn_name is not None else None
        return conv3x3_pallas(inp, w, b, relu=relu, bn=bn,
                              out_dtype=(out_dtype or inter_dtype))

    if C != 3:
        w1, b1 = params['conv_in']
        # 1x1 conv embedded as a centre-tap 3x3; f32 (feeds the byte() quant).
        img_rgb = conv3x3_pallas(x, _center_tap_3x3(w1), b1,
                                 out_dtype=jnp.float32)
    else:
        img_rgb = x

    # (img_rgb * 255).clamp(0, 255).byte() -> integer values in [0, 255]
    rgb255 = jnp.floor(jnp.clip(img_rgb * 255.0, 0.0, 255.0))
    img_lab = rgb_to_lab(rgb255)
    img_hsv = rgb_to_hsv(rgb255)
    img_l = img_lab[:, 0:1]
    img_ab = img_lab[:, 1:3]
    img_h = img_hsv[:, 0:1]
    img_s = img_hsv[:, 1:2]
    img_v = img_hsv[:, 2:3]

    img_color = jnp.concatenate([img_rgb, img_h, img_ab], axis=1) / 255.0
    img_light = jnp.concatenate([img_v, img_l], axis=1)

    t = conv(img_color, 'cc1_conv1', relu=True, bn_name='cc1_bn1')
    img_color_1 = conv(t, 'cc1_conv2', relu=True, bn_name='cc1_bn2')
    t = conv(img_color, 'cc2_conv1', relu=True, bn_name='cc2_bn1')
    img_color_2 = conv(t, 'cc2_conv2', relu=True, bn_name='cc2_bn2')
    t = conv(img_light, 'cl_conv1', relu=True, bn_name='cl_bn1')
    img_light_f = conv(t, 'cl_conv2', relu=True, bn_name='cl_bn2')
    img_s_f = conv(img_s, 'conv_s')

    img_sc = jnp.concatenate([img_s_f, img_color_2], axis=1)
    img_sc = conv(img_sc, 'conv_sc')

    c_sc = img_sc.shape[1]
    c_even = c_sc - 1 if c_sc % 2 != 0 else c_sc
    first_half = img_sc[:, :c_even // 2]
    second_half = img_sc[:, c_even // 2:c_even]
    second_half = second_half + img_color_1
    img_cs_1 = jnp.concatenate([second_half, first_half], axis=1)
    img_hsv_1 = jnp.concatenate([img_cs_1, img_light_f], axis=1)

    img_hsv_2 = conv(img_hsv_1, 'conv_hsv2', out_dtype=jnp.float32)
    img_hsv_3 = img_hsv_2 + img_hsv
    img_rgb2 = hsv_to_rgb(img_hsv_3)
    img_rgb_2 = jnp.floor(jnp.clip(img_rgb2 * 255.0, 0.0, 255.0)) / 255.0
    img_rgb_3 = conv(img_rgb_2, 'conv_rgb', out_dtype=jnp.float32)

    return img_rgb_3 + x


# ----------------------------------------------------------------------------
# Demo
# ----------------------------------------------------------------------------
if __name__ == "__main__":
    B, C, H, W = 2, 6, 16, 16      # input channels == out_channels (residual)
    out_channels = 6

    key = jax.random.PRNGKey(0)
    k_img, k_par, k_tst = jax.random.split(key, 3)
    img = jax.random.uniform(k_img, (B, C, H, W), jnp.float32)
    params = init_cmt_params(k_par, out_channels, C)

    # --- sanity check: Pallas fused conv (f32) vs lax.conv reference
    w_t, b_t = params['cc1_conv1']
    x_t = jax.random.normal(k_tst, (B, 6, H, W), jnp.float32)
    got = conv3x3_pallas(x_t, w_t, b_t, relu=True, out_dtype=jnp.float32)
    ref = jax.lax.conv_general_dilated(
        x_t, w_t, (1, 1), "SAME",
        dimension_numbers=("NCHW", "OIHW", "NCHW"),
        precision=jax.lax.Precision.HIGHEST)
    ref = jnp.maximum(ref + b_t[None, :, None, None], 0.0)
    assert got.shape == ref.shape
    assert jnp.allclose(got, ref, atol=1e-3, rtol=1e-3), "conv kernel mismatch"

    # --- full CMT forward
    fwd = jax.jit(cmt_forward)
    out = jax.block_until_ready(fwd(img, params))
    assert out.shape == (B, out_channels, H, W)
    assert bool(jnp.all(jnp.isfinite(out)))

    print("KERNEL_OK")
</pallas_src>

<mosaic_0001>
module attributes {stable_mosaic.version = 11 : i64} {
  func.func @_conv3x3_bias_act_kernel(%arg0: i32, %arg1: i32, %arg2: memref<324xf32, #tpu.memory_space<smem>>, %arg3: memref<6xf32, #tpu.memory_space<smem>>, %arg4: memref<1x1x6x18x18xf32, #tpu.memory_space<vmem>>, %arg5: memref<1x6x1x16x16xf32, #tpu.memory_space<vmem>>) attributes {dimension_semantics = [#tpu.dimension_semantics<parallel>, #tpu.dimension_semantics<parallel>], iteration_bounds = array<i64: 2, 1>, scalar_prefetch = 0 : i64, scratch_operands = 0 : i64, tpu.core_type = #tpu.core_type<tc>, window_params = [{transform_indices = @transform_0, window_bounds = array<i64: 324>}, {transform_indices = @transform_1, window_bounds = array<i64: 6>}, {transform_indices = @transform_2, window_bounds = array<i64: 1, 1, 6, 18, 18>}, {transform_indices = @transform_3, window_bounds = array<i64: 1, 6, 1, 16, 16>}]} {
    %c0 = arith.constant 0 : index
    %c0_0 = arith.constant 0 : index
    %c0_1 = arith.constant 0 : index
    %c0_2 = arith.constant 0 : index
    %c0_3 = arith.constant 0 : index
    %0 = vector.load %arg4[%c0, %c0_0, %c0_1, %c0_2, %c0_3] : memref<1x1x6x18x18xf32, #tpu.memory_space<vmem>>, vector<1x1x1x18x18xf32>
    %1 = vector.shape_cast %0 : vector<1x1x1x18x18xf32> to vector<18x18xf32>
    %2 = vector.extract_strided_slice %1 {offsets = [0, 0], sizes = [16, 18], strides = [1, 1]} : vector<18x18xf32> to vector<16x18xf32>
    %3 = vector.extract_strided_slice %2 {offsets = [0, 0], sizes = [16, 16], strides = [1, 1]} : vector<16x18xf32> to vector<16x16xf32>
    %4 = vector.extract_strided_slice %2 {offsets = [0, 1], sizes = [16, 16], strides = [1, 1]} : vector<16x18xf32> to vector<16x16xf32>
    %5 = vector.extract_strided_slice %2 {offsets = [0, 2], sizes = [16, 16], strides = [1, 1]} : vector<16x18xf32> to vector<16x16xf32>
    %6 = vector.extract_strided_slice %1 {offsets = [1, 0], sizes = [16, 18], strides = [1, 1]} : vector<18x18xf32> to vector<16x18xf32>
    %7 = vector.extract_strided_slice %6 {offsets = [0, 0], sizes = [16, 16], strides = [1, 1]} : vector<16x18xf32> to vector<16x16xf32>
    %8 = vector.extract_strided_slice %6 {offsets = [0, 1], sizes = [16, 16], strides = [1, 1]} : vector<16x18xf32> to vector<16x16xf32>
    %9 = vector.extract_strided_slice %6 {offsets = [0, 2], sizes = [16, 16], strides = [1, 1]} : vector<16x18xf32> to vector<16x16xf32>
    %10 = vector.extract_strided_slice %1 {offsets = [2, 0], sizes = [16, 18], strides = [1, 1]} : vector<18x18xf32> to vector<16x18xf32>
    %11 = vector.extract_strided_slice %10 {offsets = [0, 0], sizes = [16, 16], strides = [1, 1]} : vector<16x18xf32> to vector<16x16xf32>
    %12 = vector.extract_strided_slice %10 {offsets = [0, 1], sizes = [16, 16], strides = [1, 1]} : vector<16x18xf32> to vector<16x16xf32>
    %13 = vector.extract_strided_slice %10 {offsets = [0, 2], sizes = [16, 16], strides = [1, 1]} : vector<16x18xf32> to vector<16x16xf32>
    %c0_4 = arith.constant 0 : index
    %c0_5 = arith.constant 0 : index
    %c1 = arith.constant 1 : index
    %c0_6 = arith.constant 0 : index
    %c0_7 = arith.constant 0 : index
    %14 = vector.load %arg4[%c0_4, %c0_5, %c1, %c0_6, %c0_7] : memref<1x1x6x18x18xf32, #tpu.memory_space<vmem>>, vector<1x1x1x18x18xf32>
    %15 = vector.shape_cast %14 : vector<1x1x1x18x18xf32> to vector<18x18xf32>
    %16 = vector.extract_strided_slice %15 {offsets = [0, 0], sizes = [16, 18], strides = [1, 1]} : vector<18x18xf32> to vector<16x18xf32>
    %17 = vector.extract_strided_slice %16 {offsets = [0, 0], sizes = [16, 16], strides = [1, 1]} : vector<16x18xf32> to vector<16x16xf32>
    %18 = vector.extract_strided_slice %16 {offsets = [0, 1], sizes = [16, 16], strides = [1, 1]} : vector<16x18xf32> to vector<16x16xf32>
    %19 = vector.extract_strided_slice %16 {offsets = [0, 2], sizes = [16, 16], strides = [1, 1]} : vector<16x18xf32> to vector<16x16xf32>
    %20 = vector.extract_strided_slice %15 {offsets = [1, 0], sizes = [16, 18], strides = [1, 1]} : vector<18x18xf32> to vector<16x18xf32>
    %21 = vector.extract_strided_slice %20 {offsets = [0, 0], sizes = [16, 16], strides = [1, 1]} : vector<16x18xf32> to vector<16x16xf32>
    %22 = vector.extract_strided_slice %20 {offsets = [0, 1], sizes = [16, 16], strides = [1, 1]} : vector<16x18xf32> to vector<16x16xf32>
    %23 = vector.extract_strided_slice %20 {offsets = [0, 2], sizes = [16, 16], strides = [1, 1]} : vector<16x18xf32> to vector<16x16xf32>
    %24 = vector.extract_strided_slice %15 {offsets = [2, 0], sizes = [16, 18], strides = [1, 1]} : vector<18x18xf32> to vector<16x18xf32>
    %25 = vector.extract_strided_slice %24 {offsets = [0, 0], sizes = [16, 16], strides = [1, 1]} : vector<16x18xf32> to vector<16x16xf32>
    %26 = vector.extract_strided_slice %24 {offsets = [0, 1], sizes = [16, 16], strides = [1, 1]} : vector<16x18xf32> to vector<16x16xf32>
    %27 = vector.extract_strided_slice %24 {offsets = [0, 2], sizes = [16, 16], strides = [1, 1]} : vector<16x18xf32> to vector<16x16xf32>
    %c0_8 = arith.constant 0 : index
    %c0_9 = arith.constant 0 : index
    %c2 = arith.constant 2 : index
    %c0_10 = arith.constant 0 : index
    %c0_11 = arith.constant 0 : index
    %28 = vector.load %arg4[%c0_8, %c0_9, %c2, %c0_10, %c0_11] : memref<1x1x6x18x18xf32, #tpu.memory_space<vmem>>, vector<1x1x1x18x18xf32>
    %29 = vector.shape_cast %28 : vector<1x1x1x18x18xf32> to vector<18x18xf32>
    %30 = vector.extract_strided_slice %29 {offsets = [0, 0], sizes = [16, 18], strides = [1, 1]} : vector<18x18xf32> to vector<16x18xf32>
    %31 = vector.extract_strided_slice %30 {offsets = [0, 0], sizes = [16, 16], strides = [1, 1]} : vector<16x18xf32> to vector<16x16xf32>
    %32 = vector.extract_strided_slice %30 {offsets = [0, 1], sizes = [16, 16], strides = [1, 1]} : vector<16x18xf32> to vector<16x16xf32>
    %33 = vector.extract_strided_slice %30 {offsets = [0, 2], sizes = [16, 16], strides = [1, 1]} : vector<16x18xf32> to vector<16x16xf32>
    %34 = vector.extract_strided_slice %29 {offsets = [1, 0], sizes = [16, 18], strides = [1, 1]} : vector<18x18xf32> to vector<16x18xf32>
    %35 = vector.extract_strided_slice %34 {offsets = [0, 0], sizes = [16, 16], strides = [1, 1]} : vector<16x18xf32> to vector<16x16xf32>
    %36 = vector.extract_strided_slice %34 {offsets = [0, 1], sizes = [16, 16], strides = [1, 1]} : vector<16x18xf32> to vector<16x16xf32>
    %37 = vector.extract_strided_slice %34 {offsets = [0, 2], sizes = [16, 16], strides = [1, 1]} : vector<16x18xf32> to vector<16x16xf32>
    %38 = vector.extract_strided_slice %29 {offsets = [2, 0], sizes = [16, 18], strides = [1, 1]} : vector<18x18xf32> to vector<16x18xf32>
    %39 = vector.extract_strided_slice %38 {offsets = [0, 0], sizes = [16, 16], strides = [1, 1]} : vector<16x18xf32> to vector<16x16xf32>
    %40 = vector.extract_strided_slice %38 {offsets = [0, 1], sizes = [16, 16], strides = [1, 1]} : vector<16x18xf32> to vector<16x16xf32>
    %41 = vector.extract_strided_slice %38 {offsets = [0, 2], sizes = [16, 16], strides = [1, 1]} : vector<16x18xf32> to vector<16x16xf32>
    %c0_12 = arith.constant 0 : index
    %c0_13 = arith.constant 0 : index
    %c3 = arith.constant 3 : index
    %c0_14 = arith.constant 0 : index
    %c0_15 = arith.constant 0 : index
    %42 = vector.load %arg4[%c0_12, %c0_13, %c3, %c0_14, %c0_15] : memref<1x1x6x18x18xf32, #tpu.memory_space<vmem>>, vector<1x1x1x18x18xf32>
    %43 = vector.shape_cast %42 : vector<1x1x1x18x18xf32> to vector<18x18xf32>
    %44 = vector.extract_strided_slice %43 {offsets = [0, 0], sizes = [16, 18], strides = [1, 1]} : vector<18x18xf32> to vector<16x18xf32>
    %45 = vector.extract_strided_slice %44 {offsets = [0, 0], sizes = [16, 16], strides = [1, 1]} : vector<16x18xf32> to vector<16x16xf32>
    %46 = vector.extract_strided_slice %44 {offsets = [0, 1], sizes = [16, 16], strides = [1, 1]} : vector<16x18xf32> to vector<16x16xf32>
    %47 = vector.extract_strided_slice %44 {offsets = [0, 2], sizes = [16, 16], strides = [1, 1]} : vector<16x18xf32> to vector<16x16xf32>
    %48 = vector.extract_strided_slice %43 {offsets = [1, 0], sizes = [16, 18], strides = [1, 1]} : vector<18x18xf32> to vector<16x18xf32>
    %49 = vector.extract_strided_slice %48 {offsets = [0, 0], sizes = [16, 16], strides = [1, 1]} : vector<16x18xf32> to vector<16x16xf32>
    %50 = vector.extract_strided_slice %48 {offsets = [0, 1], sizes = [16, 16], strides = [1, 1]} : vector<16x18xf32> to vector<16x16xf32>
    %51 = vector.extract_strided_slice %48 {offsets = [0, 2], sizes = [16, 16], strides = [1, 1]} : vector<16x18xf32> to vector<16x16xf32>
    %52 = vector.extract_strided_slice %43 {offsets = [2, 0], sizes = [16, 18], strides = [1, 1]} : vector<18x18xf32> to vector<16x18xf32>
    %53 = vector.extract_strided_slice %52 {offsets = [0, 0], sizes = [16, 16], strides = [1, 1]} : vector<16x18xf32> to vector<16x16xf32>
    %54 = vector.extract_strided_slice %52 {offsets = [0, 1], sizes = [16, 16], strides = [1, 1]} : vector<16x18xf32> to vector<16x16xf32>
    %55 = vector.extract_strided_slice %52 {offsets = [0, 2], sizes = [16, 16], strides = [1, 1]} : vector<16x18xf32> to vector<16x16xf32>
    %c0_16 = arith.constant 0 : index
    %c0_17 = arith.constant 0 : index
    %c4 = arith.constant 4 : index
    %c0_18 = arith.constant 0 : index
    %c0_19 = arith.constant 0 : index
    %56 = vector.load %arg4[%c0_16, %c0_17, %c4, %c0_18, %c0_19] : memref<1x1x6x18x18xf32, #tpu.memory_space<vmem>>, vector<1x1x1x18x18xf32>
    %57 = vector.shape_cast %56 : vector<1x1x1x18x18xf32> to vector<18x18xf32>
    %58 = vector.extract_strided_slice %57 {offsets = [0, 0], sizes = [16, 18], strides = [1, 1]} : vector<18x18xf32> to vector<16x18xf32>
    %59 = vector.extract_strided_slice %58 {offsets = [0, 0], sizes = [16, 16], strides = [1, 1]} : vector<16x18xf32> to vector<16x16xf32>
    %60 = vector.extract_strided_slice %58 {offsets = [0, 1], sizes = [16, 16], strides = [1, 1]} : vector<16x18xf32> to vector<16x16xf32>
    %61 = vector.extract_strided_slice %58 {offsets = [0, 2], sizes = [16, 16], strides = [1, 1]} : vector<16x18xf32> to vector<16x16xf32>
    %62 = vector.extract_strided_slice %57 {offsets = [1, 0], sizes = [16, 18], strides = [1, 1]} : vector<18x18xf32> to vector<16x18xf32>
    %63 = vector.extract_strided_slice %62 {offsets = [0, 0], sizes = [16, 16], strides = [1, 1]} : vector<16x18xf32> to vector<16x16xf32>
    %64 = vector.extract_strided_slice %62 {offsets = [0, 1], sizes = [16, 16], strides = [1, 1]} : vector<16x18xf32> to vector<16x16xf32>
    %65 = vector.extract_strided_slice %62 {offsets = [0, 2], sizes = [16, 16], strides = [1, 1]} : vector<16x18xf32> to vector<16x16xf32>
    %66 = vector.extract_strided_slice %57 {offsets = [2, 0], sizes = [16, 18], strides = [1, 1]} : vector<18x18xf32> to vector<16x18xf32>
    %67 = vector.extract_strided_slice %66 {offsets = [0, 0], sizes = [16, 16], strides = [1, 1]} : vector<16x18xf32> to vector<16x16xf32>
    %68 = vector.extract_strided_slice %66 {offsets = [0, 1], sizes = [16, 16], strides = [1, 1]} : vector<16x18xf32> to vector<16x16xf32>
    %69 = vector.extract_strided_slice %66 {offsets = [0, 2], sizes = [16, 16], strides = [1, 1]} : vector<16x18xf32> to vector<16x16xf32>
    %c0_20 = arith.constant 0 : index
    %c0_21 = arith.constant 0 : index
    %c5 = arith.constant 5 : index
    %c0_22 = arith.constant 0 : index
    %c0_23 = arith.constant 0 : index
    %70 = vector.load %arg4[%c0_20, %c0_21, %c5, %c0_22, %c0_23] : memref<1x1x6x18x18xf32, #tpu.memory_space<vmem>>, vector<1x1x1x18x18xf32>
    %71 = vector.shape_cast %70 : vector<1x1x1x18x18xf32> to vector<18x18xf32>
    %72 = vector.extract_strided_slice %71 {offsets = [0, 0], sizes = [16, 18], strides = [1, 1]} : vector<18x18xf32> to vector<16x18xf32>
    %73 = vector.extract_strided_slice %72 {offsets = [0, 0], sizes = [16, 16], strides = [1, 1]} : vector<16x18xf32> to vector<16x16xf32>
    %74 = vector.extract_strided_slice %72 {offsets = [0, 1], sizes = [16, 16], strides = [1, 1]} : vector<16x18xf32> to vector<16x16xf32>
    %75 = vector.extract_strided_slice %72 {offsets = [0, 2], sizes = [16, 16], strides = [1, 1]} : vector<16x18xf32> to vector<16x16xf32>
    %76 = vector.extract_strided_slice %71 {offsets = [1, 0], sizes = [16, 18], strides = [1, 1]} : vector<18x18xf32> to vector<16x18xf32>
    %77 = vector.extract_strided_slice %76 {offsets = [0, 0], sizes = [16, 16], strides = [1, 1]} : vector<16x18xf32> to vector<16x16xf32>
    %78 = vector.extract_strided_slice %76 {offsets = [0, 1], sizes = [16, 16], strides = [1, 1]} : vector<16x18xf32> to vector<16x16xf32>
    %79 = vector.extract_strided_slice %76 {offsets = [0, 2], sizes = [16, 16], strides = [1, 1]} : vector<16x18xf32> to vector<16x16xf32>
    %80 = vector.extract_strided_slice %71 {offsets = [2, 0], sizes = [16, 18], strides = [1, 1]} : vector<18x18xf32> to vector<16x18xf32>
    %81 = vector.extract_strided_slice %80 {offsets = [0, 0], sizes = [16, 16], strides = [1, 1]} : vector<16x18xf32> to vector<16x16xf32>
    %82 = vector.extract_strided_slice %80 {offsets = [0, 1], sizes = [16, 16], strides = [1, 1]} : vector<16x18xf32> to vector<16x16xf32>
    %83 = vector.extract_strided_slice %80 {offsets = [0, 2], sizes = [16, 16], strides = [1, 1]} : vector<16x18xf32> to vector<16x16xf32>
    %c0_24 = arith.constant 0 : index
    %84 = memref.load %arg3[%c0_24] : memref<6xf32, #tpu.memory_space<smem>>
    %85 = vector.broadcast %84 : f32 to vector<16x16xf32>
    %c0_25 = arith.constant 0 : index
    %86 = memref.load %arg2[%c0_25] : memref<324xf32, #tpu.memory_space<smem>>
    %87 = vector.broadcast %86 : f32 to vector<16x16xf32>
    %88 = arith.mulf %87, %3 : vector<16x16xf32>
    %89 = arith.addf %85, %88 : vector<16x16xf32>
    %c1_26 = arith.constant 1 : index
    %90 = memref.load %arg2[%c1_26] : memref<324xf32, #tpu.memory_space<smem>>
    %91 = vector.broadcast %90 : f32 to vector<16x16xf32>
    %92 = arith.mulf %91, %4 : vector<16x16xf32>
    %93 = arith.addf %89, %92 : vector<16x16xf32>
    %c2_27 = arith.constant 2 : index
    %94 = memref.load %arg2[%c2_27] : memref<324xf32, #tpu.memory_space<smem>>
    %95 = vector.broadcast %94 : f32 to vector<16x16xf32>
    %96 = arith.mulf %95, %5 : vector<16x16xf32>
    %97 = arith.addf %93, %96 : vector<16x16xf32>
    %c3_28 = arith.constant 3 : index
    %98 = memref.load %arg2[%c3_28] : memref<324xf32, #tpu.memory_space<smem>>
    %99 = vector.broadcast %98 : f32 to vector<16x16xf32>
    %100 = arith.mulf %99, %7 : vector<16x16xf32>
    %101 = arith.addf %97, %100 : vector<16x16xf32>
    %c4_29 = arith.constant 4 : index
    %102 = memref.load %arg2[%c4_29] : memref<324xf32, #tpu.memory_space<smem>>
    %103 = vector.broadcast %102 : f32 to vector<16x16xf32>
    %104 = arith.mulf %103, %8 : vector<16x16xf32>
    %105 = arith.addf %101, %104 : vector<16x16xf32>
    %c5_30 = arith.constant 5 : index
    %106 = memref.load %arg2[%c5_30] : memref<324xf32, #tpu.memory_space<smem>>
    %107 = vector.broadcast %106 : f32 to vector<16x16xf32>
    %108 = arith.mulf %107, %9 : vector<16x16xf32>
    %109 = arith.addf %105, %108 : vector<16x16xf32>
    %c6 = arith.constant 6 : index
    %110 = memref.load %arg2[%c6] : memref<324xf32, #tpu.memory_space<smem>>
    %111 = vector.broadcast %110 : f32 to vector<16x16xf32>
    %112 = arith.mulf %111, %11 : vector<16x16xf32>
    %113 = arith.addf %109, %112 : vector<16x16xf32>
    %c7 = arith.constant 7 : index
    %114 = memref.load %arg2[%c7] : memref<324xf32, #tpu.memory_space<smem>>
    %115 = vector.broadcast %114 : f32 to vector<16x16xf32>
    %116 = arith.mulf %115, %12 : vector<16x16xf32>
    %117 = arith.addf %113, %116 : vector<16x16xf32>
    %c8 = arith.constant 8 : index
    %118 = memref.load %arg2[%c8] : memref<324xf32, #tpu.memory_space<smem>>
    %119 = vector.broadcast %118 : f32 to vector<16x16xf32>
    %120 = arith.mulf %119, %13 : vector<16x16xf32>
    %121 = arith.addf %117, %120 : vector<16x16xf32>
    %c9 = arith.constant 9 : index
    %122 = memref.load %arg2[%c9] : memref<324xf32, #tpu.memory_space<smem>>
    %123 = vector.broadcast %122 : f32 to vector<16x16xf32>
    %124 = arith.mulf %123, %17 : vector<16x16xf32>
    %125 = arith.addf %121, %124 : vector<16x16xf32>
    %c10 = arith.constant 10 : index
    %126 = memref.load %arg2[%c10] : memref<324xf32, #tpu.memory_space<smem>>
    %127 = vector.broadcast %126 : f32 to vector<16x16xf32>
    %128 = arith.mulf %127, %18 : vector<16x16xf32>
    %129 = arith.addf %125, %128 : vector<16x16xf32>
    %c11 = arith.constant 11 : index
    %130 = memref.load %arg2[%c11] : memref<324xf32, #tpu.memory_space<smem>>
    %131 = vector.broadcast %130 : f32 to vector<16x16xf32>
    %132 = arith.mulf %131, %19 : vector<16x16xf32>
    %133 = arith.addf %129, %132 : vector<16x16xf32>
    %c12 = arith.constant 12 : index
    %134 = memref.load %arg2[%c12] : memref<324xf32, #tpu.memory_space<smem>>
    %135 = vector.broadcast %134 : f32 to vector<16x16xf32>
    %136 = arith.mulf %135, %21 : vector<16x16xf32>
    %137 = arith.addf %133, %136 : vector<16x16xf32>
    %c13 = arith.constant 13 : index
    %138 = memref.load %arg2[%c13] : memref<324xf32, #tpu.memory_space<smem>>
    %139 = vector.broadcast %138 : f32 to vector<16x16xf32>
    %140 = arith.mulf %139, %22 : vector<16x16xf32>
    %141 = arith.addf %137, %140 : vector<16x16xf32>
    %c14 = arith.constant 14 : index
    %142 = memref.load %arg2[%c14] : memref<324xf32, #tpu.memory_space<smem>>
    %143 = vector.broadcast %142 : f32 to vector<16x16xf32>
    %144 = arith.mulf %143, %23 : vector<16x16xf32>
    %145 = arith.addf %141, %144 : vector<16x16xf32>
    %c15 = arith.constant 15 : index
    %146 = memref.load %arg2[%c15] : memref<324xf32, #tpu.memory_space<smem>>
    %147 = vector.broadcast %146 : f32 to vector<16x16xf32>
    %148 = arith.mulf %147, %25 : vector<16x16xf32>
    %149 = arith.addf %145, %148 : vector<16x16xf32>
    %c16 = arith.constant 16 : index
    %150 = memref.load %arg2[%c16] : memref<324xf32, #tpu.memory_space<smem>>
    %151 = vector.broadcast %150 : f32 to vector<16x16xf32>
    %152 = arith.mulf %151, %26 : vector<16x16xf32>
    %153 = arith.addf %149, %152 : vector<16x16xf32>
    %c17 = arith.constant 17 : index
    %154 = memref.load %arg2[%c17] : memref<324xf32, #tpu.memory_space<smem>>
    %155 = vector.broadcast %154 : f32 to vector<16x16xf32>
    %156 = arith.mulf %155, %27 : vector<16x16xf32>
    %157 = arith.addf %153, %156 : vector<16x16xf32>
    %c18 = arith.constant 18 : index
    %158 = memref.load %arg2[%c18] : memref<324xf32, #tpu.memory_space<smem>>
    %159 = vector.broadcast %158 : f32 to vector<16x16xf32>
    %160 = arith.mulf %159, %31 : vector<16x16xf32>
    %161 = arith.addf %157, %160 : vector<16x16xf32>
    %c19 = arith.constant 19 : index
    %162 = memref.load %arg2[%c19] : memref<324xf32, #tpu.memory_space<smem>>
    %163 = vector.broadcast %162 : f32 to vector<16x16xf32>
    %164 = arith.mulf %163, %32 : vector<16x16xf32>
    %165 = arith.addf %161, %164 : vector<16x16xf32>
    %c20 = arith.constant 20 : index
    %166 = memref.load %arg2[%c20] : memref<324xf32, #tpu.memory_space<smem>>
    %167 = vector.broadcast %166 : f32 to vector<16x16xf32>
    %168 = arith.mulf %167, %33 : vector<16x16xf32>
    %169 = arith.addf %165, %168 : vector<16x16xf32>
    %c21 = arith.constant 21 : index
    %170 = memref.load %arg2[%c21] : memref<324xf32, #tpu.memory_space<smem>>
    %171 = vector.broadcast %170 : f32 to vector<16x16xf32>
    %172 = arith.mulf %171, %35 : vector<16x16xf32>
    %173 = arith.addf %169, %172 : vector<16x16xf32>
    %c22 = arith.constant 22 : index
    %174 = memref.load %arg2[%c22] : memref<324xf32, #tpu.memory_space<smem>>
    %175 = vector.broadcast %174 : f32 to vector<16x16xf32>
    %176 = arith.mulf %175, %36 : vector<16x16xf32>
    %177 = arith.addf %173, %176 : vector<16x16xf32>
    %c23 = arith.constant 23 : index
    %178 = memref.load %arg2[%c23] : memref<324xf32, #tpu.memory_space<smem>>
    %179 = vector.broadcast %178 : f32 to vector<16x16xf32>
    %180 = arith.mulf %179, %37 : vector<16x16xf32>
    %181 = arith.addf %177, %180 : vector<16x16xf32>
    %c24 = arith.constant 24 : index
    %182 = memref.load %arg2[%c24] : memref<324xf32, #tpu.memory_space<smem>>
    %183 = vector.broadcast %182 : f32 to vector<16x16xf32>
    %184 = arith.mulf %183, %39 : vector<16x16xf32>
    %185 = arith.addf %181, %184 : vector<16x16xf32>
    %c25 = arith.constant 25 : index
    %186 = memref.load %arg2[%c25] : memref<324xf32, #tpu.memory_space<smem>>
    %187 = vector.broadcast %186 : f32 to vector<16x16xf32>
    %188 = arith.mulf %187, %40 : vector<16x16xf32>
    %189 = arith.addf %185, %188 : vector<16x16xf32>
    %c26 = arith.constant 26 : index
    %190 = memref.load %arg2[%c26] : memref<324xf32, #tpu.memory_space<smem>>
    %191 = vector.broadcast %190 : f32 to vector<16x16xf32>
    %192 = arith.mulf %191, %41 : vector<16x16xf32>
    %193 = arith.addf %189, %192 : vector<16x16xf32>
    %c27 = arith.constant 27 : index
    %194 = memref.load %arg2[%c27] : memref<324xf32, #tpu.memory_space<smem>>
    %195 = vector.broadcast %194 : f32 to vector<16x16xf32>
    %196 = arith.mulf %195, %45 : vector<16x16xf32>
    %197 = arith.addf %193, %196 : vector<16x16xf32>
    %c28 = arith.constant 28 : index
    %198 = memref.load %arg2[%c28] : memref<324xf32, #tpu.memory_space<smem>>
    %199 = vector.broadcast %198 : f32 to vector<16x16xf32>
    %200 = arith.mulf %199, %46 : vector<16x16xf32>
    %201 = arith.addf %197, %200 : vector<16x16xf32>
    %c29 = arith.constant 29 : index
    %202 = memref.load %arg2[%c29] : memref<324xf32, #tpu.memory_space<smem>>
    %203 = vector.broadcast %202 : f32 to vector<16x16xf32>
    %204 = arith.mulf %203, %47 : vector<16x16xf32>
    %205 = arith.addf %201, %204 : vector<16x16xf32>
    %c30 = arith.constant 30 : index
    %206 = memref.load %arg2[%c30] : memref<324xf32, #tpu.memory_space<smem>>
    %207 = vector.broadcast %206 : f32 to vector<16x16xf32>
    %208 = arith.mulf %207, %49 : vector<16x16xf32>
    %209 = arith.addf %205, %208 : vector<16x16xf32>
    %c31 = arith.constant 31 : index
    %210 = memref.load %arg2[%c31] : memref<324xf32, #tpu.memory_space<smem>>
    %211 = vector.broadcast %210 : f32 to vector<16x16xf32>
    %212 = arith.mulf %211, %50 : vector<16x16xf32>
    %213 = arith.addf %209, %212 : vector<16x16xf32>
    %c32 = arith.constant 32 : index
    %214 = memref.load %arg2[%c32] : memref<324xf32, #tpu.memory_space<smem>>
    %215 = vector.broadcast %214 : f32 to vector<16x16xf32>
    %216 = arith.mulf %215, %51 : vector<16x16xf32>
    %217 = arith.addf %213, %216 : vector<16x16xf32>
    %c33 = arith.constant 33 : index
    %218 = memref.load %arg2[%c33] : memref<324xf32, #tpu.memory_space<smem>>
    %219 = vector.broadcast %218 : f32 to vector<16x16xf32>
    %220 = arith.mulf %219, %53 : vector<16x16xf32>
    %221 = arith.addf %217, %220 : vector<16x16xf32>
    %c34 = arith.constant 34 : index
    %222 = memref.load %arg2[%c34] : memref<324xf32, #tpu.memory_space<smem>>
    %223 = vector.broadcast %222 : f32 to vector<16x16xf32>
    %224 = arith.mulf %223, %54 : vector<16x16xf32>
    %225 = arith.addf %221, %224 : vector<16x16xf32>
    %c35 = arith.constant 35 : index
    %226 = memref.load %arg2[%c35] : memref<324xf32, #tpu.memory_space<smem>>
    %227 = vector.broadcast %226 : f32 to vector<16x16xf32>
    %228 = arith.mulf %227, %55 : vector<16x16xf32>
    %229 = arith.addf %225, %228 : vector<16x16xf32>
    %c36 = arith.constant 36 : index
    %230 = memref.load %arg2[%c36] : memref<324xf32, #tpu.memory_space<smem>>
    %231 = vector.broadcast %230 : f32 to vector<16x16xf32>
    %232 = arith.mulf %231, %59 : vector<16x16xf32>
    %233 = arith.addf %229, %232 : vector<16x16xf32>
    %c37 = arith.constant 37 : index
    %234 = memref.load %arg2[%c37] : memref<324xf32, #tpu.memory_space<smem>>
    %235 = vector.broadcast %234 : f32 to vector<16x16xf32>
    %236 = arith.mulf %235, %60 : vector<16x16xf32>
    %237 = arith.addf %233, %236 : vector<16x16xf32>
    %c38 = arith.constant 38 : index
    %238 = memref.load %arg2[%c38] : memref<324xf32, #tpu.memory_space<smem>>
    %239 = vector.broadcast %238 : f32 to vector<16x16xf32>
    %240 = arith.mulf %239, %61 : vector<16x16xf32>
    %241 = arith.addf %237, %240 : vector<16x16xf32>
    %c39 = arith.constant 39 : index
    %242 = memref.load %arg2[%c39] : memref<324xf32, #tpu.memory_space<smem>>
    %243 = vector.broadcast %242 : f32 to vector<16x16xf32>
    %244 = arith.mulf %243, %63 : vector<16x16xf32>
    %245 = arith.addf %241, %244 : vector<16x16xf32>
    %c40 = arith.constant 40 : index
    %246 = memref.load %arg2[%c40] : memref<324xf32, #tpu.memory_space<smem>>
    %247 = vector.broadcast %246 : f32 to vector<16x16xf32>
    %248 = arith.mulf %247, %64 : vector<16x16xf32>
    %249 = arith.addf %245, %248 : vector<16x16xf32>
    %c41 = arith.constant 41 : index
    %250 = memref.load %arg2[%c41] : memref<324xf32, #tpu.memory_space<smem>>
    %251 = vector.broadcast %250 : f32 to vector<16x16xf32>
    %252 = arith.mulf %251, %65 : vector<16x16xf32>
    %253 = arith.addf %249, %252 : vector<16x16xf32>
    %c42 = arith.constant 42 : index
    %254 = memref.load %arg2[%c42] : memref<324xf32, #tpu.memory_space<smem>>
    %255 = vector.broadcast %254 : f32 to vector<16x16xf32>
    %256 = arith.mulf %255, %67 : vector<16x16xf32>
    %257 = arith.addf %253, %256 : vector<16x16xf32>
    %c43 = arith.constant 43 : index
    %258 = memref.load %arg2[%c43] : memref<324xf32, #tpu.memory_space<smem>>
    %259 = vector.broadcast %258 : f32 to vector<16x16xf32>
    %260 = arith.mulf %259, %68 : vector<16x16xf32>
    %261 = arith.addf %257, %260 : vector<16x16xf32>
    %c44 = arith.constant 44 : index
    %262 = memref.load %arg2[%c44] : memref<324xf32, #tpu.memory_space<smem>>
    %263 = vector.broadcast %262 : f32 to vector<16x16xf32>
    %264 = arith.mulf %263, %69 : vector<16x16xf32>
    %265 = arith.addf %261, %264 : vector<16x16xf32>
    %c45 = arith.constant 45 : index
    %266 = memref.load %arg2[%c45] : memref<324xf32, #tpu.memory_space<smem>>
    %267 = vector.broadcast %266 : f32 to vector<16x16xf32>
    %268 = arith.mulf %267, %73 : vector<16x16xf32>
    %269 = arith.addf %265, %268 : vector<16x16xf32>
    %c46 = arith.constant 46 : index
    %270 = memref.load %arg2[%c46] : memref<324xf32, #tpu.memory_space<smem>>
    %271 = vector.broadcast %270 : f32 to vector<16x16xf32>
    %272 = arith.mulf %271, %74 : vector<16x16xf32>
    %273 = arith.addf %269, %272 : vector<16x16xf32>
    %c47 = arith.constant 47 : index
    %274 = memref.load %arg2[%c47] : memref<324xf32, #tpu.memory_space<smem>>
    %275 = vector.broadcast %274 : f32 to vector<16x16xf32>
    %276 = arith.mulf %275, %75 : vector<16x16xf32>
    %277 = arith.addf %273, %276 : vector<16x16xf32>
    %c48 = arith.constant 48 : index
    %278 = memref.load %arg2[%c48] : memref<324xf32, #tpu.memory_space<smem>>
    %279 = vector.broadcast %278 : f32 to vector<16x16xf32>
    %280 = arith.mulf %279, %77 : vector<16x16xf32>
    %281 = arith.addf %277, %280 : vector<16x16xf32>
    %c49 = arith.constant 49 : index
    %282 = memref.load %arg2[%c49] : memref<324xf32, #tpu.memory_space<smem>>
    %283 = vector.broadcast %282 : f32 to vector<16x16xf32>
    %284 = arith.mulf %283, %78 : vector<16x16xf32>
    %285 = arith.addf %281, %284 : vector<16x16xf32>
    %c50 = arith.constant 50 : index
    %286 = memref.load %arg2[%c50] : memref<324xf32, #tpu.memory_space<smem>>
    %287 = vector.broadcast %286 : f32 to vector<16x16xf32>
    %288 = arith.mulf %287, %79 : vector<16x16xf32>
    %289 = arith.addf %285, %288 : vector<16x16xf32>
    %c51 = arith.constant 51 : index
    %290 = memref.load %arg2[%c51] : memref<324xf32, #tpu.memory_space<smem>>
    %291 = vector.broadcast %290 : f32 to vector<16x16xf32>
    %292 = arith.mulf %291, %81 : vector<16x16xf32>
    %293 = arith.addf %289, %292 : vector<16x16xf32>
    %c52 = arith.constant 52 : index
    %294 = memref.load %arg2[%c52] : memref<324xf32, #tpu.memory_space<smem>>
    %295 = vector.broadcast %294 : f32 to vector<16x16xf32>
    %296 = arith.mulf %295, %82 : vector<16x16xf32>
    %297 = arith.addf %293, %296 : vector<16x16xf32>
    %c53 = arith.constant 53 : index
    %298 = memref.load %arg2[%c53] : memref<324xf32, #tpu.memory_space<smem>>
    %299 = vector.broadcast %298 : f32 to vector<16x16xf32>
    %300 = arith.mulf %299, %83 : vector<16x16xf32>
    %301 = arith.addf %297, %300 : vector<16x16xf32>
    %cst = arith.constant 0.000000e+00 : f32
    %302 = vector.broadcast %cst : f32 to vector<16x16xf32>
    %303 = arith.maximumf %301, %302 : vector<16x16xf32>
    %c0_31 = arith.constant 0 : index
    %c0_32 = arith.constant 0 : index
    %c0_33 = arith.constant 0 : index
    %c0_34 = arith.constant 0 : index
    %c0_35 = arith.constant 0 : index
    %304 = vector.load %arg5[%c0_31, %c0_32, %c0_33, %c0_34, %c0_35] : memref<1x6x1x16x16xf32, #tpu.memory_space<vmem>>, vector<1x1x1x16x16xf32>
    %305 = vector.shape_cast %304 : vector<1x1x1x16x16xf32> to vector<16x16xf32>
    %306 = vector.shape_cast %303 : vector<16x16xf32> to vector<1x1x1x16x16xf32>
    tpu.vector_store %arg5[%c0_31, %c0_32, %c0_33, %c0_34, %c0_35], %306 {strides = array<i32>} : memref<1x6x1x16x16xf32, #tpu.memory_space<vmem>>, vector<1x1x1x16x16xf32>,
    %c1_36 = arith.constant 1 : index
    %307 = memref.load %arg3[%c1_36] : memref<6xf32, #tpu.memory_space<smem>>
    %308 = vector.broadcast %307 : f32 to vector<16x16xf32>
    %c54 = arith.constant 54 : index
    %309 = memref.load %arg2[%c54] : memref<324xf32, #tpu.memory_space<smem>>
    %310 = vector.broadcast %309 : f32 to vector<16x16xf32>
    %311 = arith.mulf %310, %3 : vector<16x16xf32>
    %312 = arith.addf %308, %311 : vector<16x16xf32>
    %c55 = arith.constant 55 : index
    %313 = memref.load %arg2[%c55] : memref<324xf32, #tpu.memory_space<smem>>
    %314 = vector.broadcast %313 : f32 to vector<16x16xf32>
    %315 = arith.mulf %314, %4 : vector<16x16xf32>
    %316 = arith.addf %312, %315 : vector<16x16xf32>
    %c56 = arith.constant 56 : index
    %317 = memref.load %arg2[%c56] : memref<324xf32, #tpu.memory_space<smem>>
    %318 = vector.broadcast %317 : f32 to vector<16x16xf32>
    %319 = arith.mulf %318, %5 : vector<16x16xf32>
    %320 = arith.addf %316, %319 : vector<16x16xf32>
    %c57 = arith.constant 57 : index
    %321 = memref.load %arg2[%c57] : memref<324xf32, #tpu.memory_space<smem>>
    %322 = vector.broadcast %321 : f32 to vector<16x16xf32>
    %323 = arith.mulf %322, %7 : vector<16x16xf32>
    %324 = arith.addf %320, %323 : vector<16x16xf32>
    %c58 = arith.constant 58 : index
    %325 = memref.load %arg2[%c58] : memref<324xf32, #tpu.memory_space<smem>>
    %326 = vector.broadcast %325 : f32 to vector<16x16xf32>
    %327 = arith.mulf %326, %8 : vector<16x16xf32>
    %328 = arith.addf %324, %327 : vector<16x16xf32>
    %c59 = arith.constant 59 : index
    %329 = memref.load %arg2[%c59] : memref<324xf32, #tpu.memory_space<smem>>
    %330 = vector.broadcast %329 : f32 to vector<16x16xf32>
    %331 = arith.mulf %330, %9 : vector<16x16xf32>
    %332 = arith.addf %328, %331 : vector<16x16xf32>
    %c60 = arith.constant 60 : index
    %333 = memref.load %arg2[%c60] : memref<324xf32, #tpu.memory_space<smem>>
    %334 = vector.broadcast %333 : f32 to vector<16x16xf32>
    %335 = arith.mulf %334, %11 : vector<16x16xf32>
    %336 = arith.addf %332, %335 : vector<16x16xf32>
    %c61 = arith.constant 61 : index
    %337 = memref.load %arg2[%c61] : memref<324xf32, #tpu.memory_space<smem>>
    %338 = vector.broadcast %337 : f32 to vector<16x16xf32>
    %339 = arith.mulf %338, %12 : vector<16x16xf32>
    %340 = arith.addf %336, %339 : vector<16x16xf32>
    %c62 = arith.constant 62 : index
    %341 = memref.load %arg2[%c62] : memref<324xf32, #tpu.memory_space<smem>>
    %342 = vector.broadcast %341 : f32 to vector<16x16xf32>
    %343 = arith.mulf %342, %13 : vector<16x16xf32>
    %344 = arith.addf %340, %343 : vector<16x16xf32>
    %c63 = arith.constant 63 : index
    %345 = memref.load %arg2[%c63] : memref<324xf32, #tpu.memory_space<smem>>
    %346 = vector.broadcast %345 : f32 to vector<16x16xf32>
    %347 = arith.mulf %346, %17 : vector<16x16xf32>
    %348 = arith.addf %344, %347 : vector<16x16xf32>
    %c64 = arith.constant 64 : index
    %349 = memref.load %arg2[%c64] : memref<324xf32, #tpu.memory_space<smem>>
    %350 = vector.broadcast %349 : f32 to vector<16x16xf32>
    %351 = arith.mulf %350, %18 : vector<16x16xf32>
    %352 = arith.addf %348, %351 : vector<16x16xf32>
    %c65 = arith.constant 65 : index
    %353 = memref.load %arg2[%c65] : memref<324xf32, #tpu.memory_space<smem>>
    %354 = vector.broadcast %353 : f32 to vector<16x16xf32>
    %355 = arith.mulf %354, %19 : vector<16x16xf32>
    %356 = arith.addf %352, %355 : vector<16x16xf32>
    %c66 = arith.constant 66 : index
    %357 = memref.load %arg2[%c66] : memref<324xf32, #tpu.memory_space<smem>>
    %358 = vector.broadcast %357 : f32 to vector<16x16xf32>
    %359 = arith.mulf %358, %21 : vector<16x16xf32>
    %360 = arith.addf %356, %359 : vector<16x16xf32>
    %c67 = arith.constant 67 : index
    %361 = memref.load %arg2[%c67] : memref<324xf32, #tpu.memory_space<smem>>
    %362 = vector.broadcast %361 : f32 to vector<16x16xf32>
    %363 = arith.mulf %362, %22 : vector<16x16xf32>
    %364 = arith.addf %360, %363 : vector<16x16xf32>
    %c68 = arith.constant 68 : index
    %365 = memref.load %arg2[%c68] : memref<324xf32, #tpu.memory_space<smem>>
    %366 = vector.broadcast %365 : f32 to vector<16x16xf32>
    %367 = arith.mulf %366, %23 : vector<16x16xf32>
    %368 = arith.addf %364, %367 : vector<16x16xf32>
    %c69 = arith.constant 69 : index
    %369 = memref.load %arg2[%c69] : memref<324xf32, #tpu.memory_space<smem>>
    %370 = vector.broadcast %369 : f32 to vector<16x16xf32>
    %371 = arith.mulf %370, %25 : vector<16x16xf32>
    %372 = arith.addf %368, %371 : vector<16x16xf32>
    %c70 = arith.constant 70 : index
    %373 = memref.load %arg2[%c70] : memref<324xf32, #tpu.memory_space<smem>>
    %374 = vector.broadcast %373 : f32 to vector<16x16xf32>
    %375 = arith.mulf %374, %26 : vector<16x16xf32>
    %376 = arith.addf %372, %375 : vector<16x16xf32>
    %c71 = arith.constant 71 : index
    %377 = memref.load %arg2[%c71] : memref<324xf32, #tpu.memory_space<smem>>
    %378 = vector.broadcast %377 : f32 to vector<16x16xf32>
    %379 = arith.mulf %378, %27 : vector<16x16xf32>
    %380 = arith.addf %376, %379 : vector<16x16xf32>
    %c72 = arith.constant 72 : index
    %381 = memref.load %arg2[%c72] : memref<324xf32, #tpu.memory_space<smem>>
    %382 = vector.broadcast %381 : f32 to vector<16x16xf32>
    %383 = arith.mulf %382, %31 : vector<16x16xf32>
    %384 = arith.addf %380, %383 : vector<16x16xf32>
    %c73 = arith.constant 73 : index
    %385 = memref.load %arg2[%c73] : memref<324xf32, #tpu.memory_space<smem>>
    %386 = vector.broadcast %385 : f32 to vector<16x16xf32>
    %387 = arith.mulf %386, %32 : vector<16x16xf32>
    %388 = arith.addf %384, %387 : vector<16x16xf32>
    %c74 = arith.constant 74 : index
    %389 = memref.load %arg2[%c74] : memref<324xf32, #tpu.memory_space<smem>>
    %390 = vector.broadcast %389 : f32 to vector<16x16xf32>
    %391 = arith.mulf %390, %33 : vector<16x16xf32>
    %392 = arith.addf %388, %391 : vector<16x16xf32>
    %c75 = arith.constant 75 : index
    %393 = memref.load %arg2[%c75] : memref<324xf32, #tpu.memory_space<smem>>
    %394 = vector.broadcast %393 : f32 to vector<16x16xf32>
    %395 = arith.mulf %394, %35 : vector<16x16xf32>
    %396 = arith.addf %392, %395 : vector<16x16xf32>
    %c76 = arith.constant 76 : index
    %397 = memref.load %arg2[%c76] : memref<324xf32, #tpu.memory_space<smem>>
    %398 = vector.broadcast %397 : f32 to vector<16x16xf32>
    %399 = arith.mulf %398, %36 : vector<16x16xf32>
    %400 = arith.addf %396, %399 : vector<16x16xf32>
    %c77 = arith.constant 77 : index
    %401 = memref.load %arg2[%c77] : memref<324xf32, #tpu.memory_space<smem>>
    %402 = vector.broadcast %401 : f32 to vector<16x16xf32>
    %403 = arith.mulf %402, %37 : vector<16x16xf32>
    %404 = arith.addf %400, %403 : vector<16x16xf32>
    %c78 = arith.constant 78 : index
    %405 = memref.load %arg2[%c78] : memref<324xf32, #tpu.memory_space<smem>>
    %406 = vector.broadcast %405 : f32 to vector<16x16xf32>
    %407 = arith.mulf %406, %39 : vector<16x16xf32>
    %408 = arith.addf %404, %407 : vector<16x16xf32>
    %c79 = arith.constant 79 : index
    %409 = memref.load %arg2[%c79] : memref<324xf32, #tpu.memory_space<smem>>
    %410 = vector.broadcast %409 : f32 to vector<16x16xf32>
    %411 = arith.mulf %410, %40 : vector<16x16xf32>
    %412 = arith.addf %408, %411 : vector<16x16xf32>
    %c80 = arith.constant 80 : index
    %413 = memref.load %arg2[%c80] : memref<324xf32, #tpu.memory_space<smem>>
    %414 = vector.broadcast %413 : f32 to vector<16x16xf32>
    %415 = arith.mulf %414, %41 : vector<16x16xf32>
    %416 = arith.addf %412, %415 : vector<16x16xf32>
    %c81 = arith.constant 81 : index
    %417 = memref.load %arg2[%c81] : memref<324xf32, #tpu.memory_space<smem>>
    %418 = vector.broadcast %417 : f32 to vector<16x16xf32>
    %419 = arith.mulf %418, %45 : vector<16x16xf32>
    %420 = arith.addf %416, %419 : vector<16x16xf32>
    %c82 = arith.constant 82 : index
    %421 = memref.load %arg2[%c82] : memref<324xf32, #tpu.memory_space<smem>>
    %422 = vector.broadcast %421 : f32 to vector<16x16xf32>
    %423 = arith.mulf %422, %46 : vector<16x16xf32>
    %424 = arith.addf %420, %423 : vector<16x16xf32>
    %c83 = arith.constant 83 : index
    %425 = memref.load %arg2[%c83] : memref<324xf32, #tpu.memory_space<smem>>
    %426 = vector.broadcast %425 : f32 to vector<16x16xf32>
    %427 = arith.mulf %426, %47 : vector<16x16xf32>
    %428 = arith.addf %424, %427 : vector<16x16xf32>
    %c84 = arith.constant 84 : index
    %429 = memref.load %arg2[%c84] : memref<324xf32, #tpu.memory_space<smem>>
    %430 = vector.broadcast %429 : f32 to vector<16x16xf32>
    %431 = arith.mulf %430, %49 : vector<16x16xf32>
    %432 = arith.addf %428, %431 : vector<16x16xf32>
    %c85 = arith.constant 85 : index
    %433 = memref.load %arg2[%c85] : memref<324xf32, #tpu.memory_space<smem>>
    %434 = vector.broadcast %433 : f32 to vector<16x16xf32>
    %435 = arith.mulf %434, %50 : vector<16x16xf32>
    %436 = arith.addf %432, %435 : vector<16x16xf32>
    %c86 = arith.constant 86 : index
    %437 = memref.load %arg2[%c86] : memref<324xf32, #tpu.memory_space<smem>>
    %438 = vector.broadcast %437 : f32 to vector<16x16xf32>
    %439 = arith.mulf %438, %51 : vector<16x16xf32>
    %440 = arith.addf %436, %439 : vector<16x16xf32>
    %c87 = arith.constant 87 : index
    %441 = memref.load %arg2[%c87] : memref<324xf32, #tpu.memory_space<smem>>
    %442 = vector.broadcast %441 : f32 to vector<16x16xf32>
    %443 = arith.mulf %442, %53 : vector<16x16xf32>
    %444 = arith.addf %440, %443 : vector<16x16xf32>
    %c88 = arith.constant 88 : index
    %445 = memref.load %arg2[%c88] : memref<324xf32, #tpu.memory_space<smem>>
    %446 = vector.broadcast %445 : f32 to vector<16x16xf32>
    %447 = arith.mulf %446, %54 : vector<16x16xf32>
    %448 = arith.addf %444, %447 : vector<16x16xf32>
    %c89 = arith.constant 89 : index
    %449 = memref.load %arg2[%c89] : memref<324xf32, #tpu.memory_space<smem>>
    %450 = vector.broadcast %449 : f32 to vector<16x16xf32>
    %451 = arith.mulf %450, %55 : vector<16x16xf32>
    %452 = arith.addf %448, %451 : vector<16x16xf32>
    %c90 = arith.constant 90 : index
    %453 = memref.load %arg2[%c90] : memref<324xf32, #tpu.memory_space<smem>>
    %454 = vector.broadcast %453 : f32 to vector<16x16xf32>
    %455 = arith.mulf %454, %59 : vector<16x16xf32>
    %456 = arith.addf %452, %455 : vector<16x16xf32>
    %c91 = arith.constant 91 : index
    %457 = memref.load %arg2[%c91] : memref<324xf32, #tpu.memory_space<smem>>
    %458 = vector.broadcast %457 : f32 to vector<16x16xf32>
    %459 = arith.mulf %458, %60 : vector<16x16xf32>
    %460 = arith.addf %456, %459 : vector<16x16xf32>
    %c92 = arith.constant 92 : index
    %461 = memref.load %arg2[%c92] : memref<324xf32, #tpu.memory_space<smem>>
    %462 = vector.broadcast %461 : f32 to vector<16x16xf32>
    %463 = arith.mulf %462, %61 : vector<16x16xf32>
    %464 = arith.addf %460, %463 : vector<16x16xf32>
    %c93 = arith.constant 93 : index
    %465 = memref.load %arg2[%c93] : memref<324xf32, #tpu.memory_space<smem>>
    %466 = vector.broadcast %465 : f32 to vector<16x16xf32>
    %467 = arith.mulf %466, %63 : vector<16x16xf32>
    %468 = arith.addf %464, %467 : vector<16x16xf32>
    %c94 = arith.constant 94 : index
    %469 = memref.load %arg2[%c94] : memref<324xf32, #tpu.memory_space<smem>>
    %470 = vector.broadcast %469 : f32 to vector<16x16xf32>
    %471 = arith.mulf %470, %64 : vector<16x16xf32>
    %472 = arith.addf %468, %471 : vector<16x16xf32>
    %c95 = arith.constant 95 : index
    %473 = memref.load %arg2[%c95] : memref<324xf32, #tpu.memory_space<smem>>
    %474 = vector.broadcast %473 : f32 to vector<16x16xf32>
    %475 = arith.mulf %474, %65 : vector<16x16xf32>
    %476 = arith.addf %472, %475 : vector<16x16xf32>
    %c96 = arith.constant 96 : index
    %477 = memref.load %arg2[%c96] : memref<324xf32, #tpu.memory_space<smem>>
    %478 = vector.broadcast %477 : f32 to vector<16x16xf32>
    %479 = arith.mulf %478, %67 : vector<16x16xf32>
    %480 = arith.addf %476, %479 : vector<16x16xf32>
    %c97 = arith.constant 97 : index
    %481 = memref.load %arg2[%c97] : memref<324xf32, #tpu.memory_space<smem>>
    %482 = vector.broadcast %481 : f32 to vector<16x16xf32>
    %483 = arith.mulf %482, %68 : vector<16x16xf32>
    %484 = arith.addf %480, %483 : vector<16x16xf32>
    %c98 = arith.constant 98 : index
    %485 = memref.load %arg2[%c98] : memref<324xf32, #tpu.memory_space<smem>>
    %486 = vector.broadcast %485 : f32 to vector<16x16xf32>
    %487 = arith.mulf %486, %69 : vector<16x16xf32>
    %488 = arith.addf %484, %487 : vector<16x16xf32>
    %c99 = arith.constant 99 : index
    %489 = memref.load %arg2[%c99] : memref<324xf32, #tpu.memory_space<smem>>
    %490 = vector.broadcast %489 : f32 to vector<16x16xf32>
    %491 = arith.mulf %490, %73 : vector<16x16xf32>
    %492 = arith.addf %488, %491 : vector<16x16xf32>
    %c100 = arith.constant 100 : index
    %493 = memref.load %arg2[%c100] : memref<324xf32, #tpu.memory_space<smem>>
    %494 = vector.broadcast %493 : f32 to vector<16x16xf32>
    %495 = arith.mulf %494, %74 : vector<16x16xf32>
    %496 = arith.addf %492, %495 : vector<16x16xf32>
    %c101 = arith.constant 101 : index
    %497 = memref.load %arg2[%c101] : memref<324xf32, #tpu.memory_space<smem>>
    %498 = vector.broadcast %497 : f32 to vector<16x16xf32>
    %499 = arith.mulf %498, %75 : vector<16x16xf32>
    %500 = arith.addf %496, %499 : vector<16x16xf32>
    %c102 = arith.constant 102 : index
    %501 = memref.load %arg2[%c102] : memref<324xf32, #tpu.memory_space<smem>>
    %502 = vector.broadcast %501 : f32 to vector<16x16xf32>
    %503 = arith.mulf %502, %77 : vector<16x16xf32>
    %504 = arith.addf %500, %503 : vector<16x16xf32>
    %c103 = arith.constant 103 : index
    %505 = memref.load %arg2[%c103] : memref<324xf32, #tpu.memory_space<smem>>
    %506 = vector.broadcast %505 : f32 to vector<16x16xf32>
    %507 = arith.mulf %506, %78 : vector<16x16xf32>
    %508 = arith.addf %504, %507 : vector<16x16xf32>
    %c104 = arith.constant 104 : index
    %509 = memref.load %arg2[%c104] : memref<324xf32, #tpu.memory_space<smem>>
    %510 = vector.broadcast %509 : f32 to vector<16x16xf32>
    %511 = arith.mulf %510, %79 : vector<16x16xf32>
    %512 = arith.addf %508, %511 : vector<16x16xf32>
    %c105 = arith.constant 105 : index
    %513 = memref.load %arg2[%c105] : memref<324xf32, #tpu.memory_space<smem>>
    %514 = vector.broadcast %513 : f32 to vector<16x16xf32>
    %515 = arith.mulf %514, %81 : vector<16x16xf32>
    %516 = arith.addf %512, %515 : vector<16x16xf32>
    %c106 = arith.constant 106 : index
    %517 = memref.load %arg2[%c106] : memref<324xf32, #tpu.memory_space<smem>>
    %518 = vector.broadcast %517 : f32 to vector<16x16xf32>
    %519 = arith.mulf %518, %82 : vector<16x16xf32>
    %520 = arith.addf %516, %519 : vector<16x16xf32>
    %c107 = arith.constant 107 : index
    %521 = memref.load %arg2[%c107] : memref<324xf32, #tpu.memory_space<smem>>
    %522 = vector.broadcast %521 : f32 to vector<16x16xf32>
    %523 = arith.mulf %522, %83 : vector<16x16xf32>
    %524 = arith.addf %520, %523 : vector<16x16xf32>
    %cst_37 = arith.constant 0.000000e+00 : f32
    %525 = vector.broadcast %cst_37 : f32 to vector<16x16xf32>
    %526 = arith.maximumf %524, %525 : vector<16x16xf32>
    %c0_38 = arith.constant 0 : index
    %c1_39 = arith.constant 1 : index
    %c0_40 = arith.constant 0 : index
    %c0_41 = arith.constant 0 : index
    %c0_42 = arith.constant 0 : index
    %527 = vector.load %arg5[%c0_38, %c1_39, %c0_40, %c0_41, %c0_42] : memref<1x6x1x16x16xf32, #tpu.memory_space<vmem>>, vector<1x1x1x16x16xf32>
    %528 = vector.shape_cast %527 : vector<1x1x1x16x16xf32> to vector<16x16xf32>
    %529 = vector.shape_cast %526 : vector<16x16xf32> to vector<1x1x1x16x16xf32>
    tpu.vector_store %arg5[%c0_38, %c1_39, %c0_40, %c0_41, %c0_42], %529 {strides = array<i32>} : memref<1x6x1x16x16xf32, #tpu.memory_space<vmem>>, vector<1x1x1x16x16xf32>,
    %c2_43 = arith.constant 2 : index
    %530 = memref.load %arg3[%c2_43] : memref<6xf32, #tpu.memory_space<smem>>
    %531 = vector.broadcast %530 : f32 to vector<16x16xf32>
    %c108 = arith.constant 108 : index
    %532 = memref.load %arg2[%c108] : memref<324xf32, #tpu.memory_space<smem>>
    %533 = vector.broadcast %532 : f32 to vector<16x16xf32>
    %534 = arith.mulf %533, %3 : vector<16x16xf32>
    %535 = arith.addf %531, %534 : vector<16x16xf32>
    %c109 = arith.constant 109 : index
    %536 = memref.load %arg2[%c109] : memref<324xf32, #tpu.memory_space<smem>>
    %537 = vector.broadcast %536 : f32 to vector<16x16xf32>
    %538 = arith.mulf %537, %4 : vector<16x16xf32>
    %539 = arith.addf %535, %538 : vector<16x16xf32>
    %c110 = arith.constant 110 : index
    %540 = memref.load %arg2[%c110] : memref<324xf32, #tpu.memory_space<smem>>
    %541 = vector.broadcast %540 : f32 to vector<16x16xf32>
    %542 = arith.mulf %541, %5 : vector<16x16xf32>
    %543 = arith.addf %539, %542 : vector<16x16xf32>
    %c111 = arith.constant 111 : index
    %544 = memref.load %arg2[%c111] : memref<324xf32, #tpu.memory_space<smem>>
    %545 = vector.broadcast %544 : f32 to vector<16x16xf32>
    %546 = arith.mulf %545, %7 : vector<16x16xf32>
    %547 = arith.addf %543, %546 : vector<16x16xf32>
    %c112 = arith.constant 112 : index
    %548 = memref.load %arg2[%c112] : memref<324xf32, #tpu.memory_space<smem>>
    %549 = vector.broadcast %548 : f32 to vector<16x16xf32>
    %550 = arith.mulf %549, %8 : vector<16x16xf32>
    %551 = arith.addf %547, %550 : vector<16x16xf32>
    %c113 = arith.constant 113 : index
    %552 = memref.load %arg2[%c113] : memref<324xf32, #tpu.memory_space<smem>>
    %553 = vector.broadcast %552 : f32 to vector<16x16xf32>
    %554 = arith.mulf %553, %9 : vector<16x16xf32>
    %555 = arith.addf %551, %554 : vector<16x16xf32>
    %c114 = arith.constant 114 : index
    %556 = memref.load %arg2[%c114] : memref<324xf32, #tpu.memory_space<smem>>
    %557 = vector.broadcast %556 : f32 to vector<16x16xf32>
    %558 = arith.mulf %557, %11 : vector<16x16xf32>
    %559 = arith.addf %555, %558 : vector<16x16xf32>
    %c115 = arith.constant 115 : index
    %560 = memref.load %arg2[%c115] : memref<324xf32, #tpu.memory_space<smem>>
    %561 = vector.broadcast %560 : f32 to vector<16x16xf32>
    %562 = arith.mulf %561, %12 : vector<16x16xf32>
    %563 = arith.addf %559, %562 : vector<16x16xf32>
    %c116 = arith.constant 116 : index
    %564 = memref.load %arg2[%c116] : memref<324xf32, #tpu.memory_space<smem>>
    %565 = vector.broadcast %564 : f32 to vector<16x16xf32>
    %566 = arith.mulf %565, %13 : vector<16x16xf32>
    %567 = arith.addf %563, %566 : vector<16x16xf32>
    %c117 = arith.constant 117 : index
    %568 = memref.load %arg2[%c117] : memref<324xf32, #tpu.memory_space<smem>>
    %569 = vector.broadcast %568 : f32 to vector<16x16xf32>
    %570 = arith.mulf %569, %17 : vector<16x16xf32>
    %571 = arith.addf %567, %570 : vector<16x16xf32>
    %c118 = arith.constant 118 : index
    %572 = memref.load %arg2[%c118] : memref<324xf32, #tpu.memory_space<smem>>
    %573 = vector.broadcast %572 : f32 to vector<16x16xf32>
    %574 = arith.mulf %573, %18 : vector<16x16xf32>
    %575 = arith.addf %571, %574 : vector<16x16xf32>
    %c119 = arith.constant 119 : index
    %576 = memref.load %arg2[%c119] : memref<324xf32, #tpu.memory_space<smem>>
    %577 = vector.broadcast %576 : f32 to vector<16x16xf32>
    %578 = arith.mulf %577, %19 : vector<16x16xf32>
    %579 = arith.addf %575, %578 : vector<16x16xf32>
    %c120 = arith.constant 120 : index
    %580 = memref.load %arg2[%c120] : memref<324xf32, #tpu.memory_space<smem>>
    %581 = vector.broadcast %580 : f32 to vector<16x16xf32>
    %582 = arith.mulf %581, %21 : vector<16x16xf32>
    %583 = arith.addf %579, %582 : vector<16x16xf32>
    %c121 = arith.constant 121 : index
    %584 = memref.load %arg2[%c121] : memref<324xf32, #tpu.memory_space<smem>>
    %585 = vector.broadcast %584 : f32 to vector<16x16xf32>
    %586 = arith.mulf %585, %22 : vector<16x16xf32>
    %587 = arith.addf %583, %586 : vector<16x16xf32>
    %c122 = arith.constant 122 : index
    %588 = memref.load %arg2[%c122] : memref<324xf32, #tpu.memory_space<smem>>
    %589 = vector.broadcast %588 : f32 to vector<16x16xf32>
    %590 = arith.mulf %589, %23 : vector<16x16xf32>
    %591 = arith.addf %587, %590 : vector<16x16xf32>
    %c123 = arith.constant 123 : index
    %592 = memref.load %arg2[%c123] : memref<324xf32, #tpu.memory_space<smem>>
    %593 = vector.broadcast %592 : f32 to vector<16x16xf32>
    %594 = arith.mulf %593, %25 : vector<16x16xf32>
    %595 = arith.addf %591, %594 : vector<16x16xf32>
    %c124 = arith.constant 124 : index
    %596 = memref.load %arg2[%c124] : memref<324xf32, #tpu.memory_space<smem>>
    %597 = vector.broadcast %596 : f32 to vector<16x16xf32>
    %598 = arith.mulf %597, %26 : vector<16x16xf32>
    %599 = arith.addf %595, %598 : vector<16x16xf32>
    %c125 = arith.constant 125 : index
    %600 = memref.load %arg2[%c125] : memref<324xf32, #tpu.memory_space<smem>>
    %601 = vector.broadcast %600 : f32 to vector<16x16xf32>
    %602 = arith.mulf %601, %27 : vector<16x16xf32>
    %603 = arith.addf %599, %602 : vector<16x16xf32>
    %c126 = arith.constant 126 : index
    %604 = memref.load %arg2[%c126] : memref<324xf32, #tpu.memory_space<smem>>
    %605 = vector.broadcast %604 : f32 to vector<16x16xf32>
    %606 = arith.mulf %605, %31 : vector<16x16xf32>
    %607 = arith.addf %603, %606 : vector<16x16xf32>
    %c127 = arith.constant 127 : index
    %608 = memref.load %arg2[%c127] : memref<324xf32, #tpu.memory_space<smem>>
    %609 = vector.broadcast %608 : f32 to vector<16x16xf32>
    %610 = arith.mulf %609, %32 : vector<16x16xf32>
    %611 = arith.addf %607, %610 : vector<16x16xf32>
    %c128 = arith.constant 128 : index
    %612 = memref.load %arg2[%c128] : memref<324xf32, #tpu.memory_space<smem>>
    %613 = vector.broadcast %612 : f32 to vector<16x16xf32>
    %614 = arith.mulf %613, %33 : vector<16x16xf32>
    %615 = arith.addf %611, %614 : vector<16x16xf32>
    %c129 = arith.constant 129 : index
    %616 = memref.load %arg2[%c129] : memref<324xf32, #tpu.memory_space<smem>>
    %617 = vector.broadcast %616 : f32 to vector<16x16xf32>
    %618 = arith.mulf %617, %35 : vector<16x16xf32>
    %619 = arith.addf %615, %618 : vector<16x16xf32>
    %c130 = arith.constant 130 : index
    %620 = memref.load %arg2[%c130] : memref<324xf32, #tpu.memory_space<smem>>
    %621 = vector.broadcast %620 : f32 to vector<16x16xf32>
    %622 = arith.mulf %621, %36 : vector<16x16xf32>
    %623 = arith.addf %619, %622 : vector<16x16xf32>
    %c131 = arith.constant 131 : index
    %624 = memref.load %arg2[%c131] : memref<324xf32, #tpu.memory_space<smem>>
    %625 = vector.broadcast %624 : f32 to vector<16x16xf32>
    %626 = arith.mulf %625, %37 : vector<16x16xf32>
    %627 = arith.addf %623, %626 : vector<16x16xf32>
    %c132 = arith.constant 132 : index
    %628 = memref.load %arg2[%c132] : memref<324xf32, #tpu.memory_space<smem>>
    %629 = vector.broadcast %628 : f32 to vector<16x16xf32>
    %630 = arith.mulf %629, %39 : vector<16x16xf32>
    %631 = arith.addf %627, %630 : vector<16x16xf32>
    %c133 = arith.constant 133 : index
    %632 = memref.load %arg2[%c133] : memref<324xf32, #tpu.memory_space<smem>>
    %633 = vector.broadcast %632 : f32 to vector<16x16xf32>
    %634 = arith.mulf %633, %40 : vector<16x16xf32>
    %635 = arith.addf %631, %634 : vector<16x16xf32>
    %c134 = arith.constant 134 : index
    %636 = memref.load %arg2[%c134] : memref<324xf32, #tpu.memory_space<smem>>
    %637 = vector.broadcast %636 : f32 to vector<16x16xf32>
    %638 = arith.mulf %637, %41 : vector<16x16xf32>
    %639 = arith.addf %635, %638 : vector<16x16xf32>
    %c135 = arith.constant 135 : index
    %640 = memref.load %arg2[%c135] : memref<324xf32, #tpu.memory_space<smem>>
    %641 = vector.broadcast %640 : f32 to vector<16x16xf32>
    %642 = arith.mulf %641, %45 : vector<16x16xf32>
    %643 = arith.addf %639, %642 : vector<16x16xf32>
    %c136 = arith.constant 136 : index
    %644 = memref.load %arg2[%c136] : memref<324xf32, #tpu.memory_space<smem>>
    %645 = vector.broadcast %644 : f32 to vector<16x16xf32>
    %646 = arith.mulf %645, %46 : vector<16x16xf32>
    %647 = arith.addf %643, %646 : vector<16x16xf32>
    %c137 = arith.constant 137 : index
    %648 = memref.load %arg2[%c137] : memref<324xf32, #tpu.memory_space<smem>>
    %649 = vector.broadcast %648 : f32 to vector<16x16xf32>
    %650 = arith.mulf %649, %47 : vector<16x16xf32>
    %651 = arith.addf %647, %650 : vector<16x16xf32>
    %c138 = arith.constant 138 : index
    %652 = memref.load %arg2[%c138] : memref<324xf32, #tpu.memory_space<smem>>
    %653 = vector.broadcast %652 : f32 to vector<16x16xf32>
    %654 = arith.mulf %653, %49 : vector<16x16xf32>
    %655 = arith.addf %651, %654 : vector<16x16xf32>
    %c139 = arith.constant 139 : index
    %656 = memref.load %arg2[%c139] : memref<324xf32, #tpu.memory_space<smem>>
    %657 = vector.broadcast %656 : f32 to vector<16x16xf32>
    %658 = arith.mulf %657, %50 : vector<16x16xf32>
    %659 = arith.addf %655, %658 : vector<16x16xf32>
    %c140 = arith.constant 140 : index
    %660 = memref.load %arg2[%c140] : memref<324xf32, #tpu.memory_space<smem>>
    %661 = vector.broadcast %660 : f32 to vector<16x16xf32>
    %662 = arith.mulf %661, %51 : vector<16x16xf32>
    %663 = arith.addf %659, %662 : vector<16x16xf32>
    %c141 = arith.constant 141 : index
    %664 = memref.load %arg2[%c141] : memref<324xf32, #tpu.memory_space<smem>>
    %665 = vector.broadcast %664 : f32 to vector<16x16xf32>
    %666 = arith.mulf %665, %53 : vector<16x16xf32>
    %667 = arith.addf %663, %666 : vector<16x16xf32>
    %c142 = arith.constant 142 : index
    %668 = memref.load %arg2[%c142] : memref<324xf32, #tpu.memory_space<smem>>
    %669 = vector.broadcast %668 : f32 to vector<16x16xf32>
    %670 = arith.mulf %669, %54 : vector<16x16xf32>
    %671 = arith.addf %667, %670 : vector<16x16xf32>
    %c143 = arith.constant 143 : index
    %672 = memref.load %arg2[%c143] : memref<324xf32, #tpu.memory_space<smem>>
    %673 = vector.broadcast %672 : f32 to vector<16x16xf32>
    %674 = arith.mulf %673, %55 : vector<16x16xf32>
    %675 = arith.addf %671, %674 : vector<16x16xf32>
    %c144 = arith.constant 144 : index
    %676 = memref.load %arg2[%c144] : memref<324xf32, #tpu.memory_space<smem>>
    %677 = vector.broadcast %676 : f32 to vector<16x16xf32>
    %678 = arith.mulf %677, %59 : vector<16x16xf32>
    %679 = arith.addf %675, %678 : vector<16x16xf32>
    %c145 = arith.constant 145 : index
    %680 = memref.load %arg2[%c145] : memref<324xf32, #tpu.memory_space<smem>>
    %681 = vector.broadcast %680 : f32 to vector<16x16xf32>
    %682 = arith.mulf %681, %60 : vector<16x16xf32>
    %683 = arith.addf %679, %682 : vector<16x16xf32>
    %c146 = arith.constant 146 : index
    %684 = memref.load %arg2[%c146] : memref<324xf32, #tpu.memory_space<smem>>
    %685 = vector.broadcast %684 : f32 to vector<16x16xf32>
    %686 = arith.mulf %685, %61 : vector<16x16xf32>
    %687 = arith.addf %683, %686 : vector<16x16xf32>
    %c147 = arith.constant 147 : index
    %688 = memref.load %arg2[%c147] : memref<324xf32, #tpu.memory_space<smem>>
    %689 = vector.broadcast %688 : f32 to vector<16x16xf32>
    %690 = arith.mulf %689, %63 : vector<16x16xf32>
    %691 = arith.addf %687, %690 : vector<16x16xf32>
    %c148 = arith.constant 148 : index
    %692 = memref.load %arg2[%c148] : memref<324xf32, #tpu.memory_space<smem>>
    %693 = vector.broadcast %692 : f32 to vector<16x16xf32>
    %694 = arith.mulf %693, %64 : vector<16x16xf32>
    %695 = arith.addf %691, %694 : vector<16x16xf32>
    %c149 = arith.constant 149 : index
    %696 = memref.load %arg2[%c149] : memref<324xf32, #tpu.memory_space<smem>>
    %697 = vector.broadcast %696 : f32 to vector<16x16xf32>
    %698 = arith.mulf %697, %65 : vector<16x16xf32>
    %699 = arith.addf %695, %698 : vector<16x16xf32>
    %c150 = arith.constant 150 : index
    %700 = memref.load %arg2[%c150] : memref<324xf32, #tpu.memory_space<smem>>
    %701 = vector.broadcast %700 : f32 to vector<16x16xf32>
    %702 = arith.mulf %701, %67 : vector<16x16xf32>
    %703 = arith.addf %699, %702 : vector<16x16xf32>
    %c151 = arith.constant 151 : index
    %704 = memref.load %arg2[%c151] : memref<324xf32, #tpu.memory_space<smem>>
    %705 = vector.broadcast %704 : f32 to vector<16x16xf32>
    %706 = arith.mulf %705, %68 : vector<16x16xf32>
    %707 = arith.addf %703, %706 : vector<16x16xf32>
    %c152 = arith.constant 152 : index
    %708 = memref.load %arg2[%c152] : memref<324xf32, #tpu.memory_space<smem>>
    %709 = vector.broadcast %708 : f32 to vector<16x16xf32>
    %710 = arith.mulf %709, %69 : vector<16x16xf32>
    %711 = arith.addf %707, %710 : vector<16x16xf32>
    %c153 = arith.constant 153 : index
    %712 = memref.load %arg2[%c153] : memref<324xf32, #tpu.memory_space<smem>>
    %713 = vector.broadcast %712 : f32 to vector<16x16xf32>
    %714 = arith.mulf %713, %73 : vector<16x16xf32>
    %715 = arith.addf %711, %714 : vector<16x16xf32>
    %c154 = arith.constant 154 : index
    %716 = memref.load %arg2[%c154] : memref<324xf32, #tpu.memory_space<smem>>
    %717 = vector.broadcast %716 : f32 to vector<16x16xf32>
    %718 = arith.mulf %717, %74 : vector<16x16xf32>
    %719 = arith.addf %715, %718 : vector<16x16xf32>
    %c155 = arith.constant 155 : index
    %720 = memref.load %arg2[%c155] : memref<324xf32, #tpu.memory_space<smem>>
    %721 = vector.broadcast %720 : f32 to vector<16x16xf32>
    %722 = arith.mulf %721, %75 : vector<16x16xf32>
    %723 = arith.addf %719, %722 : vector<16x16xf32>
    %c156 = arith.constant 156 : index
    %724 = memref.load %arg2[%c156] : memref<324xf32, #tpu.memory_space<smem>>
    %725 = vector.broadcast %724 : f32 to vector<16x16xf32>
    %726 = arith.mulf %725, %77 : vector<16x16xf32>
    %727 = arith.addf %723, %726 : vector<16x16xf32>
    %c157 = arith.constant 157 : index
    %728 = memref.load %arg2[%c157] : memref<324xf32, #tpu.memory_space<smem>>
    %729 = vector.broadcast %728 : f32 to vector<16x16xf32>
    %730 = arith.mulf %729, %78 : vector<16x16xf32>
    %731 = arith.addf %727, %730 : vector<16x16xf32>
    %c158 = arith.constant 158 : index
    %732 = memref.load %arg2[%c158] : memref<324xf32, #tpu.memory_space<smem>>
    %733 = vector.broadcast %732 : f32 to vector<16x16xf32>
    %734 = arith.mulf %733, %79 : vector<16x16xf32>
    %735 = arith.addf %731, %734 : vector<16x16xf32>
    %c159 = arith.constant 159 : index
    %736 = memref.load %arg2[%c159] : memref<324xf32, #tpu.memory_space<smem>>
    %737 = vector.broadcast %736 : f32 to vector<16x16xf32>
    %738 = arith.mulf %737, %81 : vector<16x16xf32>
    %739 = arith.addf %735, %738 : vector<16x16xf32>
    %c160 = arith.constant 160 : index
    %740 = memref.load %arg2[%c160] : memref<324xf32, #tpu.memory_space<smem>>
    %741 = vector.broadcast %740 : f32 to vector<16x16xf32>
    %742 = arith.mulf %741, %82 : vector<16x16xf32>
    %743 = arith.addf %739, %742 : vector<16x16xf32>
    %c161 = arith.constant 161 : index
    %744 = memref.load %arg2[%c161] : memref<324xf32, #tpu.memory_space<smem>>
    %745 = vector.broadcast %744 : f32 to vector<16x16xf32>
    %746 = arith.mulf %745, %83 : vector<16x16xf32>
    %747 = arith.addf %743, %746 : vector<16x16xf32>
    %cst_44 = arith.constant 0.000000e+00 : f32
    %748 = vector.broadcast %cst_44 : f32 to vector<16x16xf32>
    %749 = arith.maximumf %747, %748 : vector<16x16xf32>
    %c0_45 = arith.constant 0 : index
    %c2_46 = arith.constant 2 : index
    %c0_47 = arith.constant 0 : index
    %c0_48 = arith.constant 0 : index
    %c0_49 = arith.constant 0 : index
    %750 = vector.load %arg5[%c0_45, %c2_46, %c0_47, %c0_48, %c0_49] : memref<1x6x1x16x16xf32, #tpu.memory_space<vmem>>, vector<1x1x1x16x16xf32>
    %751 = vector.shape_cast %750 : vector<1x1x1x16x16xf32> to vector<16x16xf32>
    %752 = vector.shape_cast %749 : vector<16x16xf32> to vector<1x1x1x16x16xf32>
    tpu.vector_store %arg5[%c0_45, %c2_46, %c0_47, %c0_48, %c0_49], %752 {strides = array<i32>} : memref<1x6x1x16x16xf32, #tpu.memory_space<vmem>>, vector<1x1x1x16x16xf32>,
    %c3_50 = arith.constant 3 : index
    %753 = memref.load %arg3[%c3_50] : memref<6xf32, #tpu.memory_space<smem>>
    %754 = vector.broadcast %753 : f32 to vector<16x16xf32>
    %c162 = arith.constant 162 : index
    %755 = memref.load %arg2[%c162] : memref<324xf32, #tpu.memory_space<smem>>
    %756 = vector.broadcast %755 : f32 to vector<16x16xf32>
    %757 = arith.mulf %756, %3 : vector<16x16xf32>
    %758 = arith.addf %754, %757 : vector<16x16xf32>
    %c163 = arith.constant 163 : index
    %759 = memref.load %arg2[%c163] : memref<324xf32, #tpu.memory_space<smem>>
    %760 = vector.broadcast %759 : f32 to vector<16x16xf32>
    %761 = arith.mulf %760, %4 : vector<16x16xf32>
    %762 = arith.addf %758, %761 : vector<16x16xf32>
    %c164 = arith.constant 164 : index
    %763 = memref.load %arg2[%c164] : memref<324xf32, #tpu.memory_space<smem>>
    %764 = vector.broadcast %763 : f32 to vector<16x16xf32>
    %765 = arith.mulf %764, %5 : vector<16x16xf32>
    %766 = arith.addf %762, %765 : vector<16x16xf32>
    %c165 = arith.constant 165 : index
    %767 = memref.load %arg2[%c165] : memref<324xf32, #tpu.memory_space<smem>>
    %768 = vector.broadcast %767 : f32 to vector<16x16xf32>
    %769 = arith.mulf %768, %7 : vector<16x16xf32>
    %770 = arith.addf %766, %769 : vector<16x16xf32>
    %c166 = arith.constant 166 : index
    %771 = memref.load %arg2[%c166] : memref<324xf32, #tpu.memory_space<smem>>
    %772 = vector.broadcast %771 : f32 to vector<16x16xf32>
    %773 = arith.mulf %772, %8 : vector<16x16xf32>
    %774 = arith.addf %770, %773 : vector<16x16xf32>
    %c167 = arith.constant 167 : index
    %775 = memref.load %arg2[%c167] : memref<324xf32, #tpu.memory_space<smem>>
    %776 = vector.broadcast %775 : f32 to vector<16x16xf32>
    %777 = arith.mulf %776, %9 : vector<16x16xf32>
    %778 = arith.addf %774, %777 : vector<16x16xf32>
    %c168 = arith.constant 168 : index
    %779 = memref.load %arg2[%c168] : memref<324xf32, #tpu.memory_space<smem>>
    %780 = vector.broadcast %779 : f32 to vector<16x16xf32>
    %781 = arith.mulf %780, %11 : vector<16x16xf32>
    %782 = arith.addf %778, %781 : vector<16x16xf32>
    %c169 = arith.constant 169 : index
    %783 = memref.load %arg2[%c169] : memref<324xf32, #tpu.memory_space<smem>>
    %784 = vector.broadcast %783 : f32 to vector<16x16xf32>
    %785 = arith.mulf %784, %12 : vector<16x16xf32>
    %786 = arith.addf %782, %785 : vector<16x16xf32>
    %c170 = arith.constant 170 : index
    %787 = memref.load %arg2[%c170] : memref<324xf32, #tpu.memory_space<smem>>
    %788 = vector.broadcast %787 : f32 to vector<16x16xf32>
    %789 = arith.mulf %788, %13 : vector<16x16xf32>
    %790 = arith.addf %786, %789 : vector<16x16xf32>
    %c171 = arith.constant 171 : index
    %791 = memref.load %arg2[%c171] : memref<324xf32, #tpu.memory_space<smem>>
    %792 = vector.broadcast %791 : f32 to vector<16x16xf32>
    %793 = arith.mulf %792, %17 : vector<16x16xf32>
    %794 = arith.addf %790, %793 : vector<16x16xf32>
    %c172 = arith.constant 172 : index
    %795 = memref.load %arg2[%c172] : memref<324xf32, #tpu.memory_space<smem>>
    %796 = vector.broadcast %795 : f32 to vector<16x16xf32>
    %797 = arith.mulf %796, %18 : vector<16x16xf32>
    %798 = arith.addf %794, %797 : vector<16x16xf32>
    %c173 = arith.constant 173 : index
    %799 = memref.load %arg2[%c173] : memref<324xf32, #tpu.memory_space<smem>>
    %800 = vector.broadcast %799 : f32 to vector<16x16xf32>
    %801 = arith.mulf %800, %19 : vector<16x16xf32>
    %802 = arith.addf %798, %801 : vector<16x16xf32>
    %c174 = arith.constant 174 : index
    %803 = memref.load %arg2[%c174] : memref<324xf32, #tpu.memory_space<smem>>
    %804 = vector.broadcast %803 : f32 to vector<16x16xf32>
    %805 = arith.mulf %804, %21 : vector<16x16xf32>
    %806 = arith.addf %802, %805 : vector<16x16xf32>
    %c175 = arith.constant 175 : index
    %807 = memref.load %arg2[%c175] : memref<324xf32, #tpu.memory_space<smem>>
    %808 = vector.broadcast %807 : f32 to vector<16x16xf32>
    %809 = arith.mulf %808, %22 : vector<16x16xf32>
    %810 = arith.addf %806, %809 : vector<16x16xf32>
    %c176 = arith.constant 176 : index
    %811 = memref.load %arg2[%c176] : memref<324xf32, #tpu.memory_space<smem>>
    %812 = vector.broadcast %811 : f32 to vector<16x16xf32>
    %813 = arith.mulf %812, %23 : vector<16x16xf32>
    %814 = arith.addf %810, %813 : vector<16x16xf32>
    %c177 = arith.constant 177 : index
    %815 = memref.load %arg2[%c177] : memref<324xf32, #tpu.memory_space<smem>>
    %816 = vector.broadcast %815 : f32 to vector<16x16xf32>
    %817 = arith.mulf %816, %25 : vector<16x16xf32>
    %818 = arith.addf %814, %817 : vector<16x16xf32>
    %c178 = arith.constant 178 : index
    %819 = memref.load %arg2[%c178] : memref<324xf32, #tpu.memory_space<smem>>
    %820 = vector.broadcast %819 : f32 to vector<16x16xf32>
    %821 = arith.mulf %820, %26 : vector<16x16xf32>
    %822 = arith.addf %818, %821 : vector<16x16xf32>
    %c179 = arith.constant 179 : index
    %823 = memref.load %arg2[%c179] : memref<324xf32, #tpu.memory_space<smem>>
    %824 = vector.broadcast %823 : f32 to vector<16x16xf32>
    %825 = arith.mulf %824, %27 : vector<16x16xf32>
    %826 = arith.addf %822, %825 : vector<16x16xf32>
    %c180 = arith.constant 180 : index
    %827 = memref.load %arg2[%c180] : memref<324xf32, #tpu.memory_space<smem>>
    %828 = vector.broadcast %827 : f32 to vector<16x16xf32>
    %829 = arith.mulf %828, %31 : vector<16x16xf32>
    %830 = arith.addf %826, %829 : vector<16x16xf32>
    %c181 = arith.constant 181 : index
    %831 = memref.load %arg2[%c181] : memref<324xf32, #tpu.memory_space<smem>>
    %832 = vector.broadcast %831 : f32 to vector<16x16xf32>
    %833 = arith.mulf %832, %32 : vector<16x16xf32>
    %834 = arith.addf %830, %833 : vector<16x16xf32>
    %c182 = arith.constant 182 : index
    %835 = memref.load %arg2[%c182] : memref<324xf32, #tpu.memory_space<smem>>
    %836 = vector.broadcast %835 : f32 to vector<16x16xf32>
    %837 = arith.mulf %836, %33 : vector<16x16xf32>
    %838 = arith.addf %834, %837 : vector<16x16xf32>
    %c183 = arith.constant 183 : index
    %839 = memref.load %arg2[%c183] : memref<324xf32, #tpu.memory_space<smem>>
    %840 = vector.broadcast %839 : f32 to vector<16x16xf32>
    %841 = arith.mulf %840, %35 : vector<16x16xf32>
    %842 = arith.addf %838, %841 : vector<16x16xf32>
    %c184 = arith.constant 184 : index
    %843 = memref.load %arg2[%c184] : memref<324xf32, #tpu.memory_space<smem>>
    %844 = vector.broadcast %843 : f32 to vector<16x16xf32>
    %845 = arith.mulf %844, %36 : vector<16x16xf32>
    %846 = arith.addf %842, %845 : vector<16x16xf32>
    %c185 = arith.constant 185 : index
    %847 = memref.load %arg2[%c185] : memref<324xf32, #tpu.memory_space<smem>>
    %848 = vector.broadcast %847 : f32 to vector<16x16xf32>
    %849 = arith.mulf %848, %37 : vector<16x16xf32>
    %850 = arith.addf %846, %849 : vector<16x16xf32>
    %c186 = arith.constant 186 : index
    %851 = memref.load %arg2[%c186] : memref<324xf32, #tpu.memory_space<smem>>
    %852 = vector.broadcast %851 : f32 to vector<16x16xf32>
    %853 = arith.mulf %852, %39 : vector<16x16xf32>
    %854 = arith.addf %850, %853 : vector<16x16xf32>
    %c187 = arith.constant 187 : index
    %855 = memref.load %arg2[%c187] : memref<324xf32, #tpu.memory_space<smem>>
    %856 = vector.broadcast %855 : f32 to vector<16x16xf32>
    %857 = arith.mulf %856, %40 : vector<16x16xf32>
    %858 = arith.addf %854, %857 : vector<16x16xf32>
    %c188 = arith.constant 188 : index
    %859 = memref.load %arg2[%c188] : memref<324xf32, #tpu.memory_space<smem>>
    %860 = vector.broadcast %859 : f32 to vector<16x16xf32>
    %861 = arith.mulf %860, %41 : vector<16x16xf32>
    %862 = arith.addf %858, %861 : vector<16x16xf32>
    %c189 = arith.constant 189 : index
    %863 = memref.load %arg2[%c189] : memref<324xf32, #tpu.memory_space<smem>>
    %864 = vector.broadcast %863 : f32 to vector<16x16xf32>
    %865 = arith.mulf %864, %45 : vector<16x16xf32>
    %866 = arith.addf %862, %865 : vector<16x16xf32>
    %c190 = arith.constant 190 : index
    %867 = memref.load %arg2[%c190] : memref<324xf32, #tpu.memory_space<smem>>
    %868 = vector.broadcast %867 : f32 to vector<16x16xf32>
    %869 = arith.mulf %868, %46 : vector<16x16xf32>
    %870 = arith.addf %866, %869 : vector<16x16xf32>
    %c191 = arith.constant 191 : index
    %871 = memref.load %arg2[%c191] : memref<324xf32, #tpu.memory_space<smem>>
    %872 = vector.broadcast %871 : f32 to vector<16x16xf32>
    %873 = arith.mulf %872, %47 : vector<16x16xf32>
    %874 = arith.addf %870, %873 : vector<16x16xf32>
    %c192 = arith.constant 192 : index
    %875 = memref.load %arg2[%c192] : memref<324xf32, #tpu.memory_space<smem>>
    %876 = vector.broadcast %875 : f32 to vector<16x16xf32>
    %877 = arith.mulf %876, %49 : vector<16x16xf32>
    %878 = arith.addf %874, %877 : vector<16x16xf32>
    %c193 = arith.constant 193 : index
    %879 = memref.load %arg2[%c193] : memref<324xf32, #tpu.memory_space<smem>>
    %880 = vector.broadcast %879 : f32 to vector<16x16xf32>
    %881 = arith.mulf %880, %50 : vector<16x16xf32>
    %882 = arith.addf %878, %881 : vector<16x16xf32>
    %c194 = arith.constant 194 : index
    %883 = memref.load %arg2[%c194] : memref<324xf32, #tpu.memory_space<smem>>
    %884 = vector.broadcast %883 : f32 to vector<16x16xf32>
    %885 = arith.mulf %884, %51 : vector<16x16xf32>
    %886 = arith.addf %882, %885 : vector<16x16xf32>
    %c195 = arith.constant 195 : index
    %887 = memref.load %arg2[%c195] : memref<324xf32, #tpu.memory_space<smem>>
    %888 = vector.broadcast %887 : f32 to vector<16x16xf32>
    %889 = arith.mulf %888, %53 : vector<16x16xf32>
    %890 = arith.addf %886, %889 : vector<16x16xf32>
    %c196 = arith.constant 196 : index
    %891 = memref.load %arg2[%c196] : memref<324xf32, #tpu.memory_space<smem>>
    %892 = vector.broadcast %891 : f32 to vector<16x16xf32>
    %893 = arith.mulf %892, %54 : vector<16x16xf32>
    %894 = arith.addf %890, %893 : vector<16x16xf32>
    %c197 = arith.constant 197 : index
    %895 = memref.load %arg2[%c197] : memref<324xf32, #tpu.memory_space<smem>>
    %896 = vector.broadcast %895 : f32 to vector<16x16xf32>
    %897 = arith.mulf %896, %55 : vector<16x16xf32>
    %898 = arith.addf %894, %897 : vector<16x16xf32>
    %c198 = arith.constant 198 : index
    %899 = memref.load %arg2[%c198] : memref<324xf32, #tpu.memory_space<smem>>
    %900 = vector.broadcast %899 : f32 to vector<16x16xf32>
    %901 = arith.mulf %900, %59 : vector<16x16xf32>
    %902 = arith.addf %898, %901 : vector<16x16xf32>
    %c199 = arith.constant 199 : index
    %903 = memref.load %arg2[%c199] : memref<324xf32, #tpu.memory_space<smem>>
    %904 = vector.broadcast %903 : f32 to vector<16x16xf32>
    %905 = arith.mulf %904, %60 : vector<16x16xf32>
    %906 = arith.addf %902, %905 : vector<16x16xf32>
    %c200 = arith.constant 200 : index
    %907 = memref.load %arg2[%c200] : memref<324xf32, #tpu.memory_space<smem>>
    %908 = vector.broadcast %907 : f32 to vector<16x16xf32>
    %909 = arith.mulf %908, %61 : vector<16x16xf32>
    %910 = arith.addf %906, %909 : vector<16x16xf32>
    %c201 = arith.constant 201 : index
    %911 = memref.load %arg2[%c201] : memref<324xf32, #tpu.memory_space<smem>>
    %912 = vector.broadcast %911 : f32 to vector<16x16xf32>
    %913 = arith.mulf %912, %63 : vector<16x16xf32>
    %914 = arith.addf %910, %913 : vector<16x16xf32>
    %c202 = arith.constant 202 : index
    %915 = memref.load %arg2[%c202] : memref<324xf32, #tpu.memory_space<smem>>
    %916 = vector.broadcast %915 : f32 to vector<16x16xf32>
    %917 = arith.mulf %916, %64 : vector<16x16xf32>
    %918 = arith.addf %914, %917 : vector<16x16xf32>
    %c203 = arith.constant 203 : index
    %919 = memref.load %arg2[%c203] : memref<324xf32, #tpu.memory_space<smem>>
    %920 = vector.broadcast %919 : f32 to vector<16x16xf32>
    %921 = arith.mulf %920, %65 : vector<16x16xf32>
    %922 = arith.addf %918, %921 : vector<16x16xf32>
    %c204 = arith.constant 204 : index
    %923 = memref.load %arg2[%c204] : memref<324xf32, #tpu.memory_space<smem>>
    %924 = vector.broadcast %923 : f32 to vector<16x16xf32>
    %925 = arith.mulf %924, %67 : vector<16x16xf32>
    %926 = arith.addf %922, %925 : vector<16x16xf32>
    %c205 = arith.constant 205 : index
    %927 = memref.load %arg2[%c205] : memref<324xf32, #tpu.memory_space<smem>>
    %928 = vector.broadcast %927 : f32 to vector<16x16xf32>
    %929 = arith.mulf %928, %68 : vector<16x16xf32>
    %930 = arith.addf %926, %929 : vector<16x16xf32>
    %c206 = arith.constant 206 : index
    %931 = memref.load %arg2[%c206] : memref<324xf32, #tpu.memory_space<smem>>
    %932 = vector.broadcast %931 : f32 to vector<16x16xf32>
    %933 = arith.mulf %932, %69 : vector<16x16xf32>
    %934 = arith.addf %930, %933 : vector<16x16xf32>
    %c207 = arith.constant 207 : index
    %935 = memref.load %arg2[%c207] : memref<324xf32, #tpu.memory_space<smem>>
    %936 = vector.broadcast %935 : f32 to vector<16x16xf32>
    %937 = arith.mulf %936, %73 : vector<16x16xf32>
    %938 = arith.addf %934, %937 : vector<16x16xf32>
    %c208 = arith.constant 208 : index
    %939 = memref.load %arg2[%c208] : memref<324xf32, #tpu.memory_space<smem>>
    %940 = vector.broadcast %939 : f32 to vector<16x16xf32>
    %941 = arith.mulf %940, %74 : vector<16x16xf32>
    %942 = arith.addf %938, %941 : vector<16x16xf32>
    %c209 = arith.constant 209 : index
    %943 = memref.load %arg2[%c209] : memref<324xf32, #tpu.memory_space<smem>>
    %944 = vector.broadcast %943 : f32 to vector<16x16xf32>
    %945 = arith.mulf %944, %75 : vector<16x16xf32>
    %946 = arith.addf %942, %945 : vector<16x16xf32>
    %c210 = arith.constant 210 : index
    %947 = memref.load %arg2[%c210] : memref<324xf32, #tpu.memory_space<smem>>
    %948 = vector.broadcast %947 : f32 to vector<16x16xf32>
    %949 = arith.mulf %948, %77 : vector<16x16xf32>
    %950 = arith.addf %946, %949 : vector<16x16xf32>
    %c211 = arith.constant 211 : index
    %951 = memref.load %arg2[%c211] : memref<324xf32, #tpu.memory_space<smem>>
    %952 = vector.broadcast %951 : f32 to vector<16x16xf32>
    %953 = arith.mulf %952, %78 : vector<16x16xf32>
    %954 = arith.addf %950, %953 : vector<16x16xf32>
    %c212 = arith.constant 212 : index
    %955 = memref.load %arg2[%c212] : memref<324xf32, #tpu.memory_space<smem>>
    %956 = vector.broadcast %955 : f32 to vector<16x16xf32>
    %957 = arith.mulf %956, %79 : vector<16x16xf32>
    %958 = arith.addf %954, %957 : vector<16x16xf32>
    %c213 = arith.constant 213 : index
    %959 = memref.load %arg2[%c213] : memref<324xf32, #tpu.memory_space<smem>>
    %960 = vector.broadcast %959 : f32 to vector<16x16xf32>
    %961 = arith.mulf %960, %81 : vector<16x16xf32>
    %962 = arith.addf %958, %961 : vector<16x16xf32>
    %c214 = arith.constant 214 : index
    %963 = memref.load %arg2[%c214] : memref<324xf32, #tpu.memory_space<smem>>
    %964 = vector.broadcast %963 : f32 to vector<16x16xf32>
    %965 = arith.mulf %964, %82 : vector<16x16xf32>
    %966 = arith.addf %962, %965 : vector<16x16xf32>
    %c215 = arith.constant 215 : index
    %967 = memref.load %arg2[%c215] : memref<324xf32, #tpu.memory_space<smem>>
    %968 = vector.broadcast %967 : f32 to vector<16x16xf32>
    %969 = arith.mulf %968, %83 : vector<16x16xf32>
    %970 = arith.addf %966, %969 : vector<16x16xf32>
    %cst_51 = arith.constant 0.000000e+00 : f32
    %971 = vector.broadcast %cst_51 : f32 to vector<16x16xf32>
    %972 = arith.maximumf %970, %971 : vector<16x16xf32>
    %c0_52 = arith.constant 0 : index
    %c3_53 = arith.constant 3 : index
    %c0_54 = arith.constant 0 : index
    %c0_55 = arith.constant 0 : index
    %c0_56 = arith.constant 0 : index
    %973 = vector.load %arg5[%c0_52, %c3_53, %c0_54, %c0_55, %c0_56] : memref<1x6x1x16x16xf32, #tpu.memory_space<vmem>>, vector<1x1x1x16x16xf32>
    %974 = vector.shape_cast %973 : vector<1x1x1x16x16xf32> to vector<16x16xf32>
    %975 = vector.shape_cast %972 : vector<16x16xf32> to vector<1x1x1x16x16xf32>
    tpu.vector_store %arg5[%c0_52, %c3_53, %c0_54, %c0_55, %c0_56], %975 {strides = array<i32>} : memref<1x6x1x16x16xf32, #tpu.memory_space<vmem>>, vector<1x1x1x16x16xf32>,
    %c4_57 = arith.constant 4 : index
    %976 = memref.load %arg3[%c4_57] : memref<6xf32, #tpu.memory_space<smem>>
    %977 = vector.broadcast %976 : f32 to vector<16x16xf32>
    %c216 = arith.constant 216 : index
    %978 = memref.load %arg2[%c216] : memref<324xf32, #tpu.memory_space<smem>>
    %979 = vector.broadcast %978 : f32 to vector<16x16xf32>
    %980 = arith.mulf %979, %3 : vector<16x16xf32>
    %981 = arith.addf %977, %980 : vector<16x16xf32>
    %c217 = arith.constant 217 : index
    %982 = memref.load %arg2[%c217] : memref<324xf32, #tpu.memory_space<smem>>
    %983 = vector.broadcast %982 : f32 to vector<16x16xf32>
    %984 = arith.mulf %983, %4 : vector<16x16xf32>
    %985 = arith.addf %981, %984 : vector<16x16xf32>
    %c218 = arith.constant 218 : index
    %986 = memref.load %arg2[%c218] : memref<324xf32, #tpu.memory_space<smem>>
    %987 = vector.broadcast %986 : f32 to vector<16x16xf32>
    %988 = arith.mulf %987, %5 : vector<16x16xf32>
    %989 = arith.addf %985, %988 : vector<16x16xf32>
    %c219 = arith.constant 219 : index
    %990 = memref.load %arg2[%c219] : memref<324xf32, #tpu.memory_space<smem>>
    %991 = vector.broadcast %990 : f32 to vector<16x16xf32>
    %992 = arith.mulf %991, %7 : vector<16x16xf32>
    %993 = arith.addf %989, %992 : vector<16x16xf32>
    %c220 = arith.constant 220 : index
    %994 = memref.load %arg2[%c220] : memref<324xf32, #tpu.memory_space<smem>>
    %995 = vector.broadcast %994 : f32 to vector<16x16xf32>
    %996 = arith.mulf %995, %8 : vector<16x16xf32>
    %997 = arith.addf %993, %996 : vector<16x16xf32>
    %c221 = arith.constant 221 : index
    %998 = memref.load %arg2[%c221] : memref<324xf32, #tpu.memory_space<smem>>
    %999 = vector.broadcast %998 : f32 to vector<16x16xf32>
    %1000 = arith.mulf %999, %9 : vector<16x16xf32>
    %1001 = arith.addf %997, %1000 : vector<16x16xf32>
    %c222 = arith.constant 222 : index
    %1002 = memref.load %arg2[%c222] : memref<324xf32, #tpu.memory_space<smem>>
    %1003 = vector.broadcast %1002 : f32 to vector<16x16xf32>
    %1004 = arith.mulf %1003, %11 : vector<16x16xf32>
    %1005 = arith.addf %1001, %1004 : vector<16x16xf32>
    %c223 = arith.constant 223 : index
    %1006 = memref.load %arg2[%c223] : memref<324xf32, #tpu.memory_space<smem>>
    %1007 = vector.broadcast %1006 : f32 to vector<16x16xf32>
    %1008 = arith.mulf %1007, %12 : vector<16x16xf32>
    %1009 = arith.addf %1005, %1008 : vector<16x16xf32>
    %c224 = arith.constant 224 : index
    %1010 = memref.load %arg2[%c224] : memref<324xf32, #tpu.memory_space<smem>>
    %1011 = vector.broadcast %1010 : f32 to vector<16x16xf32>
    %1012 = arith.mulf %1011, %13 : vector<16x16xf32>
    %1013 = arith.addf %1009, %1012 : vector<16x16xf32>
    %c225 = arith.constant 225 : index
    %1014 = memref.load %arg2[%c225] : memref<324xf32, #tpu.memory_space<smem>>
    %1015 = vector.broadcast %1014 : f32 to vector<16x16xf32>
    %1016 = arith.mulf %1015, %17 : vector<16x16xf32>
    %1017 = arith.addf %1013, %1016 : vector<16x16xf32>
    %c226 = arith.constant 226 : index
    %1018 = memref.load %arg2[%c226] : memref<324xf32, #tpu.memory_space<smem>>
    %1019 = vector.broadcast %1018 : f32 to vector<16x16xf32>
    %1020 = arith.mulf %1019, %18 : vector<16x16xf32>
    %1021 = arith.addf %1017, %1020 : vector<16x16xf32>
    %c227 = arith.constant 227 : index
    %1022 = memref.load %arg2[%c227] : memref<324xf32, #tpu.memory_space<smem>>
    %1023 = vector.broadcast %1022 : f32 to vector<16x16xf32>
    %1024 = arith.mulf %1023, %19 : vector<16x16xf32>
    %1025 = arith.addf %1021, %1024 : vector<16x16xf32>
    %c228 = arith.constant 228 : index
    %1026 = memref.load %arg2[%c228] : memref<324xf32, #tpu.memory_space<smem>>
    %1027 = vector.broadcast %1026 : f32 to vector<16x16xf32>
    %1028 = arith.mulf %1027, %21 : vector<16x16xf32>
    %1029 = arith.addf %1025, %1028 : vector<16x16xf32>
    %c229 = arith.constant 229 : index
    %1030 = memref.load %arg2[%c229] : memref<324xf32, #tpu.memory_space<smem>>
    %1031 = vector.broadcast %1030 : f32 to vector<16x16xf32>
    %1032 = arith.mulf %1031, %22 : vector<16x16xf32>
    %1033 = arith.addf %1029, %1032 : vector<16x16xf32>
    %c230 = arith.constant 230 : index
    %1034 = memref.load %arg2[%c230] : memref<324xf32, #tpu.memory_space<smem>>
    %1035 = vector.broadcast %1034 : f32 to vector<16x16xf32>
    %1036 = arith.mulf %1035, %23 : vector<16x16xf32>
    %1037 = arith.addf %1033, %1036 : vector<16x16xf32>
    %c231 = arith.constant 231 : index
    %1038 = memref.load %arg2[%c231] : memref<324xf32, #tpu.memory_space<smem>>
    %1039 = vector.broadcast %1038 : f32 to vector<16x16xf32>
    %1040 = arith.mulf %1039, %25 : vector<16x16xf32>
    %1041 = arith.addf %1037, %1040 : vector<16x16xf32>
    %c232 = arith.constant 232 : index
    %1042 = memref.load %arg2[%c232] : memref<324xf32, #tpu.memory_space<smem>>
    %1043 = vector.broadcast %1042 : f32 to vector<16x16xf32>
    %1044 = arith.mulf %1043, %26 : vector<16x16xf32>
    %1045 = arith.addf %1041, %1044 : vector<16x16xf32>
    %c233 = arith.constant 233 : index
    %1046 = memref.load %arg2[%c233] : memref<324xf32, #tpu.memory_space<smem>>
    %1047 = vector.broadcast %1046 : f32 to vector<16x16xf32>
    %1048 = arith.mulf %1047, %27 : vector<16x16xf32>
    %1049 = arith.addf %1045, %1048 : vector<16x16xf32>
    %c234 = arith.constant 234 : index
    %1050 = memref.load %arg2[%c234] : memref<324xf32, #tpu.memory_space<smem>>
    %1051 = vector.broadcast %1050 : f32 to vector<16x16xf32>
    %1052 = arith.mulf %1051, %31 : vector<16x16xf32>
    %1053 = arith.addf %1049, %1052 : vector<16x16xf32>
    %c235 = arith.constant 235 : index
    %1054 = memref.load %arg2[%c235] : memref<324xf32, #tpu.memory_space<smem>>
    %1055 = vector.broadcast %1054 : f32 to vector<16x16xf32>
    %1056 = arith.mulf %1055, %32 : vector<16x16xf32>
    %1057 = arith.addf %1053, %1056 : vector<16x16xf32>
    %c236 = arith.constant 236 : index
    %1058 = memref.load %arg2[%c236] : memref<324xf32, #tpu.memory_space<smem>>
    %1059 = vector.broadcast %1058 : f32 to vector<16x16xf32>
    %1060 = arith.mulf %1059, %33 : vector<16x16xf32>
    %1061 = arith.addf %1057, %1060 : vector<16x16xf32>
    %c237 = arith.constant 237 : index
    %1062 = memref.load %arg2[%c237] : memref<324xf32, #tpu.memory_space<smem>>
    %1063 = vector.broadcast %1062 : f32 to vector<16x16xf32>
    %1064 = arith.mulf %1063, %35 : vector<16x16xf32>
    %1065 = arith.addf %1061, %1064 : vector<16x16xf32>
    %c238 = arith.constant 238 : index
    %1066 = memref.load %arg2[%c238] : memref<324xf32, #tpu.memory_space<smem>>
    %1067 = vector.broadcast %1066 : f32 to vector<16x16xf32>
    %1068 = arith.mulf %1067, %36 : vector<16x16xf32>
    %1069 = arith.addf %1065, %1068 : vector<16x16xf32>
    %c239 = arith.constant 239 : index
    %1070 = memref.load %arg2[%c239] : memref<324xf32, #tpu.memory_space<smem>>
    %1071 = vector.broadcast %1070 : f32 to vector<16x16xf32>
    %1072 = arith.mulf %1071, %37 : vector<16x16xf32>
    %1073 = arith.addf %1069, %1072 : vector<16x16xf32>
    %c240 = arith.constant 240 : index
    %1074 = memref.load %arg2[%c240] : memref<324xf32, #tpu.memory_space<smem>>
    %1075 = vector.broadcast %1074 : f32 to vector<16x16xf32>
    %1076 = arith.mulf %1075, %39 : vector<16x16xf32>
    %1077 = arith.addf %1073, %1076 : vector<16x16xf32>
    %c241 = arith.constant 241 : index
    %1078 = memref.load %arg2[%c241] : memref<324xf32, #tpu.memory_space<smem>>
    %1079 = vector.broadcast %1078 : f32 to vector<16x16xf32>
    %1080 = arith.mulf %1079, %40 : vector<16x16xf32>
    %1081 = arith.addf %1077, %1080 : vector<16x16xf32>
    %c242 = arith.constant 242 : index
    %1082 = memref.load %arg2[%c242] : memref<324xf32, #tpu.memory_space<smem>>
    %1083 = vector.broadcast %1082 : f32 to vector<16x16xf32>
    %1084 = arith.mulf %1083, %41 : vector<16x16xf32>
    %1085 = arith.addf %1081, %1084 : vector<16x16xf32>
    %c243 = arith.constant 243 : index
    %1086 = memref.load %arg2[%c243] : memref<324xf32, #tpu.memory_space<smem>>
    %1087 = vector.broadcast %1086 : f32 to vector<16x16xf32>
    %1088 = arith.mulf %1087, %45 : vector<16x16xf32>
    %1089 = arith.addf %1085, %1088 : vector<16x16xf32>
    %c244 = arith.constant 244 : index
    %1090 = memref.load %arg2[%c244] : memref<324xf32, #tpu.memory_space<smem>>
    %1091 = vector.broadcast %1090 : f32 to vector<16x16xf32>
    %1092 = arith.mulf %1091, %46 : vector<16x16xf32>
    %1093 = arith.addf %1089, %1092 : vector<16x16xf32>
    %c245 = arith.constant 245 : index
    %1094 = memref.load %arg2[%c245] : memref<324xf32, #tpu.memory_space<smem>>
    %1095 = vector.broadcast %1094 : f32 to vector<16x16xf32>
    %1096 = arith.mulf %1095, %47 : vector<16x16xf32>
    %1097 = arith.addf %1093, %1096 : vector<16x16xf32>
    %c246 = arith.constant 246 : index
    %1098 = memref.load %arg2[%c246] : memref<324xf32, #tpu.memory_space<smem>>
    %1099 = vector.broadcast %1098 : f32 to vector<16x16xf32>
    %1100 = arith.mulf %1099, %49 : vector<16x16xf32>
    %1101 = arith.addf %1097, %1100 : vector<16x16xf32>
    %c247 = arith.constant 247 : index
    %1102 = memref.load %arg2[%c247] : memref<324xf32, #tpu.memory_space<smem>>
    %1103 = vector.broadcast %1102 : f32 to vector<16x16xf32>
    %1104 = arith.mulf %1103, %50 : vector<16x16xf32>
    %1105 = arith.addf %1101, %1104 : vector<16x16xf32>
    %c248 = arith.constant 248 : index
    %1106 = memref.load %arg2[%c248] : memref<324xf32, #tpu.memory_space<smem>>
    %1107 = vector.broadcast %1106 : f32 to vector<16x16xf32>
    %1108 = arith.mulf %1107, %51 : vector<16x16xf32>
    %1109 = arith.addf %1105, %1108 : vector<16x16xf32>
    %c249 = arith.constant 249 : index
    %1110 = memref.load %arg2[%c249] : memref<324xf32, #tpu.memory_space<smem>>
    %1111 = vector.broadcast %1110 : f32 to vector<16x16xf32>
    %1112 = arith.mulf %1111, %53 : vector<16x16xf32>
    %1113 = arith.addf %1109, %1112 : vector<16x16xf32>
    %c250 = arith.constant 250 : index
    %1114 = memref.load %arg2[%c250] : memref<324xf32, #tpu.memory_space<smem>>
    %1115 = vector.broadcast %1114 : f32 to vector<16x16xf32>
    %1116 = arith.mulf %1115, %54 : vector<16x16xf32>
    %1117 = arith.addf %1113, %1116 : vector<16x16xf32>
    %c251 = arith.constant 251 : index
    %1118 = memref.load %arg2[%c251] : memref<324xf32, #tpu.memory_space<smem>>
    %1119 = vector.broadcast %1118 : f32 to vector<16x16xf32>
    %1120 = arith.mulf %1119, %55 : vector<16x16xf32>
    %1121 = arith.addf %1117, %1120 : vector<16x16xf32>
    %c252 = arith.constant 252 : index
    %1122 = memref.load %arg2[%c252] : memref<324xf32, #tpu.memory_space<smem>>
    %1123 = vector.broadcast %1122 : f32 to vector<16x16xf32>
    %1124 = arith.mulf %1123, %59 : vector<16x16xf32>
    %1125 = arith.addf %1121, %1124 : vector<16x16xf32>
    %c253 = arith.constant 253 : index
    %1126 = memref.load %arg2[%c253] : memref<324xf32, #tpu.memory_space<smem>>
    %1127 = vector.broadcast %1126 : f32 to vector<16x16xf32>
    %1128 = arith.mulf %1127, %60 : vector<16x16xf32>
    %1129 = arith.addf %1125, %1128 : vector<16x16xf32>
    %c254 = arith.constant 254 : index
    %1130 = memref.load %arg2[%c254] : memref<324xf32, #tpu.memory_space<smem>>
    %1131 = vector.broadcast %1130 : f32 to vector<16x16xf32>
    %1132 = arith.mulf %1131, %61 : vector<16x16xf32>
    %1133 = arith.addf %1129, %1132 : vector<16x16xf32>
    %c255 = arith.constant 255 : index
    %1134 = memref.load %arg2[%c255] : memref<324xf32, #tpu.memory_space<smem>>
    %1135 = vector.broadcast %1134 : f32 to vector<16x16xf32>
    %1136 = arith.mulf %1135, %63 : vector<16x16xf32>
    %1137 = arith.addf %1133, %1136 : vector<16x16xf32>
    %c256 = arith.constant 256 : index
    %1138 = memref.load %arg2[%c256] : memref<324xf32, #tpu.memory_space<smem>>
    %1139 = vector.broadcast %1138 : f32 to vector<16x16xf32>
    %1140 = arith.mulf %1139, %64 : vector<16x16xf32>
    %1141 = arith.addf %1137, %1140 : vector<16x16xf32>
    %c257 = arith.constant 257 : index
    %1142 = memref.load %arg2[%c257] : memref<324xf32, #tpu.memory_space<smem>>
    %1143 = vector.broadcast %1142 : f32 to vector<16x16xf32>
    %1144 = arith.mulf %1143, %65 : vector<16x16xf32>
    %1145 = arith.addf %1141, %1144 : vector<16x16xf32>
    %c258 = arith.constant 258 : index
    %1146 = memref.load %arg2[%c258] : memref<324xf32, #tpu.memory_space<smem>>
    %1147 = vector.broadcast %1146 : f32 to vector<16x16xf32>
    %1148 = arith.mulf %1147, %67 : vector<16x16xf32>
    %1149 = arith.addf %1145, %1148 : vector<16x16xf32>
    %c259 = arith.constant 259 : index
    %1150 = memref.load %arg2[%c259] : memref<324xf32, #tpu.memory_space<smem>>
    %1151 = vector.broadcast %1150 : f32 to vector<16x16xf32>
    %1152 = arith.mulf %1151, %68 : vector<16x16xf32>
    %1153 = arith.addf %1149, %1152 : vector<16x16xf32>
    %c260 = arith.constant 260 : index
    %1154 = memref.load %arg2[%c260] : memref<324xf32, #tpu.memory_space<smem>>
    %1155 = vector.broadcast %1154 : f32 to vector<16x16xf32>
    %1156 = arith.mulf %1155, %69 : vector<16x16xf32>
    %1157 = arith.addf %1153, %1156 : vector<16x16xf32>
    %c261 = arith.constant 261 : index
    %1158 = memref.load %arg2[%c261] : memref<324xf32, #tpu.memory_space<smem>>
    %1159 = vector.broadcast %1158 : f32 to vector<16x16xf32>
    %1160 = arith.mulf %1159, %73 : vector<16x16xf32>
    %1161 = arith.addf %1157, %1160 : vector<16x16xf32>
    %c262 = arith.constant 262 : index
    %1162 = memref.load %arg2[%c262] : memref<324xf32, #tpu.memory_space<smem>>
    %1163 = vector.broadcast %1162 : f32 to vector<16x16xf32>
    %1164 = arith.mulf %1163, %74 : vector<16x16xf32>
    %1165 = arith.addf %1161, %1164 : vector<16x16xf32>
    %c263 = arith.constant 263 : index
    %1166 = memref.load %arg2[%c263] : memref<324xf32, #tpu.memory_space<smem>>
    %1167 = vector.broadcast %1166 : f32 to vector<16x16xf32>
    %1168 = arith.mulf %1167, %75 : vector<16x16xf32>
    %1169 = arith.addf %1165, %1168 : vector<16x16xf32>
    %c264 = arith.constant 264 : index
    %1170 = memref.load %arg2[%c264] : memref<324xf32, #tpu.memory_space<smem>>
    %1171 = vector.broadcast %1170 : f32 to vector<16x16xf32>
    %1172 = arith.mulf %1171, %77 : vector<16x16xf32>
    %1173 = arith.addf %1169, %1172 : vector<16x16xf32>
    %c265 = arith.constant 265 : index
    %1174 = memref.load %arg2[%c265] : memref<324xf32, #tpu.memory_space<smem>>
    %1175 = vector.broadcast %1174 : f32 to vector<16x16xf32>
    %1176 = arith.mulf %1175, %78 : vector<16x16xf32>
    %1177 = arith.addf %1173, %1176 : vector<16x16xf32>
    %c266 = arith.constant 266 : index
    %1178 = memref.load %arg2[%c266] : memref<324xf32, #tpu.memory_space<smem>>
    %1179 = vector.broadcast %1178 : f32 to vector<16x16xf32>
    %1180 = arith.mulf %1179, %79 : vector<16x16xf32>
    %1181 = arith.addf %1177, %1180 : vector<16x16xf32>
    %c267 = arith.constant 267 : index
    %1182 = memref.load %arg2[%c267] : memref<324xf32, #tpu.memory_space<smem>>
    %1183 = vector.broadcast %1182 : f32 to vector<16x16xf32>
    %1184 = arith.mulf %1183, %81 : vector<16x16xf32>
    %1185 = arith.addf %1181, %1184 : vector<16x16xf32>
    %c268 = arith.constant 268 : index
    %1186 = memref.load %arg2[%c268] : memref<324xf32, #tpu.memory_space<smem>>
    %1187 = vector.broadcast %1186 : f32 to vector<16x16xf32>
    %1188 = arith.mulf %1187, %82 : vector<16x16xf32>
    %1189 = arith.addf %1185, %1188 : vector<16x16xf32>
    %c269 = arith.constant 269 : index
    %1190 = memref.load %arg2[%c269] : memref<324xf32, #tpu.memory_space<smem>>
    %1191 = vector.broadcast %1190 : f32 to vector<16x16xf32>
    %1192 = arith.mulf %1191, %83 : vector<16x16xf32>
    %1193 = arith.addf %1189, %1192 : vector<16x16xf32>
    %cst_58 = arith.constant 0.000000e+00 : f32
    %1194 = vector.broadcast %cst_58 : f32 to vector<16x16xf32>
    %1195 = arith.maximumf %1193, %1194 : vector<16x16xf32>
    %c0_59 = arith.constant 0 : index
    %c4_60 = arith.constant 4 : index
    %c0_61 = arith.constant 0 : index
    %c0_62 = arith.constant 0 : index
    %c0_63 = arith.constant 0 : index
    %1196 = vector.load %arg5[%c0_59, %c4_60, %c0_61, %c0_62, %c0_63] : memref<1x6x1x16x16xf32, #tpu.memory_space<vmem>>, vector<1x1x1x16x16xf32>
    %1197 = vector.shape_cast %1196 : vector<1x1x1x16x16xf32> to vector<16x16xf32>
    %1198 = vector.shape_cast %1195 : vector<16x16xf32> to vector<1x1x1x16x16xf32>
    tpu.vector_store %arg5[%c0_59, %c4_60, %c0_61, %c0_62, %c0_63], %1198 {strides = array<i32>} : memref<1x6x1x16x16xf32, #tpu.memory_space<vmem>>, vector<1x1x1x16x16xf32>,
    %c5_64 = arith.constant 5 : index
    %1199 = memref.load %arg3[%c5_64] : memref<6xf32, #tpu.memory_space<smem>>
    %1200 = vector.broadcast %1199 : f32 to vector<16x16xf32>
    %c270 = arith.constant 270 : index
    %1201 = memref.load %arg2[%c270] : memref<324xf32, #tpu.memory_space<smem>>
    %1202 = vector.broadcast %1201 : f32 to vector<16x16xf32>
    %1203 = arith.mulf %1202, %3 : vector<16x16xf32>
    %1204 = arith.addf %1200, %1203 : vector<16x16xf32>
    %c271 = arith.constant 271 : index
    %1205 = memref.load %arg2[%c271] : memref<324xf32, #tpu.memory_space<smem>>
    %1206 = vector.broadcast %1205 : f32 to vector<16x16xf32>
    %1207 = arith.mulf %1206, %4 : vector<16x16xf32>
    %1208 = arith.addf %1204, %1207 : vector<16x16xf32>
    %c272 = arith.constant 272 : index
    %1209 = memref.load %arg2[%c272] : memref<324xf32, #tpu.memory_space<smem>>
    %1210 = vector.broadcast %1209 : f32 to vector<16x16xf32>
    %1211 = arith.mulf %1210, %5 : vector<16x16xf32>
    %1212 = arith.addf %1208, %1211 : vector<16x16xf32>
    %c273 = arith.constant 273 : index
    %1213 = memref.load %arg2[%c273] : memref<324xf32, #tpu.memory_space<smem>>
    %1214 = vector.broadcast %1213 : f32 to vector<16x16xf32>
    %1215 = arith.mulf %1214, %7 : vector<16x16xf32>
    %1216 = arith.addf %1212, %1215 : vector<16x16xf32>
    %c274 = arith.constant 274 : index
    %1217 = memref.load %arg2[%c274] : memref<324xf32, #tpu.memory_space<smem>>
    %1218 = vector.broadcast %1217 : f32 to vector<16x16xf32>
    %1219 = arith.mulf %1218, %8 : vector<16x16xf32>
    %1220 = arith.addf %1216, %1219 : vector<16x16xf32>
    %c275 = arith.constant 275 : index
    %1221 = memref.load %arg2[%c275] : memref<324xf32, #tpu.memory_space<smem>>
    %1222 = vector.broadcast %1221 : f32 to vector<16x16xf32>
    %1223 = arith.mulf %1222, %9 : vector<16x16xf32>
    %1224 = arith.addf %1220, %1223 : vector<16x16xf32>
    %c276 = arith.constant 276 : index
    %1225 = memref.load %arg2[%c276] : memref<324xf32, #tpu.memory_space<smem>>
    %1226 = vector.broadcast %1225 : f32 to vector<16x16xf32>
    %1227 = arith.mulf %1226, %11 : vector<16x16xf32>
    %1228 = arith.addf %1224, %1227 : vector<16x16xf32>
    %c277 = arith.constant 277 : index
    %1229 = memref.load %arg2[%c277] : memref<324xf32, #tpu.memory_space<smem>>
    %1230 = vector.broadcast %1229 : f32 to vector<16x16xf32>
    %1231 = arith.mulf %1230, %12 : vector<16x16xf32>
    %1232 = arith.addf %1228, %1231 : vector<16x16xf32>
    %c278 = arith.constant 278 : index
    %1233 = memref.load %arg2[%c278] : memref<324xf32, #tpu.memory_space<smem>>
    %1234 = vector.broadcast %1233 : f32 to vector<16x16xf32>
    %1235 = arith.mulf %1234, %13 : vector<16x16xf32>
    %1236 = arith.addf %1232, %1235 : vector<16x16xf32>
    %c279 = arith.constant 279 : index
    %1237 = memref.load %arg2[%c279] : memref<324xf32, #tpu.memory_space<smem>>
    %1238 = vector.broadcast %1237 : f32 to vector<16x16xf32>
    %1239 = arith.mulf %1238, %17 : vector<16x16xf32>
    %1240 = arith.addf %1236, %1239 : vector<16x16xf32>
    %c280 = arith.constant 280 : index
    %1241 = memref.load %arg2[%c280] : memref<324xf32, #tpu.memory_space<smem>>
    %1242 = vector.broadcast %1241 : f32 to vector<16x16xf32>
    %1243 = arith.mulf %1242, %18 : vector<16x16xf32>
    %1244 = arith.addf %1240, %1243 : vector<16x16xf32>
    %c281 = arith.constant 281 : index
    %1245 = memref.load %arg2[%c281] : memref<324xf32, #tpu.memory_space<smem>>
    %1246 = vector.broadcast %1245 : f32 to vector<16x16xf32>
    %1247 = arith.mulf %1246, %19 : vector<16x16xf32>
    %1248 = arith.addf %1244, %1247 : vector<16x16xf32>
    %c282 = arith.constant 282 : index
    %1249 = memref.load %arg2[%c282] : memref<324xf32, #tpu.memory_space<smem>>
    %1250 = vector.broadcast %1249 : f32 to vector<16x16xf32>
    %1251 = arith.mulf %1250, %21 : vector<16x16xf32>
    %1252 = arith.addf %1248, %1251 : vector<16x16xf32>
    %c283 = arith.constant 283 : index
    %1253 = memref.load %arg2[%c283] : memref<324xf32, #tpu.memory_space<smem>>
    %1254 = vector.broadcast %1253 : f32 to vector<16x16xf32>
    %1255 = arith.mulf %1254, %22 : vector<16x16xf32>
    %1256 = arith.addf %1252, %1255 : vector<16x16xf32>
    %c284 = arith.constant 284 : index
    %1257 = memref.load %arg2[%c284] : memref<324xf32, #tpu.memory_space<smem>>
    %1258 = vector.broadcast %1257 : f32 to vector<16x16xf32>
    %1259 = arith.mulf %1258, %23 : vector<16x16xf32>
    %1260 = arith.addf %1256, %1259 : vector<16x16xf32>
    %c285 = arith.constant 285 : index
    %1261 = memref.load %arg2[%c285] : memref<324xf32, #tpu.memory_space<smem>>
    %1262 = vector.broadcast %1261 : f32 to vector<16x16xf32>
    %1263 = arith.mulf %1262, %25 : vector<16x16xf32>
    %1264 = arith.addf %1260, %1263 : vector<16x16xf32>
    %c286 = arith.constant 286 : index
    %1265 = memref.load %arg2[%c286] : memref<324xf32, #tpu.memory_space<smem>>
    %1266 = vector.broadcast %1265 : f32 to vector<16x16xf32>
    %1267 = arith.mulf %1266, %26 : vector<16x16xf32>
    %1268 = arith.addf %1264, %1267 : vector<16x16xf32>
    %c287 = arith.constant 287 : index
    %1269 = memref.load %arg2[%c287] : memref<324xf32, #tpu.memory_space<smem>>
    %1270 = vector.broadcast %1269 : f32 to vector<16x16xf32>
    %1271 = arith.mulf %1270, %27 : vector<16x16xf32>
    %1272 = arith.addf %1268, %1271 : vector<16x16xf32>
    %c288 = arith.constant 288 : index
    %1273 = memref.load %arg2[%c288] : memref<324xf32, #tpu.memory_space<smem>>
    %1274 = vector.broadcast %1273 : f32 to vector<16x16xf32>
    %1275 = arith.mulf %1274, %31 : vector<16x16xf32>
    %1276 = arith.addf %1272, %1275 : vector<16x16xf32>
    %c289 = arith.constant 289 : index
    %1277 = memref.load %arg2[%c289] : memref<324xf32, #tpu.memory_space<smem>>
    %1278 = vector.broadcast %1277 : f32 to vector<16x16xf32>
    %1279 = arith.mulf %1278, %32 : vector<16x16xf32>
    %1280 = arith.addf %1276, %1279 : vector<16x16xf32>
    %c290 = arith.constant 290 : index
    %1281 = memref.load %arg2[%c290] : memref<324xf32, #tpu.memory_space<smem>>
    %1282 = vector.broadcast %1281 : f32 to vector<16x16xf32>
    %1283 = arith.mulf %1282, %33 : vector<16x16xf32>
    %1284 = arith.addf %1280, %1283 : vector<16x16xf32>
    %c291 = arith.constant 291 : index
    %1285 = memref.load %arg2[%c291] : memref<324xf32, #tpu.memory_space<smem>>
    %1286 = vector.broadcast %1285 : f32 to vector<16x16xf32>
    %1287 = arith.mulf %1286, %35 : vector<16x16xf32>
    %1288 = arith.addf %1284, %1287 : vector<16x16xf32>
    %c292 = arith.constant 292 : index
    %1289 = memref.load %arg2[%c292] : memref<324xf32, #tpu.memory_space<smem>>
    %1290 = vector.broadcast %1289 : f32 to vector<16x16xf32>
    %1291 = arith.mulf %1290, %36 : vector<16x16xf32>
    %1292 = arith.addf %1288, %1291 : vector<16x16xf32>
    %c293 = arith.constant 293 : index
    %1293 = memref.load %arg2[%c293] : memref<324xf32, #tpu.memory_space<smem>>
    %1294 = vector.broadcast %1293 : f32 to vector<16x16xf32>
    %1295 = arith.mulf %1294, %37 : vector<16x16xf32>
    %1296 = arith.addf %1292, %1295 : vector<16x16xf32>
    %c294 = arith.constant 294 : index
    %1297 = memref.load %arg2[%c294] : memref<324xf32, #tpu.memory_space<smem>>
    %1298 = vector.broadcast %1297 : f32 to vector<16x16xf32>
    %1299 = arith.mulf %1298, %39 : vector<16x16xf32>
    %1300 = arith.addf %1296, %1299 : vector<16x16xf32>
    %c295 = arith.constant 295 : index
    %1301 = memref.load %arg2[%c295] : memref<324xf32, #tpu.memory_space<smem>>
    %1302 = vector.broadcast %1301 : f32 to vector<16x16xf32>
    %1303 = arith.mulf %1302, %40 : vector<16x16xf32>
    %1304 = arith.addf %1300, %1303 : vector<16x16xf32>
    %c296 = arith.constant 296 : index
    %1305 = memref.load %arg2[%c296] : memref<324xf32, #tpu.memory_space<smem>>
    %1306 = vector.broadcast %1305 : f32 to vector<16x16xf32>
    %1307 = arith.mulf %1306, %41 : vector<16x16xf32>
    %1308 = arith.addf %1304, %1307 : vector<16x16xf32>
    %c297 = arith.constant 297 : index
    %1309 = memref.load %arg2[%c297] : memref<324xf32, #tpu.memory_space<smem>>
    %1310 = vector.broadcast %1309 : f32 to vector<16x16xf32>
    %1311 = arith.mulf %1310, %45 : vector<16x16xf32>
    %1312 = arith.addf %1308, %1311 : vector<16x16xf32>
    %c298 = arith.constant 298 : index
    %1313 = memref.load %arg2[%c298] : memref<324xf32, #tpu.memory_space<smem>>
    %1314 = vector.broadcast %1313 : f32 to vector<16x16xf32>
    %1315 = arith.mulf %1314, %46 : vector<16x16xf32>
    %1316 = arith.addf %1312, %1315 : vector<16x16xf32>
    %c299 = arith.constant 299 : index
    %1317 = memref.load %arg2[%c299] : memref<324xf32, #tpu.memory_space<smem>>
    %1318 = vector.broadcast %1317 : f32 to vector<16x16xf32>
    %1319 = arith.mulf %1318, %47 : vector<16x16xf32>
    %1320 = arith.addf %1316, %1319 : vector<16x16xf32>
    %c300 = arith.constant 300 : index
    %1321 = memref.load %arg2[%c300] : memref<324xf32, #tpu.memory_space<smem>>
    %1322 = vector.broadcast %1321 : f32 to vector<16x16xf32>
    %1323 = arith.mulf %1322, %49 : vector<16x16xf32>
    %1324 = arith.addf %1320, %1323 : vector<16x16xf32>
    %c301 = arith.constant 301 : index
    %1325 = memref.load %arg2[%c301] : memref<324xf32, #tpu.memory_space<smem>>
    %1326 = vector.broadcast %1325 : f32 to vector<16x16xf32>
    %1327 = arith.mulf %1326, %50 : vector<16x16xf32>
    %1328 = arith.addf %1324, %1327 : vector<16x16xf32>
    %c302 = arith.constant 302 : index
    %1329 = memref.load %arg2[%c302] : memref<324xf32, #tpu.memory_space<smem>>
    %1330 = vector.broadcast %1329 : f32 to vector<16x16xf32>
    %1331 = arith.mulf %1330, %51 : vector<16x16xf32>
    %1332 = arith.addf %1328, %1331 : vector<16x16xf32>
    %c303 = arith.constant 303 : index
    %1333 = memref.load %arg2[%c303] : memref<324xf32, #tpu.memory_space<smem>>
    %1334 = vector.broadcast %1333 : f32 to vector<16x16xf32>
    %1335 = arith.mulf %1334, %53 : vector<16x16xf32>
    %1336 = arith.addf %1332, %1335 : vector<16x16xf32>
    %c304 = arith.constant 304 : index
    %1337 = memref.load %arg2[%c304] : memref<324xf32, #tpu.memory_space<smem>>
    %1338 = vector.broadcast %1337 : f32 to vector<16x16xf32>
    %1339 = arith.mulf %1338, %54 : vector<16x16xf32>
    %1340 = arith.addf %1336, %1339 : vector<16x16xf32>
    %c305 = arith.constant 305 : index
    %1341 = memref.load %arg2[%c305] : memref<324xf32, #tpu.memory_space<smem>>
    %1342 = vector.broadcast %1341 : f32 to vector<16x16xf32>
    %1343 = arith.mulf %1342, %55 : vector<16x16xf32>
    %1344 = arith.addf %1340, %1343 : vector<16x16xf32>
    %c306 = arith.constant 306 : index
    %1345 = memref.load %arg2[%c306] : memref<324xf32, #tpu.memory_space<smem>>
    %1346 = vector.broadcast %1345 : f32 to vector<16x16xf32>
    %1347 = arith.mulf %1346, %59 : vector<16x16xf32>
    %1348 = arith.addf %1344, %1347 : vector<16x16xf32>
    %c307 = arith.constant 307 : index
    %1349 = memref.load %arg2[%c307] : memref<324xf32, #tpu.memory_space<smem>>
    %1350 = vector.broadcast %1349 : f32 to vector<16x16xf32>
    %1351 = arith.mulf %1350, %60 : vector<16x16xf32>
    %1352 = arith.addf %1348, %1351 : vector<16x16xf32>
    %c308 = arith.constant 308 : index
    %1353 = memref.load %arg2[%c308] : memref<324xf32, #tpu.memory_space<smem>>
    %1354 = vector.broadcast %1353 : f32 to vector<16x16xf32>
    %1355 = arith.mulf %1354, %61 : vector<16x16xf32>
    %1356 = arith.addf %1352, %1355 : vector<16x16xf32>
    %c309 = arith.constant 309 : index
    %1357 = memref.load %arg2[%c309] : memref<324xf32, #tpu.memory_space<smem>>
    %1358 = vector.broadcast %1357 : f32 to vector<16x16xf32>
    %1359 = arith.mulf %1358, %63 : vector<16x16xf32>
    %1360 = arith.addf %1356, %1359 : vector<16x16xf32>
    %c310 = arith.constant 310 : index
    %1361 = memref.load %arg2[%c310] : memref<324xf32, #tpu.memory_space<smem>>
    %1362 = vector.broadcast %1361 : f32 to vector<16x16xf32>
    %1363 = arith.mulf %1362, %64 : vector<16x16xf32>
    %1364 = arith.addf %1360, %1363 : vector<16x16xf32>
    %c311 = arith.constant 311 : index
    %1365 = memref.load %arg2[%c311] : memref<324xf32, #tpu.memory_space<smem>>
    %1366 = vector.broadcast %1365 : f32 to vector<16x16xf32>
    %1367 = arith.mulf %1366, %65 : vector<16x16xf32>
    %1368 = arith.addf %1364, %1367 : vector<16x16xf32>
    %c312 = arith.constant 312 : index
    %1369 = memref.load %arg2[%c312] : memref<324xf32, #tpu.memory_space<smem>>
    %1370 = vector.broadcast %1369 : f32 to vector<16x16xf32>
    %1371 = arith.mulf %1370, %67 : vector<16x16xf32>
    %1372 = arith.addf %1368, %1371 : vector<16x16xf32>
    %c313 = arith.constant 313 : index
    %1373 = memref.load %arg2[%c313] : memref<324xf32, #tpu.memory_space<smem>>
    %1374 = vector.broadcast %1373 : f32 to vector<16x16xf32>
    %1375 = arith.mulf %1374, %68 : vector<16x16xf32>
    %1376 = arith.addf %1372, %1375 : vector<16x16xf32>
    %c314 = arith.constant 314 : index
    %1377 = memref.load %arg2[%c314] : memref<324xf32, #tpu.memory_space<smem>>
    %1378 = vector.broadcast %1377 : f32 to vector<16x16xf32>
    %1379 = arith.mulf %1378, %69 : vector<16x16xf32>
    %1380 = arith.addf %1376, %1379 : vector<16x16xf32>
    %c315 = arith.constant 315 : index
    %1381 = memref.load %arg2[%c315] : memref<324xf32, #tpu.memory_space<smem>>
    %1382 = vector.broadcast %1381 : f32 to vector<16x16xf32>
    %1383 = arith.mulf %1382, %73 : vector<16x16xf32>
    %1384 = arith.addf %1380, %1383 : vector<16x16xf32>
    %c316 = arith.constant 316 : index
    %1385 = memref.load %arg2[%c316] : memref<324xf32, #tpu.memory_space<smem>>
    %1386 = vector.broadcast %1385 : f32 to vector<16x16xf32>
    %1387 = arith.mulf %1386, %74 : vector<16x16xf32>
    %1388 = arith.addf %1384, %1387 : vector<16x16xf32>
    %c317 = arith.constant 317 : index
    %1389 = memref.load %arg2[%c317] : memref<324xf32, #tpu.memory_space<smem>>
    %1390 = vector.broadcast %1389 : f32 to vector<16x16xf32>
    %1391 = arith.mulf %1390, %75 : vector<16x16xf32>
    %1392 = arith.addf %1388, %1391 : vector<16x16xf32>
    %c318 = arith.constant 318 : index
    %1393 = memref.load %arg2[%c318] : memref<324xf32, #tpu.memory_space<smem>>
    %1394 = vector.broadcast %1393 : f32 to vector<16x16xf32>
    %1395 = arith.mulf %1394, %77 : vector<16x16xf32>
    %1396 = arith.addf %1392, %1395 : vector<16x16xf32>
    %c319 = arith.constant 319 : index
    %1397 = memref.load %arg2[%c319] : memref<324xf32, #tpu.memory_space<smem>>
    %1398 = vector.broadcast %1397 : f32 to vector<16x16xf32>
    %1399 = arith.mulf %1398, %78 : vector<16x16xf32>
    %1400 = arith.addf %1396, %1399 : vector<16x16xf32>
    %c320 = arith.constant 320 : index
    %1401 = memref.load %arg2[%c320] : memref<324xf32, #tpu.memory_space<smem>>
    %1402 = vector.broadcast %1401 : f32 to vector<16x16xf32>
    %1403 = arith.mulf %1402, %79 : vector<16x16xf32>
    %1404 = arith.addf %1400, %1403 : vector<16x16xf32>
    %c321 = arith.constant 321 : index
    %1405 = memref.load %arg2[%c321] : memref<324xf32, #tpu.memory_space<smem>>
    %1406 = vector.broadcast %1405 : f32 to vector<16x16xf32>
    %1407 = arith.mulf %1406, %81 : vector<16x16xf32>
    %1408 = arith.addf %1404, %1407 : vector<16x16xf32>
    %c322 = arith.constant 322 : index
    %1409 = memref.load %arg2[%c322] : memref<324xf32, #tpu.memory_space<smem>>
    %1410 = vector.broadcast %1409 : f32 to vector<16x16xf32>
    %1411 = arith.mulf %1410, %82 : vector<16x16xf32>
    %1412 = arith.addf %1408, %1411 : vector<16x16xf32>
    %c323 = arith.constant 323 : index
    %1413 = memref.load %arg2[%c323] : memref<324xf32, #tpu.memory_space<smem>>
    %1414 = vector.broadcast %1413 : f32 to vector<16x16xf32>
    %1415 = arith.mulf %1414, %83 : vector<16x16xf32>
    %1416 = arith.addf %1412, %1415 : vector<16x16xf32>
    %cst_65 = arith.constant 0.000000e+00 : f32
    %1417 = vector.broadcast %cst_65 : f32 to vector<16x16xf32>
    %1418 = arith.maximumf %1416, %1417 : vector<16x16xf32>
    %c0_66 = arith.constant 0 : index
    %c5_67 = arith.constant 5 : index
    %c0_68 = arith.constant 0 : index
    %c0_69 = arith.constant 0 : index
    %c0_70 = arith.constant 0 : index
    %1419 = vector.load %arg5[%c0_66, %c5_67, %c0_68, %c0_69, %c0_70] : memref<1x6x1x16x16xf32, #tpu.memory_space<vmem>>, vector<1x1x1x16x16xf32>
    %1420 = vector.shape_cast %1419 : vector<1x1x1x16x16xf32> to vector<16x16xf32>
    %1421 = vector.shape_cast %1418 : vector<16x16xf32> to vector<1x1x1x16x16xf32>
    tpu.vector_store %arg5[%c0_66, %c5_67, %c0_68, %c0_69, %c0_70], %1421 {strides = array<i32>} : memref<1x6x1x16x16xf32, #tpu.memory_space<vmem>>, vector<1x1x1x16x16xf32>,
    return
  }
  func.func @transform_0(%arg0: i32, %arg1: i32) -> i32 {
    %c0_i32 = arith.constant 0 : i32
    %c0_i32_0 = arith.constant 0 : i32
    return %c0_i32 : i32
  }
  func.func @transform_1(%arg0: i32, %arg1: i32) -> i32 {
    %c0_i32 = arith.constant 0 : i32
    %c0_i32_0 = arith.constant 0 : i32
    return %c0_i32 : i32
  }
  func.func @transform_2(%arg0: i32, %arg1: i32) -> (i32, i32, i32, i32, i32) {
    %c0_i32 = arith.constant 0 : i32
    %c0_i32_0 = arith.constant 0 : i32
    %c0_i32_1 = arith.constant 0 : i32
    %c0_i32_2 = arith.constant 0 : i32
    return %arg0, %arg1, %c0_i32, %c0_i32_0, %c0_i32_1 : i32, i32, i32, i32, i32
  }
  func.func @transform_3(%arg0: i32, %arg1: i32) -> (i32, i32, i32, i32, i32) {
    %c0_i32 = arith.constant 0 : i32
    %c0_i32_0 = arith.constant 0 : i32
    %c0_i32_1 = arith.constant 0 : i32
    %c0_i32_2 = arith.constant 0 : i32
    return %arg0, %c0_i32, %arg1, %c0_i32_0, %c0_i32_1 : i32, i32, i32, i32, i32
  }
}

</mosaic_0001>

<llo_original>
// kernel: tpu_custom_call.1
$region0: #{tpu_custom_call.1}
  #allocation0 [shape = 'u32[]', space=smem, size = 0x4, offset = 0x4, fixed_abs, tag = 'smem constant byte address 0x4 - core index']
  #allocation1 [shape = 'u32[144,128]{1,0:T(1,128)}', space=vmem, size = 0x12000, scoped, tag = 'internal scratch']
  %s0 = inlined_call_operand.vmem [shape: f32[324], index: 0, kind: input, shape index: {}]
  %s1 = inlined_call_operand.vmem [shape: f32[6], index: 1, kind: input, shape index: {}]
  %s2 = inlined_call_operand.vmem [shape: f32[2,1,6,18,18], index: 2, kind: input, shape index: {}]
  %s3 = inlined_call_operand.hbm [shape: f32[2,6,1,16,16], index: 3, kind: output, shape index: {}]
  %s4 = sld [smem:[#allocation0]]
  $region53: #{tpu_custom_call.1} parent=0
    _
  %s6 = ssub.s32 1, %s4
  %s7 = scalar_select 0, %s6, %s4
  $region1: #{tpu_custom_call.1} parent=0
    #allocation2 [shape = 'u8[1536]{0}', space=smem, size = 0x600, scoped, tag = 'input window, operand 0, single buffered']
    #allocation3 [shape = 's32[2]{0}', space=sflag, size = 0x8, scoped, tag = 'scoped memory for tpu_custom_call.1']
    #allocation4 [shape = 's32[2]{0}', space=sflag, size = 0x8, scoped, tag = 'scoped memory for tpu_custom_call.1']
    #allocation5 [shape = 'u8[512]{0}', space=smem, size = 0x200, scoped, tag = 'input window, operand 1, single buffered']
    #allocation6 [shape = 's32[1]{0}', space=sflag, size = 0x4, scoped, tag = 'scoped memory for tpu_custom_call.1']
    #allocation7 [shape = 'u8[98304]{0}', space=vmem, size = 0x18000, scoped, tag = 'output window, operand 0']
    %8 = vsyncpa [#allocation4], 0
    %9 = vsyncpa [#allocation6], 0
    %10 = vsyncpa [#allocation3], 0
    %s11 = scalar_lea.sflag [#allocation3], 1
    %12 = vsyncpa %s11, 0
    loop: start=0, step=1, limit=4
    $region2: #{tpu_custom_call.1} parent=1 // loop_pre_header
      _
    $region3: #{tpu_custom_call.1} parent=1 // loop_header
      %s14 = sphi 0, %s18
      %p15 = scmp.ge.s32.totalorder %s14, 4
      %s21 = sphi 0, %s33
      %s22 = sphi 0, %s29
      %s23 = sphi 0, %s21
      %s24 = sphi 0, %s22
      %s25 = sphi 0, %s23
      %s26 = sphi 0, %s24
      %s34 = sphi 0, %s34
      %s36 = sphi 0, %s34
      %s37 = sphi 0, %s36
      %s51 = sphi 0, %s37
      %s55 = sphi 0, %s55
      %s57 = sphi 0, %s55
      %s58 = sphi 0, %s57
      %s72 = sphi 0, %s58
      %s80 = sphi 0, %s82
      %s83 = sphi 0, %s80
      %s84 = sphi 0, %s83
      %s100 = sphi 0, %s84
      %s108 = sphi 0, %s110
      %s111 = sphi 0, %s108
      %s112 = sphi 0, %s111
      %s128 = sphi 0, %s112
    $region4: #{tpu_custom_call.1} parent=1 // loop_header_branch
      %17 = sbr.rel (%p15) target = $region8
    $region5: #{tpu_custom_call.1} parent=1 // loop_body
      %s19 = ssub.s32 %s14, 1
      %s20 = ssub.s32 %s14, 2
      %s27 = sadd.s32 1, %s22
      %p28 = scmp.ge.s32.totalorder %s27, 1
      %s29 = scalar_select %p28, 0, %s27
      %s30 = sadd.s32 1, %s21
      %s31 = scalar_select %p28, %s30, %s21
      %p32 = scmp.ge.s32.totalorder %s31, 2
      %s33 = scalar_select %p32, 0, %s31
      %s35 = sadd.s32 %s34, 1
      %p38 = scmp.eq.s32.totalorder %s14, 1
      %p39 = scmp.ne.s32.totalorder %s34, %s36
      %p40 = scmp.eq.s32.totalorder %s14, 0
      %p41 = por %p39, %p40
      %p42 = scmp.ne.s32.totalorder %s34, %s36
      %p43 = scmp.eq.s32.totalorder %s19, 1
      %p44 = por %p42, %p43
      %p45 = scmp.ne.s32.totalorder %s36, %s37
      %p46 = scmp.eq.s32.totalorder %s19, 0
      %p47 = por %p45, %p46
      %p48 = scmp.ne.s32.totalorder %s36, %s37
      %p49 = scmp.eq.s32.totalorder %s20, 1
      %p50 = por %p48, %p49
      %p52 = scmp.ne.s32.totalorder %s37, %s51
      %p53 = scmp.eq.s32.totalorder %s20, 0
      %p54 = por %p52, %p53
      %s56 = sadd.s32 %s55, 1
      %p59 = scmp.eq.s32.totalorder %s14, 1
      %p60 = scmp.ne.s32.totalorder %s55, %s57
      %p61 = scmp.eq.s32.totalorder %s14, 0
      %p62 = por %p60, %p61
      %p63 = scmp.ne.s32.totalorder %s55, %s57
      %p64 = scmp.eq.s32.totalorder %s19, 1
      %p65 = por %p63, %p64
      %p66 = scmp.ne.s32.totalorder %s57, %s58
      %p67 = scmp.eq.s32.totalorder %s19, 0
      %p68 = por %p66, %p67
      %p69 = scmp.ne.s32.totalorder %s57, %s58
      %p70 = scmp.eq.s32.totalorder %s20, 1
      %p71 = por %p69, %p70
      %p73 = scmp.ne.s32.totalorder %s58, %s72
      %p74 = scmp.eq.s32.totalorder %s20, 0
      %p75 = por %p73, %p74
      %s76 = ssub.s32 %s21, %s33
      %s77 = ssub.s32 %s22, %s29
      %s78 = sor.u32 %s76, %s77
      %p79 = scmp.eq.s32.totalorder %s78, 0
      %s81 = sadd.s32 %s80, 1
      %s82 = scalar_select %p79, %s80, %s81
      %p85 = pneg %p79
      %p86 = scmp.eq.s32.totalorder %s14, 1
      %p87 = por %p85, %p86
      %p88 = scmp.ne.s32.totalorder %s80, %s83
      %p89 = scmp.eq.s32.totalorder %s14, 0
      %p90 = por %p88, %p89
      %p91 = scmp.ne.s32.totalorder %s80, %s83
      %p92 = scmp.eq.s32.totalorder %s19, 1
      %p93 = por %p91, %p92
      %p94 = scmp.ne.s32.totalorder %s83, %s84
      %p95 = scmp.eq.s32.totalorder %s19, 0
      %p96 = por %p94, %p95
      %p97 = scmp.ne.s32.totalorder %s83, %s84
      %p98 = scmp.eq.s32.totalorder %s20, 1
      %p99 = por %p97, %p98
      %p101 = scmp.ne.s32.totalorder %s84, %s100
      %p102 = scmp.eq.s32.totalorder %s20, 0
      %p103 = por %p101, %p102
      %s104 = ssub.s32 %s21, %s33
      %s105 = ssub.s32 %s22, %s29
      %s106 = sor.u32 %s104, %s105
      %p107 = scmp.eq.s32.totalorder %s106, 0
      %s109 = sadd.s32 %s108, 1
      %s110 = scalar_select %p107, %s108, %s109
      %p113 = pneg %p107
      %p114 = scmp.eq.s32.totalorder %s14, 1
      %p115 = por %p113, %p114
      %p116 = scmp.ne.s32.totalorder %s108, %s111
      %p117 = scmp.eq.s32.totalorder %s14, 0
      %p118 = por %p116, %p117
      %p119 = scmp.ne.s32.totalorder %s108, %s111
      %p120 = scmp.eq.s32.totalorder %s19, 1
      %p121 = por %p119, %p120
      %p122 = scmp.ne.s32.totalorder %s111, %s112
      %p123 = scmp.eq.s32.totalorder %s19, 0
      %p124 = por %p122, %p123
      %p125 = scmp.ne.s32.totalorder %s111, %s112
      %p126 = scmp.eq.s32.totalorder %s20, 1
      %p127 = por %p125, %p126
      %p129 = scmp.ne.s32.totalorder %s112, %s128
      %p130 = scmp.eq.s32.totalorder %s20, 0
      %p131 = por %p129, %p130
      %p132 = scmp.le.s32.totalorder 1, %s14
      %p133 = scmp.lt.s32.totalorder %s14, 3
      %p134 = pnand %p132, %p133
      %p135 = pneg %p134
      // Predicated region
      $region9: #{tpu_custom_call.1} parent=5 // pred_check
        _
      $region10: #{tpu_custom_call.1} parent=5 // pred_check_branch
        %137 = sbr.rel (%p134) target = $region12
      $region11: #{tpu_custom_call.1} parent=5 // pred_region
        %s138 = ssub.s32 %s14, 1
        // Predicated region
        $region13: #{tpu_custom_call.1} parent=11 // pred_check
          %p139 = pneg %p47
        $region14: #{tpu_custom_call.1} parent=11 // pred_check_branch
          %141 = sbr.rel (%p139) target = $region16
        $region15: #{tpu_custom_call.1} parent=11 // pred_region
          %s143 = ssub.s32 48, 48
          %144 = vsyncadd [#allocation4], %s143
          %s146 = sshll.u32 %s0, 4
          %s147 = int_to_ptr.vmem [resolvable:$true] %s146
          %149 = dma.vmem_to_smem %s147, 48, [#allocation2], [#allocation4]
        $region16: #{tpu_custom_call.1} parent=11 // pred_fallthru
          _
        // Predicated region
        $region17: #{tpu_custom_call.1} parent=11 // pred_check
          %p150 = pneg %p68
        $region18: #{tpu_custom_call.1} parent=11 // pred_check_branch
          %152 = sbr.rel (%p150) target = $region20
        $region19: #{tpu_custom_call.1} parent=11 // pred_region
          %s154 = ssub.s32 16, 16
          %155 = vsyncadd [#allocation6], %s154
          %s157 = sshll.u32 %s1, 4
          %s158 = int_to_ptr.vmem [resolvable:$true] %s157
          %160 = dma.vmem_to_smem %s158, 16, [#allocation5], [#allocation6]
        $region20: #{tpu_custom_call.1} parent=11 // pred_fallthru
          _
      $region12: #{tpu_custom_call.1} parent=5 // pred_fallthru
        _
      %p161 = scmp.lt.s32.totalorder %s14, 2
      // Predicated region
      $region21: #{tpu_custom_call.1} parent=5 // pred_check
        %p162 = pneg %p161
      $region22: #{tpu_custom_call.1} parent=5 // pred_check_branch
        %164 = sbr.rel (%p162) target = $region24
      $region23: #{tpu_custom_call.1} parent=5 // pred_region
        // Predicated region
        $region25: #{tpu_custom_call.1} parent=23 // pred_check
          %p165 = pneg %p90
        $region26: #{tpu_custom_call.1} parent=23 // pred_check_branch
          %167 = sbr.rel (%p165) target = $region28
        $region27: #{tpu_custom_call.1} parent=23 // pred_region
          %p168 = scmp.lt.s32.totalorder %s21, 1
          %s169 = scalar_select %p168, %s21, 1
          %p170 = scmp.lt.s32.totalorder %s22, 0
          %s171 = scalar_select %p170, %s22, 0
          %s172 = smul.addr %s171, 18
          %s173 = smul.addr %s169, 18
          %s174 = sadd.s32 %s172, %s173
          %s175 = smul.addr %s174, 8
          %s176 = scalar_lea.vmem %s2, %s175
        $region28: #{tpu_custom_call.1} parent=23 // pred_fallthru
          _
      $region24: #{tpu_custom_call.1} parent=5 // pred_fallthru
        _
      %p177 = scmp.le.s32.totalorder 1, %s14
      %p178 = scmp.lt.s32.totalorder %s14, 3
      %p179 = pnand %p177, %p178
      %p180 = pneg %p179
      // Predicated region
      $region29: #{tpu_custom_call.1} parent=5 // pred_check
        _
      $region30: #{tpu_custom_call.1} parent=5 // pred_check_branch
        %182 = sbr.rel (%p179) target = $region32
      $region31: #{tpu_custom_call.1} parent=5 // pred_region
        %s183 = ssub.s32 %s14, 1
        // Predicated region
        $region33: #{tpu_custom_call.1} parent=31 // pred_check
          %p184 = pneg %p47
        $region34: #{tpu_custom_call.1} parent=31 // pred_check_branch
          %186 = sbr.rel (%p184) target = $region36
        $region35: #{tpu_custom_call.1} parent=31 // pred_region
          %187 = dma.done [#allocation4], 48
        $region36: #{tpu_custom_call.1} parent=31 // pred_fallthru
          _
        // Predicated region
        $region37: #{tpu_custom_call.1} parent=31 // pred_check
          %p188 = pneg %p68
        $region38: #{tpu_custom_call.1} parent=31 // pred_check_branch
          %190 = sbr.rel (%p188) target = $region40
        $region39: #{tpu_custom_call.1} parent=31 // pred_region
          %191 = dma.done [#allocation6], 16
        $region40: #{tpu_custom_call.1} parent=31 // pred_fallthru
          _
        %192 = sfence
        %p193 = pneg %p47
        %p194 = pneg %p44
        %p195 = pneg %p68
        %p196 = pneg %p65
        %p197 = scmp.lt.s32.totalorder %s23, 1
        %s198 = scalar_select %p197, %s23, 1
        %p199 = scmp.lt.s32.totalorder %s24, 0
        %s200 = scalar_select %p199, %s24, 0
        %s201 = smul.addr %s200, 18
        %s202 = smul.addr %s198, 18
        %s203 = sadd.s32 %s201, %s202
        %s204 = smul.addr %s203, 8
        %s205 = scalar_lea.vmem %s2, %s204
        %p206 = pneg %p96
        %p207 = pneg %p93
        %p208 = pneg %p124
        %p209 = pneg %p121
        %s210 = sand.u32 %s111, 1
        %s211 = scalar_lea.sflag [#allocation3], %s210
        %s212 = sand.u32 %s111, 1
        %s213 = smul.addr %s212, 96
        %s214 = scalar_lea.vmem [#allocation7], %s213
        %p215 = scmp.lt.s32.totalorder %s23, 1
        %s216 = scalar_select %p215, %s23, 1
        %p217 = scmp.lt.s32.totalorder %s24, 0
        %s218 = scalar_select %p217, %s24, 0
        %s219 = smul.addr %s218, 18
        %s220 = smul.addr %s216, 18
        %s221 = sadd.s32 %s219, %s220
        %s222 = smul.addr %s221, 8
        %s223 = scalar_lea.vmem %s2, %s222
        %v224 = vld [vmem:[%s223] sm:$0xff]
        %v225 = vld [vmem:[%s223 + $0x8] sm:$0xff]
        %v226 = vld [vmem:[%s223 + $0x10] sm:$0x3]
        %s227 = scalar_lea.vmem %s223, 24
        %v228 = vld [vmem:[%s227] sm:$0xff]
        %v229 = vld [vmem:[%s227 + $0x8] sm:$0xff]
        %v230 = vld [vmem:[%s227 + $0x10] sm:$0x3]
        %s231 = scalar_lea.vmem %s223, 48
        %v232 = vld [vmem:[%s231] sm:$0xff]
        %v233 = vld [vmem:[%s231 + $0x8] sm:$0xff]
        %v234 = vld [vmem:[%s231 + $0x10] sm:$0x3]
        %s235 = scalar_lea.vmem %s223, 72
        %v236 = vld [vmem:[%s235] sm:$0xff]
        %v237 = vld [vmem:[%s235 + $0x8] sm:$0xff]
        %v238 = vld [vmem:[%s235 + $0x10] sm:$0x3]
        %s239 = scalar_lea.vmem %s223, 96
        %v240 = vld [vmem:[%s239] sm:$0xff]
        %v241 = vld [vmem:[%s239 + $0x8] sm:$0xff]
        %v242 = vld [vmem:[%s239 + $0x10] sm:$0x3]
        %s243 = scalar_lea.vmem %s223, 120
        %v244 = vld [vmem:[%s243] sm:$0xff]
        %v245 = vld [vmem:[%s243 + $0x8] sm:$0xff]
        %v246 = vld [vmem:[%s243 + $0x10] sm:$0x3]
        %s247 = sld [smem:[#allocation5]]
        %v248 = vstv %s247
        %s249 = sld [smem:[#allocation2]]
        %v250 = vstv %s249
        %v251 = vmul.f32 %v250, %v224
        %v252 = vmul.f32 %v250, %v225
        %v253 = vadd.f32 %v248, %v251
        %v254 = vadd.f32 %v248, %v252
        %s255 = sld [smem:[#allocation2 + $0x1]]
        %v256 = vstv %s255
        %v257 = vmul.f32 %v256, %v224
        %v258 = vmul.f32 %v256, %v225
        %261 = vrot.lane.b32.xlu0 %v257, 127
        %v262 = vpop.permute.xlu0 %261
        %263 = vrot.lane.b32.xlu0 %v258, 127
        %v264 = vpop.permute.xlu0 %263
        %v267 = vadd.f32 %v253, %v262
        %v268 = vadd.f32 %v254, %v264
        %s269 = sld [smem:[#allocation2 + $0x2]]
        %v270 = vstv %s269
        %v271 = vmul.f32 %v270, %v224
        %v272 = vmul.f32 %v270, %v225
        %275 = vrot.lane.b32.xlu0 %v271, 126
        %v276 = vpop.permute.xlu0 %275
        %277 = vrot.lane.b32.xlu0 %v272, 126
        %v278 = vpop.permute.xlu0 %277
        %v281 = vadd.f32 %v267, %v276
        %v282 = vadd.f32 %v268, %v278
        %s283 = sld [smem:[#allocation2 + $0x3]]
        %v284 = vstv %s283
        %v285 = vmul.f32 %v284, %v224
        %v286 = vmul.f32 %v284, %v225
        %v287 = vmul.f32 %v284, %v226
        %vm291 = vcmask 1046528
        %v292 = vrot.slane %v285, 1
        %v293 = vrot.slane %v286, 1
        %v294 = vsel %vm291, %v292, %v293
        %v295 = vrot.slane %v287, 1
        %v296 = vsel %vm291, %v293, %v295
        %v299 = vadd.f32 %v281, %v294
        %v300 = vadd.f32 %v282, %v296
        %s301 = sld [smem:[#allocation2 + $0x4]]
        %v302 = vstv %s301
        %v303 = vmul.f32 %v302, %v224
        %v304 = vmul.f32 %v302, %v225
        %v305 = vmul.f32 %v302, %v226
        %v309 = vrot.slane %v303, 1
        %v310 = vrot.slane %v304, 1
        %v311 = vsel %vm291, %v309, %v310
        %v312 = vrot.slane %v305, 1
        %v313 = vsel %vm291, %v310, %v312
        %314 = vrot.lane.b32.xlu0 %v311, 127
        %v315 = vpop.permute.xlu0 %314
        %316 = vrot.lane.b32.xlu0 %v313, 127
        %v317 = vpop.permute.xlu0 %316
        %v320 = vadd.f32 %v299, %v315
        %v321 = vadd.f32 %v300, %v317
        %s322 = sld [smem:[#allocation2 + $0x5]]
        %v323 = vstv %s322
        %v324 = vmul.f32 %v323, %v224
        %v325 = vmul.f32 %v323, %v225
        %v326 = vmul.f32 %v323, %v226
        %v330 = vrot.slane %v324, 1
        %v331 = vrot.slane %v325, 1
        %v332 = vsel %vm291, %v330, %v331
        %v333 = vrot.slane %v326, 1
        %v334 = vsel %vm291, %v331, %v333
        %335 = vrot.lane.b32.xlu0 %v332, 126
        %v336 = vpop.permute.xlu0 %335
        %337 = vrot.lane.b32.xlu0 %v334, 126
        %v338 = vpop.permute.xlu0 %337
        %v341 = vadd.f32 %v320, %v336
        %v342 = vadd.f32 %v321, %v338
        %s343 = sld [smem:[#allocation2 + $0x6]]
        %v344 = vstv %s343
        %v345 = vmul.f32 %v344, %v224
        %v346 = vmul.f32 %v344, %v225
        %v347 = vmul.f32 %v344, %v226
        %vm351 = vcmask 1045504
        %v352 = vrot.slane %v345, 2
        %v353 = vrot.slane %v346, 2
        %v354 = vsel %vm351, %v352, %v353
        %v355 = vrot.slane %v347, 2
        %v356 = vsel %vm351, %v353, %v355
        %v359 = vadd.f32 %v341, %v354
        %v360 = vadd.f32 %v342, %v356
        %s361 = sld [smem:[#allocation2 + $0x7]]
        %v362 = vstv %s361
        %v363 = vmul.f32 %v362, %v224
        %v364 = vmul.f32 %v362, %v225
        %v365 = vmul.f32 %v362, %v226
        %v369 = vrot.slane %v363, 2
        %v370 = vrot.slane %v364, 2
        %v371 = vsel %vm351, %v369, %v370
        %v372 = vrot.slane %v365, 2
        %v373 = vsel %vm351, %v370, %v372
        %374 = vrot.lane.b32.xlu0 %v371, 127
        %v375 = vpop.permute.xlu0 %374
        %376 = vrot.lane.b32.xlu0 %v373, 127
        %v377 = vpop.permute.xlu0 %376
        %v380 = vadd.f32 %v359, %v375
        %v381 = vadd.f32 %v360, %v377
        %s382 = sld [smem:[#allocation2 + $0x8]]
        %v383 = vstv %s382
        %v384 = vmul.f32 %v383, %v224
        %v385 = vmul.f32 %v383, %v225
        %v386 = vmul.f32 %v383, %v226
        %v390 = vrot.slane %v384, 2
        %v391 = vrot.slane %v385, 2
        %v392 = vsel %vm351, %v390, %v391
        %v393 = vrot.slane %v386, 2
        %v394 = vsel %vm351, %v391, %v393
        %395 = vrot.lane.b32.xlu0 %v392, 126
        %v396 = vpop.permute.xlu0 %395
        %397 = vrot.lane.b32.xlu0 %v394, 126
        %v398 = vpop.permute.xlu0 %397
        %v401 = vadd.f32 %v380, %v396
        %v402 = vadd.f32 %v381, %v398
        %s403 = sld [smem:[#allocation2 + $0x9]]
        %v404 = vstv %s403
        %v405 = vmul.f32 %v404, %v228
        %v406 = vmul.f32 %v404, %v229
        %v407 = vadd.f32 %v401, %v405
        %v408 = vadd.f32 %v402, %v406
        %s409 = sld [smem:[#allocation2 + $0xa]]
        %v410 = vstv %s409
        %v411 = vmul.f32 %v410, %v228
        %v412 = vmul.f32 %v410, %v229
        %415 = vrot.lane.b32.xlu0 %v411, 127
        %v416 = vpop.permute.xlu0 %415
        %417 = vrot.lane.b32.xlu0 %v412, 127
        %v418 = vpop.permute.xlu0 %417
        %v421 = vadd.f32 %v407, %v416
        %v422 = vadd.f32 %v408, %v418
        %s423 = sld [smem:[#allocation2 + $0xb]]
        %v424 = vstv %s423
        %v425 = vmul.f32 %v424, %v228
        %v426 = vmul.f32 %v424, %v229
        %429 = vrot.lane.b32.xlu0 %v425, 126
        %v430 = vpop.permute.xlu0 %429
        %431 = vrot.lane.b32.xlu0 %v426, 126
        %v432 = vpop.permute.xlu0 %431
        %v435 = vadd.f32 %v421, %v430
        %v436 = vadd.f32 %v422, %v432
        %s437 = sld [smem:[#allocation2 + $0xc]]
        %v438 = vstv %s437
        %v439 = vmul.f32 %v438, %v228
        %v440 = vmul.f32 %v438, %v229
        %v441 = vmul.f32 %v438, %v230
        %v445 = vrot.slane %v439, 1
        %v446 = vrot.slane %v440, 1
        %v447 = vsel %vm291, %v445, %v446
        %v448 = vrot.slane %v441, 1
        %v449 = vsel %vm291, %v446, %v448
        %v452 = vadd.f32 %v435, %v447
        %v453 = vadd.f32 %v436, %v449
        %s454 = sld [smem:[#allocation2 + $0xd]]
        %v455 = vstv %s454
        %v456 = vmul.f32 %v455, %v228
        %v457 = vmul.f32 %v455, %v229
        %v458 = vmul.f32 %v455, %v230
        %v462 = vrot.slane %v456, 1
        %v463 = vrot.slane %v457, 1
        %v464 = vsel %vm291, %v462, %v463
        %v465 = vrot.slane %v458, 1
        %v466 = vsel %vm291, %v463, %v465
        %467 = vrot.lane.b32.xlu0 %v464, 127
        %v468 = vpop.permute.xlu0 %467
        %469 = vrot.lane.b32.xlu0 %v466, 127
        %v470 = vpop.permute.xlu0 %469
        %v473 = vadd.f32 %v452, %v468
        %v474 = vadd.f32 %v453, %v470
        %s475 = sld [smem:[#allocation2 + $0xe]]
        %v476 = vstv %s475
        %v477 = vmul.f32 %v476, %v228
        %v478 = vmul.f32 %v476, %v229
        %v479 = vmul.f32 %v476, %v230
        %v483 = vrot.slane %v477, 1
        %v484 = vrot.slane %v478, 1
        %v485 = vsel %vm291, %v483, %v484
        %v486 = vrot.slane %v479, 1
        %v487 = vsel %vm291, %v484, %v486
        %488 = vrot.lane.b32.xlu0 %v485, 126
        %v489 = vpop.permute.xlu0 %488
        %490 = vrot.lane.b32.xlu0 %v487, 126
        %v491 = vpop.permute.xlu0 %490
        %v494 = vadd.f32 %v473, %v489
        %v495 = vadd.f32 %v474, %v491
        %s496 = sld [smem:[#allocation2 + $0xf]]
        %v497 = vstv %s496
        %v498 = vmul.f32 %v497, %v228
        %v499 = vmul.f32 %v497, %v229
        %v500 = vmul.f32 %v497, %v230
        %v504 = vrot.slane %v498, 2
        %v505 = vrot.slane %v499, 2
        %v506 = vsel %vm351, %v504, %v505
        %v507 = vrot.slane %v500, 2
        %v508 = vsel %vm351, %v505, %v507
        %v511 = vadd.f32 %v494, %v506
        %v512 = vadd.f32 %v495, %v508
        %s513 = sld [smem:[#allocation2 + $0x10]]
        %v514 = vstv %s513
        %v515 = vmul.f32 %v514, %v228
        %v516 = vmul.f32 %v514, %v229
        %v517 = vmul.f32 %v514, %v230
        %v521 = vrot.slane %v515, 2
        %v522 = vrot.slane %v516, 2
        %v523 = vsel %vm351, %v521, %v522
        %v524 = vrot.slane %v517, 2
        %v525 = vsel %vm351, %v522, %v524
        %526 = vrot.lane.b32.xlu0 %v523, 127
        %v527 = vpop.permute.xlu0 %526
        %528 = vrot.lane.b32.xlu0 %v525, 127
        %v529 = vpop.permute.xlu0 %528
        %v532 = vadd.f32 %v511, %v527
        %v533 = vadd.f32 %v512, %v529
        %s534 = sld [smem:[#allocation2 + $0x11]]
        %v535 = vstv %s534
        %v536 = vmul.f32 %v535, %v228
        %v537 = vmul.f32 %v535, %v229
        %v538 = vmul.f32 %v535, %v230
        %v542 = vrot.slane %v536, 2
        %v543 = vrot.slane %v537, 2
        %v544 = vsel %vm351, %v542, %v543
        %v545 = vrot.slane %v538, 2
        %v546 = vsel %vm351, %v543, %v545
        %547 = vrot.lane.b32.xlu0 %v544, 126
        %v548 = vpop.permute.xlu0 %547
        %549 = vrot.lane.b32.xlu0 %v546, 126
        %v550 = vpop.permute.xlu0 %549
        %v553 = vadd.f32 %v532, %v548
        %v554 = vadd.f32 %v533, %v550
        %s555 = sld [smem:[#allocation2 + $0x12]]
        %v556 = vstv %s555
        %v557 = vmul.f32 %v556, %v232
        %v558 = vmul.f32 %v556, %v233
        %v559 = vadd.f32 %v553, %v557
        %v560 = vadd.f32 %v554, %v558
        %s561 = sld [smem:[#allocation2 + $0x13]]
        %v562 = vstv %s561
        %v563 = vmul.f32 %v562, %v232
        %v564 = vmul.f32 %v562, %v233
        %567 = vrot.lane.b32.xlu0 %v563, 127
        %v568 = vpop.permute.xlu0 %567
        %569 = vrot.lane.b32.xlu0 %v564, 127
        %v570 = vpop.permute.xlu0 %569
        %v573 = vadd.f32 %v559, %v568
        %v574 = vadd.f32 %v560, %v570
        %s575 = sld [smem:[#allocation2 + $0x14]]
        %v576 = vstv %s575
        %v577 = vmul.f32 %v576, %v232
        %v578 = vmul.f32 %v576, %v233
        %581 = vrot.lane.b32.xlu0 %v577, 126
        %v582 = vpop.permute.xlu0 %581
        %583 = vrot.lane.b32.xlu0 %v578, 126
        %v584 = vpop.permute.xlu0 %583
        %v587 = vadd.f32 %v573, %v582
        %v588 = vadd.f32 %v574, %v584
        %s589 = sld [smem:[#allocation2 + $0x15]]
        %v590 = vstv %s589
        %v591 = vmul.f32 %v590, %v232
        %v592 = vmul.f32 %v590, %v233
        %v593 = vmul.f32 %v590, %v234
        %v597 = vrot.slane %v591, 1
        %v598 = vrot.slane %v592, 1
        %v599 = vsel %vm291, %v597, %v598
        %v600 = vrot.slane %v593, 1
        %v601 = vsel %vm291, %v598, %v600
        %v604 = vadd.f32 %v587, %v599
        %v605 = vadd.f32 %v588, %v601
        %s606 = sld [smem:[#allocation2 + $0x16]]
        %v607 = vstv %s606
        %v608 = vmul.f32 %v607, %v232
        %v609 = vmul.f32 %v607, %v233
        %v610 = vmul.f32 %v607, %v234
        %v614 = vrot.slane %v608, 1
        %v615 = vrot.slane %v609, 1
        %v616 = vsel %vm291, %v614, %v615
        %v617 = vrot.slane %v610, 1
        %v618 = vsel %vm291, %v615, %v617
        %619 = vrot.lane.b32.xlu0 %v616, 127
        %v620 = vpop.permute.xlu0 %619
        %621 = vrot.lane.b32.xlu0 %v618, 127
        %v622 = vpop.permute.xlu0 %621
        %v625 = vadd.f32 %v604, %v620
        %v626 = vadd.f32 %v605, %v622
        %s627 = sld [smem:[#allocation2 + $0x17]]
        %v628 = vstv %s627
        %v629 = vmul.f32 %v628, %v232
        %v630 = vmul.f32 %v628, %v233
        %v631 = vmul.f32 %v628, %v234
        %v635 = vrot.slane %v629, 1
        %v636 = vrot.slane %v630, 1
        %v637 = vsel %vm291, %v635, %v636
        %v638 = vrot.slane %v631, 1
        %v639 = vsel %vm291, %v636, %v638
        %640 = vrot.lane.b32.xlu0 %v637, 126
        %v641 = vpop.permute.xlu0 %640
        %642 = vrot.lane.b32.xlu0 %v639, 126
        %v643 = vpop.permute.xlu0 %642
        %v646 = vadd.f32 %v625, %v641
        %v647 = vadd.f32 %v626, %v643
        %s648 = sld [smem:[#allocation2 + $0x18]]
        %v649 = vstv %s648
        %v650 = vmul.f32 %v649, %v232
        %v651 = vmul.f32 %v649, %v233
        %v652 = vmul.f32 %v649, %v234
        %v656 = vrot.slane %v650, 2
        %v657 = vrot.slane %v651, 2
        %v658 = vsel %vm351, %v656, %v657
        %v659 = vrot.slane %v652, 2
        %v660 = vsel %vm351, %v657, %v659
        %v663 = vadd.f32 %v646, %v658
        %v664 = vadd.f32 %v647, %v660
        %s665 = sld [smem:[#allocation2 + $0x19]]
        %v666 = vstv %s665
        %v667 = vmul.f32 %v666, %v232
        %v668 = vmul.f32 %v666, %v233
        %v669 = vmul.f32 %v666, %v234
        %v673 = vrot.slane %v667, 2
        %v674 = vrot.slane %v668, 2
        %v675 = vsel %vm351, %v673, %v674
        %v676 = vrot.slane %v669, 2
        %v677 = vsel %vm351, %v674, %v676
        %678 = vrot.lane.b32.xlu0 %v675, 127
        %v679 = vpop.permute.xlu0 %678
        %680 = vrot.lane.b32.xlu0 %v677, 127
        %v681 = vpop.permute.xlu0 %680
        %v684 = vadd.f32 %v663, %v679
        %v685 = vadd.f32 %v664, %v681
        %s686 = sld [smem:[#allocation2 + $0x1a]]
        %v687 = vstv %s686
        %v688 = vmul.f32 %v687, %v232
        %v689 = vmul.f32 %v687, %v233
        %v690 = vmul.f32 %v687, %v234
        %v694 = vrot.slane %v688, 2
        %v695 = vrot.slane %v689, 2
        %v696 = vsel %vm351, %v694, %v695
        %v697 = vrot.slane %v690, 2
        %v698 = vsel %vm351, %v695, %v697
        %699 = vrot.lane.b32.xlu0 %v696, 126
        %v700 = vpop.permute.xlu0 %699
        %701 = vrot.lane.b32.xlu0 %v698, 126
        %v702 = vpop.permute.xlu0 %701
        %v705 = vadd.f32 %v684, %v700
        %v706 = vadd.f32 %v685, %v702
        %s707 = sld [smem:[#allocation2 + $0x1b]]
        %v708 = vstv %s707
        %v709 = vmul.f32 %v708, %v236
        %v710 = vmul.f32 %v708, %v237
        %v711 = vadd.f32 %v705, %v709
        %v712 = vadd.f32 %v706, %v710
        %s713 = sld [smem:[#allocation2 + $0x1c]]
        %v714 = vstv %s713
        %v715 = vmul.f32 %v714, %v236
        %v716 = vmul.f32 %v714, %v237
        %719 = vrot.lane.b32.xlu0 %v715, 127
        %v720 = vpop.permute.xlu0 %719
        %721 = vrot.lane.b32.xlu0 %v716, 127
        %v722 = vpop.permute.xlu0 %721
        %v725 = vadd.f32 %v711, %v720
        %v726 = vadd.f32 %v712, %v722
        %s727 = sld [smem:[#allocation2 + $0x1d]]
        %v728 = vstv %s727
        %v729 = vmul.f32 %v728, %v236
        %v730 = vmul.f32 %v728, %v237
        %733 = vrot.lane.b32.xlu0 %v729, 126
        %v734 = vpop.permute.xlu0 %733
        %735 = vrot.lane.b32.xlu0 %v730, 126
        %v736 = vpop.permute.xlu0 %735
        %v739 = vadd.f32 %v725, %v734
        %v740 = vadd.f32 %v726, %v736
        %s741 = sld [smem:[#allocation2 + $0x1e]]
        %v742 = vstv %s741
        %v743 = vmul.f32 %v742, %v236
        %v744 = vmul.f32 %v742, %v237
        %v745 = vmul.f32 %v742, %v238
        %v749 = vrot.slane %v743, 1
        %v750 = vrot.slane %v744, 1
        %v751 = vsel %vm291, %v749, %v750
        %v752 = vrot.slane %v745, 1
        %v753 = vsel %vm291, %v750, %v752
        %v756 = vadd.f32 %v739, %v751
        %v757 = vadd.f32 %v740, %v753
        %s758 = sld [smem:[#allocation2 + $0x1f]]
        %v759 = vstv %s758
        %v760 = vmul.f32 %v759, %v236
        %v761 = vmul.f32 %v759, %v237
        %v762 = vmul.f32 %v759, %v238
        %v766 = vrot.slane %v760, 1
        %v767 = vrot.slane %v761, 1
        %v768 = vsel %vm291, %v766, %v767
        %v769 = vrot.slane %v762, 1
        %v770 = vsel %vm291, %v767, %v769
        %771 = vrot.lane.b32.xlu0 %v768, 127
        %v772 = vpop.permute.xlu0 %771
        %773 = vrot.lane.b32.xlu0 %v770, 127
        %v774 = vpop.permute.xlu0 %773
        %v777 = vadd.f32 %v756, %v772
        %v778 = vadd.f32 %v757, %v774
        %s779 = sld [smem:[#allocation2 + $0x20]]
        %v780 = vstv %s779
        %v781 = vmul.f32 %v780, %v236
        %v782 = vmul.f32 %v780, %v237
        %v783 = vmul.f32 %v780, %v238
        %v787 = vrot.slane %v781, 1
        %v788 = vrot.slane %v782, 1
        %v789 = vsel %vm291, %v787, %v788
        %v790 = vrot.slane %v783, 1
        %v791 = vsel %vm291, %v788, %v790
        %792 = vrot.lane.b32.xlu0 %v789, 126
        %v793 = vpop.permute.xlu0 %792
        %794 = vrot.lane.b32.xlu0 %v791, 126
        %v795 = vpop.permute.xlu0 %794
        %v798 = vadd.f32 %v777, %v793
        %v799 = vadd.f32 %v778, %v795
        %s800 = sld [smem:[#allocation2 + $0x21]]
        %v801 = vstv %s800
        %v802 = vmul.f32 %v801, %v236
        %v803 = vmul.f32 %v801, %v237
        %v804 = vmul.f32 %v801, %v238
        %v808 = vrot.slane %v802, 2
        %v809 = vrot.slane %v803, 2
        %v810 = vsel %vm351, %v808, %v809
        %v811 = vrot.slane %v804, 2
        %v812 = vsel %vm351, %v809, %v811
        %v815 = vadd.f32 %v798, %v810
        %v816 = vadd.f32 %v799, %v812
        %s817 = sld [smem:[#allocation2 + $0x22]]
        %v818 = vstv %s817
        %v819 = vmul.f32 %v818, %v236
        %v820 = vmul.f32 %v818, %v237
        %v821 = vmul.f32 %v818, %v238
        %v825 = vrot.slane %v819, 2
        %v826 = vrot.slane %v820, 2
        %v827 = vsel %vm351, %v825, %v826
        %v828 = vrot.slane %v821, 2
        %v829 = vsel %vm351, %v826, %v828
        %830 = vrot.lane.b32.xlu0 %v827, 127
        %v831 = vpop.permute.xlu0 %830
        %832 = vrot.lane.b32.xlu0 %v829, 127
        %v833 = vpop.permute.xlu0 %832
        %v836 = vadd.f32 %v815, %v831
        %v837 = vadd.f32 %v816, %v833
        %s838 = sld [smem:[#allocation2 + $0x23]]
        %v839 = vstv %s838
        %v840 = vmul.f32 %v839, %v236
        %v841 = vmul.f32 %v839, %v237
        %v842 = vmul.f32 %v839, %v238
        %v846 = vrot.slane %v840, 2
        %v847 = vrot.slane %v841, 2
        %v848 = vsel %vm351, %v846, %v847
        %v849 = vrot.slane %v842, 2
        %v850 = vsel %vm351, %v847, %v849
        %851 = vrot.lane.b32.xlu0 %v848, 126
        %v852 = vpop.permute.xlu0 %851
        %853 = vrot.lane.b32.xlu0 %v850, 126
        %v854 = vpop.permute.xlu0 %853
        %v857 = vadd.f32 %v836, %v852
        %v858 = vadd.f32 %v837, %v854
        %s859 = sld [smem:[#allocation2 + $0x24]]
        %v860 = vstv %s859
        %v861 = vmul.f32 %v860, %v240
        %v862 = vmul.f32 %v860, %v241
        %v863 = vadd.f32 %v857, %v861
        %v864 = vadd.f32 %v858, %v862
        %s865 = sld [smem:[#allocation2 + $0x25]]
        %v866 = vstv %s865
        %v867 = vmul.f32 %v866, %v240
        %v868 = vmul.f32 %v866, %v241
        %871 = vrot.lane.b32.xlu0 %v867, 127
        %v872 = vpop.permute.xlu0 %871
        %873 = vrot.lane.b32.xlu0 %v868, 127
        %v874 = vpop.permute.xlu0 %873
        %v877 = vadd.f32 %v863, %v872
        %v878 = vadd.f32 %v864, %v874
        %s879 = sld [smem:[#allocation2 + $0x26]]
        %v880 = vstv %s879
        %v881 = vmul.f32 %v880, %v240
        %v882 = vmul.f32 %v880, %v241
        %885 = vrot.lane.b32.xlu0 %v881, 126
        %v886 = vpop.permute.xlu0 %885
        %887 = vrot.lane.b32.xlu0 %v882, 126
        %v888 = vpop.permute.xlu0 %887
        %v891 = vadd.f32 %v877, %v886
        %v892 = vadd.f32 %v878, %v888
        %s893 = sld [smem:[#allocation2 + $0x27]]
        %v894 = vstv %s893
        %v895 = vmul.f32 %v894, %v240
        %v896 = vmul.f32 %v894, %v241
        %v897 = vmul.f32 %v894, %v242
        %v901 = vrot.slane %v895, 1
        %v902 = vrot.slane %v896, 1
        %v903 = vsel %vm291, %v901, %v902
        %v904 = vrot.slane %v897, 1
        %v905 = vsel %vm291, %v902, %v904
        %v908 = vadd.f32 %v891, %v903
        %v909 = vadd.f32 %v892, %v905
        %s910 = sld [smem:[#allocation2 + $0x28]]
        %v911 = vstv %s910
        %v912 = vmul.f32 %v911, %v240
        %v913 = vmul.f32 %v911, %v241
        %v914 = vmul.f32 %v911, %v242
        %v918 = vrot.slane %v912, 1
        %v919 = vrot.slane %v913, 1
        %v920 = vsel %vm291, %v918, %v919
        %v921 = vrot.slane %v914, 1
        %v922 = vsel %vm291, %v919, %v921
        %923 = vrot.lane.b32.xlu0 %v920, 127
        %v924 = vpop.permute.xlu0 %923
        %925 = vrot.lane.b32.xlu0 %v922, 127
        %v926 = vpop.permute.xlu0 %925
        %v929 = vadd.f32 %v908, %v924
        %v930 = vadd.f32 %v909, %v926
        %s931 = sld [smem:[#allocation2 + $0x29]]
        %v932 = vstv %s931
        %v933 = vmul.f32 %v932, %v240
        %v934 = vmul.f32 %v932, %v241
        %v935 = vmul.f32 %v932, %v242
        %v939 = vrot.slane %v933, 1
        %v940 = vrot.slane %v934, 1
        %v941 = vsel %vm291, %v939, %v940
        %v942 = vrot.slane %v935, 1
        %v943 = vsel %vm291, %v940, %v942
        %944 = vrot.lane.b32.xlu0 %v941, 126
        %v945 = vpop.permute.xlu0 %944
        %946 = vrot.lane.b32.xlu0 %v943, 126
        %v947 = vpop.permute.xlu0 %946
        %v950 = vadd.f32 %v929, %v945
        %v951 = vadd.f32 %v930, %v947
        %s952 = sld [smem:[#allocation2 + $0x2a]]
        %v953 = vstv %s952
        %v954 = vmul.f32 %v953, %v240
        %v955 = vmul.f32 %v953, %v241
        %v956 = vmul.f32 %v953, %v242
        %v960 = vrot.slane %v954, 2
        %v961 = vrot.slane %v955, 2
        %v962 = vsel %vm351, %v960, %v961
        %v963 = vrot.slane %v956, 2
        %v964 = vsel %vm351, %v961, %v963
        %v967 = vadd.f32 %v950, %v962
        %v968 = vadd.f32 %v951, %v964
        %s969 = sld [smem:[#allocation2 + $0x2b]]
        %v970 = vstv %s969
        %v971 = vmul.f32 %v970, %v240
        %v972 = vmul.f32 %v970, %v241
        %v973 = vmul.f32 %v970, %v242
        %v977 = vrot.slane %v971, 2
        %v978 = vrot.slane %v972, 2
        %v979 = vsel %vm351, %v977, %v978
        %v980 = vrot.slane %v973, 2
        %v981 = vsel %vm351, %v978, %v980
        %982 = vrot.lane.b32.xlu0 %v979, 127
        %v983 = vpop.permute.xlu0 %982
        %984 = vrot.lane.b32.xlu0 %v981, 127
        %v985 = vpop.permute.xlu0 %984
        %v988 = vadd.f32 %v967, %v983
        %v989 = vadd.f32 %v968, %v985
        %s990 = sld [smem:[#allocation2 + $0x2c]]
        %v991 = vstv %s990
        %v992 = vmul.f32 %v991, %v240
        %v993 = vmul.f32 %v991, %v241
        %v994 = vmul.f32 %v991, %v242
        %v998 = vrot.slane %v992, 2
        %v999 = vrot.slane %v993, 2
        %v1000 = vsel %vm351, %v998, %v999
        %v1001 = vrot.slane %v994, 2
        %v1002 = vsel %vm351, %v999, %v1001
        %1003 = vrot.lane.b32.xlu0 %v1000, 126
        %v1004 = vpop.permute.xlu0 %1003
        %1005 = vrot.lane.b32.xlu0 %v1002, 126
        %v1006 = vpop.permute.xlu0 %1005
        %v1009 = vadd.f32 %v988, %v1004
        %v1010 = vadd.f32 %v989, %v1006
        %s1011 = sld [smem:[#allocation2 + $0x2d]]
        %v1012 = vstv %s1011
        %v1013 = vmul.f32 %v1012, %v244
        %v1014 = vmul.f32 %v1012, %v245
        %v1015 = vadd.f32 %v1009, %v1013
        %v1016 = vadd.f32 %v1010, %v1014
        %s1017 = sld [smem:[#allocation2 + $0x2e]]
        %v1018 = vstv %s1017
        %v1019 = vmul.f32 %v1018, %v244
        %v1020 = vmul.f32 %v1018, %v245
        %1023 = vrot.lane.b32.xlu0 %v1019, 127
        %v1024 = vpop.permute.xlu0 %1023
        %1025 = vrot.lane.b32.xlu0 %v1020, 127
        %v1026 = vpop.permute.xlu0 %1025
        %v1029 = vadd.f32 %v1015, %v1024
        %v1030 = vadd.f32 %v1016, %v1026
        %s1031 = sld [smem:[#allocation2 + $0x2f]]
        %v1032 = vstv %s1031
        %v1033 = vmul.f32 %v1032, %v244
        %v1034 = vmul.f32 %v1032, %v245
        %1037 = vrot.lane.b32.xlu0 %v1033, 126
        %v1038 = vpop.permute.xlu0 %1037
        %1039 = vrot.lane.b32.xlu0 %v1034, 126
        %v1040 = vpop.permute.xlu0 %1039
        %v1043 = vadd.f32 %v1029, %v1038
        %v1044 = vadd.f32 %v1030, %v1040
        %s1045 = sld [smem:[#allocation2 + $0x30]]
        %v1046 = vstv %s1045
        %v1047 = vmul.f32 %v1046, %v244
        %v1048 = vmul.f32 %v1046, %v245
        %v1049 = vmul.f32 %v1046, %v246
        %v1053 = vrot.slane %v1047, 1
        %v1054 = vrot.slane %v1048, 1
        %v1055 = vsel %vm291, %v1053, %v1054
        %v1056 = vrot.slane %v1049, 1
        %v1057 = vsel %vm291, %v1054, %v1056
        %v1060 = vadd.f32 %v1043, %v1055
        %v1061 = vadd.f32 %v1044, %v1057
        %s1062 = sld [smem:[#allocation2 + $0x31]]
        %v1063 = vstv %s1062
        %v1064 = vmul.f32 %v1063, %v244
        %v1065 = vmul.f32 %v1063, %v245
        %v1066 = vmul.f32 %v1063, %v246
        %v1070 = vrot.slane %v1064, 1
        %v1071 = vrot.slane %v1065, 1
        %v1072 = vsel %vm291, %v1070, %v1071
        %v1073 = vrot.slane %v1066, 1
        %v1074 = vsel %vm291, %v1071, %v1073
        %1075 = vrot.lane.b32.xlu0 %v1072, 127
        %v1076 = vpop.permute.xlu0 %1075
        %1077 = vrot.lane.b32.xlu0 %v1074, 127
        %v1078 = vpop.permute.xlu0 %1077
        %v1081 = vadd.f32 %v1060, %v1076
        %v1082 = vadd.f32 %v1061, %v1078
        %s1083 = sld [smem:[#allocation2 + $0x32]]
        %v1084 = vstv %s1083
        %v1085 = vmul.f32 %v1084, %v244
        %v1086 = vmul.f32 %v1084, %v245
        %v1087 = vmul.f32 %v1084, %v246
        %v1091 = vrot.slane %v1085, 1
        %v1092 = vrot.slane %v1086, 1
        %v1093 = vsel %vm291, %v1091, %v1092
        %v1094 = vrot.slane %v1087, 1
        %v1095 = vsel %vm291, %v1092, %v1094
        %1096 = vrot.lane.b32.xlu0 %v1093, 126
        %v1097 = vpop.permute.xlu0 %1096
        %1098 = vrot.lane.b32.xlu0 %v1095, 126
        %v1099 = vpop.permute.xlu0 %1098
        %v1102 = vadd.f32 %v1081, %v1097
        %v1103 = vadd.f32 %v1082, %v1099
        %s1104 = sld [smem:[#allocation2 + $0x33]]
        %v1105 = vstv %s1104
        %v1106 = vmul.f32 %v1105, %v244
        %v1107 = vmul.f32 %v1105, %v245
        %v1108 = vmul.f32 %v1105, %v246
        %v1112 = vrot.slane %v1106, 2
        %v1113 = vrot.slane %v1107, 2
        %v1114 = vsel %vm351, %v1112, %v1113
        %v1115 = vrot.slane %v1108, 2
        %v1116 = vsel %vm351, %v1113, %v1115
        %v1119 = vadd.f32 %v1102, %v1114
        %v1120 = vadd.f32 %v1103, %v1116
        %s1121 = sld [smem:[#allocation2 + $0x34]]
        %v1122 = vstv %s1121
        %v1123 = vmul.f32 %v1122, %v244
        %v1124 = vmul.f32 %v1122, %v245
        %v1125 = vmul.f32 %v1122, %v246
        %v1129 = vrot.slane %v1123, 2
        %v1130 = vrot.slane %v1124, 2
        %v1131 = vsel %vm351, %v1129, %v1130
        %v1132 = vrot.slane %v1125, 2
        %v1133 = vsel %vm351, %v1130, %v1132
        %1134 = vrot.lane.b32.xlu0 %v1131, 127
        %v1135 = vpop.permute.xlu0 %1134
        %1136 = vrot.lane.b32.xlu0 %v1133, 127
        %v1137 = vpop.permute.xlu0 %1136
        %v1140 = vadd.f32 %v1119, %v1135
        %v1141 = vadd.f32 %v1120, %v1137
        %s1142 = sld [smem:[#allocation2 + $0x35]]
        %v1143 = vstv %s1142
        %v1144 = vmul.f32 %v1143, %v244
        %v1145 = vmul.f32 %v1143, %v245
        %v1146 = vmul.f32 %v1143, %v246
        %v1150 = vrot.slane %v1144, 2
        %v1151 = vrot.slane %v1145, 2
        %v1152 = vsel %vm351, %v1150, %v1151
        %v1153 = vrot.slane %v1146, 2
        %v1154 = vsel %vm351, %v1151, %v1153
        %1155 = vrot.lane.b32.xlu0 %v1152, 126
        %v1156 = vpop.permute.xlu0 %1155
        %1157 = vrot.lane.b32.xlu0 %v1154, 126
        %v1158 = vpop.permute.xlu0 %1157
        %v1161 = vadd.f32 %v1140, %v1156
        %v1162 = vadd.f32 %v1141, %v1158
        %v1163 = vmax.f32 %v1161, 0.0
        %v1164 = vmax.f32 %v1162, 0.0
        %vm1165 = vcmask 130048
        %1166 = vst.msk [vmem:[%s214] sm:$0xff] %vm1165, %v1163
        %1167 = vst.msk [vmem:[%s214 + $0x8] sm:$0xff] %vm1165, %v1164
        %s1168 = sld [smem:[#allocation5 + $0x1]]
        %v1169 = vstv %s1168
        %s1170 = sld [smem:[#allocation2 + $0x36]]
        %v1171 = vstv %s1170
        %v1172 = vmul.f32 %v1171, %v224
        %v1173 = vmul.f32 %v1171, %v225
        %v1174 = vadd.f32 %v1169, %v1172
        %v1175 = vadd.f32 %v1169, %v1173
        %s1176 = sld [smem:[#allocation2 + $0x37]]
        %v1177 = vstv %s1176
        %v1178 = vmul.f32 %v1177, %v224
        %v1179 = vmul.f32 %v1177, %v225
        %1182 = vrot.lane.b32.xlu0 %v1178, 127
        %v1183 = vpop.permute.xlu0 %1182
        %1184 = vrot.lane.b32.xlu0 %v1179, 127
        %v1185 = vpop.permute.xlu0 %1184
        %v1188 = vadd.f32 %v1174, %v1183
        %v1189 = vadd.f32 %v1175, %v1185
        %s1190 = sld [smem:[#allocation2 + $0x38]]
        %v1191 = vstv %s1190
        %v1192 = vmul.f32 %v1191, %v224
        %v1193 = vmul.f32 %v1191, %v225
        %1196 = vrot.lane.b32.xlu0 %v1192, 126
        %v1197 = vpop.permute.xlu0 %1196
        %1198 = vrot.lane.b32.xlu0 %v1193, 126
        %v1199 = vpop.permute.xlu0 %1198
        %v1202 = vadd.f32 %v1188, %v1197
        %v1203 = vadd.f32 %v1189, %v1199
        %s1204 = sld [smem:[#allocation2 + $0x39]]
        %v1205 = vstv %s1204
        %v1206 = vmul.f32 %v1205, %v224
        %v1207 = vmul.f32 %v1205, %v225
        %v1208 = vmul.f32 %v1205, %v226
        %v1212 = vrot.slane %v1206, 1
        %v1213 = vrot.slane %v1207, 1
        %v1214 = vsel %vm291, %v1212, %v1213
        %v1215 = vrot.slane %v1208, 1
        %v1216 = vsel %vm291, %v1213, %v1215
        %v1219 = vadd.f32 %v1202, %v1214
        %v1220 = vadd.f32 %v1203, %v1216
        %s1221 = sld [smem:[#allocation2 + $0x3a]]
        %v1222 = vstv %s1221
        %v1223 = vmul.f32 %v1222, %v224
        %v1224 = vmul.f32 %v1222, %v225
        %v1225 = vmul.f32 %v1222, %v226
        %v1229 = vrot.slane %v1223, 1
        %v1230 = vrot.slane %v1224, 1
        %v1231 = vsel %vm291, %v1229, %v1230
        %v1232 = vrot.slane %v1225, 1
        %v1233 = vsel %vm291, %v1230, %v1232
        %1234 = vrot.lane.b32.xlu0 %v1231, 127
        %v1235 = vpop.permute.xlu0 %1234
        %1236 = vrot.lane.b32.xlu0 %v1233, 127
        %v1237 = vpop.permute.xlu0 %1236
        %v1240 = vadd.f32 %v1219, %v1235
        %v1241 = vadd.f32 %v1220, %v1237
        %s1242 = sld [smem:[#allocation2 + $0x3b]]
        %v1243 = vstv %s1242
        %v1244 = vmul.f32 %v1243, %v224
        %v1245 = vmul.f32 %v1243, %v225
        %v1246 = vmul.f32 %v1243, %v226
        %v1250 = vrot.slane %v1244, 1
        %v1251 = vrot.slane %v1245, 1
        %v1252 = vsel %vm291, %v1250, %v1251
        %v1253 = vrot.slane %v1246, 1
        %v1254 = vsel %vm291, %v1251, %v1253
        %1255 = vrot.lane.b32.xlu0 %v1252, 126
        %v1256 = vpop.permute.xlu0 %1255
        %1257 = vrot.lane.b32.xlu0 %v1254, 126
        %v1258 = vpop.permute.xlu0 %1257
        %v1261 = vadd.f32 %v1240, %v1256
        %v1262 = vadd.f32 %v1241, %v1258
        %s1263 = sld [smem:[#allocation2 + $0x3c]]
        %v1264 = vstv %s1263
        %v1265 = vmul.f32 %v1264, %v224
        %v1266 = vmul.f32 %v1264, %v225
        %v1267 = vmul.f32 %v1264, %v226
        %v1271 = vrot.slane %v1265, 2
        %v1272 = vrot.slane %v1266, 2
        %v1273 = vsel %vm351, %v1271, %v1272
        %v1274 = vrot.slane %v1267, 2
        %v1275 = vsel %vm351, %v1272, %v1274
        %v1278 = vadd.f32 %v1261, %v1273
        %v1279 = vadd.f32 %v1262, %v1275
        %s1280 = sld [smem:[#allocation2 + $0x3d]]
        %v1281 = vstv %s1280
        %v1282 = vmul.f32 %v1281, %v224
        %v1283 = vmul.f32 %v1281, %v225
        %v1284 = vmul.f32 %v1281, %v226
        %v1288 = vrot.slane %v1282, 2
        %v1289 = vrot.slane %v1283, 2
        %v1290 = vsel %vm351, %v1288, %v1289
        %v1291 = vrot.slane %v1284, 2
        %v1292 = vsel %vm351, %v1289, %v1291
        %1293 = vrot.lane.b32.xlu0 %v1290, 127
        %v1294 = vpop.permute.xlu0 %1293
        %1295 = vrot.lane.b32.xlu0 %v1292, 127
        %v1296 = vpop.permute.xlu0 %1295
        %v1299 = vadd.f32 %v1278, %v1294
        %v1300 = vadd.f32 %v1279, %v1296
        %s1301 = sld [smem:[#allocation2 + $0x3e]]
        %v1302 = vstv %s1301
        %v1303 = vmul.f32 %v1302, %v224
        %v1304 = vmul.f32 %v1302, %v225
        %v1305 = vmul.f32 %v1302, %v226
        %v1309 = vrot.slane %v1303, 2
        %v1310 = vrot.slane %v1304, 2
        %v1311 = vsel %vm351, %v1309, %v1310
        %v1312 = vrot.slane %v1305, 2
        %v1313 = vsel %vm351, %v1310, %v1312
        %1314 = vrot.lane.b32.xlu0 %v1311, 126
        %v1315 = vpop.permute.xlu0 %1314
        %1316 = vrot.lane.b32.xlu0 %v1313, 126
        %v1317 = vpop.permute.xlu0 %1316
        %v1320 = vadd.f32 %v1299, %v1315
        %v1321 = vadd.f32 %v1300, %v1317
        %s1322 = sld [smem:[#allocation2 + $0x3f]]
        %v1323 = vstv %s1322
        %v1324 = vmul.f32 %v1323, %v228
        %v1325 = vmul.f32 %v1323, %v229
        %v1326 = vadd.f32 %v1320, %v1324
        %v1327 = vadd.f32 %v1321, %v1325
        %s1328 = sld [smem:[#allocation2 + $0x40]]
        %v1329 = vstv %s1328
        %v1330 = vmul.f32 %v1329, %v228
        %v1331 = vmul.f32 %v1329, %v229
        %1334 = vrot.lane.b32.xlu0 %v1330, 127
        %v1335 = vpop.permute.xlu0 %1334
        %1336 = vrot.lane.b32.xlu0 %v1331, 127
        %v1337 = vpop.permute.xlu0 %1336
        %v1340 = vadd.f32 %v1326, %v1335
        %v1341 = vadd.f32 %v1327, %v1337
        %s1342 = sld [smem:[#allocation2 + $0x41]]
        %v1343 = vstv %s1342
        %v1344 = vmul.f32 %v1343, %v228
        %v1345 = vmul.f32 %v1343, %v229
        %1348 = vrot.lane.b32.xlu0 %v1344, 126
        %v1349 = vpop.permute.xlu0 %1348
        %1350 = vrot.lane.b32.xlu0 %v1345, 126
        %v1351 = vpop.permute.xlu0 %1350
        %v1354 = vadd.f32 %v1340, %v1349
        %v1355 = vadd.f32 %v1341, %v1351
        %s1356 = sld [smem:[#allocation2 + $0x42]]
        %v1357 = vstv %s1356
        %v1358 = vmul.f32 %v1357, %v228
        %v1359 = vmul.f32 %v1357, %v229
        %v1360 = vmul.f32 %v1357, %v230
        %v1364 = vrot.slane %v1358, 1
        %v1365 = vrot.slane %v1359, 1
        %v1366 = vsel %vm291, %v1364, %v1365
        %v1367 = vrot.slane %v1360, 1
        %v1368 = vsel %vm291, %v1365, %v1367
        %v1371 = vadd.f32 %v1354, %v1366
        %v1372 = vadd.f32 %v1355, %v1368
        %s1373 = sld [smem:[#allocation2 + $0x43]]
        %v1374 = vstv %s1373
        %v1375 = vmul.f32 %v1374, %v228
        %v1376 = vmul.f32 %v1374, %v229
        %v1377 = vmul.f32 %v1374, %v230
        %v1381 = vrot.slane %v1375, 1
        %v1382 = vrot.slane %v1376, 1
        %v1383 = vsel %vm291, %v1381, %v1382
        %v1384 = vrot.slane %v1377, 1
        %v1385 = vsel %vm291, %v1382, %v1384
        %1386 = vrot.lane.b32.xlu0 %v1383, 127
        %v1387 = vpop.permute.xlu0 %1386
        %1388 = vrot.lane.b32.xlu0 %v1385, 127
        %v1389 = vpop.permute.xlu0 %1388
        %v1392 = vadd.f32 %v1371, %v1387
        %v1393 = vadd.f32 %v1372, %v1389
        %s1394 = sld [smem:[#allocation2 + $0x44]]
        %v1395 = vstv %s1394
        %v1396 = vmul.f32 %v1395, %v228
        %v1397 = vmul.f32 %v1395, %v229
        %v1398 = vmul.f32 %v1395, %v230
        %v1402 = vrot.slane %v1396, 1
        %v1403 = vrot.slane %v1397, 1
        %v1404 = vsel %vm291, %v1402, %v1403
        %v1405 = vrot.slane %v1398, 1
        %v1406 = vsel %vm291, %v1403, %v1405
        %1407 = vrot.lane.b32.xlu0 %v1404, 126
        %v1408 = vpop.permute.xlu0 %1407
        %1409 = vrot.lane.b32.xlu0 %v1406, 126
        %v1410 = vpop.permute.xlu0 %1409
        %v1413 = vadd.f32 %v1392, %v1408
        %v1414 = vadd.f32 %v1393, %v1410
        %s1415 = sld [smem:[#allocation2 + $0x45]]
        %v1416 = vstv %s1415
        %v1417 = vmul.f32 %v1416, %v228
        %v1418 = vmul.f32 %v1416, %v229
        %v1419 = vmul.f32 %v1416, %v230
        %v1423 = vrot.slane %v1417, 2
        %v1424 = vrot.slane %v1418, 2
        %v1425 = vsel %vm351, %v1423, %v1424
        %v1426 = vrot.slane %v1419, 2
        %v1427 = vsel %vm351, %v1424, %v1426
        %v1430 = vadd.f32 %v1413, %v1425
        %v1431 = vadd.f32 %v1414, %v1427
        %s1432 = sld [smem:[#allocation2 + $0x46]]
        %v1433 = vstv %s1432
        %v1434 = vmul.f32 %v1433, %v228
        %v1435 = vmul.f32 %v1433, %v229
        %v1436 = vmul.f32 %v1433, %v230
        %v1440 = vrot.slane %v1434, 2
        %v1441 = vrot.slane %v1435, 2
        %v1442 = vsel %vm351, %v1440, %v1441
        %v1443 = vrot.slane %v1436, 2
        %v1444 = vsel %vm351, %v1441, %v1443
        %1445 = vrot.lane.b32.xlu0 %v1442, 127
        %v1446 = vpop.permute.xlu0 %1445
        %1447 = vrot.lane.b32.xlu0 %v1444, 127
        %v1448 = vpop.permute.xlu0 %1447
        %v1451 = vadd.f32 %v1430, %v1446
        %v1452 = vadd.f32 %v1431, %v1448
        %s1453 = sld [smem:[#allocation2 + $0x47]]
        %v1454 = vstv %s1453
        %v1455 = vmul.f32 %v1454, %v228
        %v1456 = vmul.f32 %v1454, %v229
        %v1457 = vmul.f32 %v1454, %v230
        %v1461 = vrot.slane %v1455, 2
        %v1462 = vrot.slane %v1456, 2
        %v1463 = vsel %vm351, %v1461, %v1462
        %v1464 = vrot.slane %v1457, 2
        %v1465 = vsel %vm351, %v1462, %v1464
        %1466 = vrot.lane.b32.xlu0 %v1463, 126
        %v1467 = vpop.permute.xlu0 %1466
        %1468 = vrot.lane.b32.xlu0 %v1465, 126
        %v1469 = vpop.permute.xlu0 %1468
        %v1472 = vadd.f32 %v1451, %v1467
        %v1473 = vadd.f32 %v1452, %v1469
        %s1474 = sld [smem:[#allocation2 + $0x48]]
        %v1475 = vstv %s1474
        %v1476 = vmul.f32 %v1475, %v232
        %v1477 = vmul.f32 %v1475, %v233
        %v1478 = vadd.f32 %v1472, %v1476
        %v1479 = vadd.f32 %v1473, %v1477
        %s1480 = sld [smem:[#allocation2 + $0x49]]
        %v1481 = vstv %s1480
        %v1482 = vmul.f32 %v1481, %v232
        %v1483 = vmul.f32 %v1481, %v233
        %1486 = vrot.lane.b32.xlu0 %v1482, 127
        %v1487 = vpop.permute.xlu0 %1486
        %1488 = vrot.lane.b32.xlu0 %v1483, 127
        %v1489 = vpop.permute.xlu0 %1488
        %v1492 = vadd.f32 %v1478, %v1487
        %v1493 = vadd.f32 %v1479, %v1489
        %s1494 = sld [smem:[#allocation2 + $0x4a]]
        %v1495 = vstv %s1494
        %v1496 = vmul.f32 %v1495, %v232
        %v1497 = vmul.f32 %v1495, %v233
        %1500 = vrot.lane.b32.xlu0 %v1496, 126
        %v1501 = vpop.permute.xlu0 %1500
        %1502 = vrot.lane.b32.xlu0 %v1497, 126
        %v1503 = vpop.permute.xlu0 %1502
        %v1506 = vadd.f32 %v1492, %v1501
        %v1507 = vadd.f32 %v1493, %v1503
        %s1508 = sld [smem:[#allocation2 + $0x4b]]
        %v1509 = vstv %s1508
        %v1510 = vmul.f32 %v1509, %v232
        %v1511 = vmul.f32 %v1509, %v233
        %v1512 = vmul.f32 %v1509, %v234
        %v1516 = vrot.slane %v1510, 1
        %v1517 = vrot.slane %v1511, 1
        %v1518 = vsel %vm291, %v1516, %v1517
        %v1519 = vrot.slane %v1512, 1
        %v1520 = vsel %vm291, %v1517, %v1519
        %v1523 = vadd.f32 %v1506, %v1518
        %v1524 = vadd.f32 %v1507, %v1520
        %s1525 = sld [smem:[#allocation2 + $0x4c]]
        %v1526 = vstv %s1525
        %v1527 = vmul.f32 %v1526, %v232
        %v1528 = vmul.f32 %v1526, %v233
        %v1529 = vmul.f32 %v1526, %v234
        %v1533 = vrot.slane %v1527, 1
        %v1534 = vrot.slane %v1528, 1
        %v1535 = vsel %vm291, %v1533, %v1534
        %v1536 = vrot.slane %v1529, 1
        %v1537 = vsel %vm291, %v1534, %v1536
        %1538 = vrot.lane.b32.xlu0 %v1535, 127
        %v1539 = vpop.permute.xlu0 %1538
        %1540 = vrot.lane.b32.xlu0 %v1537, 127
        %v1541 = vpop.permute.xlu0 %1540
        %v1544 = vadd.f32 %v1523, %v1539
        %v1545 = vadd.f32 %v1524, %v1541
        %s1546 = sld [smem:[#allocation2 + $0x4d]]
        %v1547 = vstv %s1546
        %v1548 = vmul.f32 %v1547, %v232
        %v1549 = vmul.f32 %v1547, %v233
        %v1550 = vmul.f32 %v1547, %v234
        %v1554 = vrot.slane %v1548, 1
        %v1555 = vrot.slane %v1549, 1
        %v1556 = vsel %vm291, %v1554, %v1555
        %v1557 = vrot.slane %v1550, 1
        %v1558 = vsel %vm291, %v1555, %v1557
        %1559 = vrot.lane.b32.xlu0 %v1556, 126
        %v1560 = vpop.permute.xlu0 %1559
        %1561 = vrot.lane.b32.xlu0 %v1558, 126
        %v1562 = vpop.permute.xlu0 %1561
        %v1565 = vadd.f32 %v1544, %v1560
        %v1566 = vadd.f32 %v1545, %v1562
        %s1567 = sld [smem:[#allocation2 + $0x4e]]
        %v1568 = vstv %s1567
        %v1569 = vmul.f32 %v1568, %v232
        %v1570 = vmul.f32 %v1568, %v233
        %v1571 = vmul.f32 %v1568, %v234
        %v1575 = vrot.slane %v1569, 2
        %v1576 = vrot.slane %v1570, 2
        %v1577 = vsel %vm351, %v1575, %v1576
        %v1578 = vrot.slane %v1571, 2
        %v1579 = vsel %vm351, %v1576, %v1578
        %v1582 = vadd.f32 %v1565, %v1577
        %v1583 = vadd.f32 %v1566, %v1579
        %s1584 = sld [smem:[#allocation2 + $0x4f]]
        %v1585 = vstv %s1584
        %v1586 = vmul.f32 %v1585, %v232
        %v1587 = vmul.f32 %v1585, %v233
        %v1588 = vmul.f32 %v1585, %v234
        %v1592 = vrot.slane %v1586, 2
        %v1593 = vrot.slane %v1587, 2
        %v1594 = vsel %vm351, %v1592, %v1593
        %v1595 = vrot.slane %v1588, 2
        %v1596 = vsel %vm351, %v1593, %v1595
        %1597 = vrot.lane.b32.xlu0 %v1594, 127
        %v1598 = vpop.permute.xlu0 %1597
        %1599 = vrot.lane.b32.xlu0 %v1596, 127
        %v1600 = vpop.permute.xlu0 %1599
        %v1603 = vadd.f32 %v1582, %v1598
        %v1604 = vadd.f32 %v1583, %v1600
        %s1605 = sld [smem:[#allocation2 + $0x50]]
        %v1606 = vstv %s1605
        %v1607 = vmul.f32 %v1606, %v232
        %v1608 = vmul.f32 %v1606, %v233
        %v1609 = vmul.f32 %v1606, %v234
        %v1613 = vrot.slane %v1607, 2
        %v1614 = vrot.slane %v1608, 2
        %v1615 = vsel %vm351, %v1613, %v1614
        %v1616 = vrot.slane %v1609, 2
        %v1617 = vsel %vm351, %v1614, %v1616
        %1618 = vrot.lane.b32.xlu0 %v1615, 126
        %v1619 = vpop.permute.xlu0 %1618
        %1620 = vrot.lane.b32.xlu0 %v1617, 126
        %v1621 = vpop.permute.xlu0 %1620
        %v1624 = vadd.f32 %v1603, %v1619
        %v1625 = vadd.f32 %v1604, %v1621
        %s1626 = sld [smem:[#allocation2 + $0x51]]
        %v1627 = vstv %s1626
        %v1628 = vmul.f32 %v1627, %v236
        %v1629 = vmul.f32 %v1627, %v237
        %v1630 = vadd.f32 %v1624, %v1628
        %v1631 = vadd.f32 %v1625, %v1629
        %s1632 = sld [smem:[#allocation2 + $0x52]]
        %v1633 = vstv %s1632
        %v1634 = vmul.f32 %v1633, %v236
        %v1635 = vmul.f32 %v1633, %v237
        %1638 = vrot.lane.b32.xlu0 %v1634, 127
        %v1639 = vpop.permute.xlu0 %1638
        %1640 = vrot.lane.b32.xlu0 %v1635, 127
        %v1641 = vpop.permute.xlu0 %1640
        %v1644 = vadd.f32 %v1630, %v1639
        %v1645 = vadd.f32 %v1631, %v1641
        %s1646 = sld [smem:[#allocation2 + $0x53]]
        %v1647 = vstv %s1646
        %v1648 = vmul.f32 %v1647, %v236
        %v1649 = vmul.f32 %v1647, %v237
        %1652 = vrot.lane.b32.xlu0 %v1648, 126
        %v1653 = vpop.permute.xlu0 %1652
        %1654 = vrot.lane.b32.xlu0 %v1649, 126
        %v1655 = vpop.permute.xlu0 %1654
        %v1658 = vadd.f32 %v1644, %v1653
        %v1659 = vadd.f32 %v1645, %v1655
        %s1660 = sld [smem:[#allocation2 + $0x54]]
        %v1661 = vstv %s1660
        %v1662 = vmul.f32 %v1661, %v236
        %v1663 = vmul.f32 %v1661, %v237
        %v1664 = vmul.f32 %v1661, %v238
        %v1668 = vrot.slane %v1662, 1
        %v1669 = vrot.slane %v1663, 1
        %v1670 = vsel %vm291, %v1668, %v1669
        %v1671 = vrot.slane %v1664, 1
        %v1672 = vsel %vm291, %v1669, %v1671
        %v1675 = vadd.f32 %v1658, %v1670
        %v1676 = vadd.f32 %v1659, %v1672
        %s1677 = sld [smem:[#allocation2 + $0x55]]
        %v1678 = vstv %s1677
        %v1679 = vmul.f32 %v1678, %v236
        %v1680 = vmul.f32 %v1678, %v237
        %v1681 = vmul.f32 %v1678, %v238
        %v1685 = vrot.slane %v1679, 1
        %v1686 = vrot.slane %v1680, 1
        %v1687 = vsel %vm291, %v1685, %v1686
        %v1688 = vrot.slane %v1681, 1
        %v1689 = vsel %vm291, %v1686, %v1688
        %1690 = vrot.lane.b32.xlu0 %v1687, 127
        %v1691 = vpop.permute.xlu0 %1690
        %1692 = vrot.lane.b32.xlu0 %v1689, 127
        %v1693 = vpop.permute.xlu0 %1692
        %v1696 = vadd.f32 %v1675, %v1691
        %v1697 = vadd.f32 %v1676, %v1693
        %s1698 = sld [smem:[#allocation2 + $0x56]]
        %v1699 = vstv %s1698
        %v1700 = vmul.f32 %v1699, %v236
        %v1701 = vmul.f32 %v1699, %v237
        %v1702 = vmul.f32 %v1699, %v238
        %v1706 = vrot.slane %v1700, 1
        %v1707 = vrot.slane %v1701, 1
        %v1708 = vsel %vm291, %v1706, %v1707
        %v1709 = vrot.slane %v1702, 1
        %v1710 = vsel %vm291, %v1707, %v1709
        %1711 = vrot.lane.b32.xlu0 %v1708, 126
        %v1712 = vpop.permute.xlu0 %1711
        %1713 = vrot.lane.b32.xlu0 %v1710, 126
        %v1714 = vpop.permute.xlu0 %1713
        %v1717 = vadd.f32 %v1696, %v1712
        %v1718 = vadd.f32 %v1697, %v1714
        %s1719 = sld [smem:[#allocation2 + $0x57]]
        %v1720 = vstv %s1719
        %v1721 = vmul.f32 %v1720, %v236
        %v1722 = vmul.f32 %v1720, %v237
        %v1723 = vmul.f32 %v1720, %v238
        %v1727 = vrot.slane %v1721, 2
        %v1728 = vrot.slane %v1722, 2
        %v1729 = vsel %vm351, %v1727, %v1728
        %v1730 = vrot.slane %v1723, 2
        %v1731 = vsel %vm351, %v1728, %v1730
        %v1734 = vadd.f32 %v1717, %v1729
        %v1735 = vadd.f32 %v1718, %v1731
        %s1736 = sld [smem:[#allocation2 + $0x58]]
        %v1737 = vstv %s1736
        %v1738 = vmul.f32 %v1737, %v236
        %v1739 = vmul.f32 %v1737, %v237
        %v1740 = vmul.f32 %v1737, %v238
        %v1744 = vrot.slane %v1738, 2
        %v1745 = vrot.slane %v1739, 2
        %v1746 = vsel %vm351, %v1744, %v1745
        %v1747 = vrot.slane %v1740, 2
        %v1748 = vsel %vm351, %v1745, %v1747
        %1749 = vrot.lane.b32.xlu0 %v1746, 127
        %v1750 = vpop.permute.xlu0 %1749
        %1751 = vrot.lane.b32.xlu0 %v1748, 127
        %v1752 = vpop.permute.xlu0 %1751
        %v1755 = vadd.f32 %v1734, %v1750
        %v1756 = vadd.f32 %v1735, %v1752
        %s1757 = sld [smem:[#allocation2 + $0x59]]
        %v1758 = vstv %s1757
        %v1759 = vmul.f32 %v1758, %v236
        %v1760 = vmul.f32 %v1758, %v237
        %v1761 = vmul.f32 %v1758, %v238
        %v1765 = vrot.slane %v1759, 2
        %v1766 = vrot.slane %v1760, 2
        %v1767 = vsel %vm351, %v1765, %v1766
        %v1768 = vrot.slane %v1761, 2
        %v1769 = vsel %vm351, %v1766, %v1768
        %1770 = vrot.lane.b32.xlu0 %v1767, 126
        %v1771 = vpop.permute.xlu0 %1770
        %1772 = vrot.lane.b32.xlu0 %v1769, 126
        %v1773 = vpop.permute.xlu0 %1772
        %v1776 = vadd.f32 %v1755, %v1771
        %v1777 = vadd.f32 %v1756, %v1773
        %s1778 = sld [smem:[#allocation2 + $0x5a]]
        %v1779 = vstv %s1778
        %v1780 = vmul.f32 %v1779, %v240
        %v1781 = vmul.f32 %v1779, %v241
        %v1782 = vadd.f32 %v1776, %v1780
        %v1783 = vadd.f32 %v1777, %v1781
        %s1784 = sld [smem:[#allocation2 + $0x5b]]
        %v1785 = vstv %s1784
        %v1786 = vmul.f32 %v1785, %v240
        %v1787 = vmul.f32 %v1785, %v241
        %1790 = vrot.lane.b32.xlu0 %v1786, 127
        %v1791 = vpop.permute.xlu0 %1790
        %1792 = vrot.lane.b32.xlu0 %v1787, 127
        %v1793 = vpop.permute.xlu0 %1792
        %v1796 = vadd.f32 %v1782, %v1791
        %v1797 = vadd.f32 %v1783, %v1793
        %s1798 = sld [smem:[#allocation2 + $0x5c]]
        %v1799 = vstv %s1798
        %v1800 = vmul.f32 %v1799, %v240
        %v1801 = vmul.f32 %v1799, %v241
        %1804 = vrot.lane.b32.xlu0 %v1800, 126
        %v1805 = vpop.permute.xlu0 %1804
        %1806 = vrot.lane.b32.xlu0 %v1801, 126
        %v1807 = vpop.permute.xlu0 %1806
        %v1810 = vadd.f32 %v1796, %v1805
        %v1811 = vadd.f32 %v1797, %v1807
        %s1812 = sld [smem:[#allocation2 + $0x5d]]
        %v1813 = vstv %s1812
        %v1814 = vmul.f32 %v1813, %v240
        %v1815 = vmul.f32 %v1813, %v241
        %v1816 = vmul.f32 %v1813, %v242
        %v1820 = vrot.slane %v1814, 1
        %v1821 = vrot.slane %v1815, 1
        %v1822 = vsel %vm291, %v1820, %v1821
        %v1823 = vrot.slane %v1816, 1
        %v1824 = vsel %vm291, %v1821, %v1823
        %v1827 = vadd.f32 %v1810, %v1822
        %v1828 = vadd.f32 %v1811, %v1824
        %s1829 = sld [smem:[#allocation2 + $0x5e]]
        %v1830 = vstv %s1829
        %v1831 = vmul.f32 %v1830, %v240
        %v1832 = vmul.f32 %v1830, %v241
        %v1833 = vmul.f32 %v1830, %v242
        %v1837 = vrot.slane %v1831, 1
        %v1838 = vrot.slane %v1832, 1
        %v1839 = vsel %vm291, %v1837, %v1838
        %v1840 = vrot.slane %v1833, 1
        %v1841 = vsel %vm291, %v1838, %v1840
        %1842 = vrot.lane.b32.xlu0 %v1839, 127
        %v1843 = vpop.permute.xlu0 %1842
        %1844 = vrot.lane.b32.xlu0 %v1841, 127
        %v1845 = vpop.permute.xlu0 %1844
        %v1848 = vadd.f32 %v1827, %v1843
        %v1849 = vadd.f32 %v1828, %v1845
        %s1850 = sld [smem:[#allocation2 + $0x5f]]
        %v1851 = vstv %s1850
        %v1852 = vmul.f32 %v1851, %v240
        %v1853 = vmul.f32 %v1851, %v241
        %v1854 = vmul.f32 %v1851, %v242
        %v1858 = vrot.slane %v1852, 1
        %v1859 = vrot.slane %v1853, 1
        %v1860 = vsel %vm291, %v1858, %v1859
        %v1861 = vrot.slane %v1854, 1
        %v1862 = vsel %vm291, %v1859, %v1861
        %1863 = vrot.lane.b32.xlu0 %v1860, 126
        %v1864 = vpop.permute.xlu0 %1863
        %1865 = vrot.lane.b32.xlu0 %v1862, 126
        %v1866 = vpop.permute.xlu0 %1865
        %v1869 = vadd.f32 %v1848, %v1864
        %v1870 = vadd.f32 %v1849, %v1866
        %s1871 = sld [smem:[#allocation2 + $0x60]]
        %v1872 = vstv %s1871
        %v1873 = vmul.f32 %v1872, %v240
        %v1874 = vmul.f32 %v1872, %v241
        %v1875 = vmul.f32 %v1872, %v242
        %v1879 = vrot.slane %v1873, 2
        %v1880 = vrot.slane %v1874, 2
        %v1881 = vsel %vm351, %v1879, %v1880
        %v1882 = vrot.slane %v1875, 2
        %v1883 = vsel %vm351, %v1880, %v1882
        %v1886 = vadd.f32 %v1869, %v1881
        %v1887 = vadd.f32 %v1870, %v1883
        %s1888 = sld [smem:[#allocation2 + $0x61]]
        %v1889 = vstv %s1888
        %v1890 = vmul.f32 %v1889, %v240
        %v1891 = vmul.f32 %v1889, %v241
        %v1892 = vmul.f32 %v1889, %v242
        %v1896 = vrot.slane %v1890, 2
        %v1897 = vrot.slane %v1891, 2
        %v1898 = vsel %vm351, %v1896, %v1897
        %v1899 = vrot.slane %v1892, 2
        %v1900 = vsel %vm351, %v1897, %v1899
        %1901 = vrot.lane.b32.xlu0 %v1898, 127
        %v1902 = vpop.permute.xlu0 %1901
        %1903 = vrot.lane.b32.xlu0 %v1900, 127
        %v1904 = vpop.permute.xlu0 %1903
        %v1907 = vadd.f32 %v1886, %v1902
        %v1908 = vadd.f32 %v1887, %v1904
        %s1909 = sld [smem:[#allocation2 + $0x62]]
        %v1910 = vstv %s1909
        %v1911 = vmul.f32 %v1910, %v240
        %v1912 = vmul.f32 %v1910, %v241
        %v1913 = vmul.f32 %v1910, %v242
        %v1917 = vrot.slane %v1911, 2
        %v1918 = vrot.slane %v1912, 2
        %v1919 = vsel %vm351, %v1917, %v1918
        %v1920 = vrot.slane %v1913, 2
        %v1921 = vsel %vm351, %v1918, %v1920
        %1922 = vrot.lane.b32.xlu0 %v1919, 126
        %v1923 = vpop.permute.xlu0 %1922
        %1924 = vrot.lane.b32.xlu0 %v1921, 126
        %v1925 = vpop.permute.xlu0 %1924
        %v1928 = vadd.f32 %v1907, %v1923
        %v1929 = vadd.f32 %v1908, %v1925
        %s1930 = sld [smem:[#allocation2 + $0x63]]
        %v1931 = vstv %s1930
        %v1932 = vmul.f32 %v1931, %v244
        %v1933 = vmul.f32 %v1931, %v245
        %v1934 = vadd.f32 %v1928, %v1932
        %v1935 = vadd.f32 %v1929, %v1933
        %s1936 = sld [smem:[#allocation2 + $0x64]]
        %v1937 = vstv %s1936
        %v1938 = vmul.f32 %v1937, %v244
        %v1939 = vmul.f32 %v1937, %v245
        %1942 = vrot.lane.b32.xlu0 %v1938, 127
        %v1943 = vpop.permute.xlu0 %1942
        %1944 = vrot.lane.b32.xlu0 %v1939, 127
        %v1945 = vpop.permute.xlu0 %1944
        %v1948 = vadd.f32 %v1934, %v1943
        %v1949 = vadd.f32 %v1935, %v1945
        %s1950 = sld [smem:[#allocation2 + $0x65]]
        %v1951 = vstv %s1950
        %v1952 = vmul.f32 %v1951, %v244
        %v1953 = vmul.f32 %v1951, %v245
        %1956 = vrot.lane.b32.xlu0 %v1952, 126
        %v1957 = vpop.permute.xlu0 %1956
        %1958 = vrot.lane.b32.xlu0 %v1953, 126
        %v1959 = vpop.permute.xlu0 %1958
        %v1962 = vadd.f32 %v1948, %v1957
        %v1963 = vadd.f32 %v1949, %v1959
        %s1964 = sld [smem:[#allocation2 + $0x66]]
        %v1965 = vstv %s1964
        %v1966 = vmul.f32 %v1965, %v244
        %v1967 = vmul.f32 %v1965, %v245
        %v1968 = vmul.f32 %v1965, %v246
        %v1972 = vrot.slane %v1966, 1
        %v1973 = vrot.slane %v1967, 1
        %v1974 = vsel %vm291, %v1972, %v1973
        %v1975 = vrot.slane %v1968, 1
        %v1976 = vsel %vm291, %v1973, %v1975
        %v1979 = vadd.f32 %v1962, %v1974
        %v1980 = vadd.f32 %v1963, %v1976
        %s1981 = sld [smem:[#allocation2 + $0x67]]
        %v1982 = vstv %s1981
        %v1983 = vmul.f32 %v1982, %v244
        %v1984 = vmul.f32 %v1982, %v245
        %v1985 = vmul.f32 %v1982, %v246
        %v1989 = vrot.slane %v1983, 1
        %v1990 = vrot.slane %v1984, 1
        %v1991 = vsel %vm291, %v1989, %v1990
        %v1992 = vrot.slane %v1985, 1
        %v1993 = vsel %vm291, %v1990, %v1992
        %1994 = vrot.lane.b32.xlu0 %v1991, 127
        %v1995 = vpop.permute.xlu0 %1994
        %1996 = vrot.lane.b32.xlu0 %v1993, 127
        %v1997 = vpop.permute.xlu0 %1996
        %v2000 = vadd.f32 %v1979, %v1995
        %v2001 = vadd.f32 %v1980, %v1997
        %s2002 = sld [smem:[#allocation2 + $0x68]]
        %v2003 = vstv %s2002
        %v2004 = vmul.f32 %v2003, %v244
        %v2005 = vmul.f32 %v2003, %v245
        %v2006 = vmul.f32 %v2003, %v246
        %v2010 = vrot.slane %v2004, 1
        %v2011 = vrot.slane %v2005, 1
        %v2012 = vsel %vm291, %v2010, %v2011
        %v2013 = vrot.slane %v2006, 1
        %v2014 = vsel %vm291, %v2011, %v2013
        %2015 = vrot.lane.b32.xlu0 %v2012, 126
        %v2016 = vpop.permute.xlu0 %2015
        %2017 = vrot.lane.b32.xlu0 %v2014, 126
        %v2018 = vpop.permute.xlu0 %2017
        %v2021 = vadd.f32 %v2000, %v2016
        %v2022 = vadd.f32 %v2001, %v2018
        %s2023 = sld [smem:[#allocation2 + $0x69]]
        %v2024 = vstv %s2023
        %v2025 = vmul.f32 %v2024, %v244
        %v2026 = vmul.f32 %v2024, %v245
        %v2027 = vmul.f32 %v2024, %v246
        %v2031 = vrot.slane %v2025, 2
        %v2032 = vrot.slane %v2026, 2
        %v2033 = vsel %vm351, %v2031, %v2032
        %v2034 = vrot.slane %v2027, 2
        %v2035 = vsel %vm351, %v2032, %v2034
        %v2038 = vadd.f32 %v2021, %v2033
        %v2039 = vadd.f32 %v2022, %v2035
        %s2040 = sld [smem:[#allocation2 + $0x6a]]
        %v2041 = vstv %s2040
        %v2042 = vmul.f32 %v2041, %v244
        %v2043 = vmul.f32 %v2041, %v245
        %v2044 = vmul.f32 %v2041, %v246
        %v2048 = vrot.slane %v2042, 2
        %v2049 = vrot.slane %v2043, 2
        %v2050 = vsel %vm351, %v2048, %v2049
        %v2051 = vrot.slane %v2044, 2
        %v2052 = vsel %vm351, %v2049, %v2051
        %2053 = vrot.lane.b32.xlu0 %v2050, 127
        %v2054 = vpop.permute.xlu0 %2053
        %2055 = vrot.lane.b32.xlu0 %v2052, 127
        %v2056 = vpop.permute.xlu0 %2055
        %v2059 = vadd.f32 %v2038, %v2054
        %v2060 = vadd.f32 %v2039, %v2056
        %s2061 = sld [smem:[#allocation2 + $0x6b]]
        %v2062 = vstv %s2061
        %v2063 = vmul.f32 %v2062, %v244
        %v2064 = vmul.f32 %v2062, %v245
        %v2065 = vmul.f32 %v2062, %v246
        %v2069 = vrot.slane %v2063, 2
        %v2070 = vrot.slane %v2064, 2
        %v2071 = vsel %vm351, %v2069, %v2070
        %v2072 = vrot.slane %v2065, 2
        %v2073 = vsel %vm351, %v2070, %v2072
        %2074 = vrot.lane.b32.xlu0 %v2071, 126
        %v2075 = vpop.permute.xlu0 %2074
        %2076 = vrot.lane.b32.xlu0 %v2073, 126
        %v2077 = vpop.permute.xlu0 %2076
        %v2080 = vadd.f32 %v2059, %v2075
        %v2081 = vadd.f32 %v2060, %v2077
        %v2082 = vmax.f32 %v2080, 0.0
        %v2083 = vmax.f32 %v2081, 0.0
        %s2084 = scalar_lea.vmem %s214, 16 [#allocation7]
        %2085 = vst.msk [vmem:[%s2084] sm:$0xff] %vm1165, %v2082
        %2086 = vst.msk [vmem:[%s2084 + $0x8] sm:$0xff] %vm1165, %v2083
        %s2087 = sld [smem:[#allocation5 + $0x2]]
        %v2088 = vstv %s2087
        %s2089 = sld [smem:[#allocation2 + $0x6c]]
        %v2090 = vstv %s2089
        %v2091 = vmul.f32 %v2090, %v224
        %v2092 = vmul.f32 %v2090, %v225
        %v2093 = vadd.f32 %v2088, %v2091
        %v2094 = vadd.f32 %v2088, %v2092
        %s2095 = sld [smem:[#allocation2 + $0x6d]]
        %v2096 = vstv %s2095
        %v2097 = vmul.f32 %v2096, %v224
        %v2098 = vmul.f32 %v2096, %v225
        %2101 = vrot.lane.b32.xlu0 %v2097, 127
        %v2102 = vpop.permute.xlu0 %2101
        %2103 = vrot.lane.b32.xlu0 %v2098, 127
        %v2104 = vpop.permute.xlu0 %2103
        %v2107 = vadd.f32 %v2093, %v2102
        %v2108 = vadd.f32 %v2094, %v2104
        %s2109 = sld [smem:[#allocation2 + $0x6e]]
        %v2110 = vstv %s2109
        %v2111 = vmul.f32 %v2110, %v224
        %v2112 = vmul.f32 %v2110, %v225
        %2115 = vrot.lane.b32.xlu0 %v2111, 126
        %v2116 = vpop.permute.xlu0 %2115
        %2117 = vrot.lane.b32.xlu0 %v2112, 126
        %v2118 = vpop.permute.xlu0 %2117
        %v2121 = vadd.f32 %v2107, %v2116
        %v2122 = vadd.f32 %v2108, %v2118
        %s2123 = sld [smem:[#allocation2 + $0x6f]]
        %v2124 = vstv %s2123
        %v2125 = vmul.f32 %v2124, %v224
        %v2126 = vmul.f32 %v2124, %v225
        %v2127 = vmul.f32 %v2124, %v226
        %v2131 = vrot.slane %v2125, 1
        %v2132 = vrot.slane %v2126, 1
        %v2133 = vsel %vm291, %v2131, %v2132
        %v2134 = vrot.slane %v2127, 1
        %v2135 = vsel %vm291, %v2132, %v2134
        %v2138 = vadd.f32 %v2121, %v2133
        %v2139 = vadd.f32 %v2122, %v2135
        %s2140 = sld [smem:[#allocation2 + $0x70]]
        %v2141 = vstv %s2140
        %v2142 = vmul.f32 %v2141, %v224
        %v2143 = vmul.f32 %v2141, %v225
        %v2144 = vmul.f32 %v2141, %v226
        %v2148 = vrot.slane %v2142, 1
        %v2149 = vrot.slane %v2143, 1
        %v2150 = vsel %vm291, %v2148, %v2149
        %v2151 = vrot.slane %v2144, 1
        %v2152 = vsel %vm291, %v2149, %v2151
        %2153 = vrot.lane.b32.xlu0 %v2150, 127
        %v2154 = vpop.permute.xlu0 %2153
        %2155 = vrot.lane.b32.xlu0 %v2152, 127
        %v2156 = vpop.permute.xlu0 %2155
        %v2159 = vadd.f32 %v2138, %v2154
        %v2160 = vadd.f32 %v2139, %v2156
        %s2161 = sld [smem:[#allocation2 + $0x71]]
        %v2162 = vstv %s2161
        %v2163 = vmul.f32 %v2162, %v224
        %v2164 = vmul.f32 %v2162, %v225
        %v2165 = vmul.f32 %v2162, %v226
        %v2169 = vrot.slane %v2163, 1
        %v2170 = vrot.slane %v2164, 1
        %v2171 = vsel %vm291, %v2169, %v2170
        %v2172 = vrot.slane %v2165, 1
        %v2173 = vsel %vm291, %v2170, %v2172
        %2174 = vrot.lane.b32.xlu0 %v2171, 126
        %v2175 = vpop.permute.xlu0 %2174
        %2176 = vrot.lane.b32.xlu0 %v2173, 126
        %v2177 = vpop.permute.xlu0 %2176
        %v2180 = vadd.f32 %v2159, %v2175
        %v2181 = vadd.f32 %v2160, %v2177
        %s2182 = sld [smem:[#allocation2 + $0x72]]
        %v2183 = vstv %s2182
        %v2184 = vmul.f32 %v2183, %v224
        %v2185 = vmul.f32 %v2183, %v225
        %v2186 = vmul.f32 %v2183, %v226
        %v2190 = vrot.slane %v2184, 2
        %v2191 = vrot.slane %v2185, 2
        %v2192 = vsel %vm351, %v2190, %v2191
        %v2193 = vrot.slane %v2186, 2
        %v2194 = vsel %vm351, %v2191, %v2193
        %v2197 = vadd.f32 %v2180, %v2192
        %v2198 = vadd.f32 %v2181, %v2194
        %s2199 = sld [smem:[#allocation2 + $0x73]]
        %v2200 = vstv %s2199
        %v2201 = vmul.f32 %v2200, %v224
        %v2202 = vmul.f32 %v2200, %v225
        %v2203 = vmul.f32 %v2200, %v226
        %v2207 = vrot.slane %v2201, 2
        %v2208 = vrot.slane %v2202, 2
        %v2209 = vsel %vm351, %v2207, %v2208
        %v2210 = vrot.slane %v2203, 2
        %v2211 = vsel %vm351, %v2208, %v2210
        %2212 = vrot.lane.b32.xlu0 %v2209, 127
        %v2213 = vpop.permute.xlu0 %2212
        %2214 = vrot.lane.b32.xlu0 %v2211, 127
        %v2215 = vpop.permute.xlu0 %2214
        %v2218 = vadd.f32 %v2197, %v2213
        %v2219 = vadd.f32 %v2198, %v2215
        %s2220 = sld [smem:[#allocation2 + $0x74]]
        %v2221 = vstv %s2220
        %v2222 = vmul.f32 %v2221, %v224
        %v2223 = vmul.f32 %v2221, %v225
        %v2224 = vmul.f32 %v2221, %v226
        %v2228 = vrot.slane %v2222, 2
        %v2229 = vrot.slane %v2223, 2
        %v2230 = vsel %vm351, %v2228, %v2229
        %v2231 = vrot.slane %v2224, 2
        %v2232 = vsel %vm351, %v2229, %v2231
        %2233 = vrot.lane.b32.xlu0 %v2230, 126
        %v2234 = vpop.permute.xlu0 %2233
        %2235 = vrot.lane.b32.xlu0 %v2232, 126
        %v2236 = vpop.permute.xlu0 %2235
        %v2239 = vadd.f32 %v2218, %v2234
        %v2240 = vadd.f32 %v2219, %v2236
        %s2241 = sld [smem:[#allocation2 + $0x75]]
        %v2242 = vstv %s2241
        %v2243 = vmul.f32 %v2242, %v228
        %v2244 = vmul.f32 %v2242, %v229
        %v2245 = vadd.f32 %v2239, %v2243
        %v2246 = vadd.f32 %v2240, %v2244
        %s2247 = sld [smem:[#allocation2 + $0x76]]
        %v2248 = vstv %s2247
        %v2249 = vmul.f32 %v2248, %v228
        %v2250 = vmul.f32 %v2248, %v229
        %2253 = vrot.lane.b32.xlu0 %v2249, 127
        %v2254 = vpop.permute.xlu0 %2253
        %2255 = vrot.lane.b32.xlu0 %v2250, 127
        %v2256 = vpop.permute.xlu0 %2255
        %v2259 = vadd.f32 %v2245, %v2254
        %v2260 = vadd.f32 %v2246, %v2256
        %s2261 = sld [smem:[#allocation2 + $0x77]]
        %v2262 = vstv %s2261
        %v2263 = vmul.f32 %v2262, %v228
        %v2264 = vmul.f32 %v2262, %v229
        %2267 = vrot.lane.b32.xlu0 %v2263, 126
        %v2268 = vpop.permute.xlu0 %2267
        %2269 = vrot.lane.b32.xlu0 %v2264, 126
        %v2270 = vpop.permute.xlu0 %2269
        %v2273 = vadd.f32 %v2259, %v2268
        %v2274 = vadd.f32 %v2260, %v2270
        %s2275 = sld [smem:[#allocation2 + $0x78]]
        %v2276 = vstv %s2275
        %v2277 = vmul.f32 %v2276, %v228
        %v2278 = vmul.f32 %v2276, %v229
        %v2279 = vmul.f32 %v2276, %v230
        %v2283 = vrot.slane %v2277, 1
        %v2284 = vrot.slane %v2278, 1
        %v2285 = vsel %vm291, %v2283, %v2284
        %v2286 = vrot.slane %v2279, 1
        %v2287 = vsel %vm291, %v2284, %v2286
        %v2290 = vadd.f32 %v2273, %v2285
        %v2291 = vadd.f32 %v2274, %v2287
        %s2292 = sld [smem:[#allocation2 + $0x79]]
        %v2293 = vstv %s2292
        %v2294 = vmul.f32 %v2293, %v228
        %v2295 = vmul.f32 %v2293, %v229
        %v2296 = vmul.f32 %v2293, %v230
        %v2300 = vrot.slane %v2294, 1
        %v2301 = vrot.slane %v2295, 1
        %v2302 = vsel %vm291, %v2300, %v2301
        %v2303 = vrot.slane %v2296, 1
        %v2304 = vsel %vm291, %v2301, %v2303
        %2305 = vrot.lane.b32.xlu0 %v2302, 127
        %v2306 = vpop.permute.xlu0 %2305
        %2307 = vrot.lane.b32.xlu0 %v2304, 127
        %v2308 = vpop.permute.xlu0 %2307
        %v2311 = vadd.f32 %v2290, %v2306
        %v2312 = vadd.f32 %v2291, %v2308
        %s2313 = sld [smem:[#allocation2 + $0x7a]]
        %v2314 = vstv %s2313
        %v2315 = vmul.f32 %v2314, %v228
        %v2316 = vmul.f32 %v2314, %v229
        %v2317 = vmul.f32 %v2314, %v230
        %v2321 = vrot.slane %v2315, 1
        %v2322 = vrot.slane %v2316, 1
        %v2323 = vsel %vm291, %v2321, %v2322
        %v2324 = vrot.slane %v2317, 1
        %v2325 = vsel %vm291, %v2322, %v2324
        %2326 = vrot.lane.b32.xlu0 %v2323, 126
        %v2327 = vpop.permute.xlu0 %2326
        %2328 = vrot.lane.b32.xlu0 %v2325, 126
        %v2329 = vpop.permute.xlu0 %2328
        %v2332 = vadd.f32 %v2311, %v2327
        %v2333 = vadd.f32 %v2312, %v2329
        %s2334 = sld [smem:[#allocation2 + $0x7b]]
        %v2335 = vstv %s2334
        %v2336 = vmul.f32 %v2335, %v228
        %v2337 = vmul.f32 %v2335, %v229
        %v2338 = vmul.f32 %v2335, %v230
        %v2342 = vrot.slane %v2336, 2
        %v2343 = vrot.slane %v2337, 2
        %v2344 = vsel %vm351, %v2342, %v2343
        %v2345 = vrot.slane %v2338, 2
        %v2346 = vsel %vm351, %v2343, %v2345
        %v2349 = vadd.f32 %v2332, %v2344
        %v2350 = vadd.f32 %v2333, %v2346
        %s2351 = sld [smem:[#allocation2 + $0x7c]]
        %v2352 = vstv %s2351
        %v2353 = vmul.f32 %v2352, %v228
        %v2354 = vmul.f32 %v2352, %v229
        %v2355 = vmul.f32 %v2352, %v230
        %v2359 = vrot.slane %v2353, 2
        %v2360 = vrot.slane %v2354, 2
        %v2361 = vsel %vm351, %v2359, %v2360
        %v2362 = vrot.slane %v2355, 2
        %v2363 = vsel %vm351, %v2360, %v2362
        %2364 = vrot.lane.b32.xlu0 %v2361, 127
        %v2365 = vpop.permute.xlu0 %2364
        %2366 = vrot.lane.b32.xlu0 %v2363, 127
        %v2367 = vpop.permute.xlu0 %2366
        %v2370 = vadd.f32 %v2349, %v2365
        %v2371 = vadd.f32 %v2350, %v2367
        %s2372 = sld [smem:[#allocation2 + $0x7d]]
        %v2373 = vstv %s2372
        %v2374 = vmul.f32 %v2373, %v228
        %v2375 = vmul.f32 %v2373, %v229
        %v2376 = vmul.f32 %v2373, %v230
        %v2380 = vrot.slane %v2374, 2
        %v2381 = vrot.slane %v2375, 2
        %v2382 = vsel %vm351, %v2380, %v2381
        %v2383 = vrot.slane %v2376, 2
        %v2384 = vsel %vm351, %v2381, %v2383
        %2385 = vrot.lane.b32.xlu0 %v2382, 126
        %v2386 = vpop.permute.xlu0 %2385
        %2387 = vrot.lane.b32.xlu0 %v2384, 126
        %v2388 = vpop.permute.xlu0 %2387
        %v2391 = vadd.f32 %v2370, %v2386
        %v2392 = vadd.f32 %v2371, %v2388
        %s2393 = sld [smem:[#allocation2 + $0x7e]]
        %v2394 = vstv %s2393
        %v2395 = vmul.f32 %v2394, %v232
        %v2396 = vmul.f32 %v2394, %v233
        %v2397 = vadd.f32 %v2391, %v2395
        %v2398 = vadd.f32 %v2392, %v2396
        %s2399 = sld [smem:[#allocation2 + $0x7f]]
        %v2400 = vstv %s2399
        %v2401 = vmul.f32 %v2400, %v232
        %v2402 = vmul.f32 %v2400, %v233
        %2405 = vrot.lane.b32.xlu0 %v2401, 127
        %v2406 = vpop.permute.xlu0 %2405
        %2407 = vrot.lane.b32.xlu0 %v2402, 127
        %v2408 = vpop.permute.xlu0 %2407
        %v2411 = vadd.f32 %v2397, %v2406
        %v2412 = vadd.f32 %v2398, %v2408
        %s2413 = sld [smem:[#allocation2 + $0x80]]
        %v2414 = vstv %s2413
        %v2415 = vmul.f32 %v2414, %v232
        %v2416 = vmul.f32 %v2414, %v233
        %2419 = vrot.lane.b32.xlu0 %v2415, 126
        %v2420 = vpop.permute.xlu0 %2419
        %2421 = vrot.lane.b32.xlu0 %v2416, 126
        %v2422 = vpop.permute.xlu0 %2421
        %v2425 = vadd.f32 %v2411, %v2420
        %v2426 = vadd.f32 %v2412, %v2422
        %s2427 = sld [smem:[#allocation2 + $0x81]]
        %v2428 = vstv %s2427
        %v2429 = vmul.f32 %v2428, %v232
        %v2430 = vmul.f32 %v2428, %v233
        %v2431 = vmul.f32 %v2428, %v234
        %v2435 = vrot.slane %v2429, 1
        %v2436 = vrot.slane %v2430, 1
        %v2437 = vsel %vm291, %v2435, %v2436
        %v2438 = vrot.slane %v2431, 1
        %v2439 = vsel %vm291, %v2436, %v2438
        %v2442 = vadd.f32 %v2425, %v2437
        %v2443 = vadd.f32 %v2426, %v2439
        %s2444 = sld [smem:[#allocation2 + $0x82]]
        %v2445 = vstv %s2444
        %v2446 = vmul.f32 %v2445, %v232
        %v2447 = vmul.f32 %v2445, %v233
        %v2448 = vmul.f32 %v2445, %v234
        %v2452 = vrot.slane %v2446, 1
        %v2453 = vrot.slane %v2447, 1
        %v2454 = vsel %vm291, %v2452, %v2453
        %v2455 = vrot.slane %v2448, 1
        %v2456 = vsel %vm291, %v2453, %v2455
        %2457 = vrot.lane.b32.xlu0 %v2454, 127
        %v2458 = vpop.permute.xlu0 %2457
        %2459 = vrot.lane.b32.xlu0 %v2456, 127
        %v2460 = vpop.permute.xlu0 %2459
        %v2463 = vadd.f32 %v2442, %v2458
        %v2464 = vadd.f32 %v2443, %v2460
        %s2465 = sld [smem:[#allocation2 + $0x83]]
        %v2466 = vstv %s2465
        %v2467 = vmul.f32 %v2466, %v232
        %v2468 = vmul.f32 %v2466, %v233
        %v2469 = vmul.f32 %v2466, %v234
        %v2473 = vrot.slane %v2467, 1
        %v2474 = vrot.slane %v2468, 1
        %v2475 = vsel %vm291, %v2473, %v2474
        %v2476 = vrot.slane %v2469, 1
        %v2477 = vsel %vm291, %v2474, %v2476
        %2478 = vrot.lane.b32.xlu0 %v2475, 126
        %v2479 = vpop.permute.xlu0 %2478
        %2480 = vrot.lane.b32.xlu0 %v2477, 126
        %v2481 = vpop.permute.xlu0 %2480
        %v2484 = vadd.f32 %v2463, %v2479
        %v2485 = vadd.f32 %v2464, %v2481
        %s2486 = sld [smem:[#allocation2 + $0x84]]
        %v2487 = vstv %s2486
        %v2488 = vmul.f32 %v2487, %v232
        %v2489 = vmul.f32 %v2487, %v233
        %v2490 = vmul.f32 %v2487, %v234
        %v2494 = vrot.slane %v2488, 2
        %v2495 = vrot.slane %v2489, 2
        %v2496 = vsel %vm351, %v2494, %v2495
        %v2497 = vrot.slane %v2490, 2
        %v2498 = vsel %vm351, %v2495, %v2497
        %v2501 = vadd.f32 %v2484, %v2496
        %v2502 = vadd.f32 %v2485, %v2498
        %s2503 = sld [smem:[#allocation2 + $0x85]]
        %v2504 = vstv %s2503
        %v2505 = vmul.f32 %v2504, %v232
        %v2506 = vmul.f32 %v2504, %v233
        %v2507 = vmul.f32 %v2504, %v234
        %v2511 = vrot.slane %v2505, 2
        %v2512 = vrot.slane %v2506, 2
        %v2513 = vsel %vm351, %v2511, %v2512
        %v2514 = vrot.slane %v2507, 2
        %v2515 = vsel %vm351, %v2512, %v2514
        %2516 = vrot.lane.b32.xlu0 %v2513, 127
        %v2517 = vpop.permute.xlu0 %2516
        %2518 = vrot.lane.b32.xlu0 %v2515, 127
        %v2519 = vpop.permute.xlu0 %2518
        %v2522 = vadd.f32 %v2501, %v2517
        %v2523 = vadd.f32 %v2502, %v2519
        %s2524 = sld [smem:[#allocation2 + $0x86]]
        %v2525 = vstv %s2524
        %v2526 = vmul.f32 %v2525, %v232
        %v2527 = vmul.f32 %v2525, %v233
        %v2528 = vmul.f32 %v2525, %v234
        %v2532 = vrot.slane %v2526, 2
        %v2533 = vrot.slane %v2527, 2
        %v2534 = vsel %vm351, %v2532, %v2533
        %v2535 = vrot.slane %v2528, 2
        %v2536 = vsel %vm351, %v2533, %v2535
        %2537 = vrot.lane.b32.xlu0 %v2534, 126
        %v2538 = vpop.permute.xlu0 %2537
        %2539 = vrot.lane.b32.xlu0 %v2536, 126
        %v2540 = vpop.permute.xlu0 %2539
        %v2543 = vadd.f32 %v2522, %v2538
        %v2544 = vadd.f32 %v2523, %v2540
        %s2545 = sld [smem:[#allocation2 + $0x87]]
        %v2546 = vstv %s2545
        %v2547 = vmul.f32 %v2546, %v236
        %v2548 = vmul.f32 %v2546, %v237
        %v2549 = vadd.f32 %v2543, %v2547
        %v2550 = vadd.f32 %v2544, %v2548
        %s2551 = sld [smem:[#allocation2 + $0x88]]
        %v2552 = vstv %s2551
        %v2553 = vmul.f32 %v2552, %v236
        %v2554 = vmul.f32 %v2552, %v237
        %2557 = vrot.lane.b32.xlu0 %v2553, 127
        %v2558 = vpop.permute.xlu0 %2557
        %2559 = vrot.lane.b32.xlu0 %v2554, 127
        %v2560 = vpop.permute.xlu0 %2559
        %v2563 = vadd.f32 %v2549, %v2558
        %v2564 = vadd.f32 %v2550, %v2560
        %s2565 = sld [smem:[#allocation2 + $0x89]]
        %v2566 = vstv %s2565
        %v2567 = vmul.f32 %v2566, %v236
        %v2568 = vmul.f32 %v2566, %v237
        %2571 = vrot.lane.b32.xlu0 %v2567, 126
        %v2572 = vpop.permute.xlu0 %2571
        %2573 = vrot.lane.b32.xlu0 %v2568, 126
        %v2574 = vpop.permute.xlu0 %2573
        %v2577 = vadd.f32 %v2563, %v2572
        %v2578 = vadd.f32 %v2564, %v2574
        %s2579 = sld [smem:[#allocation2 + $0x8a]]
        %v2580 = vstv %s2579
        %v2581 = vmul.f32 %v2580, %v236
        %v2582 = vmul.f32 %v2580, %v237
        %v2583 = vmul.f32 %v2580, %v238
        %v2587 = vrot.slane %v2581, 1
        %v2588 = vrot.slane %v2582, 1
        %v2589 = vsel %vm291, %v2587, %v2588
        %v2590 = vrot.slane %v2583, 1
        %v2591 = vsel %vm291, %v2588, %v2590
        %v2594 = vadd.f32 %v2577, %v2589
        %v2595 = vadd.f32 %v2578, %v2591
        %s2596 = sld [smem:[#allocation2 + $0x8b]]
        %v2597 = vstv %s2596
        %v2598 = vmul.f32 %v2597, %v236
        %v2599 = vmul.f32 %v2597, %v237
        %v2600 = vmul.f32 %v2597, %v238
        %v2604 = vrot.slane %v2598, 1
        %v2605 = vrot.slane %v2599, 1
        %v2606 = vsel %vm291, %v2604, %v2605
        %v2607 = vrot.slane %v2600, 1
        %v2608 = vsel %vm291, %v2605, %v2607
        %2609 = vrot.lane.b32.xlu0 %v2606, 127
        %v2610 = vpop.permute.xlu0 %2609
        %2611 = vrot.lane.b32.xlu0 %v2608, 127
        %v2612 = vpop.permute.xlu0 %2611
        %v2615 = vadd.f32 %v2594, %v2610
        %v2616 = vadd.f32 %v2595, %v2612
        %s2617 = sld [smem:[#allocation2 + $0x8c]]
        %v2618 = vstv %s2617
        %v2619 = vmul.f32 %v2618, %v236
        %v2620 = vmul.f32 %v2618, %v237
        %v2621 = vmul.f32 %v2618, %v238
        %v2625 = vrot.slane %v2619, 1
        %v2626 = vrot.slane %v2620, 1
        %v2627 = vsel %vm291, %v2625, %v2626
        %v2628 = vrot.slane %v2621, 1
        %v2629 = vsel %vm291, %v2626, %v2628
        %2630 = vrot.lane.b32.xlu0 %v2627, 126
        %v2631 = vpop.permute.xlu0 %2630
        %2632 = vrot.lane.b32.xlu0 %v2629, 126
        %v2633 = vpop.permute.xlu0 %2632
        %v2636 = vadd.f32 %v2615, %v2631
        %v2637 = vadd.f32 %v2616, %v2633
        %s2638 = sld [smem:[#allocation2 + $0x8d]]
        %v2639 = vstv %s2638
        %v2640 = vmul.f32 %v2639, %v236
        %v2641 = vmul.f32 %v2639, %v237
        %v2642 = vmul.f32 %v2639, %v238
        %v2646 = vrot.slane %v2640, 2
        %v2647 = vrot.slane %v2641, 2
        %v2648 = vsel %vm351, %v2646, %v2647
        %v2649 = vrot.slane %v2642, 2
        %v2650 = vsel %vm351, %v2647, %v2649
        %v2653 = vadd.f32 %v2636, %v2648
        %v2654 = vadd.f32 %v2637, %v2650
        %s2655 = sld [smem:[#allocation2 + $0x8e]]
        %v2656 = vstv %s2655
        %v2657 = vmul.f32 %v2656, %v236
        %v2658 = vmul.f32 %v2656, %v237
        %v2659 = vmul.f32 %v2656, %v238
        %v2663 = vrot.slane %v2657, 2
        %v2664 = vrot.slane %v2658, 2
        %v2665 = vsel %vm351, %v2663, %v2664
        %v2666 = vrot.slane %v2659, 2
        %v2667 = vsel %vm351, %v2664, %v2666
        %2668 = vrot.lane.b32.xlu0 %v2665, 127
        %v2669 = vpop.permute.xlu0 %2668
        %2670 = vrot.lane.b32.xlu0 %v2667, 127
        %v2671 = vpop.permute.xlu0 %2670
        %v2674 = vadd.f32 %v2653, %v2669
        %v2675 = vadd.f32 %v2654, %v2671
        %s2676 = sld [smem:[#allocation2 + $0x8f]]
        %v2677 = vstv %s2676
        %v2678 = vmul.f32 %v2677, %v236
        %v2679 = vmul.f32 %v2677, %v237
        %v2680 = vmul.f32 %v2677, %v238
        %v2684 = vrot.slane %v2678, 2
        %v2685 = vrot.slane %v2679, 2
        %v2686 = vsel %vm351, %v2684, %v2685
        %v2687 = vrot.slane %v2680, 2
        %v2688 = vsel %vm351, %v2685, %v2687
        %2689 = vrot.lane.b32.xlu0 %v2686, 126
        %v2690 = vpop.permute.xlu0 %2689
        %2691 = vrot.lane.b32.xlu0 %v2688, 126
        %v2692 = vpop.permute.xlu0 %2691
        %v2695 = vadd.f32 %v2674, %v2690
        %v2696 = vadd.f32 %v2675, %v2692
        %s2697 = sld [smem:[#allocation2 + $0x90]]
        %v2698 = vstv %s2697
        %v2699 = vmul.f32 %v2698, %v240
        %v2700 = vmul.f32 %v2698, %v241
        %v2701 = vadd.f32 %v2695, %v2699
        %v2702 = vadd.f32 %v2696, %v2700
        %s2703 = sld [smem:[#allocation2 + $0x91]]
        %v2704 = vstv %s2703
        %v2705 = vmul.f32 %v2704, %v240
        %v2706 = vmul.f32 %v2704, %v241
        %2709 = vrot.lane.b32.xlu0 %v2705, 127
        %v2710 = vpop.permute.xlu0 %2709
        %2711 = vrot.lane.b32.xlu0 %v2706, 127
        %v2712 = vpop.permute.xlu0 %2711
        %v2715 = vadd.f32 %v2701, %v2710
        %v2716 = vadd.f32 %v2702, %v2712
        %s2717 = sld [smem:[#allocation2 + $0x92]]
        %v2718 = vstv %s2717
        %v2719 = vmul.f32 %v2718, %v240
        %v2720 = vmul.f32 %v2718, %v241
        %2723 = vrot.lane.b32.xlu0 %v2719, 126
        %v2724 = vpop.permute.xlu0 %2723
        %2725 = vrot.lane.b32.xlu0 %v2720, 126
        %v2726 = vpop.permute.xlu0 %2725
        %v2729 = vadd.f32 %v2715, %v2724
        %v2730 = vadd.f32 %v2716, %v2726
        %s2731 = sld [smem:[#allocation2 + $0x93]]
        %v2732 = vstv %s2731
        %v2733 = vmul.f32 %v2732, %v240
        %v2734 = vmul.f32 %v2732, %v241
        %v2735 = vmul.f32 %v2732, %v242
        %v2739 = vrot.slane %v2733, 1
        %v2740 = vrot.slane %v2734, 1
        %v2741 = vsel %vm291, %v2739, %v2740
        %v2742 = vrot.slane %v2735, 1
        %v2743 = vsel %vm291, %v2740, %v2742
        %v2746 = vadd.f32 %v2729, %v2741
        %v2747 = vadd.f32 %v2730, %v2743
        %s2748 = sld [smem:[#allocation2 + $0x94]]
        %v2749 = vstv %s2748
        %v2750 = vmul.f32 %v2749, %v240
        %v2751 = vmul.f32 %v2749, %v241
        %v2752 = vmul.f32 %v2749, %v242
        %v2756 = vrot.slane %v2750, 1
        %v2757 = vrot.slane %v2751, 1
        %v2758 = vsel %vm291, %v2756, %v2757
        %v2759 = vrot.slane %v2752, 1
        %v2760 = vsel %vm291, %v2757, %v2759
        %2761 = vrot.lane.b32.xlu0 %v2758, 127
        %v2762 = vpop.permute.xlu0 %2761
        %2763 = vrot.lane.b32.xlu0 %v2760, 127
        %v2764 = vpop.permute.xlu0 %2763
        %v2767 = vadd.f32 %v2746, %v2762
        %v2768 = vadd.f32 %v2747, %v2764
        %s2769 = sld [smem:[#allocation2 + $0x95]]
        %v2770 = vstv %s2769
        %v2771 = vmul.f32 %v2770, %v240
        %v2772 = vmul.f32 %v2770, %v241
        %v2773 = vmul.f32 %v2770, %v242
        %v2777 = vrot.slane %v2771, 1
        %v2778 = vrot.slane %v2772, 1
        %v2779 = vsel %vm291, %v2777, %v2778
        %v2780 = vrot.slane %v2773, 1
        %v2781 = vsel %vm291, %v2778, %v2780
        %2782 = vrot.lane.b32.xlu0 %v2779, 126
        %v2783 = vpop.permute.xlu0 %2782
        %2784 = vrot.lane.b32.xlu0 %v2781, 126
        %v2785 = vpop.permute.xlu0 %2784
        %v2788 = vadd.f32 %v2767, %v2783
        %v2789 = vadd.f32 %v2768, %v2785
        %s2790 = sld [smem:[#allocation2 + $0x96]]
        %v2791 = vstv %s2790
        %v2792 = vmul.f32 %v2791, %v240
        %v2793 = vmul.f32 %v2791, %v241
        %v2794 = vmul.f32 %v2791, %v242
        %v2798 = vrot.slane %v2792, 2
        %v2799 = vrot.slane %v2793, 2
        %v2800 = vsel %vm351, %v2798, %v2799
        %v2801 = vrot.slane %v2794, 2
        %v2802 = vsel %vm351, %v2799, %v2801
        %v2805 = vadd.f32 %v2788, %v2800
        %v2806 = vadd.f32 %v2789, %v2802
        %s2807 = sld [smem:[#allocation2 + $0x97]]
        %v2808 = vstv %s2807
        %v2809 = vmul.f32 %v2808, %v240
        %v2810 = vmul.f32 %v2808, %v241
        %v2811 = vmul.f32 %v2808, %v242
        %v2815 = vrot.slane %v2809, 2
        %v2816 = vrot.slane %v2810, 2
        %v2817 = vsel %vm351, %v2815, %v2816
        %v2818 = vrot.slane %v2811, 2
        %v2819 = vsel %vm351, %v2816, %v2818
        %2820 = vrot.lane.b32.xlu0 %v2817, 127
        %v2821 = vpop.permute.xlu0 %2820
        %2822 = vrot.lane.b32.xlu0 %v2819, 127
        %v2823 = vpop.permute.xlu0 %2822
        %v2826 = vadd.f32 %v2805, %v2821
        %v2827 = vadd.f32 %v2806, %v2823
        %s2828 = sld [smem:[#allocation2 + $0x98]]
        %v2829 = vstv %s2828
        %v2830 = vmul.f32 %v2829, %v240
        %v2831 = vmul.f32 %v2829, %v241
        %v2832 = vmul.f32 %v2829, %v242
        %v2836 = vrot.slane %v2830, 2
        %v2837 = vrot.slane %v2831, 2
        %v2838 = vsel %vm351, %v2836, %v2837
        %v2839 = vrot.slane %v2832, 2
        %v2840 = vsel %vm351, %v2837, %v2839
        %2841 = vrot.lane.b32.xlu0 %v2838, 126
        %v2842 = vpop.permute.xlu0 %2841
        %2843 = vrot.lane.b32.xlu0 %v2840, 126
        %v2844 = vpop.permute.xlu0 %2843
        %v2847 = vadd.f32 %v2826, %v2842
        %v2848 = vadd.f32 %v2827, %v2844
        %s2849 = sld [smem:[#allocation2 + $0x99]]
        %v2850 = vstv %s2849
        %v2851 = vmul.f32 %v2850, %v244
        %v2852 = vmul.f32 %v2850, %v245
        %v2853 = vadd.f32 %v2847, %v2851
        %v2854 = vadd.f32 %v2848, %v2852
        %s2855 = sld [smem:[#allocation2 + $0x9a]]
        %v2856 = vstv %s2855
        %v2857 = vmul.f32 %v2856, %v244
        %v2858 = vmul.f32 %v2856, %v245
        %2861 = vrot.lane.b32.xlu0 %v2857, 127
        %v2862 = vpop.permute.xlu0 %2861
        %2863 = vrot.lane.b32.xlu0 %v2858, 127
        %v2864 = vpop.permute.xlu0 %2863
        %v2867 = vadd.f32 %v2853, %v2862
        %v2868 = vadd.f32 %v2854, %v2864
        %s2869 = sld [smem:[#allocation2 + $0x9b]]
        %v2870 = vstv %s2869
        %v2871 = vmul.f32 %v2870, %v244
        %v2872 = vmul.f32 %v2870, %v245
        %2875 = vrot.lane.b32.xlu0 %v2871, 126
        %v2876 = vpop.permute.xlu0 %2875
        %2877 = vrot.lane.b32.xlu0 %v2872, 126
        %v2878 = vpop.permute.xlu0 %2877
        %v2881 = vadd.f32 %v2867, %v2876
        %v2882 = vadd.f32 %v2868, %v2878
        %s2883 = sld [smem:[#allocation2 + $0x9c]]
        %v2884 = vstv %s2883
        %v2885 = vmul.f32 %v2884, %v244
        %v2886 = vmul.f32 %v2884, %v245
        %v2887 = vmul.f32 %v2884, %v246
        %v2891 = vrot.slane %v2885, 1
        %v2892 = vrot.slane %v2886, 1
        %v2893 = vsel %vm291, %v2891, %v2892
        %v2894 = vrot.slane %v2887, 1
        %v2895 = vsel %vm291, %v2892, %v2894
        %v2898 = vadd.f32 %v2881, %v2893
        %v2899 = vadd.f32 %v2882, %v2895
        %s2900 = sld [smem:[#allocation2 + $0x9d]]
        %v2901 = vstv %s2900
        %v2902 = vmul.f32 %v2901, %v244
        %v2903 = vmul.f32 %v2901, %v245
        %v2904 = vmul.f32 %v2901, %v246
        %v2908 = vrot.slane %v2902, 1
        %v2909 = vrot.slane %v2903, 1
        %v2910 = vsel %vm291, %v2908, %v2909
        %v2911 = vrot.slane %v2904, 1
        %v2912 = vsel %vm291, %v2909, %v2911
        %2913 = vrot.lane.b32.xlu0 %v2910, 127
        %v2914 = vpop.permute.xlu0 %2913
        %2915 = vrot.lane.b32.xlu0 %v2912, 127
        %v2916 = vpop.permute.xlu0 %2915
        %v2919 = vadd.f32 %v2898, %v2914
        %v2920 = vadd.f32 %v2899, %v2916
        %s2921 = sld [smem:[#allocation2 + $0x9e]]
        %v2922 = vstv %s2921
        %v2923 = vmul.f32 %v2922, %v244
        %v2924 = vmul.f32 %v2922, %v245
        %v2925 = vmul.f32 %v2922, %v246
        %v2929 = vrot.slane %v2923, 1
        %v2930 = vrot.slane %v2924, 1
        %v2931 = vsel %vm291, %v2929, %v2930
        %v2932 = vrot.slane %v2925, 1
        %v2933 = vsel %vm291, %v2930, %v2932
        %2934 = vrot.lane.b32.xlu0 %v2931, 126
        %v2935 = vpop.permute.xlu0 %2934
        %2936 = vrot.lane.b32.xlu0 %v2933, 126
        %v2937 = vpop.permute.xlu0 %2936
        %v2940 = vadd.f32 %v2919, %v2935
        %v2941 = vadd.f32 %v2920, %v2937
        %s2942 = sld [smem:[#allocation2 + $0x9f]]
        %v2943 = vstv %s2942
        %v2944 = vmul.f32 %v2943, %v244
        %v2945 = vmul.f32 %v2943, %v245
        %v2946 = vmul.f32 %v2943, %v246
        %v2950 = vrot.slane %v2944, 2
        %v2951 = vrot.slane %v2945, 2
        %v2952 = vsel %vm351, %v2950, %v2951
        %v2953 = vrot.slane %v2946, 2
        %v2954 = vsel %vm351, %v2951, %v2953
        %v2957 = vadd.f32 %v2940, %v2952
        %v2958 = vadd.f32 %v2941, %v2954
        %s2959 = sld [smem:[#allocation2 + $0xa0]]
        %v2960 = vstv %s2959
        %v2961 = vmul.f32 %v2960, %v244
        %v2962 = vmul.f32 %v2960, %v245
        %v2963 = vmul.f32 %v2960, %v246
        %v2967 = vrot.slane %v2961, 2
        %v2968 = vrot.slane %v2962, 2
        %v2969 = vsel %vm351, %v2967, %v2968
        %v2970 = vrot.slane %v2963, 2
        %v2971 = vsel %vm351, %v2968, %v2970
        %2972 = vrot.lane.b32.xlu0 %v2969, 127
        %v2973 = vpop.permute.xlu0 %2972
        %2974 = vrot.lane.b32.xlu0 %v2971, 127
        %v2975 = vpop.permute.xlu0 %2974
        %v2978 = vadd.f32 %v2957, %v2973
        %v2979 = vadd.f32 %v2958, %v2975
        %s2980 = sld [smem:[#allocation2 + $0xa1]]
        %v2981 = vstv %s2980
        %v2982 = vmul.f32 %v2981, %v244
        %v2983 = vmul.f32 %v2981, %v245
        %v2984 = vmul.f32 %v2981, %v246
        %v2988 = vrot.slane %v2982, 2
        %v2989 = vrot.slane %v2983, 2
        %v2990 = vsel %vm351, %v2988, %v2989
        %v2991 = vrot.slane %v2984, 2
        %v2992 = vsel %vm351, %v2989, %v2991
        %2993 = vrot.lane.b32.xlu0 %v2990, 126
        %v2994 = vpop.permute.xlu0 %2993
        %2995 = vrot.lane.b32.xlu0 %v2992, 126
        %v2996 = vpop.permute.xlu0 %2995
        %v2999 = vadd.f32 %v2978, %v2994
        %v3000 = vadd.f32 %v2979, %v2996
        %v3001 = vmax.f32 %v2999, 0.0
        %v3002 = vmax.f32 %v3000, 0.0
        %s3003 = scalar_lea.vmem %s214, 32 [#allocation7]
        %3004 = vst.msk [vmem:[%s3003] sm:$0xff] %vm1165, %v3001
        %3005 = vst.msk [vmem:[%s3003 + $0x8] sm:$0xff] %vm1165, %v3002
        %s3006 = sld [smem:[#allocation5 + $0x3]]
        %v3007 = vstv %s3006
        %s3008 = sld [smem:[#allocation2 + $0xa2]]
        %v3009 = vstv %s3008
        %v3010 = vmul.f32 %v3009, %v224
        %v3011 = vmul.f32 %v3009, %v225
        %v3012 = vadd.f32 %v3007, %v3010
        %v3013 = vadd.f32 %v3007, %v3011
        %s3014 = sld [smem:[#allocation2 + $0xa3]]
        %v3015 = vstv %s3014
        %v3016 = vmul.f32 %v3015, %v224
        %v3017 = vmul.f32 %v3015, %v225
        %3020 = vrot.lane.b32.xlu0 %v3016, 127
        %v3021 = vpop.permute.xlu0 %3020
        %3022 = vrot.lane.b32.xlu0 %v3017, 127
        %v3023 = vpop.permute.xlu0 %3022
        %v3026 = vadd.f32 %v3012, %v3021
        %v3027 = vadd.f32 %v3013, %v3023
        %s3028 = sld [smem:[#allocation2 + $0xa4]]
        %v3029 = vstv %s3028
        %v3030 = vmul.f32 %v3029, %v224
        %v3031 = vmul.f32 %v3029, %v225
        %3034 = vrot.lane.b32.xlu0 %v3030, 126
        %v3035 = vpop.permute.xlu0 %3034
        %3036 = vrot.lane.b32.xlu0 %v3031, 126
        %v3037 = vpop.permute.xlu0 %3036
        %v3040 = vadd.f32 %v3026, %v3035
        %v3041 = vadd.f32 %v3027, %v3037
        %s3042 = sld [smem:[#allocation2 + $0xa5]]
        %v3043 = vstv %s3042
        %v3044 = vmul.f32 %v3043, %v224
        %v3045 = vmul.f32 %v3043, %v225
        %v3046 = vmul.f32 %v3043, %v226
        %v3050 = vrot.slane %v3044, 1
        %v3051 = vrot.slane %v3045, 1
        %v3052 = vsel %vm291, %v3050, %v3051
        %v3053 = vrot.slane %v3046, 1
        %v3054 = vsel %vm291, %v3051, %v3053
        %v3057 = vadd.f32 %v3040, %v3052
        %v3058 = vadd.f32 %v3041, %v3054
        %s3059 = sld [smem:[#allocation2 + $0xa6]]
        %v3060 = vstv %s3059
        %v3061 = vmul.f32 %v3060, %v224
        %v3062 = vmul.f32 %v3060, %v225
        %v3063 = vmul.f32 %v3060, %v226
        %v3067 = vrot.slane %v3061, 1
        %v3068 = vrot.slane %v3062, 1
        %v3069 = vsel %vm291, %v3067, %v3068
        %v3070 = vrot.slane %v3063, 1
        %v3071 = vsel %vm291, %v3068, %v3070
        %3072 = vrot.lane.b32.xlu0 %v3069, 127
        %v3073 = vpop.permute.xlu0 %3072
        %3074 = vrot.lane.b32.xlu0 %v3071, 127
        %v3075 = vpop.permute.xlu0 %3074
        %v3078 = vadd.f32 %v3057, %v3073
        %v3079 = vadd.f32 %v3058, %v3075
        %s3080 = sld [smem:[#allocation2 + $0xa7]]
        %v3081 = vstv %s3080
        %v3082 = vmul.f32 %v3081, %v224
        %v3083 = vmul.f32 %v3081, %v225
        %v3084 = vmul.f32 %v3081, %v226
        %v3088 = vrot.slane %v3082, 1
        %v3089 = vrot.slane %v3083, 1
        %v3090 = vsel %vm291, %v3088, %v3089
        %v3091 = vrot.slane %v3084, 1
        %v3092 = vsel %vm291, %v3089, %v3091
        %3093 = vrot.lane.b32.xlu0 %v3090, 126
        %v3094 = vpop.permute.xlu0 %3093
        %3095 = vrot.lane.b32.xlu0 %v3092, 126
        %v3096 = vpop.permute.xlu0 %3095
        %v3099 = vadd.f32 %v3078, %v3094
        %v3100 = vadd.f32 %v3079, %v3096
        %s3101 = sld [smem:[#allocation2 + $0xa8]]
        %v3102 = vstv %s3101
        %v3103 = vmul.f32 %v3102, %v224
        %v3104 = vmul.f32 %v3102, %v225
        %v3105 = vmul.f32 %v3102, %v226
        %v3109 = vrot.slane %v3103, 2
        %v3110 = vrot.slane %v3104, 2
        %v3111 = vsel %vm351, %v3109, %v3110
        %v3112 = vrot.slane %v3105, 2
        %v3113 = vsel %vm351, %v3110, %v3112
        %v3116 = vadd.f32 %v3099, %v3111
        %v3117 = vadd.f32 %v3100, %v3113
        %s3118 = sld [smem:[#allocation2 + $0xa9]]
        %v3119 = vstv %s3118
        %v3120 = vmul.f32 %v3119, %v224
        %v3121 = vmul.f32 %v3119, %v225
        %v3122 = vmul.f32 %v3119, %v226
        %v3126 = vrot.slane %v3120, 2
        %v3127 = vrot.slane %v3121, 2
        %v3128 = vsel %vm351, %v3126, %v3127
        %v3129 = vrot.slane %v3122, 2
        %v3130 = vsel %vm351, %v3127, %v3129
        %3131 = vrot.lane.b32.xlu0 %v3128, 127
        %v3132 = vpop.permute.xlu0 %3131
        %3133 = vrot.lane.b32.xlu0 %v3130, 127
        %v3134 = vpop.permute.xlu0 %3133
        %v3137 = vadd.f32 %v3116, %v3132
        %v3138 = vadd.f32 %v3117, %v3134
        %s3139 = sld [smem:[#allocation2 + $0xaa]]
        %v3140 = vstv %s3139
        %v3141 = vmul.f32 %v3140, %v224
        %v3142 = vmul.f32 %v3140, %v225
        %v3143 = vmul.f32 %v3140, %v226
        %v3147 = vrot.slane %v3141, 2
        %v3148 = vrot.slane %v3142, 2
        %v3149 = vsel %vm351, %v3147, %v3148
        %v3150 = vrot.slane %v3143, 2
        %v3151 = vsel %vm351, %v3148, %v3150
        %3152 = vrot.lane.b32.xlu0 %v3149, 126
        %v3153 = vpop.permute.xlu0 %3152
        %3154 = vrot.lane.b32.xlu0 %v3151, 126
        %v3155 = vpop.permute.xlu0 %3154
        %v3158 = vadd.f32 %v3137, %v3153
        %v3159 = vadd.f32 %v3138, %v3155
        %s3160 = sld [smem:[#allocation2 + $0xab]]
        %v3161 = vstv %s3160
        %v3162 = vmul.f32 %v3161, %v228
        %v3163 = vmul.f32 %v3161, %v229
        %v3164 = vadd.f32 %v3158, %v3162
        %v3165 = vadd.f32 %v3159, %v3163
        %s3166 = sld [smem:[#allocation2 + $0xac]]
        %v3167 = vstv %s3166
        %v3168 = vmul.f32 %v3167, %v228
        %v3169 = vmul.f32 %v3167, %v229
        %3172 = vrot.lane.b32.xlu0 %v3168, 127
        %v3173 = vpop.permute.xlu0 %3172
        %3174 = vrot.lane.b32.xlu0 %v3169, 127
        %v3175 = vpop.permute.xlu0 %3174
        %v3178 = vadd.f32 %v3164, %v3173
        %v3179 = vadd.f32 %v3165, %v3175
        %s3180 = sld [smem:[#allocation2 + $0xad]]
        %v3181 = vstv %s3180
        %v3182 = vmul.f32 %v3181, %v228
        %v3183 = vmul.f32 %v3181, %v229
        %3186 = vrot.lane.b32.xlu0 %v3182, 126
        %v3187 = vpop.permute.xlu0 %3186
        %3188 = vrot.lane.b32.xlu0 %v3183, 126
        %v3189 = vpop.permute.xlu0 %3188
        %v3192 = vadd.f32 %v3178, %v3187
        %v3193 = vadd.f32 %v3179, %v3189
        %s3194 = sld [smem:[#allocation2 + $0xae]]
        %v3195 = vstv %s3194
        %v3196 = vmul.f32 %v3195, %v228
        %v3197 = vmul.f32 %v3195, %v229
        %v3198 = vmul.f32 %v3195, %v230
        %v3202 = vrot.slane %v3196, 1
        %v3203 = vrot.slane %v3197, 1
        %v3204 = vsel %vm291, %v3202, %v3203
        %v3205 = vrot.slane %v3198, 1
        %v3206 = vsel %vm291, %v3203, %v3205
        %v3209 = vadd.f32 %v3192, %v3204
        %v3210 = vadd.f32 %v3193, %v3206
        %s3211 = sld [smem:[#allocation2 + $0xaf]]
        %v3212 = vstv %s3211
        %v3213 = vmul.f32 %v3212, %v228
        %v3214 = vmul.f32 %v3212, %v229
        %v3215 = vmul.f32 %v3212, %v230
        %v3219 = vrot.slane %v3213, 1
        %v3220 = vrot.slane %v3214, 1
        %v3221 = vsel %vm291, %v3219, %v3220
        %v3222 = vrot.slane %v3215, 1
        %v3223 = vsel %vm291, %v3220, %v3222
        %3224 = vrot.lane.b32.xlu0 %v3221, 127
        %v3225 = vpop.permute.xlu0 %3224
        %3226 = vrot.lane.b32.xlu0 %v3223, 127
        %v3227 = vpop.permute.xlu0 %3226
        %v3230 = vadd.f32 %v3209, %v3225
        %v3231 = vadd.f32 %v3210, %v3227
        %s3232 = sld [smem:[#allocation2 + $0xb0]]
        %v3233 = vstv %s3232
        %v3234 = vmul.f32 %v3233, %v228
        %v3235 = vmul.f32 %v3233, %v229
        %v3236 = vmul.f32 %v3233, %v230
        %v3240 = vrot.slane %v3234, 1
        %v3241 = vrot.slane %v3235, 1
        %v3242 = vsel %vm291, %v3240, %v3241
        %v3243 = vrot.slane %v3236, 1
        %v3244 = vsel %vm291, %v3241, %v3243
        %3245 = vrot.lane.b32.xlu0 %v3242, 126
        %v3246 = vpop.permute.xlu0 %3245
        %3247 = vrot.lane.b32.xlu0 %v3244, 126
        %v3248 = vpop.permute.xlu0 %3247
        %v3251 = vadd.f32 %v3230, %v3246
        %v3252 = vadd.f32 %v3231, %v3248
        %s3253 = sld [smem:[#allocation2 + $0xb1]]
        %v3254 = vstv %s3253
        %v3255 = vmul.f32 %v3254, %v228
        %v3256 = vmul.f32 %v3254, %v229
        %v3257 = vmul.f32 %v3254, %v230
        %v3261 = vrot.slane %v3255, 2
        %v3262 = vrot.slane %v3256, 2
        %v3263 = vsel %vm351, %v3261, %v3262
        %v3264 = vrot.slane %v3257, 2
        %v3265 = vsel %vm351, %v3262, %v3264
        %v3268 = vadd.f32 %v3251, %v3263
        %v3269 = vadd.f32 %v3252, %v3265
        %s3270 = sld [smem:[#allocation2 + $0xb2]]
        %v3271 = vstv %s3270
        %v3272 = vmul.f32 %v3271, %v228
        %v3273 = vmul.f32 %v3271, %v229
        %v3274 = vmul.f32 %v3271, %v230
        %v3278 = vrot.slane %v3272, 2
        %v3279 = vrot.slane %v3273, 2
        %v3280 = vsel %vm351, %v3278, %v3279
        %v3281 = vrot.slane %v3274, 2
        %v3282 = vsel %vm351, %v3279, %v3281
        %3283 = vrot.lane.b32.xlu0 %v3280, 127
        %v3284 = vpop.permute.xlu0 %3283
        %3285 = vrot.lane.b32.xlu0 %v3282, 127
        %v3286 = vpop.permute.xlu0 %3285
        %v3289 = vadd.f32 %v3268, %v3284
        %v3290 = vadd.f32 %v3269, %v3286
        %s3291 = sld [smem:[#allocation2 + $0xb3]]
        %v3292 = vstv %s3291
        %v3293 = vmul.f32 %v3292, %v228
        %v3294 = vmul.f32 %v3292, %v229
        %v3295 = vmul.f32 %v3292, %v230
        %v3299 = vrot.slane %v3293, 2
        %v3300 = vrot.slane %v3294, 2
        %v3301 = vsel %vm351, %v3299, %v3300
        %v3302 = vrot.slane %v3295, 2
        %v3303 = vsel %vm351, %v3300, %v3302
        %3304 = vrot.lane.b32.xlu0 %v3301, 126
        %v3305 = vpop.permute.xlu0 %3304
        %3306 = vrot.lane.b32.xlu0 %v3303, 126
        %v3307 = vpop.permute.xlu0 %3306
        %v3310 = vadd.f32 %v3289, %v3305
        %v3311 = vadd.f32 %v3290, %v3307
        %s3312 = sld [smem:[#allocation2 + $0xb4]]
        %v3313 = vstv %s3312
        %v3314 = vmul.f32 %v3313, %v232
        %v3315 = vmul.f32 %v3313, %v233
        %v3316 = vadd.f32 %v3310, %v3314
        %v3317 = vadd.f32 %v3311, %v3315
        %s3318 = sld [smem:[#allocation2 + $0xb5]]
        %v3319 = vstv %s3318
        %v3320 = vmul.f32 %v3319, %v232
        %v3321 = vmul.f32 %v3319, %v233
        %3324 = vrot.lane.b32.xlu0 %v3320, 127
        %v3325 = vpop.permute.xlu0 %3324
        %3326 = vrot.lane.b32.xlu0 %v3321, 127
        %v3327 = vpop.permute.xlu0 %3326
        %v3330 = vadd.f32 %v3316, %v3325
        %v3331 = vadd.f32 %v3317, %v3327
        %s3332 = sld [smem:[#allocation2 + $0xb6]]
        %v3333 = vstv %s3332
        %v3334 = vmul.f32 %v3333, %v232
        %v3335 = vmul.f32 %v3333, %v233
        %3338 = vrot.lane.b32.xlu0 %v3334, 126
        %v3339 = vpop.permute.xlu0 %3338
        %3340 = vrot.lane.b32.xlu0 %v3335, 126
        %v3341 = vpop.permute.xlu0 %3340
        %v3344 = vadd.f32 %v3330, %v3339
        %v3345 = vadd.f32 %v3331, %v3341
        %s3346 = sld [smem:[#allocation2 + $0xb7]]
        %v3347 = vstv %s3346
        %v3348 = vmul.f32 %v3347, %v232
        %v3349 = vmul.f32 %v3347, %v233
        %v3350 = vmul.f32 %v3347, %v234
        %v3354 = vrot.slane %v3348, 1
        %v3355 = vrot.slane %v3349, 1
        %v3356 = vsel %vm291, %v3354, %v3355
        %v3357 = vrot.slane %v3350, 1
        %v3358 = vsel %vm291, %v3355, %v3357
        %v3361 = vadd.f32 %v3344, %v3356
        %v3362 = vadd.f32 %v3345, %v3358
        %s3363 = sld [smem:[#allocation2 + $0xb8]]
        %v3364 = vstv %s3363
        %v3365 = vmul.f32 %v3364, %v232
        %v3366 = vmul.f32 %v3364, %v233
        %v3367 = vmul.f32 %v3364, %v234
        %v3371 = vrot.slane %v3365, 1
        %v3372 = vrot.slane %v3366, 1
        %v3373 = vsel %vm291, %v3371, %v3372
        %v3374 = vrot.slane %v3367, 1
        %v3375 = vsel %vm291, %v3372, %v3374
        %3376 = vrot.lane.b32.xlu0 %v3373, 127
        %v3377 = vpop.permute.xlu0 %3376
        %3378 = vrot.lane.b32.xlu0 %v3375, 127
        %v3379 = vpop.permute.xlu0 %3378
        %v3382 = vadd.f32 %v3361, %v3377
        %v3383 = vadd.f32 %v3362, %v3379
        %s3384 = sld [smem:[#allocation2 + $0xb9]]
        %v3385 = vstv %s3384
        %v3386 = vmul.f32 %v3385, %v232
        %v3387 = vmul.f32 %v3385, %v233
        %v3388 = vmul.f32 %v3385, %v234
        %v3392 = vrot.slane %v3386, 1
        %v3393 = vrot.slane %v3387, 1
        %v3394 = vsel %vm291, %v3392, %v3393
        %v3395 = vrot.slane %v3388, 1
        %v3396 = vsel %vm291, %v3393, %v3395
        %3397 = vrot.lane.b32.xlu0 %v3394, 126
        %v3398 = vpop.permute.xlu0 %3397
        %3399 = vrot.lane.b32.xlu0 %v3396, 126
        %v3400 = vpop.permute.xlu0 %3399
        %v3403 = vadd.f32 %v3382, %v3398
        %v3404 = vadd.f32 %v3383, %v3400
        %s3405 = sld [smem:[#allocation2 + $0xba]]
        %v3406 = vstv %s3405
        %v3407 = vmul.f32 %v3406, %v232
        %v3408 = vmul.f32 %v3406, %v233
        %v3409 = vmul.f32 %v3406, %v234
        %v3413 = vrot.slane %v3407, 2
        %v3414 = vrot.slane %v3408, 2
        %v3415 = vsel %vm351, %v3413, %v3414
        %v3416 = vrot.slane %v3409, 2
        %v3417 = vsel %vm351, %v3414, %v3416
        %v3420 = vadd.f32 %v3403, %v3415
        %v3421 = vadd.f32 %v3404, %v3417
        %s3422 = sld [smem:[#allocation2 + $0xbb]]
        %v3423 = vstv %s3422
        %v3424 = vmul.f32 %v3423, %v232
        %v3425 = vmul.f32 %v3423, %v233
        %v3426 = vmul.f32 %v3423, %v234
        %v3430 = vrot.slane %v3424, 2
        %v3431 = vrot.slane %v3425, 2
        %v3432 = vsel %vm351, %v3430, %v3431
        %v3433 = vrot.slane %v3426, 2
        %v3434 = vsel %vm351, %v3431, %v3433
        %3435 = vrot.lane.b32.xlu0 %v3432, 127
        %v3436 = vpop.permute.xlu0 %3435
        %3437 = vrot.lane.b32.xlu0 %v3434, 127
        %v3438 = vpop.permute.xlu0 %3437
        %v3441 = vadd.f32 %v3420, %v3436
        %v3442 = vadd.f32 %v3421, %v3438
        %s3443 = sld [smem:[#allocation2 + $0xbc]]
        %v3444 = vstv %s3443
        %v3445 = vmul.f32 %v3444, %v232
        %v3446 = vmul.f32 %v3444, %v233
        %v3447 = vmul.f32 %v3444, %v234
        %v3451 = vrot.slane %v3445, 2
        %v3452 = vrot.slane %v3446, 2
        %v3453 = vsel %vm351, %v3451, %v3452
        %v3454 = vrot.slane %v3447, 2
        %v3455 = vsel %vm351, %v3452, %v3454
        %3456 = vrot.lane.b32.xlu0 %v3453, 126
        %v3457 = vpop.permute.xlu0 %3456
        %3458 = vrot.lane.b32.xlu0 %v3455, 126
        %v3459 = vpop.permute.xlu0 %3458
        %v3462 = vadd.f32 %v3441, %v3457
        %v3463 = vadd.f32 %v3442, %v3459
        %s3464 = sld [smem:[#allocation2 + $0xbd]]
        %v3465 = vstv %s3464
        %v3466 = vmul.f32 %v3465, %v236
        %v3467 = vmul.f32 %v3465, %v237
        %v3468 = vadd.f32 %v3462, %v3466
        %v3469 = vadd.f32 %v3463, %v3467
        %s3470 = sld [smem:[#allocation2 + $0xbe]]
        %v3471 = vstv %s3470
        %v3472 = vmul.f32 %v3471, %v236
        %v3473 = vmul.f32 %v3471, %v237
        %3476 = vrot.lane.b32.xlu0 %v3472, 127
        %v3477 = vpop.permute.xlu0 %3476
        %3478 = vrot.lane.b32.xlu0 %v3473, 127
        %v3479 = vpop.permute.xlu0 %3478
        %v3482 = vadd.f32 %v3468, %v3477
        %v3483 = vadd.f32 %v3469, %v3479
        %s3484 = sld [smem:[#allocation2 + $0xbf]]
        %v3485 = vstv %s3484
        %v3486 = vmul.f32 %v3485, %v236
        %v3487 = vmul.f32 %v3485, %v237
        %3490 = vrot.lane.b32.xlu0 %v3486, 126
        %v3491 = vpop.permute.xlu0 %3490
        %3492 = vrot.lane.b32.xlu0 %v3487, 126
        %v3493 = vpop.permute.xlu0 %3492
        %v3496 = vadd.f32 %v3482, %v3491
        %v3497 = vadd.f32 %v3483, %v3493
        %s3498 = sld [smem:[#allocation2 + $0xc0]]
        %v3499 = vstv %s3498
        %v3500 = vmul.f32 %v3499, %v236
        %v3501 = vmul.f32 %v3499, %v237
        %v3502 = vmul.f32 %v3499, %v238
        %v3506 = vrot.slane %v3500, 1
        %v3507 = vrot.slane %v3501, 1
        %v3508 = vsel %vm291, %v3506, %v3507
        %v3509 = vrot.slane %v3502, 1
        %v3510 = vsel %vm291, %v3507, %v3509
        %v3513 = vadd.f32 %v3496, %v3508
        %v3514 = vadd.f32 %v3497, %v3510
        %s3515 = sld [smem:[#allocation2 + $0xc1]]
        %v3516 = vstv %s3515
        %v3517 = vmul.f32 %v3516, %v236
        %v3518 = vmul.f32 %v3516, %v237
        %v3519 = vmul.f32 %v3516, %v238
        %v3523 = vrot.slane %v3517, 1
        %v3524 = vrot.slane %v3518, 1
        %v3525 = vsel %vm291, %v3523, %v3524
        %v3526 = vrot.slane %v3519, 1
        %v3527 = vsel %vm291, %v3524, %v3526
        %3528 = vrot.lane.b32.xlu0 %v3525, 127
        %v3529 = vpop.permute.xlu0 %3528
        %3530 = vrot.lane.b32.xlu0 %v3527, 127
        %v3531 = vpop.permute.xlu0 %3530
        %v3534 = vadd.f32 %v3513, %v3529
        %v3535 = vadd.f32 %v3514, %v3531
        %s3536 = sld [smem:[#allocation2 + $0xc2]]
        %v3537 = vstv %s3536
        %v3538 = vmul.f32 %v3537, %v236
        %v3539 = vmul.f32 %v3537, %v237
        %v3540 = vmul.f32 %v3537, %v238
        %v3544 = vrot.slane %v3538, 1
        %v3545 = vrot.slane %v3539, 1
        %v3546 = vsel %vm291, %v3544, %v3545
        %v3547 = vrot.slane %v3540, 1
        %v3548 = vsel %vm291, %v3545, %v3547
        %3549 = vrot.lane.b32.xlu0 %v3546, 126
        %v3550 = vpop.permute.xlu0 %3549
        %3551 = vrot.lane.b32.xlu0 %v3548, 126
        %v3552 = vpop.permute.xlu0 %3551
        %v3555 = vadd.f32 %v3534, %v3550
        %v3556 = vadd.f32 %v3535, %v3552
        %s3557 = sld [smem:[#allocation2 + $0xc3]]
        %v3558 = vstv %s3557
        %v3559 = vmul.f32 %v3558, %v236
        %v3560 = vmul.f32 %v3558, %v237
        %v3561 = vmul.f32 %v3558, %v238
        %v3565 = vrot.slane %v3559, 2
        %v3566 = vrot.slane %v3560, 2
        %v3567 = vsel %vm351, %v3565, %v3566
        %v3568 = vrot.slane %v3561, 2
        %v3569 = vsel %vm351, %v3566, %v3568
        %v3572 = vadd.f32 %v3555, %v3567
        %v3573 = vadd.f32 %v3556, %v3569
        %s3574 = sld [smem:[#allocation2 + $0xc4]]
        %v3575 = vstv %s3574
        %v3576 = vmul.f32 %v3575, %v236
        %v3577 = vmul.f32 %v3575, %v237
        %v3578 = vmul.f32 %v3575, %v238
        %v3582 = vrot.slane %v3576, 2
        %v3583 = vrot.slane %v3577, 2
        %v3584 = vsel %vm351, %v3582, %v3583
        %v3585 = vrot.slane %v3578, 2
        %v3586 = vsel %vm351, %v3583, %v3585
        %3587 = vrot.lane.b32.xlu0 %v3584, 127
        %v3588 = vpop.permute.xlu0 %3587
        %3589 = vrot.lane.b32.xlu0 %v3586, 127
        %v3590 = vpop.permute.xlu0 %3589
        %v3593 = vadd.f32 %v3572, %v3588
        %v3594 = vadd.f32 %v3573, %v3590
        %s3595 = sld [smem:[#allocation2 + $0xc5]]
        %v3596 = vstv %s3595
        %v3597 = vmul.f32 %v3596, %v236
        %v3598 = vmul.f32 %v3596, %v237
        %v3599 = vmul.f32 %v3596, %v238
        %v3603 = vrot.slane %v3597, 2
        %v3604 = vrot.slane %v3598, 2
        %v3605 = vsel %vm351, %v3603, %v3604
        %v3606 = vrot.slane %v3599, 2
        %v3607 = vsel %vm351, %v3604, %v3606
        %3608 = vrot.lane.b32.xlu0 %v3605, 126
        %v3609 = vpop.permute.xlu0 %3608
        %3610 = vrot.lane.b32.xlu0 %v3607, 126
        %v3611 = vpop.permute.xlu0 %3610
        %v3614 = vadd.f32 %v3593, %v3609
        %v3615 = vadd.f32 %v3594, %v3611
        %s3616 = sld [smem:[#allocation2 + $0xc6]]
        %v3617 = vstv %s3616
        %v3618 = vmul.f32 %v3617, %v240
        %v3619 = vmul.f32 %v3617, %v241
        %v3620 = vadd.f32 %v3614, %v3618
        %v3621 = vadd.f32 %v3615, %v3619
        %s3622 = sld [smem:[#allocation2 + $0xc7]]
        %v3623 = vstv %s3622
        %v3624 = vmul.f32 %v3623, %v240
        %v3625 = vmul.f32 %v3623, %v241
        %3628 = vrot.lane.b32.xlu0 %v3624, 127
        %v3629 = vpop.permute.xlu0 %3628
        %3630 = vrot.lane.b32.xlu0 %v3625, 127
        %v3631 = vpop.permute.xlu0 %3630
        %v3634 = vadd.f32 %v3620, %v3629
        %v3635 = vadd.f32 %v3621, %v3631
        %s3636 = sld [smem:[#allocation2 + $0xc8]]
        %v3637 = vstv %s3636
        %v3638 = vmul.f32 %v3637, %v240
        %v3639 = vmul.f32 %v3637, %v241
        %3642 = vrot.lane.b32.xlu0 %v3638, 126
        %v3643 = vpop.permute.xlu0 %3642
        %3644 = vrot.lane.b32.xlu0 %v3639, 126
        %v3645 = vpop.permute.xlu0 %3644
        %v3648 = vadd.f32 %v3634, %v3643
        %v3649 = vadd.f32 %v3635, %v3645
        %s3650 = sld [smem:[#allocation2 + $0xc9]]
        %v3651 = vstv %s3650
        %v3652 = vmul.f32 %v3651, %v240
        %v3653 = vmul.f32 %v3651, %v241
        %v3654 = vmul.f32 %v3651, %v242
        %v3658 = vrot.slane %v3652, 1
        %v3659 = vrot.slane %v3653, 1
        %v3660 = vsel %vm291, %v3658, %v3659
        %v3661 = vrot.slane %v3654, 1
        %v3662 = vsel %vm291, %v3659, %v3661
        %v3665 = vadd.f32 %v3648, %v3660
        %v3666 = vadd.f32 %v3649, %v3662
        %s3667 = sld [smem:[#allocation2 + $0xca]]
        %v3668 = vstv %s3667
        %v3669 = vmul.f32 %v3668, %v240
        %v3670 = vmul.f32 %v3668, %v241
        %v3671 = vmul.f32 %v3668, %v242
        %v3675 = vrot.slane %v3669, 1
        %v3676 = vrot.slane %v3670, 1
        %v3677 = vsel %vm291, %v3675, %v3676
        %v3678 = vrot.slane %v3671, 1
        %v3679 = vsel %vm291, %v3676, %v3678
        %3680 = vrot.lane.b32.xlu0 %v3677, 127
        %v3681 = vpop.permute.xlu0 %3680
        %3682 = vrot.lane.b32.xlu0 %v3679, 127
        %v3683 = vpop.permute.xlu0 %3682
        %v3686 = vadd.f32 %v3665, %v3681
        %v3687 = vadd.f32 %v3666, %v3683
        %s3688 = sld [smem:[#allocation2 + $0xcb]]
        %v3689 = vstv %s3688
        %v3690 = vmul.f32 %v3689, %v240
        %v3691 = vmul.f32 %v3689, %v241
        %v3692 = vmul.f32 %v3689, %v242
        %v3696 = vrot.slane %v3690, 1
        %v3697 = vrot.slane %v3691, 1
        %v3698 = vsel %vm291, %v3696, %v3697
        %v3699 = vrot.slane %v3692, 1
        %v3700 = vsel %vm291, %v3697, %v3699
        %3701 = vrot.lane.b32.xlu0 %v3698, 126
        %v3702 = vpop.permute.xlu0 %3701
        %3703 = vrot.lane.b32.xlu0 %v3700, 126
        %v3704 = vpop.permute.xlu0 %3703
        %v3707 = vadd.f32 %v3686, %v3702
        %v3708 = vadd.f32 %v3687, %v3704
        %s3709 = sld [smem:[#allocation2 + $0xcc]]
        %v3710 = vstv %s3709
        %v3711 = vmul.f32 %v3710, %v240
        %v3712 = vmul.f32 %v3710, %v241
        %v3713 = vmul.f32 %v3710, %v242
        %v3717 = vrot.slane %v3711, 2
        %v3718 = vrot.slane %v3712, 2
        %v3719 = vsel %vm351, %v3717, %v3718
        %v3720 = vrot.slane %v3713, 2
        %v3721 = vsel %vm351, %v3718, %v3720
        %v3724 = vadd.f32 %v3707, %v3719
        %v3725 = vadd.f32 %v3708, %v3721
        %s3726 = sld [smem:[#allocation2 + $0xcd]]
        %v3727 = vstv %s3726
        %v3728 = vmul.f32 %v3727, %v240
        %v3729 = vmul.f32 %v3727, %v241
        %v3730 = vmul.f32 %v3727, %v242
        %v3734 = vrot.slane %v3728, 2
        %v3735 = vrot.slane %v3729, 2
        %v3736 = vsel %vm351, %v3734, %v3735
        %v3737 = vrot.slane %v3730, 2
        %v3738 = vsel %vm351, %v3735, %v3737
        %3739 = vrot.lane.b32.xlu0 %v3736, 127
        %v3740 = vpop.permute.xlu0 %3739
        %3741 = vrot.lane.b32.xlu0 %v3738, 127
        %v3742 = vpop.permute.xlu0 %3741
        %v3745 = vadd.f32 %v3724, %v3740
        %v3746 = vadd.f32 %v3725, %v3742
        %s3747 = sld [smem:[#allocation2 + $0xce]]
        %v3748 = vstv %s3747
        %v3749 = vmul.f32 %v3748, %v240
        %v3750 = vmul.f32 %v3748, %v241
        %v3751 = vmul.f32 %v3748, %v242
        %v3755 = vrot.slane %v3749, 2
        %v3756 = vrot.slane %v3750, 2
        %v3757 = vsel %vm351, %v3755, %v3756
        %v3758 = vrot.slane %v3751, 2
        %v3759 = vsel %vm351, %v3756, %v3758
        %3760 = vrot.lane.b32.xlu0 %v3757, 126
        %v3761 = vpop.permute.xlu0 %3760
        %3762 = vrot.lane.b32.xlu0 %v3759, 126
        %v3763 = vpop.permute.xlu0 %3762
        %v3766 = vadd.f32 %v3745, %v3761
        %v3767 = vadd.f32 %v3746, %v3763
        %s3768 = sld [smem:[#allocation2 + $0xcf]]
        %v3769 = vstv %s3768
        %v3770 = vmul.f32 %v3769, %v244
        %v3771 = vmul.f32 %v3769, %v245
        %v3772 = vadd.f32 %v3766, %v3770
        %v3773 = vadd.f32 %v3767, %v3771
        %s3774 = sld [smem:[#allocation2 + $0xd0]]
        %v3775 = vstv %s3774
        %v3776 = vmul.f32 %v3775, %v244
        %v3777 = vmul.f32 %v3775, %v245
        %3780 = vrot.lane.b32.xlu0 %v3776, 127
        %v3781 = vpop.permute.xlu0 %3780
        %3782 = vrot.lane.b32.xlu0 %v3777, 127
        %v3783 = vpop.permute.xlu0 %3782
        %v3786 = vadd.f32 %v3772, %v3781
        %v3787 = vadd.f32 %v3773, %v3783
        %s3788 = sld [smem:[#allocation2 + $0xd1]]
        %v3789 = vstv %s3788
        %v3790 = vmul.f32 %v3789, %v244
        %v3791 = vmul.f32 %v3789, %v245
        %3794 = vrot.lane.b32.xlu0 %v3790, 126
        %v3795 = vpop.permute.xlu0 %3794
        %3796 = vrot.lane.b32.xlu0 %v3791, 126
        %v3797 = vpop.permute.xlu0 %3796
        %v3800 = vadd.f32 %v3786, %v3795
        %v3801 = vadd.f32 %v3787, %v3797
        %s3802 = sld [smem:[#allocation2 + $0xd2]]
        %v3803 = vstv %s3802
        %v3804 = vmul.f32 %v3803, %v244
        %v3805 = vmul.f32 %v3803, %v245
        %v3806 = vmul.f32 %v3803, %v246
        %v3810 = vrot.slane %v3804, 1
        %v3811 = vrot.slane %v3805, 1
        %v3812 = vsel %vm291, %v3810, %v3811
        %v3813 = vrot.slane %v3806, 1
        %v3814 = vsel %vm291, %v3811, %v3813
        %v3817 = vadd.f32 %v3800, %v3812
        %v3818 = vadd.f32 %v3801, %v3814
        %s3819 = sld [smem:[#allocation2 + $0xd3]]
        %v3820 = vstv %s3819
        %v3821 = vmul.f32 %v3820, %v244
        %v3822 = vmul.f32 %v3820, %v245
        %v3823 = vmul.f32 %v3820, %v246
        %v3827 = vrot.slane %v3821, 1
        %v3828 = vrot.slane %v3822, 1
        %v3829 = vsel %vm291, %v3827, %v3828
        %v3830 = vrot.slane %v3823, 1
        %v3831 = vsel %vm291, %v3828, %v3830
        %3832 = vrot.lane.b32.xlu0 %v3829, 127
        %v3833 = vpop.permute.xlu0 %3832
        %3834 = vrot.lane.b32.xlu0 %v3831, 127
        %v3835 = vpop.permute.xlu0 %3834
        %v3838 = vadd.f32 %v3817, %v3833
        %v3839 = vadd.f32 %v3818, %v3835
        %s3840 = sld [smem:[#allocation2 + $0xd4]]
        %v3841 = vstv %s3840
        %v3842 = vmul.f32 %v3841, %v244
        %v3843 = vmul.f32 %v3841, %v245
        %v3844 = vmul.f32 %v3841, %v246
        %v3848 = vrot.slane %v3842, 1
        %v3849 = vrot.slane %v3843, 1
        %v3850 = vsel %vm291, %v3848, %v3849
        %v3851 = vrot.slane %v3844, 1
        %v3852 = vsel %vm291, %v3849, %v3851
        %3853 = vrot.lane.b32.xlu0 %v3850, 126
        %v3854 = vpop.permute.xlu0 %3853
        %3855 = vrot.lane.b32.xlu0 %v3852, 126
        %v3856 = vpop.permute.xlu0 %3855
        %v3859 = vadd.f32 %v3838, %v3854
        %v3860 = vadd.f32 %v3839, %v3856
        %s3861 = sld [smem:[#allocation2 + $0xd5]]
        %v3862 = vstv %s3861
        %v3863 = vmul.f32 %v3862, %v244
        %v3864 = vmul.f32 %v3862, %v245
        %v3865 = vmul.f32 %v3862, %v246
        %v3869 = vrot.slane %v3863, 2
        %v3870 = vrot.slane %v3864, 2
        %v3871 = vsel %vm351, %v3869, %v3870
        %v3872 = vrot.slane %v3865, 2
        %v3873 = vsel %vm351, %v3870, %v3872
        %v3876 = vadd.f32 %v3859, %v3871
        %v3877 = vadd.f32 %v3860, %v3873
        %s3878 = sld [smem:[#allocation2 + $0xd6]]
        %v3879 = vstv %s3878
        %v3880 = vmul.f32 %v3879, %v244
        %v3881 = vmul.f32 %v3879, %v245
        %v3882 = vmul.f32 %v3879, %v246
        %v3886 = vrot.slane %v3880, 2
        %v3887 = vrot.slane %v3881, 2
        %v3888 = vsel %vm351, %v3886, %v3887
        %v3889 = vrot.slane %v3882, 2
        %v3890 = vsel %vm351, %v3887, %v3889
        %3891 = vrot.lane.b32.xlu0 %v3888, 127
        %v3892 = vpop.permute.xlu0 %3891
        %3893 = vrot.lane.b32.xlu0 %v3890, 127
        %v3894 = vpop.permute.xlu0 %3893
        %v3897 = vadd.f32 %v3876, %v3892
        %v3898 = vadd.f32 %v3877, %v3894
        %s3899 = sld [smem:[#allocation2 + $0xd7]]
        %v3900 = vstv %s3899
        %v3901 = vmul.f32 %v3900, %v244
        %v3902 = vmul.f32 %v3900, %v245
        %v3903 = vmul.f32 %v3900, %v246
        %v3907 = vrot.slane %v3901, 2
        %v3908 = vrot.slane %v3902, 2
        %v3909 = vsel %vm351, %v3907, %v3908
        %v3910 = vrot.slane %v3903, 2
        %v3911 = vsel %vm351, %v3908, %v3910
        %3912 = vrot.lane.b32.xlu0 %v3909, 126
        %v3913 = vpop.permute.xlu0 %3912
        %3914 = vrot.lane.b32.xlu0 %v3911, 126
        %v3915 = vpop.permute.xlu0 %3914
        %v3918 = vadd.f32 %v3897, %v3913
        %v3919 = vadd.f32 %v3898, %v3915
        %v3920 = vmax.f32 %v3918, 0.0
        %v3921 = vmax.f32 %v3919, 0.0
        %s3922 = scalar_lea.vmem %s214, 48 [#allocation7]
        %3923 = vst.msk [vmem:[%s3922] sm:$0xff] %vm1165, %v3920
        %3924 = vst.msk [vmem:[%s3922 + $0x8] sm:$0xff] %vm1165, %v3921
        %s3925 = sld [smem:[#allocation5 + $0x4]]
        %v3926 = vstv %s3925
        %s3927 = sld [smem:[#allocation2 + $0xd8]]
        %v3928 = vstv %s3927
        %v3929 = vmul.f32 %v3928, %v224
        %v3930 = vmul.f32 %v3928, %v225
        %v3931 = vadd.f32 %v3926, %v3929
        %v3932 = vadd.f32 %v3926, %v3930
        %s3933 = sld [smem:[#allocation2 + $0xd9]]
        %v3934 = vstv %s3933
        %v3935 = vmul.f32 %v3934, %v224
        %v3936 = vmul.f32 %v3934, %v225
        %3939 = vrot.lane.b32.xlu0 %v3935, 127
        %v3940 = vpop.permute.xlu0 %3939
        %3941 = vrot.lane.b32.xlu0 %v3936, 127
        %v3942 = vpop.permute.xlu0 %3941
        %v3945 = vadd.f32 %v3931, %v3940
        %v3946 = vadd.f32 %v3932, %v3942
        %s3947 = sld [smem:[#allocation2 + $0xda]]
        %v3948 = vstv %s3947
        %v3949 = vmul.f32 %v3948, %v224
        %v3950 = vmul.f32 %v3948, %v225
        %3953 = vrot.lane.b32.xlu0 %v3949, 126
        %v3954 = vpop.permute.xlu0 %3953
        %3955 = vrot.lane.b32.xlu0 %v3950, 126
        %v3956 = vpop.permute.xlu0 %3955
        %v3959 = vadd.f32 %v3945, %v3954
        %v3960 = vadd.f32 %v3946, %v3956
        %s3961 = sld [smem:[#allocation2 + $0xdb]]
        %v3962 = vstv %s3961
        %v3963 = vmul.f32 %v3962, %v224
        %v3964 = vmul.f32 %v3962, %v225
        %v3965 = vmul.f32 %v3962, %v226
        %v3969 = vrot.slane %v3963, 1
        %v3970 = vrot.slane %v3964, 1
        %v3971 = vsel %vm291, %v3969, %v3970
        %v3972 = vrot.slane %v3965, 1
        %v3973 = vsel %vm291, %v3970, %v3972
        %v3976 = vadd.f32 %v3959, %v3971
        %v3977 = vadd.f32 %v3960, %v3973
        %s3978 = sld [smem:[#allocation2 + $0xdc]]
        %v3979 = vstv %s3978
        %v3980 = vmul.f32 %v3979, %v224
        %v3981 = vmul.f32 %v3979, %v225
        %v3982 = vmul.f32 %v3979, %v226
        %v3986 = vrot.slane %v3980, 1
        %v3987 = vrot.slane %v3981, 1
        %v3988 = vsel %vm291, %v3986, %v3987
        %v3989 = vrot.slane %v3982, 1
        %v3990 = vsel %vm291, %v3987, %v3989
        %3991 = vrot.lane.b32.xlu0 %v3988, 127
        %v3992 = vpop.permute.xlu0 %3991
        %3993 = vrot.lane.b32.xlu0 %v3990, 127
        %v3994 = vpop.permute.xlu0 %3993
        %v3997 = vadd.f32 %v3976, %v3992
        %v3998 = vadd.f32 %v3977, %v3994
        %s3999 = sld [smem:[#allocation2 + $0xdd]]
        %v4000 = vstv %s3999
        %v4001 = vmul.f32 %v4000, %v224
        %v4002 = vmul.f32 %v4000, %v225
        %v4003 = vmul.f32 %v4000, %v226
        %v4007 = vrot.slane %v4001, 1
        %v4008 = vrot.slane %v4002, 1
        %v4009 = vsel %vm291, %v4007, %v4008
        %v4010 = vrot.slane %v4003, 1
        %v4011 = vsel %vm291, %v4008, %v4010
        %4012 = vrot.lane.b32.xlu0 %v4009, 126
        %v4013 = vpop.permute.xlu0 %4012
        %4014 = vrot.lane.b32.xlu0 %v4011, 126
        %v4015 = vpop.permute.xlu0 %4014
        %v4018 = vadd.f32 %v3997, %v4013
        %v4019 = vadd.f32 %v3998, %v4015
        %s4020 = sld [smem:[#allocation2 + $0xde]]
        %v4021 = vstv %s4020
        %v4022 = vmul.f32 %v4021, %v224
        %v4023 = vmul.f32 %v4021, %v225
        %v4024 = vmul.f32 %v4021, %v226
        %v4028 = vrot.slane %v4022, 2
        %v4029 = vrot.slane %v4023, 2
        %v4030 = vsel %vm351, %v4028, %v4029
        %v4031 = vrot.slane %v4024, 2
        %v4032 = vsel %vm351, %v4029, %v4031
        %v4035 = vadd.f32 %v4018, %v4030
        %v4036 = vadd.f32 %v4019, %v4032
        %s4037 = sld [smem:[#allocation2 + $0xdf]]
        %v4038 = vstv %s4037
        %v4039 = vmul.f32 %v4038, %v224
        %v4040 = vmul.f32 %v4038, %v225
        %v4041 = vmul.f32 %v4038, %v226
        %v4045 = vrot.slane %v4039, 2
        %v4046 = vrot.slane %v4040, 2
        %v4047 = vsel %vm351, %v4045, %v4046
        %v4048 = vrot.slane %v4041, 2
        %v4049 = vsel %vm351, %v4046, %v4048
        %4050 = vrot.lane.b32.xlu0 %v4047, 127
        %v4051 = vpop.permute.xlu0 %4050
        %4052 = vrot.lane.b32.xlu0 %v4049, 127
        %v4053 = vpop.permute.xlu0 %4052
        %v4056 = vadd.f32 %v4035, %v4051
        %v4057 = vadd.f32 %v4036, %v4053
        %s4058 = sld [smem:[#allocation2 + $0xe0]]
        %v4059 = vstv %s4058
        %v4060 = vmul.f32 %v4059, %v224
        %v4061 = vmul.f32 %v4059, %v225
        %v4062 = vmul.f32 %v4059, %v226
        %v4066 = vrot.slane %v4060, 2
        %v4067 = vrot.slane %v4061, 2
        %v4068 = vsel %vm351, %v4066, %v4067
        %v4069 = vrot.slane %v4062, 2
        %v4070 = vsel %vm351, %v4067, %v4069
        %4071 = vrot.lane.b32.xlu0 %v4068, 126
        %v4072 = vpop.permute.xlu0 %4071
        %4073 = vrot.lane.b32.xlu0 %v4070, 126
        %v4074 = vpop.permute.xlu0 %4073
        %v4077 = vadd.f32 %v4056, %v4072
        %v4078 = vadd.f32 %v4057, %v4074
        %s4079 = sld [smem:[#allocation2 + $0xe1]]
        %v4080 = vstv %s4079
        %v4081 = vmul.f32 %v4080, %v228
        %v4082 = vmul.f32 %v4080, %v229
        %v4083 = vadd.f32 %v4077, %v4081
        %v4084 = vadd.f32 %v4078, %v4082
        %s4085 = sld [smem:[#allocation2 + $0xe2]]
        %v4086 = vstv %s4085
        %v4087 = vmul.f32 %v4086, %v228
        %v4088 = vmul.f32 %v4086, %v229
        %4091 = vrot.lane.b32.xlu0 %v4087, 127
        %v4092 = vpop.permute.xlu0 %4091
        %4093 = vrot.lane.b32.xlu0 %v4088, 127
        %v4094 = vpop.permute.xlu0 %4093
        %v4097 = vadd.f32 %v4083, %v4092
        %v4098 = vadd.f32 %v4084, %v4094
        %s4099 = sld [smem:[#allocation2 + $0xe3]]
        %v4100 = vstv %s4099
        %v4101 = vmul.f32 %v4100, %v228
        %v4102 = vmul.f32 %v4100, %v229
        %4105 = vrot.lane.b32.xlu0 %v4101, 126
        %v4106 = vpop.permute.xlu0 %4105
        %4107 = vrot.lane.b32.xlu0 %v4102, 126
        %v4108 = vpop.permute.xlu0 %4107
        %v4111 = vadd.f32 %v4097, %v4106
        %v4112 = vadd.f32 %v4098, %v4108
        %s4113 = sld [smem:[#allocation2 + $0xe4]]
        %v4114 = vstv %s4113
        %v4115 = vmul.f32 %v4114, %v228
        %v4116 = vmul.f32 %v4114, %v229
        %v4117 = vmul.f32 %v4114, %v230
        %v4121 = vrot.slane %v4115, 1
        %v4122 = vrot.slane %v4116, 1
        %v4123 = vsel %vm291, %v4121, %v4122
        %v4124 = vrot.slane %v4117, 1
        %v4125 = vsel %vm291, %v4122, %v4124
        %v4128 = vadd.f32 %v4111, %v4123
        %v4129 = vadd.f32 %v4112, %v4125
        %s4130 = sld [smem:[#allocation2 + $0xe5]]
        %v4131 = vstv %s4130
        %v4132 = vmul.f32 %v4131, %v228
        %v4133 = vmul.f32 %v4131, %v229
        %v4134 = vmul.f32 %v4131, %v230
        %v4138 = vrot.slane %v4132, 1
        %v4139 = vrot.slane %v4133, 1
        %v4140 = vsel %vm291, %v4138, %v4139
        %v4141 = vrot.slane %v4134, 1
        %v4142 = vsel %vm291, %v4139, %v4141
        %4143 = vrot.lane.b32.xlu0 %v4140, 127
        %v4144 = vpop.permute.xlu0 %4143
        %4145 = vrot.lane.b32.xlu0 %v4142, 127
        %v4146 = vpop.permute.xlu0 %4145
        %v4149 = vadd.f32 %v4128, %v4144
        %v4150 = vadd.f32 %v4129, %v4146
        %s4151 = sld [smem:[#allocation2 + $0xe6]]
        %v4152 = vstv %s4151
        %v4153 = vmul.f32 %v4152, %v228
        %v4154 = vmul.f32 %v4152, %v229
        %v4155 = vmul.f32 %v4152, %v230
        %v4159 = vrot.slane %v4153, 1
        %v4160 = vrot.slane %v4154, 1
        %v4161 = vsel %vm291, %v4159, %v4160
        %v4162 = vrot.slane %v4155, 1
        %v4163 = vsel %vm291, %v4160, %v4162
        %4164 = vrot.lane.b32.xlu0 %v4161, 126
        %v4165 = vpop.permute.xlu0 %4164
        %4166 = vrot.lane.b32.xlu0 %v4163, 126
        %v4167 = vpop.permute.xlu0 %4166
        %v4170 = vadd.f32 %v4149, %v4165
        %v4171 = vadd.f32 %v4150, %v4167
        %s4172 = sld [smem:[#allocation2 + $0xe7]]
        %v4173 = vstv %s4172
        %v4174 = vmul.f32 %v4173, %v228
        %v4175 = vmul.f32 %v4173, %v229
        %v4176 = vmul.f32 %v4173, %v230
        %v4180 = vrot.slane %v4174, 2
        %v4181 = vrot.slane %v4175, 2
        %v4182 = vsel %vm351, %v4180, %v4181
        %v4183 = vrot.slane %v4176, 2
        %v4184 = vsel %vm351, %v4181, %v4183
        %v4187 = vadd.f32 %v4170, %v4182
        %v4188 = vadd.f32 %v4171, %v4184
        %s4189 = sld [smem:[#allocation2 + $0xe8]]
        %v4190 = vstv %s4189
        %v4191 = vmul.f32 %v4190, %v228
        %v4192 = vmul.f32 %v4190, %v229
        %v4193 = vmul.f32 %v4190, %v230
        %v4197 = vrot.slane %v4191, 2
        %v4198 = vrot.slane %v4192, 2
        %v4199 = vsel %vm351, %v4197, %v4198
        %v4200 = vrot.slane %v4193, 2
        %v4201 = vsel %vm351, %v4198, %v4200
        %4202 = vrot.lane.b32.xlu0 %v4199, 127
        %v4203 = vpop.permute.xlu0 %4202
        %4204 = vrot.lane.b32.xlu0 %v4201, 127
        %v4205 = vpop.permute.xlu0 %4204
        %v4208 = vadd.f32 %v4187, %v4203
        %v4209 = vadd.f32 %v4188, %v4205
        %s4210 = sld [smem:[#allocation2 + $0xe9]]
        %v4211 = vstv %s4210
        %v4212 = vmul.f32 %v4211, %v228
        %v4213 = vmul.f32 %v4211, %v229
        %v4214 = vmul.f32 %v4211, %v230
        %v4218 = vrot.slane %v4212, 2
        %v4219 = vrot.slane %v4213, 2
        %v4220 = vsel %vm351, %v4218, %v4219
        %v4221 = vrot.slane %v4214, 2
        %v4222 = vsel %vm351, %v4219, %v4221
        %4223 = vrot.lane.b32.xlu0 %v4220, 126
        %v4224 = vpop.permute.xlu0 %4223
        %4225 = vrot.lane.b32.xlu0 %v4222, 126
        %v4226 = vpop.permute.xlu0 %4225
        %v4229 = vadd.f32 %v4208, %v4224
        %v4230 = vadd.f32 %v4209, %v4226
        %s4231 = sld [smem:[#allocation2 + $0xea]]
        %v4232 = vstv %s4231
        %v4233 = vmul.f32 %v4232, %v232
        %v4234 = vmul.f32 %v4232, %v233
        %v4235 = vadd.f32 %v4229, %v4233
        %v4236 = vadd.f32 %v4230, %v4234
        %s4237 = sld [smem:[#allocation2 + $0xeb]]
        %v4238 = vstv %s4237
        %v4239 = vmul.f32 %v4238, %v232
        %v4240 = vmul.f32 %v4238, %v233
        %4243 = vrot.lane.b32.xlu0 %v4239, 127
        %v4244 = vpop.permute.xlu0 %4243
        %4245 = vrot.lane.b32.xlu0 %v4240, 127
        %v4246 = vpop.permute.xlu0 %4245
        %v4249 = vadd.f32 %v4235, %v4244
        %v4250 = vadd.f32 %v4236, %v4246
        %s4251 = sld [smem:[#allocation2 + $0xec]]
        %v4252 = vstv %s4251
        %v4253 = vmul.f32 %v4252, %v232
        %v4254 = vmul.f32 %v4252, %v233
        %4257 = vrot.lane.b32.xlu0 %v4253, 126
        %v4258 = vpop.permute.xlu0 %4257
        %4259 = vrot.lane.b32.xlu0 %v4254, 126
        %v4260 = vpop.permute.xlu0 %4259
        %v4263 = vadd.f32 %v4249, %v4258
        %v4264 = vadd.f32 %v4250, %v4260
        %s4265 = sld [smem:[#allocation2 + $0xed]]
        %v4266 = vstv %s4265
        %v4267 = vmul.f32 %v4266, %v232
        %v4268 = vmul.f32 %v4266, %v233
        %v4269 = vmul.f32 %v4266, %v234
        %v4273 = vrot.slane %v4267, 1
        %v4274 = vrot.slane %v4268, 1
        %v4275 = vsel %vm291, %v4273, %v4274
        %v4276 = vrot.slane %v4269, 1
        %v4277 = vsel %vm291, %v4274, %v4276
        %v4280 = vadd.f32 %v4263, %v4275
        %v4281 = vadd.f32 %v4264, %v4277
        %s4282 = sld [smem:[#allocation2 + $0xee]]
        %v4283 = vstv %s4282
        %v4284 = vmul.f32 %v4283, %v232
        %v4285 = vmul.f32 %v4283, %v233
        %v4286 = vmul.f32 %v4283, %v234
        %v4290 = vrot.slane %v4284, 1
        %v4291 = vrot.slane %v4285, 1
        %v4292 = vsel %vm291, %v4290, %v4291
        %v4293 = vrot.slane %v4286, 1
        %v4294 = vsel %vm291, %v4291, %v4293
        %4295 = vrot.lane.b32.xlu0 %v4292, 127
        %v4296 = vpop.permute.xlu0 %4295
        %4297 = vrot.lane.b32.xlu0 %v4294, 127
        %v4298 = vpop.permute.xlu0 %4297
        %v4301 = vadd.f32 %v4280, %v4296
        %v4302 = vadd.f32 %v4281, %v4298
        %s4303 = sld [smem:[#allocation2 + $0xef]]
        %v4304 = vstv %s4303
        %v4305 = vmul.f32 %v4304, %v232
        %v4306 = vmul.f32 %v4304, %v233
        %v4307 = vmul.f32 %v4304, %v234
        %v4311 = vrot.slane %v4305, 1
        %v4312 = vrot.slane %v4306, 1
        %v4313 = vsel %vm291, %v4311, %v4312
        %v4314 = vrot.slane %v4307, 1
        %v4315 = vsel %vm291, %v4312, %v4314
        %4316 = vrot.lane.b32.xlu0 %v4313, 126
        %v4317 = vpop.permute.xlu0 %4316
        %4318 = vrot.lane.b32.xlu0 %v4315, 126
        %v4319 = vpop.permute.xlu0 %4318
        %v4322 = vadd.f32 %v4301, %v4317
        %v4323 = vadd.f32 %v4302, %v4319
        %s4324 = sld [smem:[#allocation2 + $0xf0]]
        %v4325 = vstv %s4324
        %v4326 = vmul.f32 %v4325, %v232
        %v4327 = vmul.f32 %v4325, %v233
        %v4328 = vmul.f32 %v4325, %v234
        %v4332 = vrot.slane %v4326, 2
        %v4333 = vrot.slane %v4327, 2
        %v4334 = vsel %vm351, %v4332, %v4333
        %v4335 = vrot.slane %v4328, 2
        %v4336 = vsel %vm351, %v4333, %v4335
        %v4339 = vadd.f32 %v4322, %v4334
        %v4340 = vadd.f32 %v4323, %v4336
        %s4341 = sld [smem:[#allocation2 + $0xf1]]
        %v4342 = vstv %s4341
        %v4343 = vmul.f32 %v4342, %v232
        %v4344 = vmul.f32 %v4342, %v233
        %v4345 = vmul.f32 %v4342, %v234
        %v4349 = vrot.slane %v4343, 2
        %v4350 = vrot.slane %v4344, 2
        %v4351 = vsel %vm351, %v4349, %v4350
        %v4352 = vrot.slane %v4345, 2
        %v4353 = vsel %vm351, %v4350, %v4352
        %4354 = vrot.lane.b32.xlu0 %v4351, 127
        %v4355 = vpop.permute.xlu0 %4354
        %4356 = vrot.lane.b32.xlu0 %v4353, 127
        %v4357 = vpop.permute.xlu0 %4356
        %v4360 = vadd.f32 %v4339, %v4355
        %v4361 = vadd.f32 %v4340, %v4357
        %s4362 = sld [smem:[#allocation2 + $0xf2]]
        %v4363 = vstv %s4362
        %v4364 = vmul.f32 %v4363, %v232
        %v4365 = vmul.f32 %v4363, %v233
        %v4366 = vmul.f32 %v4363, %v234
        %v4370 = vrot.slane %v4364, 2
        %v4371 = vrot.slane %v4365, 2
        %v4372 = vsel %vm351, %v4370, %v4371
        %v4373 = vrot.slane %v4366, 2
        %v4374 = vsel %vm351, %v4371, %v4373
        %4375 = vrot.lane.b32.xlu0 %v4372, 126
        %v4376 = vpop.permute.xlu0 %4375
        %4377 = vrot.lane.b32.xlu0 %v4374, 126
        %v4378 = vpop.permute.xlu0 %4377
        %v4381 = vadd.f32 %v4360, %v4376
        %v4382 = vadd.f32 %v4361, %v4378
        %s4383 = sld [smem:[#allocation2 + $0xf3]]
        %v4384 = vstv %s4383
        %v4385 = vmul.f32 %v4384, %v236
        %v4386 = vmul.f32 %v4384, %v237
        %v4387 = vadd.f32 %v4381, %v4385
        %v4388 = vadd.f32 %v4382, %v4386
        %s4389 = sld [smem:[#allocation2 + $0xf4]]
        %v4390 = vstv %s4389
        %v4391 = vmul.f32 %v4390, %v236
        %v4392 = vmul.f32 %v4390, %v237
        %4395 = vrot.lane.b32.xlu0 %v4391, 127
        %v4396 = vpop.permute.xlu0 %4395
        %4397 = vrot.lane.b32.xlu0 %v4392, 127
        %v4398 = vpop.permute.xlu0 %4397
        %v4401 = vadd.f32 %v4387, %v4396
        %v4402 = vadd.f32 %v4388, %v4398
        %s4403 = sld [smem:[#allocation2 + $0xf5]]
        %v4404 = vstv %s4403
        %v4405 = vmul.f32 %v4404, %v236
        %v4406 = vmul.f32 %v4404, %v237
        %4409 = vrot.lane.b32.xlu0 %v4405, 126
        %v4410 = vpop.permute.xlu0 %4409
        %4411 = vrot.lane.b32.xlu0 %v4406, 126
        %v4412 = vpop.permute.xlu0 %4411
        %v4415 = vadd.f32 %v4401, %v4410
        %v4416 = vadd.f32 %v4402, %v4412
        %s4417 = sld [smem:[#allocation2 + $0xf6]]
        %v4418 = vstv %s4417
        %v4419 = vmul.f32 %v4418, %v236
        %v4420 = vmul.f32 %v4418, %v237
        %v4421 = vmul.f32 %v4418, %v238
        %v4425 = vrot.slane %v4419, 1
        %v4426 = vrot.slane %v4420, 1
        %v4427 = vsel %vm291, %v4425, %v4426
        %v4428 = vrot.slane %v4421, 1
        %v4429 = vsel %vm291, %v4426, %v4428
        %v4432 = vadd.f32 %v4415, %v4427
        %v4433 = vadd.f32 %v4416, %v4429
        %s4434 = sld [smem:[#allocation2 + $0xf7]]
        %v4435 = vstv %s4434
        %v4436 = vmul.f32 %v4435, %v236
        %v4437 = vmul.f32 %v4435, %v237
        %v4438 = vmul.f32 %v4435, %v238
        %v4442 = vrot.slane %v4436, 1
        %v4443 = vrot.slane %v4437, 1
        %v4444 = vsel %vm291, %v4442, %v4443
        %v4445 = vrot.slane %v4438, 1
        %v4446 = vsel %vm291, %v4443, %v4445
        %4447 = vrot.lane.b32.xlu0 %v4444, 127
        %v4448 = vpop.permute.xlu0 %4447
        %4449 = vrot.lane.b32.xlu0 %v4446, 127
        %v4450 = vpop.permute.xlu0 %4449
        %v4453 = vadd.f32 %v4432, %v4448
        %v4454 = vadd.f32 %v4433, %v4450
        %s4455 = sld [smem:[#allocation2 + $0xf8]]
        %v4456 = vstv %s4455
        %v4457 = vmul.f32 %v4456, %v236
        %v4458 = vmul.f32 %v4456, %v237
        %v4459 = vmul.f32 %v4456, %v238
        %v4463 = vrot.slane %v4457, 1
        %v4464 = vrot.slane %v4458, 1
        %v4465 = vsel %vm291, %v4463, %v4464
        %v4466 = vrot.slane %v4459, 1
        %v4467 = vsel %vm291, %v4464, %v4466
        %4468 = vrot.lane.b32.xlu0 %v4465, 126
        %v4469 = vpop.permute.xlu0 %4468
        %4470 = vrot.lane.b32.xlu0 %v4467, 126
        %v4471 = vpop.permute.xlu0 %4470
        %v4474 = vadd.f32 %v4453, %v4469
        %v4475 = vadd.f32 %v4454, %v4471
        %s4476 = sld [smem:[#allocation2 + $0xf9]]
        %v4477 = vstv %s4476
        %v4478 = vmul.f32 %v4477, %v236
        %v4479 = vmul.f32 %v4477, %v237
        %v4480 = vmul.f32 %v4477, %v238
        %v4484 = vrot.slane %v4478, 2
        %v4485 = vrot.slane %v4479, 2
        %v4486 = vsel %vm351, %v4484, %v4485
        %v4487 = vrot.slane %v4480, 2
        %v4488 = vsel %vm351, %v4485, %v4487
        %v4491 = vadd.f32 %v4474, %v4486
        %v4492 = vadd.f32 %v4475, %v4488
        %s4493 = sld [smem:[#allocation2 + $0xfa]]
        %v4494 = vstv %s4493
        %v4495 = vmul.f32 %v4494, %v236
        %v4496 = vmul.f32 %v4494, %v237
        %v4497 = vmul.f32 %v4494, %v238
        %v4501 = vrot.slane %v4495, 2
        %v4502 = vrot.slane %v4496, 2
        %v4503 = vsel %vm351, %v4501, %v4502
        %v4504 = vrot.slane %v4497, 2
        %v4505 = vsel %vm351, %v4502, %v4504
        %4506 = vrot.lane.b32.xlu0 %v4503, 127
        %v4507 = vpop.permute.xlu0 %4506
        %4508 = vrot.lane.b32.xlu0 %v4505, 127
        %v4509 = vpop.permute.xlu0 %4508
        %v4512 = vadd.f32 %v4491, %v4507
        %v4513 = vadd.f32 %v4492, %v4509
        %s4514 = sld [smem:[#allocation2 + $0xfb]]
        %v4515 = vstv %s4514
        %v4516 = vmul.f32 %v4515, %v236
        %v4517 = vmul.f32 %v4515, %v237
        %v4518 = vmul.f32 %v4515, %v238
        %v4522 = vrot.slane %v4516, 2
        %v4523 = vrot.slane %v4517, 2
        %v4524 = vsel %vm351, %v4522, %v4523
        %v4525 = vrot.slane %v4518, 2
        %v4526 = vsel %vm351, %v4523, %v4525
        %4527 = vrot.lane.b32.xlu0 %v4524, 126
        %v4528 = vpop.permute.xlu0 %4527
        %4529 = vrot.lane.b32.xlu0 %v4526, 126
        %v4530 = vpop.permute.xlu0 %4529
        %v4533 = vadd.f32 %v4512, %v4528
        %v4534 = vadd.f32 %v4513, %v4530
        %s4535 = sld [smem:[#allocation2 + $0xfc]]
        %v4536 = vstv %s4535
        %v4537 = vmul.f32 %v4536, %v240
        %v4538 = vmul.f32 %v4536, %v241
        %v4539 = vadd.f32 %v4533, %v4537
        %v4540 = vadd.f32 %v4534, %v4538
        %s4541 = sld [smem:[#allocation2 + $0xfd]]
        %v4542 = vstv %s4541
        %v4543 = vmul.f32 %v4542, %v240
        %v4544 = vmul.f32 %v4542, %v241
        %4547 = vrot.lane.b32.xlu0 %v4543, 127
        %v4548 = vpop.permute.xlu0 %4547
        %4549 = vrot.lane.b32.xlu0 %v4544, 127
        %v4550 = vpop.permute.xlu0 %4549
        %v4553 = vadd.f32 %v4539, %v4548
        %v4554 = vadd.f32 %v4540, %v4550
        %s4555 = sld [smem:[#allocation2 + $0xfe]]
        %v4556 = vstv %s4555
        %v4557 = vmul.f32 %v4556, %v240
        %v4558 = vmul.f32 %v4556, %v241
        %4561 = vrot.lane.b32.xlu0 %v4557, 126
        %v4562 = vpop.permute.xlu0 %4561
        %4563 = vrot.lane.b32.xlu0 %v4558, 126
        %v4564 = vpop.permute.xlu0 %4563
        %v4567 = vadd.f32 %v4553, %v4562
        %v4568 = vadd.f32 %v4554, %v4564
        %s4569 = sld [smem:[#allocation2 + $0xff]]
        %v4570 = vstv %s4569
        %v4571 = vmul.f32 %v4570, %v240
        %v4572 = vmul.f32 %v4570, %v241
        %v4573 = vmul.f32 %v4570, %v242
        %v4577 = vrot.slane %v4571, 1
        %v4578 = vrot.slane %v4572, 1
        %v4579 = vsel %vm291, %v4577, %v4578
        %v4580 = vrot.slane %v4573, 1
        %v4581 = vsel %vm291, %v4578, %v4580
        %v4584 = vadd.f32 %v4567, %v4579
        %v4585 = vadd.f32 %v4568, %v4581
        %s4586 = sld [smem:[#allocation2 + $0x100]]
        %v4587 = vstv %s4586
        %v4588 = vmul.f32 %v4587, %v240
        %v4589 = vmul.f32 %v4587, %v241
        %v4590 = vmul.f32 %v4587, %v242
        %v4594 = vrot.slane %v4588, 1
        %v4595 = vrot.slane %v4589, 1
        %v4596 = vsel %vm291, %v4594, %v4595
        %v4597 = vrot.slane %v4590, 1
        %v4598 = vsel %vm291, %v4595, %v4597
        %4599 = vrot.lane.b32.xlu0 %v4596, 127
        %v4600 = vpop.permute.xlu0 %4599
        %4601 = vrot.lane.b32.xlu0 %v4598, 127
        %v4602 = vpop.permute.xlu0 %4601
        %v4605 = vadd.f32 %v4584, %v4600
        %v4606 = vadd.f32 %v4585, %v4602
        %s4607 = sld [smem:[#allocation2 + $0x101]]
        %v4608 = vstv %s4607
        %v4609 = vmul.f32 %v4608, %v240
        %v4610 = vmul.f32 %v4608, %v241
        %v4611 = vmul.f32 %v4608, %v242
        %v4615 = vrot.slane %v4609, 1
        %v4616 = vrot.slane %v4610, 1
        %v4617 = vsel %vm291, %v4615, %v4616
        %v4618 = vrot.slane %v4611, 1
        %v4619 = vsel %vm291, %v4616, %v4618
        %4620 = vrot.lane.b32.xlu0 %v4617, 126
        %v4621 = vpop.permute.xlu0 %4620
        %4622 = vrot.lane.b32.xlu0 %v4619, 126
        %v4623 = vpop.permute.xlu0 %4622
        %v4626 = vadd.f32 %v4605, %v4621
        %v4627 = vadd.f32 %v4606, %v4623
        %s4628 = sld [smem:[#allocation2 + $0x102]]
        %v4629 = vstv %s4628
        %v4630 = vmul.f32 %v4629, %v240
        %v4631 = vmul.f32 %v4629, %v241
        %v4632 = vmul.f32 %v4629, %v242
        %v4636 = vrot.slane %v4630, 2
        %v4637 = vrot.slane %v4631, 2
        %v4638 = vsel %vm351, %v4636, %v4637
        %v4639 = vrot.slane %v4632, 2
        %v4640 = vsel %vm351, %v4637, %v4639
        %v4643 = vadd.f32 %v4626, %v4638
        %v4644 = vadd.f32 %v4627, %v4640
        %s4645 = sld [smem:[#allocation2 + $0x103]]
        %v4646 = vstv %s4645
        %v4647 = vmul.f32 %v4646, %v240
        %v4648 = vmul.f32 %v4646, %v241
        %v4649 = vmul.f32 %v4646, %v242
        %v4653 = vrot.slane %v4647, 2
        %v4654 = vrot.slane %v4648, 2
        %v4655 = vsel %vm351, %v4653, %v4654
        %v4656 = vrot.slane %v4649, 2
        %v4657 = vsel %vm351, %v4654, %v4656
        %4658 = vrot.lane.b32.xlu0 %v4655, 127
        %v4659 = vpop.permute.xlu0 %4658
        %4660 = vrot.lane.b32.xlu0 %v4657, 127
        %v4661 = vpop.permute.xlu0 %4660
        %v4664 = vadd.f32 %v4643, %v4659
        %v4665 = vadd.f32 %v4644, %v4661
        %s4666 = sld [smem:[#allocation2 + $0x104]]
        %v4667 = vstv %s4666
        %v4668 = vmul.f32 %v4667, %v240
        %v4669 = vmul.f32 %v4667, %v241
        %v4670 = vmul.f32 %v4667, %v242
        %v4674 = vrot.slane %v4668, 2
        %v4675 = vrot.slane %v4669, 2
        %v4676 = vsel %vm351, %v4674, %v4675
        %v4677 = vrot.slane %v4670, 2
        %v4678 = vsel %vm351, %v4675, %v4677
        %4679 = vrot.lane.b32.xlu0 %v4676, 126
        %v4680 = vpop.permute.xlu0 %4679
        %4681 = vrot.lane.b32.xlu0 %v4678, 126
        %v4682 = vpop.permute.xlu0 %4681
        %v4685 = vadd.f32 %v4664, %v4680
        %v4686 = vadd.f32 %v4665, %v4682
        %s4687 = sld [smem:[#allocation2 + $0x105]]
        %v4688 = vstv %s4687
        %v4689 = vmul.f32 %v4688, %v244
        %v4690 = vmul.f32 %v4688, %v245
        %v4691 = vadd.f32 %v4685, %v4689
        %v4692 = vadd.f32 %v4686, %v4690
        %s4693 = sld [smem:[#allocation2 + $0x106]]
        %v4694 = vstv %s4693
        %v4695 = vmul.f32 %v4694, %v244
        %v4696 = vmul.f32 %v4694, %v245
        %4699 = vrot.lane.b32.xlu0 %v4695, 127
        %v4700 = vpop.permute.xlu0 %4699
        %4701 = vrot.lane.b32.xlu0 %v4696, 127
        %v4702 = vpop.permute.xlu0 %4701
        %v4705 = vadd.f32 %v4691, %v4700
        %v4706 = vadd.f32 %v4692, %v4702
        %s4707 = sld [smem:[#allocation2 + $0x107]]
        %v4708 = vstv %s4707
        %v4709 = vmul.f32 %v4708, %v244
        %v4710 = vmul.f32 %v4708, %v245
        %4713 = vrot.lane.b32.xlu0 %v4709, 126
        %v4714 = vpop.permute.xlu0 %4713
        %4715 = vrot.lane.b32.xlu0 %v4710, 126
        %v4716 = vpop.permute.xlu0 %4715
        %v4719 = vadd.f32 %v4705, %v4714
        %v4720 = vadd.f32 %v4706, %v4716
        %s4721 = sld [smem:[#allocation2 + $0x108]]
        %v4722 = vstv %s4721
        %v4723 = vmul.f32 %v4722, %v244
        %v4724 = vmul.f32 %v4722, %v245
        %v4725 = vmul.f32 %v4722, %v246
        %v4729 = vrot.slane %v4723, 1
        %v4730 = vrot.slane %v4724, 1
        %v4731 = vsel %vm291, %v4729, %v4730
        %v4732 = vrot.slane %v4725, 1
        %v4733 = vsel %vm291, %v4730, %v4732
        %v4736 = vadd.f32 %v4719, %v4731
        %v4737 = vadd.f32 %v4720, %v4733
        %s4738 = sld [smem:[#allocation2 + $0x109]]
        %v4739 = vstv %s4738
        %v4740 = vmul.f32 %v4739, %v244
        %v4741 = vmul.f32 %v4739, %v245
        %v4742 = vmul.f32 %v4739, %v246
        %v4746 = vrot.slane %v4740, 1
        %v4747 = vrot.slane %v4741, 1
        %v4748 = vsel %vm291, %v4746, %v4747
        %v4749 = vrot.slane %v4742, 1
        %v4750 = vsel %vm291, %v4747, %v4749
        %4751 = vrot.lane.b32.xlu0 %v4748, 127
        %v4752 = vpop.permute.xlu0 %4751
        %4753 = vrot.lane.b32.xlu0 %v4750, 127
        %v4754 = vpop.permute.xlu0 %4753
        %v4757 = vadd.f32 %v4736, %v4752
        %v4758 = vadd.f32 %v4737, %v4754
        %s4759 = sld [smem:[#allocation2 + $0x10a]]
        %v4760 = vstv %s4759
        %v4761 = vmul.f32 %v4760, %v244
        %v4762 = vmul.f32 %v4760, %v245
        %v4763 = vmul.f32 %v4760, %v246
        %v4767 = vrot.slane %v4761, 1
        %v4768 = vrot.slane %v4762, 1
        %v4769 = vsel %vm291, %v4767, %v4768
        %v4770 = vrot.slane %v4763, 1
        %v4771 = vsel %vm291, %v4768, %v4770
        %4772 = vrot.lane.b32.xlu0 %v4769, 126
        %v4773 = vpop.permute.xlu0 %4772
        %4774 = vrot.lane.b32.xlu0 %v4771, 126
        %v4775 = vpop.permute.xlu0 %4774
        %v4778 = vadd.f32 %v4757, %v4773
        %v4779 = vadd.f32 %v4758, %v4775
        %s4780 = sld [smem:[#allocation2 + $0x10b]]
        %v4781 = vstv %s4780
        %v4782 = vmul.f32 %v4781, %v244
        %v4783 = vmul.f32 %v4781, %v245
        %v4784 = vmul.f32 %v4781, %v246
        %v4788 = vrot.slane %v4782, 2
        %v4789 = vrot.slane %v4783, 2
        %v4790 = vsel %vm351, %v4788, %v4789
        %v4791 = vrot.slane %v4784, 2
        %v4792 = vsel %vm351, %v4789, %v4791
        %v4795 = vadd.f32 %v4778, %v4790
        %v4796 = vadd.f32 %v4779, %v4792
        %s4797 = sld [smem:[#allocation2 + $0x10c]]
        %v4798 = vstv %s4797
        %v4799 = vmul.f32 %v4798, %v244
        %v4800 = vmul.f32 %v4798, %v245
        %v4801 = vmul.f32 %v4798, %v246
        %v4805 = vrot.slane %v4799, 2
        %v4806 = vrot.slane %v4800, 2
        %v4807 = vsel %vm351, %v4805, %v4806
        %v4808 = vrot.slane %v4801, 2
        %v4809 = vsel %vm351, %v4806, %v4808
        %4810 = vrot.lane.b32.xlu0 %v4807, 127
        %v4811 = vpop.permute.xlu0 %4810
        %4812 = vrot.lane.b32.xlu0 %v4809, 127
        %v4813 = vpop.permute.xlu0 %4812
        %v4816 = vadd.f32 %v4795, %v4811
        %v4817 = vadd.f32 %v4796, %v4813
        %s4818 = sld [smem:[#allocation2 + $0x10d]]
        %v4819 = vstv %s4818
        %v4820 = vmul.f32 %v4819, %v244
        %v4821 = vmul.f32 %v4819, %v245
        %v4822 = vmul.f32 %v4819, %v246
        %v4826 = vrot.slane %v4820, 2
        %v4827 = vrot.slane %v4821, 2
        %v4828 = vsel %vm351, %v4826, %v4827
        %v4829 = vrot.slane %v4822, 2
        %v4830 = vsel %vm351, %v4827, %v4829
        %4831 = vrot.lane.b32.xlu0 %v4828, 126
        %v4832 = vpop.permute.xlu0 %4831
        %4833 = vrot.lane.b32.xlu0 %v4830, 126
        %v4834 = vpop.permute.xlu0 %4833
        %v4837 = vadd.f32 %v4816, %v4832
        %v4838 = vadd.f32 %v4817, %v4834
        %v4839 = vmax.f32 %v4837, 0.0
        %v4840 = vmax.f32 %v4838, 0.0
        %s4841 = scalar_lea.vmem %s214, 64 [#allocation7]
        %4842 = vst.msk [vmem:[%s4841] sm:$0xff] %vm1165, %v4839
        %4843 = vst.msk [vmem:[%s4841 + $0x8] sm:$0xff] %vm1165, %v4840
        %s4844 = sld [smem:[#allocation5 + $0x5]]
        %v4845 = vstv %s4844
        %s4846 = sld [smem:[#allocation2 + $0x10e]]
        %v4847 = vstv %s4846
        %v4848 = vmul.f32 %v4847, %v224
        %v4849 = vmul.f32 %v4847, %v225
        %v4850 = vadd.f32 %v4845, %v4848
        %v4851 = vadd.f32 %v4845, %v4849
        %s4852 = sld [smem:[#allocation2 + $0x10f]]
        %v4853 = vstv %s4852
        %v4854 = vmul.f32 %v4853, %v224
        %v4855 = vmul.f32 %v4853, %v225
        %4858 = vrot.lane.b32.xlu0 %v4854, 127
        %v4859 = vpop.permute.xlu0 %4858
        %4860 = vrot.lane.b32.xlu0 %v4855, 127
        %v4861 = vpop.permute.xlu0 %4860
        %v4864 = vadd.f32 %v4850, %v4859
        %v4865 = vadd.f32 %v4851, %v4861
        %s4866 = sld [smem:[#allocation2 + $0x110]]
        %v4867 = vstv %s4866
        %v4868 = vmul.f32 %v4867, %v224
        %v4869 = vmul.f32 %v4867, %v225
        %4872 = vrot.lane.b32.xlu0 %v4868, 126
        %v4873 = vpop.permute.xlu0 %4872
        %4874 = vrot.lane.b32.xlu0 %v4869, 126
        %v4875 = vpop.permute.xlu0 %4874
        %v4878 = vadd.f32 %v4864, %v4873
        %v4879 = vadd.f32 %v4865, %v4875
        %s4880 = sld [smem:[#allocation2 + $0x111]]
        %v4881 = vstv %s4880
        %v4882 = vmul.f32 %v4881, %v224
        %v4883 = vmul.f32 %v4881, %v225
        %v4884 = vmul.f32 %v4881, %v226
        %v4888 = vrot.slane %v4882, 1
        %v4889 = vrot.slane %v4883, 1
        %v4890 = vsel %vm291, %v4888, %v4889
        %v4891 = vrot.slane %v4884, 1
        %v4892 = vsel %vm291, %v4889, %v4891
        %v4895 = vadd.f32 %v4878, %v4890
        %v4896 = vadd.f32 %v4879, %v4892
        %s4897 = sld [smem:[#allocation2 + $0x112]]
        %v4898 = vstv %s4897
        %v4899 = vmul.f32 %v4898, %v224
        %v4900 = vmul.f32 %v4898, %v225
        %v4901 = vmul.f32 %v4898, %v226
        %v4905 = vrot.slane %v4899, 1
        %v4906 = vrot.slane %v4900, 1
        %v4907 = vsel %vm291, %v4905, %v4906
        %v4908 = vrot.slane %v4901, 1
        %v4909 = vsel %vm291, %v4906, %v4908
        %4910 = vrot.lane.b32.xlu0 %v4907, 127
        %v4911 = vpop.permute.xlu0 %4910
        %4912 = vrot.lane.b32.xlu0 %v4909, 127
        %v4913 = vpop.permute.xlu0 %4912
        %v4916 = vadd.f32 %v4895, %v4911
        %v4917 = vadd.f32 %v4896, %v4913
        %s4918 = sld [smem:[#allocation2 + $0x113]]
        %v4919 = vstv %s4918
        %v4920 = vmul.f32 %v4919, %v224
        %v4921 = vmul.f32 %v4919, %v225
        %v4922 = vmul.f32 %v4919, %v226
        %v4926 = vrot.slane %v4920, 1
        %v4927 = vrot.slane %v4921, 1
        %v4928 = vsel %vm291, %v4926, %v4927
        %v4929 = vrot.slane %v4922, 1
        %v4930 = vsel %vm291, %v4927, %v4929
        %4931 = vrot.lane.b32.xlu0 %v4928, 126
        %v4932 = vpop.permute.xlu0 %4931
        %4933 = vrot.lane.b32.xlu0 %v4930, 126
        %v4934 = vpop.permute.xlu0 %4933
        %v4937 = vadd.f32 %v4916, %v4932
        %v4938 = vadd.f32 %v4917, %v4934
        %s4939 = sld [smem:[#allocation2 + $0x114]]
        %v4940 = vstv %s4939
        %v4941 = vmul.f32 %v4940, %v224
        %v4942 = vmul.f32 %v4940, %v225
        %v4943 = vmul.f32 %v4940, %v226
        %v4947 = vrot.slane %v4941, 2
        %v4948 = vrot.slane %v4942, 2
        %v4949 = vsel %vm351, %v4947, %v4948
        %v4950 = vrot.slane %v4943, 2
        %v4951 = vsel %vm351, %v4948, %v4950
        %v4954 = vadd.f32 %v4937, %v4949
        %v4955 = vadd.f32 %v4938, %v4951
        %s4956 = sld [smem:[#allocation2 + $0x115]]
        %v4957 = vstv %s4956
        %v4958 = vmul.f32 %v4957, %v224
        %v4959 = vmul.f32 %v4957, %v225
        %v4960 = vmul.f32 %v4957, %v226
        %v4964 = vrot.slane %v4958, 2
        %v4965 = vrot.slane %v4959, 2
        %v4966 = vsel %vm351, %v4964, %v4965
        %v4967 = vrot.slane %v4960, 2
        %v4968 = vsel %vm351, %v4965, %v4967
        %4969 = vrot.lane.b32.xlu0 %v4966, 127
        %v4970 = vpop.permute.xlu0 %4969
        %4971 = vrot.lane.b32.xlu0 %v4968, 127
        %v4972 = vpop.permute.xlu0 %4971
        %v4975 = vadd.f32 %v4954, %v4970
        %v4976 = vadd.f32 %v4955, %v4972
        %s4977 = sld [smem:[#allocation2 + $0x116]]
        %v4978 = vstv %s4977
        %v4979 = vmul.f32 %v4978, %v224
        %v4980 = vmul.f32 %v4978, %v225
        %v4981 = vmul.f32 %v4978, %v226
        %v4985 = vrot.slane %v4979, 2
        %v4986 = vrot.slane %v4980, 2
        %v4987 = vsel %vm351, %v4985, %v4986
        %v4988 = vrot.slane %v4981, 2
        %v4989 = vsel %vm351, %v4986, %v4988
        %4990 = vrot.lane.b32.xlu0 %v4987, 126
        %v4991 = vpop.permute.xlu0 %4990
        %4992 = vrot.lane.b32.xlu0 %v4989, 126
        %v4993 = vpop.permute.xlu0 %4992
        %v4996 = vadd.f32 %v4975, %v4991
        %v4997 = vadd.f32 %v4976, %v4993
        %s4998 = sld [smem:[#allocation2 + $0x117]]
        %v4999 = vstv %s4998
        %v5000 = vmul.f32 %v4999, %v228
        %v5001 = vmul.f32 %v4999, %v229
        %v5002 = vadd.f32 %v4996, %v5000
        %v5003 = vadd.f32 %v4997, %v5001
        %s5004 = sld [smem:[#allocation2 + $0x118]]
        %v5005 = vstv %s5004
        %v5006 = vmul.f32 %v5005, %v228
        %v5007 = vmul.f32 %v5005, %v229
        %5010 = vrot.lane.b32.xlu0 %v5006, 127
        %v5011 = vpop.permute.xlu0 %5010
        %5012 = vrot.lane.b32.xlu0 %v5007, 127
        %v5013 = vpop.permute.xlu0 %5012
        %v5016 = vadd.f32 %v5002, %v5011
        %v5017 = vadd.f32 %v5003, %v5013
        %s5018 = sld [smem:[#allocation2 + $0x119]]
        %v5019 = vstv %s5018
        %v5020 = vmul.f32 %v5019, %v228
        %v5021 = vmul.f32 %v5019, %v229
        %5024 = vrot.lane.b32.xlu0 %v5020, 126
        %v5025 = vpop.permute.xlu0 %5024
        %5026 = vrot.lane.b32.xlu0 %v5021, 126
        %v5027 = vpop.permute.xlu0 %5026
        %v5030 = vadd.f32 %v5016, %v5025
        %v5031 = vadd.f32 %v5017, %v5027
        %s5032 = sld [smem:[#allocation2 + $0x11a]]
        %v5033 = vstv %s5032
        %v5034 = vmul.f32 %v5033, %v228
        %v5035 = vmul.f32 %v5033, %v229
        %v5036 = vmul.f32 %v5033, %v230
        %v5040 = vrot.slane %v5034, 1
        %v5041 = vrot.slane %v5035, 1
        %v5042 = vsel %vm291, %v5040, %v5041
        %v5043 = vrot.slane %v5036, 1
        %v5044 = vsel %vm291, %v5041, %v5043
        %v5047 = vadd.f32 %v5030, %v5042
        %v5048 = vadd.f32 %v5031, %v5044
        %s5049 = sld [smem:[#allocation2 + $0x11b]]
        %v5050 = vstv %s5049
        %v5051 = vmul.f32 %v5050, %v228
        %v5052 = vmul.f32 %v5050, %v229
        %v5053 = vmul.f32 %v5050, %v230
        %v5057 = vrot.slane %v5051, 1
        %v5058 = vrot.slane %v5052, 1
        %v5059 = vsel %vm291, %v5057, %v5058
        %v5060 = vrot.slane %v5053, 1
        %v5061 = vsel %vm291, %v5058, %v5060
        %5062 = vrot.lane.b32.xlu0 %v5059, 127
        %v5063 = vpop.permute.xlu0 %5062
        %5064 = vrot.lane.b32.xlu0 %v5061, 127
        %v5065 = vpop.permute.xlu0 %5064
        %v5068 = vadd.f32 %v5047, %v5063
        %v5069 = vadd.f32 %v5048, %v5065
        %s5070 = sld [smem:[#allocation2 + $0x11c]]
        %v5071 = vstv %s5070
        %v5072 = vmul.f32 %v5071, %v228
        %v5073 = vmul.f32 %v5071, %v229
        %v5074 = vmul.f32 %v5071, %v230
        %v5078 = vrot.slane %v5072, 1
        %v5079 = vrot.slane %v5073, 1
        %v5080 = vsel %vm291, %v5078, %v5079
        %v5081 = vrot.slane %v5074, 1
        %v5082 = vsel %vm291, %v5079, %v5081
        %5083 = vrot.lane.b32.xlu0 %v5080, 126
        %v5084 = vpop.permute.xlu0 %5083
        %5085 = vrot.lane.b32.xlu0 %v5082, 126
        %v5086 = vpop.permute.xlu0 %5085
        %v5089 = vadd.f32 %v5068, %v5084
        %v5090 = vadd.f32 %v5069, %v5086
        %s5091 = sld [smem:[#allocation2 + $0x11d]]
        %v5092 = vstv %s5091
        %v5093 = vmul.f32 %v5092, %v228
        %v5094 = vmul.f32 %v5092, %v229
        %v5095 = vmul.f32 %v5092, %v230
        %v5099 = vrot.slane %v5093, 2
        %v5100 = vrot.slane %v5094, 2
        %v5101 = vsel %vm351, %v5099, %v5100
        %v5102 = vrot.slane %v5095, 2
        %v5103 = vsel %vm351, %v5100, %v5102
        %v5106 = vadd.f32 %v5089, %v5101
        %v5107 = vadd.f32 %v5090, %v5103
        %s5108 = sld [smem:[#allocation2 + $0x11e]]
        %v5109 = vstv %s5108
        %v5110 = vmul.f32 %v5109, %v228
        %v5111 = vmul.f32 %v5109, %v229
        %v5112 = vmul.f32 %v5109, %v230
        %v5116 = vrot.slane %v5110, 2
        %v5117 = vrot.slane %v5111, 2
        %v5118 = vsel %vm351, %v5116, %v5117
        %v5119 = vrot.slane %v5112, 2
        %v5120 = vsel %vm351, %v5117, %v5119
        %5121 = vrot.lane.b32.xlu0 %v5118, 127
        %v5122 = vpop.permute.xlu0 %5121
        %5123 = vrot.lane.b32.xlu0 %v5120, 127
        %v5124 = vpop.permute.xlu0 %5123
        %v5127 = vadd.f32 %v5106, %v5122
        %v5128 = vadd.f32 %v5107, %v5124
        %s5129 = sld [smem:[#allocation2 + $0x11f]]
        %v5130 = vstv %s5129
        %v5131 = vmul.f32 %v5130, %v228
        %v5132 = vmul.f32 %v5130, %v229
        %v5133 = vmul.f32 %v5130, %v230
        %v5137 = vrot.slane %v5131, 2
        %v5138 = vrot.slane %v5132, 2
        %v5139 = vsel %vm351, %v5137, %v5138
        %v5140 = vrot.slane %v5133, 2
        %v5141 = vsel %vm351, %v5138, %v5140
        %5142 = vrot.lane.b32.xlu0 %v5139, 126
        %v5143 = vpop.permute.xlu0 %5142
        %5144 = vrot.lane.b32.xlu0 %v5141, 126
        %v5145 = vpop.permute.xlu0 %5144
        %v5148 = vadd.f32 %v5127, %v5143
        %v5149 = vadd.f32 %v5128, %v5145
        %s5150 = sld [smem:[#allocation2 + $0x120]]
        %v5151 = vstv %s5150
        %v5152 = vmul.f32 %v5151, %v232
        %v5153 = vmul.f32 %v5151, %v233
        %v5154 = vadd.f32 %v5148, %v5152
        %v5155 = vadd.f32 %v5149, %v5153
        %s5156 = sld [smem:[#allocation2 + $0x121]]
        %v5157 = vstv %s5156
        %v5158 = vmul.f32 %v5157, %v232
        %v5159 = vmul.f32 %v5157, %v233
        %5162 = vrot.lane.b32.xlu0 %v5158, 127
        %v5163 = vpop.permute.xlu0 %5162
        %5164 = vrot.lane.b32.xlu0 %v5159, 127
        %v5165 = vpop.permute.xlu0 %5164
        %v5168 = vadd.f32 %v5154, %v5163
        %v5169 = vadd.f32 %v5155, %v5165
        %s5170 = sld [smem:[#allocation2 + $0x122]]
        %v5171 = vstv %s5170
        %v5172 = vmul.f32 %v5171, %v232
        %v5173 = vmul.f32 %v5171, %v233
        %5176 = vrot.lane.b32.xlu0 %v5172, 126
        %v5177 = vpop.permute.xlu0 %5176
        %5178 = vrot.lane.b32.xlu0 %v5173, 126
        %v5179 = vpop.permute.xlu0 %5178
        %v5182 = vadd.f32 %v5168, %v5177
        %v5183 = vadd.f32 %v5169, %v5179
        %s5184 = sld [smem:[#allocation2 + $0x123]]
        %v5185 = vstv %s5184
        %v5186 = vmul.f32 %v5185, %v232
        %v5187 = vmul.f32 %v5185, %v233
        %v5188 = vmul.f32 %v5185, %v234
        %v5192 = vrot.slane %v5186, 1
        %v5193 = vrot.slane %v5187, 1
        %v5194 = vsel %vm291, %v5192, %v5193
        %v5195 = vrot.slane %v5188, 1
        %v5196 = vsel %vm291, %v5193, %v5195
        %v5199 = vadd.f32 %v5182, %v5194
        %v5200 = vadd.f32 %v5183, %v5196
        %s5201 = sld [smem:[#allocation2 + $0x124]]
        %v5202 = vstv %s5201
        %v5203 = vmul.f32 %v5202, %v232
        %v5204 = vmul.f32 %v5202, %v233
        %v5205 = vmul.f32 %v5202, %v234
        %v5209 = vrot.slane %v5203, 1
        %v5210 = vrot.slane %v5204, 1
        %v5211 = vsel %vm291, %v5209, %v5210
        %v5212 = vrot.slane %v5205, 1
        %v5213 = vsel %vm291, %v5210, %v5212
        %5214 = vrot.lane.b32.xlu0 %v5211, 127
        %v5215 = vpop.permute.xlu0 %5214
        %5216 = vrot.lane.b32.xlu0 %v5213, 127
        %v5217 = vpop.permute.xlu0 %5216
        %v5220 = vadd.f32 %v5199, %v5215
        %v5221 = vadd.f32 %v5200, %v5217
        %s5222 = sld [smem:[#allocation2 + $0x125]]
        %v5223 = vstv %s5222
        %v5224 = vmul.f32 %v5223, %v232
        %v5225 = vmul.f32 %v5223, %v233
        %v5226 = vmul.f32 %v5223, %v234
        %v5230 = vrot.slane %v5224, 1
        %v5231 = vrot.slane %v5225, 1
        %v5232 = vsel %vm291, %v5230, %v5231
        %v5233 = vrot.slane %v5226, 1
        %v5234 = vsel %vm291, %v5231, %v5233
        %5235 = vrot.lane.b32.xlu0 %v5232, 126
        %v5236 = vpop.permute.xlu0 %5235
        %5237 = vrot.lane.b32.xlu0 %v5234, 126
        %v5238 = vpop.permute.xlu0 %5237
        %v5241 = vadd.f32 %v5220, %v5236
        %v5242 = vadd.f32 %v5221, %v5238
        %s5243 = sld [smem:[#allocation2 + $0x126]]
        %v5244 = vstv %s5243
        %v5245 = vmul.f32 %v5244, %v232
        %v5246 = vmul.f32 %v5244, %v233
        %v5247 = vmul.f32 %v5244, %v234
        %v5251 = vrot.slane %v5245, 2
        %v5252 = vrot.slane %v5246, 2
        %v5253 = vsel %vm351, %v5251, %v5252
        %v5254 = vrot.slane %v5247, 2
        %v5255 = vsel %vm351, %v5252, %v5254
        %v5258 = vadd.f32 %v5241, %v5253
        %v5259 = vadd.f32 %v5242, %v5255
        %s5260 = sld [smem:[#allocation2 + $0x127]]
        %v5261 = vstv %s5260
        %v5262 = vmul.f32 %v5261, %v232
        %v5263 = vmul.f32 %v5261, %v233
        %v5264 = vmul.f32 %v5261, %v234
        %v5268 = vrot.slane %v5262, 2
        %v5269 = vrot.slane %v5263, 2
        %v5270 = vsel %vm351, %v5268, %v5269
        %v5271 = vrot.slane %v5264, 2
        %v5272 = vsel %vm351, %v5269, %v5271
        %5273 = vrot.lane.b32.xlu0 %v5270, 127
        %v5274 = vpop.permute.xlu0 %5273
        %5275 = vrot.lane.b32.xlu0 %v5272, 127
        %v5276 = vpop.permute.xlu0 %5275
        %v5279 = vadd.f32 %v5258, %v5274
        %v5280 = vadd.f32 %v5259, %v5276
        %s5281 = sld [smem:[#allocation2 + $0x128]]
        %v5282 = vstv %s5281
        %v5283 = vmul.f32 %v5282, %v232
        %v5284 = vmul.f32 %v5282, %v233
        %v5285 = vmul.f32 %v5282, %v234
        %v5289 = vrot.slane %v5283, 2
        %v5290 = vrot.slane %v5284, 2
        %v5291 = vsel %vm351, %v5289, %v5290
        %v5292 = vrot.slane %v5285, 2
        %v5293 = vsel %vm351, %v5290, %v5292
        %5294 = vrot.lane.b32.xlu0 %v5291, 126
        %v5295 = vpop.permute.xlu0 %5294
        %5296 = vrot.lane.b32.xlu0 %v5293, 126
        %v5297 = vpop.permute.xlu0 %5296
        %v5300 = vadd.f32 %v5279, %v5295
        %v5301 = vadd.f32 %v5280, %v5297
        %s5302 = sld [smem:[#allocation2 + $0x129]]
        %v5303 = vstv %s5302
        %v5304 = vmul.f32 %v5303, %v236
        %v5305 = vmul.f32 %v5303, %v237
        %v5306 = vadd.f32 %v5300, %v5304
        %v5307 = vadd.f32 %v5301, %v5305
        %s5308 = sld [smem:[#allocation2 + $0x12a]]
        %v5309 = vstv %s5308
        %v5310 = vmul.f32 %v5309, %v236
        %v5311 = vmul.f32 %v5309, %v237
        %5314 = vrot.lane.b32.xlu0 %v5310, 127
        %v5315 = vpop.permute.xlu0 %5314
        %5316 = vrot.lane.b32.xlu0 %v5311, 127
        %v5317 = vpop.permute.xlu0 %5316
        %v5320 = vadd.f32 %v5306, %v5315
        %v5321 = vadd.f32 %v5307, %v5317
        %s5322 = sld [smem:[#allocation2 + $0x12b]]
        %v5323 = vstv %s5322
        %v5324 = vmul.f32 %v5323, %v236
        %v5325 = vmul.f32 %v5323, %v237
        %5328 = vrot.lane.b32.xlu0 %v5324, 126
        %v5329 = vpop.permute.xlu0 %5328
        %5330 = vrot.lane.b32.xlu0 %v5325, 126
        %v5331 = vpop.permute.xlu0 %5330
        %v5334 = vadd.f32 %v5320, %v5329
        %v5335 = vadd.f32 %v5321, %v5331
        %s5336 = sld [smem:[#allocation2 + $0x12c]]
        %v5337 = vstv %s5336
        %v5338 = vmul.f32 %v5337, %v236
        %v5339 = vmul.f32 %v5337, %v237
        %v5340 = vmul.f32 %v5337, %v238
        %v5344 = vrot.slane %v5338, 1
        %v5345 = vrot.slane %v5339, 1
        %v5346 = vsel %vm291, %v5344, %v5345
        %v5347 = vrot.slane %v5340, 1
        %v5348 = vsel %vm291, %v5345, %v5347
        %v5351 = vadd.f32 %v5334, %v5346
        %v5352 = vadd.f32 %v5335, %v5348
        %s5353 = sld [smem:[#allocation2 + $0x12d]]
        %v5354 = vstv %s5353
        %v5355 = vmul.f32 %v5354, %v236
        %v5356 = vmul.f32 %v5354, %v237
        %v5357 = vmul.f32 %v5354, %v238
        %v5361 = vrot.slane %v5355, 1
        %v5362 = vrot.slane %v5356, 1
        %v5363 = vsel %vm291, %v5361, %v5362
        %v5364 = vrot.slane %v5357, 1
        %v5365 = vsel %vm291, %v5362, %v5364
        %5366 = vrot.lane.b32.xlu0 %v5363, 127
        %v5367 = vpop.permute.xlu0 %5366
        %5368 = vrot.lane.b32.xlu0 %v5365, 127
        %v5369 = vpop.permute.xlu0 %5368
        %v5372 = vadd.f32 %v5351, %v5367
        %v5373 = vadd.f32 %v5352, %v5369
        %s5374 = sld [smem:[#allocation2 + $0x12e]]
        %v5375 = vstv %s5374
        %v5376 = vmul.f32 %v5375, %v236
        %v5377 = vmul.f32 %v5375, %v237
        %v5378 = vmul.f32 %v5375, %v238
        %v5382 = vrot.slane %v5376, 1
        %v5383 = vrot.slane %v5377, 1
        %v5384 = vsel %vm291, %v5382, %v5383
        %v5385 = vrot.slane %v5378, 1
        %v5386 = vsel %vm291, %v5383, %v5385
        %5387 = vrot.lane.b32.xlu0 %v5384, 126
        %v5388 = vpop.permute.xlu0 %5387
        %5389 = vrot.lane.b32.xlu0 %v5386, 126
        %v5390 = vpop.permute.xlu0 %5389
        %v5393 = vadd.f32 %v5372, %v5388
        %v5394 = vadd.f32 %v5373, %v5390
        %s5395 = sld [smem:[#allocation2 + $0x12f]]
        %v5396 = vstv %s5395
        %v5397 = vmul.f32 %v5396, %v236
        %v5398 = vmul.f32 %v5396, %v237
        %v5399 = vmul.f32 %v5396, %v238
        %v5403 = vrot.slane %v5397, 2
        %v5404 = vrot.slane %v5398, 2
        %v5405 = vsel %vm351, %v5403, %v5404
        %v5406 = vrot.slane %v5399, 2
        %v5407 = vsel %vm351, %v5404, %v5406
        %v5410 = vadd.f32 %v5393, %v5405
        %v5411 = vadd.f32 %v5394, %v5407
        %s5412 = sld [smem:[#allocation2 + $0x130]]
        %v5413 = vstv %s5412
        %v5414 = vmul.f32 %v5413, %v236
        %v5415 = vmul.f32 %v5413, %v237
        %v5416 = vmul.f32 %v5413, %v238
        %v5420 = vrot.slane %v5414, 2
        %v5421 = vrot.slane %v5415, 2
        %v5422 = vsel %vm351, %v5420, %v5421
        %v5423 = vrot.slane %v5416, 2
        %v5424 = vsel %vm351, %v5421, %v5423
        %5425 = vrot.lane.b32.xlu0 %v5422, 127
        %v5426 = vpop.permute.xlu0 %5425
        %5427 = vrot.lane.b32.xlu0 %v5424, 127
        %v5428 = vpop.permute.xlu0 %5427
        %v5431 = vadd.f32 %v5410, %v5426
        %v5432 = vadd.f32 %v5411, %v5428
        %s5433 = sld [smem:[#allocation2 + $0x131]]
        %v5434 = vstv %s5433
        %v5435 = vmul.f32 %v5434, %v236
        %v5436 = vmul.f32 %v5434, %v237
        %v5437 = vmul.f32 %v5434, %v238
        %v5441 = vrot.slane %v5435, 2
        %v5442 = vrot.slane %v5436, 2
        %v5443 = vsel %vm351, %v5441, %v5442
        %v5444 = vrot.slane %v5437, 2
        %v5445 = vsel %vm351, %v5442, %v5444
        %5446 = vrot.lane.b32.xlu0 %v5443, 126
        %v5447 = vpop.permute.xlu0 %5446
        %5448 = vrot.lane.b32.xlu0 %v5445, 126
        %v5449 = vpop.permute.xlu0 %5448
        %v5452 = vadd.f32 %v5431, %v5447
        %v5453 = vadd.f32 %v5432, %v5449
        %s5454 = sld [smem:[#allocation2 + $0x132]]
        %v5455 = vstv %s5454
        %v5456 = vmul.f32 %v5455, %v240
        %v5457 = vmul.f32 %v5455, %v241
        %v5458 = vadd.f32 %v5452, %v5456
        %v5459 = vadd.f32 %v5453, %v5457
        %s5460 = sld [smem:[#allocation2 + $0x133]]
        %v5461 = vstv %s5460
        %v5462 = vmul.f32 %v5461, %v240
        %v5463 = vmul.f32 %v5461, %v241
        %5466 = vrot.lane.b32.xlu0 %v5462, 127
        %v5467 = vpop.permute.xlu0 %5466
        %5468 = vrot.lane.b32.xlu0 %v5463, 127
        %v5469 = vpop.permute.xlu0 %5468
        %v5472 = vadd.f32 %v5458, %v5467
        %v5473 = vadd.f32 %v5459, %v5469
        %s5474 = sld [smem:[#allocation2 + $0x134]]
        %v5475 = vstv %s5474
        %v5476 = vmul.f32 %v5475, %v240
        %v5477 = vmul.f32 %v5475, %v241
        %5480 = vrot.lane.b32.xlu0 %v5476, 126
        %v5481 = vpop.permute.xlu0 %5480
        %5482 = vrot.lane.b32.xlu0 %v5477, 126
        %v5483 = vpop.permute.xlu0 %5482
        %v5486 = vadd.f32 %v5472, %v5481
        %v5487 = vadd.f32 %v5473, %v5483
        %s5488 = sld [smem:[#allocation2 + $0x135]]
        %v5489 = vstv %s5488
        %v5490 = vmul.f32 %v5489, %v240
        %v5491 = vmul.f32 %v5489, %v241
        %v5492 = vmul.f32 %v5489, %v242
        %v5496 = vrot.slane %v5490, 1
        %v5497 = vrot.slane %v5491, 1
        %v5498 = vsel %vm291, %v5496, %v5497
        %v5499 = vrot.slane %v5492, 1
        %v5500 = vsel %vm291, %v5497, %v5499
        %v5503 = vadd.f32 %v5486, %v5498
        %v5504 = vadd.f32 %v5487, %v5500
        %s5505 = sld [smem:[#allocation2 + $0x136]]
        %v5506 = vstv %s5505
        %v5507 = vmul.f32 %v5506, %v240
        %v5508 = vmul.f32 %v5506, %v241
        %v5509 = vmul.f32 %v5506, %v242
        %v5513 = vrot.slane %v5507, 1
        %v5514 = vrot.slane %v5508, 1
        %v5515 = vsel %vm291, %v5513, %v5514
        %v5516 = vrot.slane %v5509, 1
        %v5517 = vsel %vm291, %v5514, %v5516
        %5518 = vrot.lane.b32.xlu0 %v5515, 127
        %v5519 = vpop.permute.xlu0 %5518
        %5520 = vrot.lane.b32.xlu0 %v5517, 127
        %v5521 = vpop.permute.xlu0 %5520
        %v5524 = vadd.f32 %v5503, %v5519
        %v5525 = vadd.f32 %v5504, %v5521
        %s5526 = sld [smem:[#allocation2 + $0x137]]
        %v5527 = vstv %s5526
        %v5528 = vmul.f32 %v5527, %v240
        %v5529 = vmul.f32 %v5527, %v241
        %v5530 = vmul.f32 %v5527, %v242
        %v5534 = vrot.slane %v5528, 1
        %v5535 = vrot.slane %v5529, 1
        %v5536 = vsel %vm291, %v5534, %v5535
        %v5537 = vrot.slane %v5530, 1
        %v5538 = vsel %vm291, %v5535, %v5537
        %5539 = vrot.lane.b32.xlu0 %v5536, 126
        %v5540 = vpop.permute.xlu0 %5539
        %5541 = vrot.lane.b32.xlu0 %v5538, 126
        %v5542 = vpop.permute.xlu0 %5541
        %v5545 = vadd.f32 %v5524, %v5540
        %v5546 = vadd.f32 %v5525, %v5542
        %s5547 = sld [smem:[#allocation2 + $0x138]]
        %v5548 = vstv %s5547
        %v5549 = vmul.f32 %v5548, %v240
        %v5550 = vmul.f32 %v5548, %v241
        %v5551 = vmul.f32 %v5548, %v242
        %v5555 = vrot.slane %v5549, 2
        %v5556 = vrot.slane %v5550, 2
        %v5557 = vsel %vm351, %v5555, %v5556
        %v5558 = vrot.slane %v5551, 2
        %v5559 = vsel %vm351, %v5556, %v5558
        %v5562 = vadd.f32 %v5545, %v5557
        %v5563 = vadd.f32 %v5546, %v5559
        %s5564 = sld [smem:[#allocation2 + $0x139]]
        %v5565 = vstv %s5564
        %v5566 = vmul.f32 %v5565, %v240
        %v5567 = vmul.f32 %v5565, %v241
        %v5568 = vmul.f32 %v5565, %v242
        %v5572 = vrot.slane %v5566, 2
        %v5573 = vrot.slane %v5567, 2
        %v5574 = vsel %vm351, %v5572, %v5573
        %v5575 = vrot.slane %v5568, 2
        %v5576 = vsel %vm351, %v5573, %v5575
        %5577 = vrot.lane.b32.xlu0 %v5574, 127
        %v5578 = vpop.permute.xlu0 %5577
        %5579 = vrot.lane.b32.xlu0 %v5576, 127
        %v5580 = vpop.permute.xlu0 %5579
        %v5583 = vadd.f32 %v5562, %v5578
        %v5584 = vadd.f32 %v5563, %v5580
        %s5585 = sld [smem:[#allocation2 + $0x13a]]
        %v5586 = vstv %s5585
        %v5587 = vmul.f32 %v5586, %v240
        %v5588 = vmul.f32 %v5586, %v241
        %v5589 = vmul.f32 %v5586, %v242
        %v5593 = vrot.slane %v5587, 2
        %v5594 = vrot.slane %v5588, 2
        %v5595 = vsel %vm351, %v5593, %v5594
        %v5596 = vrot.slane %v5589, 2
        %v5597 = vsel %vm351, %v5594, %v5596
        %5598 = vrot.lane.b32.xlu0 %v5595, 126
        %v5599 = vpop.permute.xlu0 %5598
        %5600 = vrot.lane.b32.xlu0 %v5597, 126
        %v5601 = vpop.permute.xlu0 %5600
        %v5604 = vadd.f32 %v5583, %v5599
        %v5605 = vadd.f32 %v5584, %v5601
        %s5606 = sld [smem:[#allocation2 + $0x13b]]
        %v5607 = vstv %s5606
        %v5608 = vmul.f32 %v5607, %v244
        %v5609 = vmul.f32 %v5607, %v245
        %v5610 = vadd.f32 %v5604, %v5608
        %v5611 = vadd.f32 %v5605, %v5609
        %s5612 = sld [smem:[#allocation2 + $0x13c]]
        %v5613 = vstv %s5612
        %v5614 = vmul.f32 %v5613, %v244
        %v5615 = vmul.f32 %v5613, %v245
        %5618 = vrot.lane.b32.xlu0 %v5614, 127
        %v5619 = vpop.permute.xlu0 %5618
        %5620 = vrot.lane.b32.xlu0 %v5615, 127
        %v5621 = vpop.permute.xlu0 %5620
        %v5624 = vadd.f32 %v5610, %v5619
        %v5625 = vadd.f32 %v5611, %v5621
        %s5626 = sld [smem:[#allocation2 + $0x13d]]
        %v5627 = vstv %s5626
        %v5628 = vmul.f32 %v5627, %v244
        %v5629 = vmul.f32 %v5627, %v245
        %5632 = vrot.lane.b32.xlu0 %v5628, 126
        %v5633 = vpop.permute.xlu0 %5632
        %5634 = vrot.lane.b32.xlu0 %v5629, 126
        %v5635 = vpop.permute.xlu0 %5634
        %v5638 = vadd.f32 %v5624, %v5633
        %v5639 = vadd.f32 %v5625, %v5635
        %s5640 = sld [smem:[#allocation2 + $0x13e]]
        %v5641 = vstv %s5640
        %v5642 = vmul.f32 %v5641, %v244
        %v5643 = vmul.f32 %v5641, %v245
        %v5644 = vmul.f32 %v5641, %v246
        %v5648 = vrot.slane %v5642, 1
        %v5649 = vrot.slane %v5643, 1
        %v5650 = vsel %vm291, %v5648, %v5649
        %v5651 = vrot.slane %v5644, 1
        %v5652 = vsel %vm291, %v5649, %v5651
        %v5655 = vadd.f32 %v5638, %v5650
        %v5656 = vadd.f32 %v5639, %v5652
        %s5657 = sld [smem:[#allocation2 + $0x13f]]
        %v5658 = vstv %s5657
        %v5659 = vmul.f32 %v5658, %v244
        %v5660 = vmul.f32 %v5658, %v245
        %v5661 = vmul.f32 %v5658, %v246
        %v5665 = vrot.slane %v5659, 1
        %v5666 = vrot.slane %v5660, 1
        %v5667 = vsel %vm291, %v5665, %v5666
        %v5668 = vrot.slane %v5661, 1
        %v5669 = vsel %vm291, %v5666, %v5668
        %5670 = vrot.lane.b32.xlu0 %v5667, 127
        %v5671 = vpop.permute.xlu0 %5670
        %5672 = vrot.lane.b32.xlu0 %v5669, 127
        %v5673 = vpop.permute.xlu0 %5672
        %v5676 = vadd.f32 %v5655, %v5671
        %v5677 = vadd.f32 %v5656, %v5673
        %s5678 = sld [smem:[#allocation2 + $0x140]]
        %v5679 = vstv %s5678
        %v5680 = vmul.f32 %v5679, %v244
        %v5681 = vmul.f32 %v5679, %v245
        %v5682 = vmul.f32 %v5679, %v246
        %v5686 = vrot.slane %v5680, 1
        %v5687 = vrot.slane %v5681, 1
        %v5688 = vsel %vm291, %v5686, %v5687
        %v5689 = vrot.slane %v5682, 1
        %v5690 = vsel %vm291, %v5687, %v5689
        %5691 = vrot.lane.b32.xlu0 %v5688, 126
        %v5692 = vpop.permute.xlu0 %5691
        %5693 = vrot.lane.b32.xlu0 %v5690, 126
        %v5694 = vpop.permute.xlu0 %5693
        %v5697 = vadd.f32 %v5676, %v5692
        %v5698 = vadd.f32 %v5677, %v5694
        %s5699 = sld [smem:[#allocation2 + $0x141]]
        %v5700 = vstv %s5699
        %v5701 = vmul.f32 %v5700, %v244
        %v5702 = vmul.f32 %v5700, %v245
        %v5703 = vmul.f32 %v5700, %v246
        %v5707 = vrot.slane %v5701, 2
        %v5708 = vrot.slane %v5702, 2
        %v5709 = vsel %vm351, %v5707, %v5708
        %v5710 = vrot.slane %v5703, 2
        %v5711 = vsel %vm351, %v5708, %v5710
        %v5714 = vadd.f32 %v5697, %v5709
        %v5715 = vadd.f32 %v5698, %v5711
        %s5716 = sld [smem:[#allocation2 + $0x142]]
        %v5717 = vstv %s5716
        %v5718 = vmul.f32 %v5717, %v244
        %v5719 = vmul.f32 %v5717, %v245
        %v5720 = vmul.f32 %v5717, %v246
        %v5724 = vrot.slane %v5718, 2
        %v5725 = vrot.slane %v5719, 2
        %v5726 = vsel %vm351, %v5724, %v5725
        %v5727 = vrot.slane %v5720, 2
        %v5728 = vsel %vm351, %v5725, %v5727
        %5729 = vrot.lane.b32.xlu0 %v5726, 127
        %v5730 = vpop.permute.xlu0 %5729
        %5731 = vrot.lane.b32.xlu0 %v5728, 127
        %v5732 = vpop.permute.xlu0 %5731
        %v5735 = vadd.f32 %v5714, %v5730
        %v5736 = vadd.f32 %v5715, %v5732
        %s5737 = sld [smem:[#allocation2 + $0x143]]
        %v5738 = vstv %s5737
        %v5739 = vmul.f32 %v5738, %v244
        %v5740 = vmul.f32 %v5738, %v245
        %v5741 = vmul.f32 %v5738, %v246
        %v5745 = vrot.slane %v5739, 2
        %v5746 = vrot.slane %v5740, 2
        %v5747 = vsel %vm351, %v5745, %v5746
        %v5748 = vrot.slane %v5741, 2
        %v5749 = vsel %vm351, %v5746, %v5748
        %5750 = vrot.lane.b32.xlu0 %v5747, 126
        %v5751 = vpop.permute.xlu0 %5750
        %5752 = vrot.lane.b32.xlu0 %v5749, 126
        %v5753 = vpop.permute.xlu0 %5752
        %v5756 = vadd.f32 %v5735, %v5751
        %v5757 = vadd.f32 %v5736, %v5753
        %v5758 = vmax.f32 %v5756, 0.0
        %v5759 = vmax.f32 %v5757, 0.0
        %s5760 = scalar_lea.vmem %s214, 80 [#allocation7]
        %5761 = vst.msk [vmem:[%s5760] sm:$0xff] %vm1165, %v5758
        %5762 = vst.msk [vmem:[%s5760 + $0x8] sm:$0xff] %vm1165, %v5759
        %s5763 = sand.u32 %s111, 1
        %s5764 = scalar_lea.sflag [#allocation3], %s5763
        %s5765 = sand.u32 %s111, 1
        %s5766 = smul.addr %s5765, 96
        %s5767 = scalar_lea.vmem [#allocation7], %s5766
        // Predicated region
        $region41: #{tpu_custom_call.1} parent=31 // pred_check
          %p5768 = pneg %p121
        $region42: #{tpu_custom_call.1} parent=31 // pred_check_branch
          %5770 = sbr.rel (%p5768) target = $region44
        $region43: #{tpu_custom_call.1} parent=31 // pred_region
          %s5772 = ssub.s32 1536, 1536
          %5773 = vsyncadd %s5764, %s5772
          %s5774 = smul.addr %s24, 2
          %s5775 = smul.addr %s23, 12
          %s5776 = sadd.s32 %s5774, %s5775
          %s5777 = smul.addr %s5776, 128
          %s5778 = scalar_lea.hbm %s3, %s5777
          %s5779 = sshll.u32 %s5767, 4
          %s5780 = int_to_ptr.vmem [resolvable:$true] %s5779
          %5785 = dma.vmem_to_hbm [thread:$0]  %s5780, 1536, %s5778, %s5764, 128, 128, 8
        $region44: #{tpu_custom_call.1} parent=31 // pred_fallthru
          _
      $region32: #{tpu_custom_call.1} parent=5 // pred_fallthru
        _
      %p5786 = scmp.le.s32.totalorder 2, %s14
      // Predicated region
      $region45: #{tpu_custom_call.1} parent=5 // pred_check
        %p5787 = pneg %p5786
      $region46: #{tpu_custom_call.1} parent=5 // pred_check_branch
        %5789 = sbr.rel (%p5787) target = $region48
      $region47: #{tpu_custom_call.1} parent=5 // pred_region
        %s5790 = ssub.s32 %s14, 2
        // Predicated region
        $region49: #{tpu_custom_call.1} parent=47 // pred_check
          %p5791 = pneg %p127
        $region50: #{tpu_custom_call.1} parent=47 // pred_check_branch
          %5793 = sbr.rel (%p5791) target = $region52
        $region51: #{tpu_custom_call.1} parent=47 // pred_region
          %s5794 = sand.u32 %s112, 1
          %s5795 = scalar_lea.sflag [#allocation3], %s5794
          %s5796 = sand.u32 %s112, 1
          %s5797 = smul.addr %s5796, 96
          %s5798 = scalar_lea.vmem [#allocation7], %s5797
          %5799 = dma.done %s5795, 1536
        $region52: #{tpu_custom_call.1} parent=47 // pred_fallthru
          _
      $region48: #{tpu_custom_call.1} parent=5 // pred_fallthru
        _
    $region6: #{tpu_custom_call.1} parent=1 // loop_footer
      %s18 = sadd.s32 1, %s14
    $region7: #{tpu_custom_call.1} parent=1 // loop_footer_branch
      %13 = sbr.rel target = $region3
    $region8: #{tpu_custom_call.1} parent=1 // loop_exit
      _
    %5800 = vsyncpa [#allocation3], 1
    %s5801 = scalar_lea.sflag [#allocation3], 1
    %5802 = vsyncpa %s5801, 1
    %5803 = vsyncpa [#allocation4], 1
    %s5804 = scalar_lea.sflag [#allocation4], 1
    %5805 = vsyncpa %s5804, 1
    %5806 = vsyncpa [#allocation6], 1

</llo_original>
